<compile_context>
chip_gen: v5e
topology: v5e:2x2
jax: 0.10.0
libtpu: 0.0.40
codegen_flags: <defaults>
</compile_context>

<pallas_src>
import numpy as np

import jax
import jax.numpy as jnp
from jax import lax
from jax.experimental import pallas as pl
from jax.experimental.pallas import tpu as pltpu


# ---------------------------------------------------------------------------
# Static geometry (fixed by the architecture: linear1 expects 7*7*32 features).
# ---------------------------------------------------------------------------
K = 5                       # conv kernel size (both convs), padding = 2
H1 = W1 = 28                # conv1 spatial size
H2 = W2 = 14                # conv2 spatial size (after pool1)
H3 = W3 = 7                 # spatial size after pool2
C1, OC1 = 1, 16
C2, OC2 = 16, 32
L1 = H1 * W1                # 784  pixels per image at conv1
L2 = H2 * W2                # 196  pixels per image at conv2
L3 = H3 * W3                # 49   pixels per image after pool2
PAD1 = 64                   # lane padding for conv1 input  (>= 2*W1 + 2 = 58)
PAD2 = 32                   # lane padding for conv2 input  (>= 2*W2 + 2 = 30)
TR1 = L1 - W1 - 1           # 755  truncated slab length for pool1 selection
TR2 = L2 - W2 - 1           # 181  truncated slab length for pool2 selection


# ---------------------------------------------------------------------------
# Constant helpers (built once with numpy; become compile-time constants).
# ---------------------------------------------------------------------------
def _conv_shifts(width):
    """Flattened-pixel shift for every (ky, kx) tap, PyTorch (ky outer) order."""
    return [(ky - K // 2) * width + (kx - K // 2)
            for ky in range(K) for kx in range(K)]


def _conv_mask(h, w):
    """(25, h*w) 0/1 mask: which shifted pixels are inside the zero-padded image."""
    hh, ww = np.meshgrid(np.arange(h), np.arange(w), indexing="ij")
    rows = []
    for ky in range(K):
        for kx in range(K):
            dy, dx = ky - K // 2, kx - K // 2
            ok = ((hh + dy >= 0) & (hh + dy < h) &
                  (ww + dx >= 0) & (ww + dx < w))
            rows.append(ok.reshape(-1))
    return np.stack(rows).astype(np.float32)


def _pool_select(h, w):
    """(h*w - w - 1, (h/2)*(w/2)) 0/1 matrix picking the 2x2-pool anchor pixels."""
    trunc = h * w - w - 1
    hp, wp = h // 2, w // 2
    sel = np.zeros((trunc, hp * wp), np.float32)
    for i in range(hp):
        for j in range(wp):
            sel[2 * i * w + 2 * j, i * wp + j] = 1.0
    return sel


_MASK1 = _conv_mask(H1, W1)     # (25, 784)
_MASK2 = _conv_mask(H2, W2)     # (25, 196)
_SEL1 = _pool_select(H1, W1)    # (755, 196)
_SEL2 = _pool_select(H2, W2)    # (181, 49)


# ---------------------------------------------------------------------------
# The fused Pallas kernel: one batch element per grid step, all in VMEM.
# ---------------------------------------------------------------------------
def _lenet_kernel(x_ref, w1_ref, b1_ref, m1_ref, s1_ref,
                  w2_ref, b2_ref, m2_ref, s2_ref,
                  wl1_ref, bl1_ref, wl2_ref, bl2_ref, wl3_ref, bl3_ref,
                  o_ref,
                  p1_ref, xin2_ref, p2_ref, lin_ref):
    f32 = jnp.float32

    def maxpool(y, sel_ref, width, trunc):
        # 2x2 / stride-2 max pool of a (C, H*W) slab: max of 4 shifted slabs,
        # compacted to (C, (H/2)*(W/2)) with a constant 0/1 matrix on the MXU.
        sel = sel_ref[...]
        out = None
        for off in (0, 1, width, width + 1):
            picked = jnp.dot(y[:, off:off + trunc], sel,
                             preferred_element_type=f32)
            out = picked if out is None else jnp.maximum(out, picked)
        return out

    # ---------------- conv1: Conv2d(1 -> 16, k=5, p=2) ----------------
    xrow = x_ref[...].reshape(1, PAD1 + L1 + PAD1)                    # (1, 912)
    for tap, shift in enumerate(_conv_shifts(W1)):
        patch = (xrow[:, PAD1 + shift: PAD1 + shift + L1]
                 * m1_ref[pl.ds(tap, 1), :])                          # (1, 784)
        p1_ref[pl.ds(tap * C1, C1), :] = patch
    y1 = (jnp.dot(w1_ref[...], p1_ref[...], preferred_element_type=f32)
          + b1_ref[...])                                              # (16, 784)

    # ---------------- maxpool1 + zero-padded conv2 input ----------------
    pooled1 = maxpool(y1, s1_ref, W1, TR1)                            # (16, 196)
    xin2_ref[...] = jnp.zeros_like(xin2_ref)
    xin2_ref[:, PAD2:PAD2 + L2] = pooled1

    # ---------------- conv2: Conv2d(16 -> 32, k=5, p=2) ----------------
    for tap, shift in enumerate(_conv_shifts(W2)):
        patch = (xin2_ref[:, pl.ds(PAD2 + shift, L2)]
                 * m2_ref[pl.ds(tap, 1), :])                          # (16, 196)
        p2_ref[pl.ds(tap * C2, C2), :] = patch
    y2 = (jnp.dot(w2_ref[...], p2_ref[...], preferred_element_type=f32)
          + b2_ref[...])                                              # (32, 196)

    # ---------------- maxpool2 + flatten in PyTorch NCHW order ----------------
    pooled2 = maxpool(y2, s2_ref, W2, TR2)                            # (32, 49)
    for c in range(OC2):
        lin_ref[:, c * L3:(c + 1) * L3] = pooled2[c:c + 1, :]

    # ---------------- linear1 -> linear2 -> out ----------------
    # Weights consumed in their native (out_features, in_features) layout:
    # contracting dim 1 of both operands == x @ W.T with no runtime transpose.
    dn = (((1,), (1,)), ((), ()))
    h = lin_ref[...]                                                  # (1, 1568)
    h = lax.dot_general(h, wl1_ref[...], dn, preferred_element_type=f32) + bl1_ref[...]
    h = lax.dot_general(h, wl2_ref[...], dn, preferred_element_type=f32) + bl2_ref[...]
    h = lax.dot_general(h, wl3_ref[...], dn, preferred_element_type=f32) + bl3_ref[...]
    o_ref[...] = h.reshape(1, 1, 10)


# ---------------------------------------------------------------------------
# Wrapper: one pallas_call for the whole network.
# ---------------------------------------------------------------------------
def _full_spec(shape):
    shape = tuple(int(d) for d in shape)
    return pl.BlockSpec(shape, lambda i: (0,) * len(shape))


def lenet_forward(params, x):
    """Forward pass of `_LeNet`: x (B, 1, 28, 28) NCHW  ->  logits (B, 10)."""
    B = x.shape[0]
    assert x.shape[1:] == (1, H1, W1)

    # Trace-time glue on the raw input / tiny weights only (no activation ever
    # round-trips through HBM between stages).
    x_pad = jnp.pad(x.reshape(B, 1, L1), ((0, 0), (0, 0), (PAD1, PAD1)))  # (B,1,912)
    w1m = params["conv1_w"].reshape(OC1, C1 * K * K)                       # (16, 25)
    b1c = params["conv1_b"].reshape(OC1, 1)
    # conv2 weight columns in (tap-major, channel-minor) order to match the
    # in-kernel patch rows (tap*16 + c).
    w2m = params["conv2_w"].transpose(0, 2, 3, 1).reshape(OC2, K * K * C2)  # (32, 400)
    b2c = params["conv2_b"].reshape(OC2, 1)
    bl1 = params["lin1_b"].reshape(1, -1)
    bl2 = params["lin2_b"].reshape(1, -1)
    bl3 = params["out_b"].reshape(1, -1)

    m1, m2 = jnp.asarray(_MASK1), jnp.asarray(_MASK2)
    s1, s2 = jnp.asarray(_SEL1), jnp.asarray(_SEL2)

    operands = (x_pad, w1m, b1c, m1, s1, w2m, b2c, m2, s2,
                params["lin1_w"], bl1, params["lin2_w"], bl2,
                params["out_w"], bl3)

    in_specs = [pl.BlockSpec((1, 1, PAD1 + L1 + PAD1), lambda i: (i, 0, 0))]
    in_specs += [_full_spec(op.shape) for op in operands[1:]]
    out_specs = pl.BlockSpec((1, 1, 10), lambda i: (i, 0, 0))

    scratch_shapes = [
        pltpu.VMEM((K * K * C1, L1), jnp.float32),          # conv1 im2col patches
        pltpu.VMEM((C2, PAD2 + L2 + PAD2), jnp.float32),    # zero-padded conv2 input
        pltpu.VMEM((K * K * C2, L2), jnp.float32),          # conv2 im2col patches
        pltpu.VMEM((1, OC2 * L3), jnp.float32),             # flattened linear input
    ]

    cp_cls = (getattr(pltpu, "CompilerParams", None)
              or getattr(pltpu, "TPUCompilerParams", None))
    compiler_params = (cp_cls(dimension_semantics=("parallel",))
                       if cp_cls is not None else None)

    out = pl.pallas_call(
        _lenet_kernel,
        out_shape=jax.ShapeDtypeStruct((B, 1, 10), jnp.float32),
        grid=(B,),
        in_specs=in_specs,
        out_specs=out_specs,
        scratch_shapes=scratch_shapes,
        compiler_params=compiler_params,
    )(*operands)
    return out.reshape(B, 10)


# ---------------------------------------------------------------------------
# Plain-JAX reference (for in-script verification) and parameter init.
# ---------------------------------------------------------------------------
def ref_forward(params, x):
    def conv(z, w, b):
        y = lax.conv_general_dilated(
            z, w, window_strides=(1, 1), padding=((2, 2), (2, 2)),
            dimension_numbers=("NCHW", "OIHW", "NCHW"))
        return y + b[None, :, None, None]

    def pool(z):
        b, c, h, w = z.shape
        return z.reshape(b, c, h // 2, 2, w // 2, 2).max(axis=(3, 5))

    y = pool(conv(x, params["conv1_w"], params["conv1_b"]))
    y = pool(conv(y, params["conv2_w"], params["conv2_b"]))
    y = y.reshape(y.shape[0], -1)
    y = y @ params["lin1_w"].T + params["lin1_b"]
    y = y @ params["lin2_w"].T + params["lin2_b"]
    y = y @ params["out_w"].T + params["out_b"]
    return y


def init_params(key):
    def u(k, shape, fan_in):
        bound = 1.0 / jnp.sqrt(jnp.float32(fan_in))
        return jax.random.uniform(k, shape, jnp.float32, -bound, bound)

    ks = jax.random.split(key, 10)
    return {
        "conv1_w": u(ks[0], (OC1, C1, K, K), C1 * K * K),
        "conv1_b": u(ks[1], (OC1,), C1 * K * K),
        "conv2_w": u(ks[2], (OC2, C2, K, K), C2 * K * K),
        "conv2_b": u(ks[3], (OC2,), C2 * K * K),
        "lin1_w": u(ks[4], (120, OC2 * L3), OC2 * L3),
        "lin1_b": u(ks[5], (120,), OC2 * L3),
        "lin2_w": u(ks[6], (84, 120), 120),
        "lin2_b": u(ks[7], (84,), 120),
        "out_w": u(ks[8], (10, 84), 84),
        "out_b": u(ks[9], (10,), 84),
    }


if __name__ == "__main__":
    key = jax.random.PRNGKey(0)
    k_param, k_x = jax.random.split(key)
    params = init_params(k_param)
    # Input shape is fixed by the architecture (linear1 expects 7*7*32 features):
    # MNIST-like (B, 1, 28, 28), small batch.
    x = jax.random.normal(k_x, (2, 1, H1, W1), dtype=jnp.float32)

    out = jax.block_until_ready(jax.jit(lenet_forward)(params, x))
    assert out.shape == (2, 10) and out.dtype == jnp.float32

    ref = jax.block_until_ready(jax.jit(ref_forward)(params, x))
    if not bool(jnp.allclose(out, ref, atol=2e-2, rtol=2e-2)):
        raise RuntimeError("Pallas LeNet forward does not match the XLA reference")
    print("KERNEL_OK")
</pallas_src>

<mosaic_0001>
module attributes {stable_mosaic.version = 11 : i64} {
  func.func @_lenet_kernel(%arg0: i32, %arg1: memref<1x1x912xf32, #tpu.memory_space<vmem>>, %arg2: memref<16x25xf32, #tpu.memory_space<vmem>>, %arg3: memref<16x1xf32, #tpu.memory_space<vmem>>, %arg4: memref<25x784xf32, #tpu.memory_space<vmem>>, %arg5: memref<755x196xf32, #tpu.memory_space<vmem>>, %arg6: memref<32x400xf32, #tpu.memory_space<vmem>>, %arg7: memref<32x1xf32, #tpu.memory_space<vmem>>, %arg8: memref<25x196xf32, #tpu.memory_space<vmem>>, %arg9: memref<181x49xf32, #tpu.memory_space<vmem>>, %arg10: memref<120x1568xf32, #tpu.memory_space<vmem>>, %arg11: memref<1x120xf32, #tpu.memory_space<vmem>>, %arg12: memref<84x120xf32, #tpu.memory_space<vmem>>, %arg13: memref<1x84xf32, #tpu.memory_space<vmem>>, %arg14: memref<10x84xf32, #tpu.memory_space<vmem>>, %arg15: memref<1x10xf32, #tpu.memory_space<vmem>>, %arg16: memref<1x1x10xf32, #tpu.memory_space<vmem>>, %arg17: memref<25x784xf32, #tpu.memory_space<vmem>>, %arg18: memref<16x260xf32, #tpu.memory_space<vmem>>, %arg19: memref<400x196xf32, #tpu.memory_space<vmem>>, %arg20: memref<1x1568xf32, #tpu.memory_space<vmem>>) attributes {dimension_semantics = [#tpu.dimension_semantics<parallel>], iteration_bounds = array<i64: 2>, scalar_prefetch = 0 : i64, scratch_operands = 4 : i64, tpu.core_type = #tpu.core_type<tc>, window_params = [{transform_indices = @transform_0, window_bounds = array<i64: 1, 1, 912>}, {pipeline_mode = #tpu.pipeline_mode<synchronous>, transform_indices = @transform_1, window_bounds = array<i64: 16, 25>}, {pipeline_mode = #tpu.pipeline_mode<synchronous>, transform_indices = @transform_2, window_bounds = array<i64: 16, 1>}, {pipeline_mode = #tpu.pipeline_mode<synchronous>, transform_indices = @transform_3, window_bounds = array<i64: 25, 784>}, {pipeline_mode = #tpu.pipeline_mode<synchronous>, transform_indices = @transform_4, window_bounds = array<i64: 755, 196>}, {pipeline_mode = #tpu.pipeline_mode<synchronous>, transform_indices = @transform_5, window_bounds = array<i64: 32, 400>}, {pipeline_mode = #tpu.pipeline_mode<synchronous>, transform_indices = @transform_6, window_bounds = array<i64: 32, 1>}, {pipeline_mode = #tpu.pipeline_mode<synchronous>, transform_indices = @transform_7, window_bounds = array<i64: 25, 196>}, {pipeline_mode = #tpu.pipeline_mode<synchronous>, transform_indices = @transform_8, window_bounds = array<i64: 181, 49>}, {pipeline_mode = #tpu.pipeline_mode<synchronous>, transform_indices = @transform_9, window_bounds = array<i64: 120, 1568>}, {pipeline_mode = #tpu.pipeline_mode<synchronous>, transform_indices = @transform_10, window_bounds = array<i64: 1, 120>}, {pipeline_mode = #tpu.pipeline_mode<synchronous>, transform_indices = @transform_11, window_bounds = array<i64: 84, 120>}, {pipeline_mode = #tpu.pipeline_mode<synchronous>, transform_indices = @transform_12, window_bounds = array<i64: 1, 84>}, {pipeline_mode = #tpu.pipeline_mode<synchronous>, transform_indices = @transform_13, window_bounds = array<i64: 10, 84>}, {pipeline_mode = #tpu.pipeline_mode<synchronous>, transform_indices = @transform_14, window_bounds = array<i64: 1, 10>}, {transform_indices = @transform_15, window_bounds = array<i64: 1, 1, 10>}]} {
    %c0 = arith.constant 0 : index
    %c0_0 = arith.constant 0 : index
    %c0_1 = arith.constant 0 : index
    %0 = vector.load %arg1[%c0, %c0_0, %c0_1] : memref<1x1x912xf32, #tpu.memory_space<vmem>>, vector<1x1x912xf32>
    %1 = vector.shape_cast %0 : vector<1x1x912xf32> to vector<1x912xf32>
    %2 = vector.extract_strided_slice %1 {offsets = [0, 6], sizes = [1, 784], strides = [1, 1]} : vector<1x912xf32> to vector<1x784xf32>
    %c0_2 = arith.constant 0 : index
    %c0_3 = arith.constant 0 : index
    %3 = vector.load %arg4[%c0_2, %c0_3] : memref<25x784xf32, #tpu.memory_space<vmem>>, vector<1x784xf32>
    %4 = arith.mulf %2, %3 : vector<1x784xf32>
    %c0_4 = arith.constant 0 : index
    %c0_5 = arith.constant 0 : index
    %5 = vector.load %arg17[%c0_4, %c0_5] : memref<25x784xf32, #tpu.memory_space<vmem>>, vector<1x784xf32>
    tpu.vector_store %arg17[%c0_4, %c0_5], %4 {strides = array<i32>} : memref<25x784xf32, #tpu.memory_space<vmem>>, vector<1x784xf32>,
    %6 = vector.extract_strided_slice %1 {offsets = [0, 7], sizes = [1, 784], strides = [1, 1]} : vector<1x912xf32> to vector<1x784xf32>
    %c1 = arith.constant 1 : index
    %c0_6 = arith.constant 0 : index
    %7 = vector.load %arg4[%c1, %c0_6] : memref<25x784xf32, #tpu.memory_space<vmem>>, vector<1x784xf32>
    %8 = arith.mulf %6, %7 : vector<1x784xf32>
    %c1_7 = arith.constant 1 : index
    %c0_8 = arith.constant 0 : index
    %9 = vector.load %arg17[%c1_7, %c0_8] : memref<25x784xf32, #tpu.memory_space<vmem>>, vector<1x784xf32>
    tpu.vector_store %arg17[%c1_7, %c0_8], %8 {strides = array<i32>} : memref<25x784xf32, #tpu.memory_space<vmem>>, vector<1x784xf32>,
    %10 = vector.extract_strided_slice %1 {offsets = [0, 8], sizes = [1, 784], strides = [1, 1]} : vector<1x912xf32> to vector<1x784xf32>
    %c2 = arith.constant 2 : index
    %c0_9 = arith.constant 0 : index
    %11 = vector.load %arg4[%c2, %c0_9] : memref<25x784xf32, #tpu.memory_space<vmem>>, vector<1x784xf32>
    %12 = arith.mulf %10, %11 : vector<1x784xf32>
    %c2_10 = arith.constant 2 : index
    %c0_11 = arith.constant 0 : index
    %13 = vector.load %arg17[%c2_10, %c0_11] : memref<25x784xf32, #tpu.memory_space<vmem>>, vector<1x784xf32>
    tpu.vector_store %arg17[%c2_10, %c0_11], %12 {strides = array<i32>} : memref<25x784xf32, #tpu.memory_space<vmem>>, vector<1x784xf32>,
    %14 = vector.extract_strided_slice %1 {offsets = [0, 9], sizes = [1, 784], strides = [1, 1]} : vector<1x912xf32> to vector<1x784xf32>
    %c3 = arith.constant 3 : index
    %c0_12 = arith.constant 0 : index
    %15 = vector.load %arg4[%c3, %c0_12] : memref<25x784xf32, #tpu.memory_space<vmem>>, vector<1x784xf32>
    %16 = arith.mulf %14, %15 : vector<1x784xf32>
    %c3_13 = arith.constant 3 : index
    %c0_14 = arith.constant 0 : index
    %17 = vector.load %arg17[%c3_13, %c0_14] : memref<25x784xf32, #tpu.memory_space<vmem>>, vector<1x784xf32>
    tpu.vector_store %arg17[%c3_13, %c0_14], %16 {strides = array<i32>} : memref<25x784xf32, #tpu.memory_space<vmem>>, vector<1x784xf32>,
    %18 = vector.extract_strided_slice %1 {offsets = [0, 10], sizes = [1, 784], strides = [1, 1]} : vector<1x912xf32> to vector<1x784xf32>
    %c4 = arith.constant 4 : index
    %c0_15 = arith.constant 0 : index
    %19 = vector.load %arg4[%c4, %c0_15] : memref<25x784xf32, #tpu.memory_space<vmem>>, vector<1x784xf32>
    %20 = arith.mulf %18, %19 : vector<1x784xf32>
    %c4_16 = arith.constant 4 : index
    %c0_17 = arith.constant 0 : index
    %21 = vector.load %arg17[%c4_16, %c0_17] : memref<25x784xf32, #tpu.memory_space<vmem>>, vector<1x784xf32>
    tpu.vector_store %arg17[%c4_16, %c0_17], %20 {strides = array<i32>} : memref<25x784xf32, #tpu.memory_space<vmem>>, vector<1x784xf32>,
    %22 = vector.extract_strided_slice %1 {offsets = [0, 34], sizes = [1, 784], strides = [1, 1]} : vector<1x912xf32> to vector<1x784xf32>
    %c5 = arith.constant 5 : index
    %c0_18 = arith.constant 0 : index
    %23 = vector.load %arg4[%c5, %c0_18] : memref<25x784xf32, #tpu.memory_space<vmem>>, vector<1x784xf32>
    %24 = arith.mulf %22, %23 : vector<1x784xf32>
    %c5_19 = arith.constant 5 : index
    %c0_20 = arith.constant 0 : index
    %25 = vector.load %arg17[%c5_19, %c0_20] : memref<25x784xf32, #tpu.memory_space<vmem>>, vector<1x784xf32>
    tpu.vector_store %arg17[%c5_19, %c0_20], %24 {strides = array<i32>} : memref<25x784xf32, #tpu.memory_space<vmem>>, vector<1x784xf32>,
    %26 = vector.extract_strided_slice %1 {offsets = [0, 35], sizes = [1, 784], strides = [1, 1]} : vector<1x912xf32> to vector<1x784xf32>
    %c6 = arith.constant 6 : index
    %c0_21 = arith.constant 0 : index
    %27 = vector.load %arg4[%c6, %c0_21] : memref<25x784xf32, #tpu.memory_space<vmem>>, vector<1x784xf32>
    %28 = arith.mulf %26, %27 : vector<1x784xf32>
    %c6_22 = arith.constant 6 : index
    %c0_23 = arith.constant 0 : index
    %29 = vector.load %arg17[%c6_22, %c0_23] : memref<25x784xf32, #tpu.memory_space<vmem>>, vector<1x784xf32>
    tpu.vector_store %arg17[%c6_22, %c0_23], %28 {strides = array<i32>} : memref<25x784xf32, #tpu.memory_space<vmem>>, vector<1x784xf32>,
    %30 = vector.extract_strided_slice %1 {offsets = [0, 36], sizes = [1, 784], strides = [1, 1]} : vector<1x912xf32> to vector<1x784xf32>
    %c7 = arith.constant 7 : index
    %c0_24 = arith.constant 0 : index
    %31 = vector.load %arg4[%c7, %c0_24] : memref<25x784xf32, #tpu.memory_space<vmem>>, vector<1x784xf32>
    %32 = arith.mulf %30, %31 : vector<1x784xf32>
    %c7_25 = arith.constant 7 : index
    %c0_26 = arith.constant 0 : index
    %33 = vector.load %arg17[%c7_25, %c0_26] : memref<25x784xf32, #tpu.memory_space<vmem>>, vector<1x784xf32>
    tpu.vector_store %arg17[%c7_25, %c0_26], %32 {strides = array<i32>} : memref<25x784xf32, #tpu.memory_space<vmem>>, vector<1x784xf32>,
    %34 = vector.extract_strided_slice %1 {offsets = [0, 37], sizes = [1, 784], strides = [1, 1]} : vector<1x912xf32> to vector<1x784xf32>
    %c8 = arith.constant 8 : index
    %c0_27 = arith.constant 0 : index
    %35 = vector.load %arg4[%c8, %c0_27] : memref<25x784xf32, #tpu.memory_space<vmem>>, vector<1x784xf32>
    %36 = arith.mulf %34, %35 : vector<1x784xf32>
    %c8_28 = arith.constant 8 : index
    %c0_29 = arith.constant 0 : index
    %37 = vector.load %arg17[%c8_28, %c0_29] : memref<25x784xf32, #tpu.memory_space<vmem>>, vector<1x784xf32>
    tpu.vector_store %arg17[%c8_28, %c0_29], %36 {strides = array<i32>} : memref<25x784xf32, #tpu.memory_space<vmem>>, vector<1x784xf32>,
    %38 = vector.extract_strided_slice %1 {offsets = [0, 38], sizes = [1, 784], strides = [1, 1]} : vector<1x912xf32> to vector<1x784xf32>
    %c9 = arith.constant 9 : index
    %c0_30 = arith.constant 0 : index
    %39 = vector.load %arg4[%c9, %c0_30] : memref<25x784xf32, #tpu.memory_space<vmem>>, vector<1x784xf32>
    %40 = arith.mulf %38, %39 : vector<1x784xf32>
    %c9_31 = arith.constant 9 : index
    %c0_32 = arith.constant 0 : index
    %41 = vector.load %arg17[%c9_31, %c0_32] : memref<25x784xf32, #tpu.memory_space<vmem>>, vector<1x784xf32>
    tpu.vector_store %arg17[%c9_31, %c0_32], %40 {strides = array<i32>} : memref<25x784xf32, #tpu.memory_space<vmem>>, vector<1x784xf32>,
    %42 = vector.extract_strided_slice %1 {offsets = [0, 62], sizes = [1, 784], strides = [1, 1]} : vector<1x912xf32> to vector<1x784xf32>
    %c10 = arith.constant 10 : index
    %c0_33 = arith.constant 0 : index
    %43 = vector.load %arg4[%c10, %c0_33] : memref<25x784xf32, #tpu.memory_space<vmem>>, vector<1x784xf32>
    %44 = arith.mulf %42, %43 : vector<1x784xf32>
    %c10_34 = arith.constant 10 : index
    %c0_35 = arith.constant 0 : index
    %45 = vector.load %arg17[%c10_34, %c0_35] : memref<25x784xf32, #tpu.memory_space<vmem>>, vector<1x784xf32>
    tpu.vector_store %arg17[%c10_34, %c0_35], %44 {strides = array<i32>} : memref<25x784xf32, #tpu.memory_space<vmem>>, vector<1x784xf32>,
    %46 = vector.extract_strided_slice %1 {offsets = [0, 63], sizes = [1, 784], strides = [1, 1]} : vector<1x912xf32> to vector<1x784xf32>
    %c11 = arith.constant 11 : index
    %c0_36 = arith.constant 0 : index
    %47 = vector.load %arg4[%c11, %c0_36] : memref<25x784xf32, #tpu.memory_space<vmem>>, vector<1x784xf32>
    %48 = arith.mulf %46, %47 : vector<1x784xf32>
    %c11_37 = arith.constant 11 : index
    %c0_38 = arith.constant 0 : index
    %49 = vector.load %arg17[%c11_37, %c0_38] : memref<25x784xf32, #tpu.memory_space<vmem>>, vector<1x784xf32>
    tpu.vector_store %arg17[%c11_37, %c0_38], %48 {strides = array<i32>} : memref<25x784xf32, #tpu.memory_space<vmem>>, vector<1x784xf32>,
    %50 = vector.extract_strided_slice %1 {offsets = [0, 64], sizes = [1, 784], strides = [1, 1]} : vector<1x912xf32> to vector<1x784xf32>
    %c12 = arith.constant 12 : index
    %c0_39 = arith.constant 0 : index
    %51 = vector.load %arg4[%c12, %c0_39] : memref<25x784xf32, #tpu.memory_space<vmem>>, vector<1x784xf32>
    %52 = arith.mulf %50, %51 : vector<1x784xf32>
    %c12_40 = arith.constant 12 : index
    %c0_41 = arith.constant 0 : index
    %53 = vector.load %arg17[%c12_40, %c0_41] : memref<25x784xf32, #tpu.memory_space<vmem>>, vector<1x784xf32>
    tpu.vector_store %arg17[%c12_40, %c0_41], %52 {strides = array<i32>} : memref<25x784xf32, #tpu.memory_space<vmem>>, vector<1x784xf32>,
    %54 = vector.extract_strided_slice %1 {offsets = [0, 65], sizes = [1, 784], strides = [1, 1]} : vector<1x912xf32> to vector<1x784xf32>
    %c13 = arith.constant 13 : index
    %c0_42 = arith.constant 0 : index
    %55 = vector.load %arg4[%c13, %c0_42] : memref<25x784xf32, #tpu.memory_space<vmem>>, vector<1x784xf32>
    %56 = arith.mulf %54, %55 : vector<1x784xf32>
    %c13_43 = arith.constant 13 : index
    %c0_44 = arith.constant 0 : index
    %57 = vector.load %arg17[%c13_43, %c0_44] : memref<25x784xf32, #tpu.memory_space<vmem>>, vector<1x784xf32>
    tpu.vector_store %arg17[%c13_43, %c0_44], %56 {strides = array<i32>} : memref<25x784xf32, #tpu.memory_space<vmem>>, vector<1x784xf32>,
    %58 = vector.extract_strided_slice %1 {offsets = [0, 66], sizes = [1, 784], strides = [1, 1]} : vector<1x912xf32> to vector<1x784xf32>
    %c14 = arith.constant 14 : index
    %c0_45 = arith.constant 0 : index
    %59 = vector.load %arg4[%c14, %c0_45] : memref<25x784xf32, #tpu.memory_space<vmem>>, vector<1x784xf32>
    %60 = arith.mulf %58, %59 : vector<1x784xf32>
    %c14_46 = arith.constant 14 : index
    %c0_47 = arith.constant 0 : index
    %61 = vector.load %arg17[%c14_46, %c0_47] : memref<25x784xf32, #tpu.memory_space<vmem>>, vector<1x784xf32>
    tpu.vector_store %arg17[%c14_46, %c0_47], %60 {strides = array<i32>} : memref<25x784xf32, #tpu.memory_space<vmem>>, vector<1x784xf32>,
    %62 = vector.extract_strided_slice %1 {offsets = [0, 90], sizes = [1, 784], strides = [1, 1]} : vector<1x912xf32> to vector<1x784xf32>
    %c15 = arith.constant 15 : index
    %c0_48 = arith.constant 0 : index
    %63 = vector.load %arg4[%c15, %c0_48] : memref<25x784xf32, #tpu.memory_space<vmem>>, vector<1x784xf32>
    %64 = arith.mulf %62, %63 : vector<1x784xf32>
    %c15_49 = arith.constant 15 : index
    %c0_50 = arith.constant 0 : index
    %65 = vector.load %arg17[%c15_49, %c0_50] : memref<25x784xf32, #tpu.memory_space<vmem>>, vector<1x784xf32>
    tpu.vector_store %arg17[%c15_49, %c0_50], %64 {strides = array<i32>} : memref<25x784xf32, #tpu.memory_space<vmem>>, vector<1x784xf32>,
    %66 = vector.extract_strided_slice %1 {offsets = [0, 91], sizes = [1, 784], strides = [1, 1]} : vector<1x912xf32> to vector<1x784xf32>
    %c16 = arith.constant 16 : index
    %c0_51 = arith.constant 0 : index
    %67 = vector.load %arg4[%c16, %c0_51] : memref<25x784xf32, #tpu.memory_space<vmem>>, vector<1x784xf32>
    %68 = arith.mulf %66, %67 : vector<1x784xf32>
    %c16_52 = arith.constant 16 : index
    %c0_53 = arith.constant 0 : index
    %69 = vector.load %arg17[%c16_52, %c0_53] : memref<25x784xf32, #tpu.memory_space<vmem>>, vector<1x784xf32>
    tpu.vector_store %arg17[%c16_52, %c0_53], %68 {strides = array<i32>} : memref<25x784xf32, #tpu.memory_space<vmem>>, vector<1x784xf32>,
    %70 = vector.extract_strided_slice %1 {offsets = [0, 92], sizes = [1, 784], strides = [1, 1]} : vector<1x912xf32> to vector<1x784xf32>
    %c17 = arith.constant 17 : index
    %c0_54 = arith.constant 0 : index
    %71 = vector.load %arg4[%c17, %c0_54] : memref<25x784xf32, #tpu.memory_space<vmem>>, vector<1x784xf32>
    %72 = arith.mulf %70, %71 : vector<1x784xf32>
    %c17_55 = arith.constant 17 : index
    %c0_56 = arith.constant 0 : index
    %73 = vector.load %arg17[%c17_55, %c0_56] : memref<25x784xf32, #tpu.memory_space<vmem>>, vector<1x784xf32>
    tpu.vector_store %arg17[%c17_55, %c0_56], %72 {strides = array<i32>} : memref<25x784xf32, #tpu.memory_space<vmem>>, vector<1x784xf32>,
    %74 = vector.extract_strided_slice %1 {offsets = [0, 93], sizes = [1, 784], strides = [1, 1]} : vector<1x912xf32> to vector<1x784xf32>
    %c18 = arith.constant 18 : index
    %c0_57 = arith.constant 0 : index
    %75 = vector.load %arg4[%c18, %c0_57] : memref<25x784xf32, #tpu.memory_space<vmem>>, vector<1x784xf32>
    %76 = arith.mulf %74, %75 : vector<1x784xf32>
    %c18_58 = arith.constant 18 : index
    %c0_59 = arith.constant 0 : index
    %77 = vector.load %arg17[%c18_58, %c0_59] : memref<25x784xf32, #tpu.memory_space<vmem>>, vector<1x784xf32>
    tpu.vector_store %arg17[%c18_58, %c0_59], %76 {strides = array<i32>} : memref<25x784xf32, #tpu.memory_space<vmem>>, vector<1x784xf32>,
    %78 = vector.extract_strided_slice %1 {offsets = [0, 94], sizes = [1, 784], strides = [1, 1]} : vector<1x912xf32> to vector<1x784xf32>
    %c19 = arith.constant 19 : index
    %c0_60 = arith.constant 0 : index
    %79 = vector.load %arg4[%c19, %c0_60] : memref<25x784xf32, #tpu.memory_space<vmem>>, vector<1x784xf32>
    %80 = arith.mulf %78, %79 : vector<1x784xf32>
    %c19_61 = arith.constant 19 : index
    %c0_62 = arith.constant 0 : index
    %81 = vector.load %arg17[%c19_61, %c0_62] : memref<25x784xf32, #tpu.memory_space<vmem>>, vector<1x784xf32>
    tpu.vector_store %arg17[%c19_61, %c0_62], %80 {strides = array<i32>} : memref<25x784xf32, #tpu.memory_space<vmem>>, vector<1x784xf32>,
    %82 = vector.extract_strided_slice %1 {offsets = [0, 118], sizes = [1, 784], strides = [1, 1]} : vector<1x912xf32> to vector<1x784xf32>
    %c20 = arith.constant 20 : index
    %c0_63 = arith.constant 0 : index
    %83 = vector.load %arg4[%c20, %c0_63] : memref<25x784xf32, #tpu.memory_space<vmem>>, vector<1x784xf32>
    %84 = arith.mulf %82, %83 : vector<1x784xf32>
    %c20_64 = arith.constant 20 : index
    %c0_65 = arith.constant 0 : index
    %85 = vector.load %arg17[%c20_64, %c0_65] : memref<25x784xf32, #tpu.memory_space<vmem>>, vector<1x784xf32>
    tpu.vector_store %arg17[%c20_64, %c0_65], %84 {strides = array<i32>} : memref<25x784xf32, #tpu.memory_space<vmem>>, vector<1x784xf32>,
    %86 = vector.extract_strided_slice %1 {offsets = [0, 119], sizes = [1, 784], strides = [1, 1]} : vector<1x912xf32> to vector<1x784xf32>
    %c21 = arith.constant 21 : index
    %c0_66 = arith.constant 0 : index
    %87 = vector.load %arg4[%c21, %c0_66] : memref<25x784xf32, #tpu.memory_space<vmem>>, vector<1x784xf32>
    %88 = arith.mulf %86, %87 : vector<1x784xf32>
    %c21_67 = arith.constant 21 : index
    %c0_68 = arith.constant 0 : index
    %89 = vector.load %arg17[%c21_67, %c0_68] : memref<25x784xf32, #tpu.memory_space<vmem>>, vector<1x784xf32>
    tpu.vector_store %arg17[%c21_67, %c0_68], %88 {strides = array<i32>} : memref<25x784xf32, #tpu.memory_space<vmem>>, vector<1x784xf32>,
    %90 = vector.extract_strided_slice %1 {offsets = [0, 120], sizes = [1, 784], strides = [1, 1]} : vector<1x912xf32> to vector<1x784xf32>
    %c22 = arith.constant 22 : index
    %c0_69 = arith.constant 0 : index
    %91 = vector.load %arg4[%c22, %c0_69] : memref<25x784xf32, #tpu.memory_space<vmem>>, vector<1x784xf32>
    %92 = arith.mulf %90, %91 : vector<1x784xf32>
    %c22_70 = arith.constant 22 : index
    %c0_71 = arith.constant 0 : index
    %93 = vector.load %arg17[%c22_70, %c0_71] : memref<25x784xf32, #tpu.memory_space<vmem>>, vector<1x784xf32>
    tpu.vector_store %arg17[%c22_70, %c0_71], %92 {strides = array<i32>} : memref<25x784xf32, #tpu.memory_space<vmem>>, vector<1x784xf32>,
    %94 = vector.extract_strided_slice %1 {offsets = [0, 121], sizes = [1, 784], strides = [1, 1]} : vector<1x912xf32> to vector<1x784xf32>
    %c23 = arith.constant 23 : index
    %c0_72 = arith.constant 0 : index
    %95 = vector.load %arg4[%c23, %c0_72] : memref<25x784xf32, #tpu.memory_space<vmem>>, vector<1x784xf32>
    %96 = arith.mulf %94, %95 : vector<1x784xf32>
    %c23_73 = arith.constant 23 : index
    %c0_74 = arith.constant 0 : index
    %97 = vector.load %arg17[%c23_73, %c0_74] : memref<25x784xf32, #tpu.memory_space<vmem>>, vector<1x784xf32>
    tpu.vector_store %arg17[%c23_73, %c0_74], %96 {strides = array<i32>} : memref<25x784xf32, #tpu.memory_space<vmem>>, vector<1x784xf32>,
    %98 = vector.extract_strided_slice %1 {offsets = [0, 122], sizes = [1, 784], strides = [1, 1]} : vector<1x912xf32> to vector<1x784xf32>
    %c24 = arith.constant 24 : index
    %c0_75 = arith.constant 0 : index
    %99 = vector.load %arg4[%c24, %c0_75] : memref<25x784xf32, #tpu.memory_space<vmem>>, vector<1x784xf32>
    %100 = arith.mulf %98, %99 : vector<1x784xf32>
    %c24_76 = arith.constant 24 : index
    %c0_77 = arith.constant 0 : index
    %101 = vector.load %arg17[%c24_76, %c0_77] : memref<25x784xf32, #tpu.memory_space<vmem>>, vector<1x784xf32>
    tpu.vector_store %arg17[%c24_76, %c0_77], %100 {strides = array<i32>} : memref<25x784xf32, #tpu.memory_space<vmem>>, vector<1x784xf32>,
    %c0_78 = arith.constant 0 : index
    %c0_79 = arith.constant 0 : index
    %102 = vector.load %arg2[%c0_78, %c0_79] : memref<16x25xf32, #tpu.memory_space<vmem>>, vector<16x25xf32>
    %c0_80 = arith.constant 0 : index
    %c0_81 = arith.constant 0 : index
    %103 = vector.load %arg17[%c0_80, %c0_81] : memref<25x784xf32, #tpu.memory_space<vmem>>, vector<25x784xf32>
    %cst = arith.constant dense<0.000000e+00> : vector<16x784xf32>
    %104 = tpu.matmul %102, %103, %cst {dimension_numbers = #tpu.dot_dimension_numbers<[1], [0], [0], [1], [0, 0, 1, 1], [], []>} : vector<16x25xf32>, vector<25x784xf32>, vector<16x784xf32> -> vector<16x784xf32>
    %c0_82 = arith.constant 0 : index
    %c0_83 = arith.constant 0 : index
    %105 = vector.load %arg3[%c0_82, %c0_83] : memref<16x1xf32, #tpu.memory_space<vmem>>, vector<16x1xf32>
    %106 = vector.broadcast %105 : vector<16x1xf32> to vector<16x784xf32>
    %107 = arith.addf %104, %106 : vector<16x784xf32>
    %c0_84 = arith.constant 0 : index
    %c0_85 = arith.constant 0 : index
    %108 = vector.load %arg5[%c0_84, %c0_85] : memref<755x196xf32, #tpu.memory_space<vmem>>, vector<755x196xf32>
    %109 = vector.extract_strided_slice %107 {offsets = [0, 0], sizes = [16, 755], strides = [1, 1]} : vector<16x784xf32> to vector<16x755xf32>
    %cst_86 = arith.constant dense<0.000000e+00> : vector<16x196xf32>
    %110 = tpu.matmul %109, %108, %cst_86 {dimension_numbers = #tpu.dot_dimension_numbers<[1], [0], [0], [1], [0, 0, 1, 1], [], []>} : vector<16x755xf32>, vector<755x196xf32>, vector<16x196xf32> -> vector<16x196xf32>
    %111 = vector.extract_strided_slice %107 {offsets = [0, 1], sizes = [16, 755], strides = [1, 1]} : vector<16x784xf32> to vector<16x755xf32>
    %cst_87 = arith.constant dense<0.000000e+00> : vector<16x196xf32>
    %112 = tpu.matmul %111, %108, %cst_87 {dimension_numbers = #tpu.dot_dimension_numbers<[1], [0], [0], [1], [0, 0, 1, 1], [], []>} : vector<16x755xf32>, vector<755x196xf32>, vector<16x196xf32> -> vector<16x196xf32>
    %113 = arith.maximumf %110, %112 : vector<16x196xf32>
    %114 = vector.extract_strided_slice %107 {offsets = [0, 28], sizes = [16, 755], strides = [1, 1]} : vector<16x784xf32> to vector<16x755xf32>
    %cst_88 = arith.constant dense<0.000000e+00> : vector<16x196xf32>
    %115 = tpu.matmul %114, %108, %cst_88 {dimension_numbers = #tpu.dot_dimension_numbers<[1], [0], [0], [1], [0, 0, 1, 1], [], []>} : vector<16x755xf32>, vector<755x196xf32>, vector<16x196xf32> -> vector<16x196xf32>
    %116 = arith.maximumf %113, %115 : vector<16x196xf32>
    %117 = vector.extract_strided_slice %107 {offsets = [0, 29], sizes = [16, 755], strides = [1, 1]} : vector<16x784xf32> to vector<16x755xf32>
    %cst_89 = arith.constant dense<0.000000e+00> : vector<16x196xf32>
    %118 = tpu.matmul %117, %108, %cst_89 {dimension_numbers = #tpu.dot_dimension_numbers<[1], [0], [0], [1], [0, 0, 1, 1], [], []>} : vector<16x755xf32>, vector<755x196xf32>, vector<16x196xf32> -> vector<16x196xf32>
    %119 = arith.maximumf %116, %118 : vector<16x196xf32>
    %cst_90 = arith.constant 0.000000e+00 : f32
    %120 = vector.broadcast %cst_90 : f32 to vector<16x260xf32>
    %c0_91 = arith.constant 0 : index
    %c0_92 = arith.constant 0 : index
    %121 = vector.load %arg18[%c0_91, %c0_92] : memref<16x260xf32, #tpu.memory_space<vmem>>, vector<16x260xf32>
    tpu.vector_store %arg18[%c0_91, %c0_92], %120 {strides = array<i32>} : memref<16x260xf32, #tpu.memory_space<vmem>>, vector<16x260xf32>,
    %c0_93 = arith.constant 0 : index
    %c32 = arith.constant 32 : index
    %122 = vector.load %arg18[%c0_93, %c32] : memref<16x260xf32, #tpu.memory_space<vmem>>, vector<16x196xf32>
    tpu.vector_store %arg18[%c0_93, %c32], %119 {strides = array<i32>} : memref<16x260xf32, #tpu.memory_space<vmem>>, vector<16x196xf32>,
    %c0_94 = arith.constant 0 : index
    %c2_95 = arith.constant 2 : index
    %123 = vector.load %arg18[%c0_94, %c2_95] : memref<16x260xf32, #tpu.memory_space<vmem>>, vector<16x196xf32>
    %c0_96 = arith.constant 0 : index
    %c0_97 = arith.constant 0 : index
    %124 = vector.load %arg8[%c0_96, %c0_97] : memref<25x196xf32, #tpu.memory_space<vmem>>, vector<1x196xf32>
    %125 = vector.broadcast %124 : vector<1x196xf32> to vector<16x196xf32>
    %126 = arith.mulf %123, %125 : vector<16x196xf32>
    %c0_98 = arith.constant 0 : index
    %c0_99 = arith.constant 0 : index
    %127 = vector.load %arg19[%c0_98, %c0_99] : memref<400x196xf32, #tpu.memory_space<vmem>>, vector<16x196xf32>
    tpu.vector_store %arg19[%c0_98, %c0_99], %126 {strides = array<i32>} : memref<400x196xf32, #tpu.memory_space<vmem>>, vector<16x196xf32>,
    %c0_100 = arith.constant 0 : index
    %c3_101 = arith.constant 3 : index
    %128 = vector.load %arg18[%c0_100, %c3_101] : memref<16x260xf32, #tpu.memory_space<vmem>>, vector<16x196xf32>
    %c1_102 = arith.constant 1 : index
    %c0_103 = arith.constant 0 : index
    %129 = vector.load %arg8[%c1_102, %c0_103] : memref<25x196xf32, #tpu.memory_space<vmem>>, vector<1x196xf32>
    %130 = vector.broadcast %129 : vector<1x196xf32> to vector<16x196xf32>
    %131 = arith.mulf %128, %130 : vector<16x196xf32>
    %c16_104 = arith.constant 16 : index
    %c0_105 = arith.constant 0 : index
    %132 = vector.load %arg19[%c16_104, %c0_105] : memref<400x196xf32, #tpu.memory_space<vmem>>, vector<16x196xf32>
    tpu.vector_store %arg19[%c16_104, %c0_105], %131 {strides = array<i32>} : memref<400x196xf32, #tpu.memory_space<vmem>>, vector<16x196xf32>,
    %c0_106 = arith.constant 0 : index
    %c4_107 = arith.constant 4 : index
    %133 = vector.load %arg18[%c0_106, %c4_107] : memref<16x260xf32, #tpu.memory_space<vmem>>, vector<16x196xf32>
    %c2_108 = arith.constant 2 : index
    %c0_109 = arith.constant 0 : index
    %134 = vector.load %arg8[%c2_108, %c0_109] : memref<25x196xf32, #tpu.memory_space<vmem>>, vector<1x196xf32>
    %135 = vector.broadcast %134 : vector<1x196xf32> to vector<16x196xf32>
    %136 = arith.mulf %133, %135 : vector<16x196xf32>
    %c32_110 = arith.constant 32 : index
    %c0_111 = arith.constant 0 : index
    %137 = vector.load %arg19[%c32_110, %c0_111] : memref<400x196xf32, #tpu.memory_space<vmem>>, vector<16x196xf32>
    tpu.vector_store %arg19[%c32_110, %c0_111], %136 {strides = array<i32>} : memref<400x196xf32, #tpu.memory_space<vmem>>, vector<16x196xf32>,
    %c0_112 = arith.constant 0 : index
    %c5_113 = arith.constant 5 : index
    %138 = vector.load %arg18[%c0_112, %c5_113] : memref<16x260xf32, #tpu.memory_space<vmem>>, vector<16x196xf32>
    %c3_114 = arith.constant 3 : index
    %c0_115 = arith.constant 0 : index
    %139 = vector.load %arg8[%c3_114, %c0_115] : memref<25x196xf32, #tpu.memory_space<vmem>>, vector<1x196xf32>
    %140 = vector.broadcast %139 : vector<1x196xf32> to vector<16x196xf32>
    %141 = arith.mulf %138, %140 : vector<16x196xf32>
    %c48 = arith.constant 48 : index
    %c0_116 = arith.constant 0 : index
    %142 = vector.load %arg19[%c48, %c0_116] : memref<400x196xf32, #tpu.memory_space<vmem>>, vector<16x196xf32>
    tpu.vector_store %arg19[%c48, %c0_116], %141 {strides = array<i32>} : memref<400x196xf32, #tpu.memory_space<vmem>>, vector<16x196xf32>,
    %c0_117 = arith.constant 0 : index
    %c6_118 = arith.constant 6 : index
    %143 = vector.load %arg18[%c0_117, %c6_118] : memref<16x260xf32, #tpu.memory_space<vmem>>, vector<16x196xf32>
    %c4_119 = arith.constant 4 : index
    %c0_120 = arith.constant 0 : index
    %144 = vector.load %arg8[%c4_119, %c0_120] : memref<25x196xf32, #tpu.memory_space<vmem>>, vector<1x196xf32>
    %145 = vector.broadcast %144 : vector<1x196xf32> to vector<16x196xf32>
    %146 = arith.mulf %143, %145 : vector<16x196xf32>
    %c64 = arith.constant 64 : index
    %c0_121 = arith.constant 0 : index
    %147 = vector.load %arg19[%c64, %c0_121] : memref<400x196xf32, #tpu.memory_space<vmem>>, vector<16x196xf32>
    tpu.vector_store %arg19[%c64, %c0_121], %146 {strides = array<i32>} : memref<400x196xf32, #tpu.memory_space<vmem>>, vector<16x196xf32>,
    %c0_122 = arith.constant 0 : index
    %c16_123 = arith.constant 16 : index
    %148 = vector.load %arg18[%c0_122, %c16_123] : memref<16x260xf32, #tpu.memory_space<vmem>>, vector<16x196xf32>
    %c5_124 = arith.constant 5 : index
    %c0_125 = arith.constant 0 : index
    %149 = vector.load %arg8[%c5_124, %c0_125] : memref<25x196xf32, #tpu.memory_space<vmem>>, vector<1x196xf32>
    %150 = vector.broadcast %149 : vector<1x196xf32> to vector<16x196xf32>
    %151 = arith.mulf %148, %150 : vector<16x196xf32>
    %c80 = arith.constant 80 : index
    %c0_126 = arith.constant 0 : index
    %152 = vector.load %arg19[%c80, %c0_126] : memref<400x196xf32, #tpu.memory_space<vmem>>, vector<16x196xf32>
    tpu.vector_store %arg19[%c80, %c0_126], %151 {strides = array<i32>} : memref<400x196xf32, #tpu.memory_space<vmem>>, vector<16x196xf32>,
    %c0_127 = arith.constant 0 : index
    %c17_128 = arith.constant 17 : index
    %153 = vector.load %arg18[%c0_127, %c17_128] : memref<16x260xf32, #tpu.memory_space<vmem>>, vector<16x196xf32>
    %c6_129 = arith.constant 6 : index
    %c0_130 = arith.constant 0 : index
    %154 = vector.load %arg8[%c6_129, %c0_130] : memref<25x196xf32, #tpu.memory_space<vmem>>, vector<1x196xf32>
    %155 = vector.broadcast %154 : vector<1x196xf32> to vector<16x196xf32>
    %156 = arith.mulf %153, %155 : vector<16x196xf32>
    %c96 = arith.constant 96 : index
    %c0_131 = arith.constant 0 : index
    %157 = vector.load %arg19[%c96, %c0_131] : memref<400x196xf32, #tpu.memory_space<vmem>>, vector<16x196xf32>
    tpu.vector_store %arg19[%c96, %c0_131], %156 {strides = array<i32>} : memref<400x196xf32, #tpu.memory_space<vmem>>, vector<16x196xf32>,
    %c0_132 = arith.constant 0 : index
    %c18_133 = arith.constant 18 : index
    %158 = vector.load %arg18[%c0_132, %c18_133] : memref<16x260xf32, #tpu.memory_space<vmem>>, vector<16x196xf32>
    %c7_134 = arith.constant 7 : index
    %c0_135 = arith.constant 0 : index
    %159 = vector.load %arg8[%c7_134, %c0_135] : memref<25x196xf32, #tpu.memory_space<vmem>>, vector<1x196xf32>
    %160 = vector.broadcast %159 : vector<1x196xf32> to vector<16x196xf32>
    %161 = arith.mulf %158, %160 : vector<16x196xf32>
    %c112 = arith.constant 112 : index
    %c0_136 = arith.constant 0 : index
    %162 = vector.load %arg19[%c112, %c0_136] : memref<400x196xf32, #tpu.memory_space<vmem>>, vector<16x196xf32>
    tpu.vector_store %arg19[%c112, %c0_136], %161 {strides = array<i32>} : memref<400x196xf32, #tpu.memory_space<vmem>>, vector<16x196xf32>,
    %c0_137 = arith.constant 0 : index
    %c19_138 = arith.constant 19 : index
    %163 = vector.load %arg18[%c0_137, %c19_138] : memref<16x260xf32, #tpu.memory_space<vmem>>, vector<16x196xf32>
    %c8_139 = arith.constant 8 : index
    %c0_140 = arith.constant 0 : index
    %164 = vector.load %arg8[%c8_139, %c0_140] : memref<25x196xf32, #tpu.memory_space<vmem>>, vector<1x196xf32>
    %165 = vector.broadcast %164 : vector<1x196xf32> to vector<16x196xf32>
    %166 = arith.mulf %163, %165 : vector<16x196xf32>
    %c128 = arith.constant 128 : index
    %c0_141 = arith.constant 0 : index
    %167 = vector.load %arg19[%c128, %c0_141] : memref<400x196xf32, #tpu.memory_space<vmem>>, vector<16x196xf32>
    tpu.vector_store %arg19[%c128, %c0_141], %166 {strides = array<i32>} : memref<400x196xf32, #tpu.memory_space<vmem>>, vector<16x196xf32>,
    %c0_142 = arith.constant 0 : index
    %c20_143 = arith.constant 20 : index
    %168 = vector.load %arg18[%c0_142, %c20_143] : memref<16x260xf32, #tpu.memory_space<vmem>>, vector<16x196xf32>
    %c9_144 = arith.constant 9 : index
    %c0_145 = arith.constant 0 : index
    %169 = vector.load %arg8[%c9_144, %c0_145] : memref<25x196xf32, #tpu.memory_space<vmem>>, vector<1x196xf32>
    %170 = vector.broadcast %169 : vector<1x196xf32> to vector<16x196xf32>
    %171 = arith.mulf %168, %170 : vector<16x196xf32>
    %c144 = arith.constant 144 : index
    %c0_146 = arith.constant 0 : index
    %172 = vector.load %arg19[%c144, %c0_146] : memref<400x196xf32, #tpu.memory_space<vmem>>, vector<16x196xf32>
    tpu.vector_store %arg19[%c144, %c0_146], %171 {strides = array<i32>} : memref<400x196xf32, #tpu.memory_space<vmem>>, vector<16x196xf32>,
    %c0_147 = arith.constant 0 : index
    %c30 = arith.constant 30 : index
    %173 = vector.load %arg18[%c0_147, %c30] : memref<16x260xf32, #tpu.memory_space<vmem>>, vector<16x196xf32>
    %c10_148 = arith.constant 10 : index
    %c0_149 = arith.constant 0 : index
    %174 = vector.load %arg8[%c10_148, %c0_149] : memref<25x196xf32, #tpu.memory_space<vmem>>, vector<1x196xf32>
    %175 = vector.broadcast %174 : vector<1x196xf32> to vector<16x196xf32>
    %176 = arith.mulf %173, %175 : vector<16x196xf32>
    %c160 = arith.constant 160 : index
    %c0_150 = arith.constant 0 : index
    %177 = vector.load %arg19[%c160, %c0_150] : memref<400x196xf32, #tpu.memory_space<vmem>>, vector<16x196xf32>
    tpu.vector_store %arg19[%c160, %c0_150], %176 {strides = array<i32>} : memref<400x196xf32, #tpu.memory_space<vmem>>, vector<16x196xf32>,
    %c0_151 = arith.constant 0 : index
    %c31 = arith.constant 31 : index
    %178 = vector.load %arg18[%c0_151, %c31] : memref<16x260xf32, #tpu.memory_space<vmem>>, vector<16x196xf32>
    %c11_152 = arith.constant 11 : index
    %c0_153 = arith.constant 0 : index
    %179 = vector.load %arg8[%c11_152, %c0_153] : memref<25x196xf32, #tpu.memory_space<vmem>>, vector<1x196xf32>
    %180 = vector.broadcast %179 : vector<1x196xf32> to vector<16x196xf32>
    %181 = arith.mulf %178, %180 : vector<16x196xf32>
    %c176 = arith.constant 176 : index
    %c0_154 = arith.constant 0 : index
    %182 = vector.load %arg19[%c176, %c0_154] : memref<400x196xf32, #tpu.memory_space<vmem>>, vector<16x196xf32>
    tpu.vector_store %arg19[%c176, %c0_154], %181 {strides = array<i32>} : memref<400x196xf32, #tpu.memory_space<vmem>>, vector<16x196xf32>,
    %c0_155 = arith.constant 0 : index
    %c32_156 = arith.constant 32 : index
    %183 = vector.load %arg18[%c0_155, %c32_156] : memref<16x260xf32, #tpu.memory_space<vmem>>, vector<16x196xf32>
    %c12_157 = arith.constant 12 : index
    %c0_158 = arith.constant 0 : index
    %184 = vector.load %arg8[%c12_157, %c0_158] : memref<25x196xf32, #tpu.memory_space<vmem>>, vector<1x196xf32>
    %185 = vector.broadcast %184 : vector<1x196xf32> to vector<16x196xf32>
    %186 = arith.mulf %183, %185 : vector<16x196xf32>
    %c192 = arith.constant 192 : index
    %c0_159 = arith.constant 0 : index
    %187 = vector.load %arg19[%c192, %c0_159] : memref<400x196xf32, #tpu.memory_space<vmem>>, vector<16x196xf32>
    tpu.vector_store %arg19[%c192, %c0_159], %186 {strides = array<i32>} : memref<400x196xf32, #tpu.memory_space<vmem>>, vector<16x196xf32>,
    %c0_160 = arith.constant 0 : index
    %c33 = arith.constant 33 : index
    %188 = vector.load %arg18[%c0_160, %c33] : memref<16x260xf32, #tpu.memory_space<vmem>>, vector<16x196xf32>
    %c13_161 = arith.constant 13 : index
    %c0_162 = arith.constant 0 : index
    %189 = vector.load %arg8[%c13_161, %c0_162] : memref<25x196xf32, #tpu.memory_space<vmem>>, vector<1x196xf32>
    %190 = vector.broadcast %189 : vector<1x196xf32> to vector<16x196xf32>
    %191 = arith.mulf %188, %190 : vector<16x196xf32>
    %c208 = arith.constant 208 : index
    %c0_163 = arith.constant 0 : index
    %192 = vector.load %arg19[%c208, %c0_163] : memref<400x196xf32, #tpu.memory_space<vmem>>, vector<16x196xf32>
    tpu.vector_store %arg19[%c208, %c0_163], %191 {strides = array<i32>} : memref<400x196xf32, #tpu.memory_space<vmem>>, vector<16x196xf32>,
    %c0_164 = arith.constant 0 : index
    %c34 = arith.constant 34 : index
    %193 = vector.load %arg18[%c0_164, %c34] : memref<16x260xf32, #tpu.memory_space<vmem>>, vector<16x196xf32>
    %c14_165 = arith.constant 14 : index
    %c0_166 = arith.constant 0 : index
    %194 = vector.load %arg8[%c14_165, %c0_166] : memref<25x196xf32, #tpu.memory_space<vmem>>, vector<1x196xf32>
    %195 = vector.broadcast %194 : vector<1x196xf32> to vector<16x196xf32>
    %196 = arith.mulf %193, %195 : vector<16x196xf32>
    %c224 = arith.constant 224 : index
    %c0_167 = arith.constant 0 : index
    %197 = vector.load %arg19[%c224, %c0_167] : memref<400x196xf32, #tpu.memory_space<vmem>>, vector<16x196xf32>
    tpu.vector_store %arg19[%c224, %c0_167], %196 {strides = array<i32>} : memref<400x196xf32, #tpu.memory_space<vmem>>, vector<16x196xf32>,
    %c0_168 = arith.constant 0 : index
    %c44 = arith.constant 44 : index
    %198 = vector.load %arg18[%c0_168, %c44] : memref<16x260xf32, #tpu.memory_space<vmem>>, vector<16x196xf32>
    %c15_169 = arith.constant 15 : index
    %c0_170 = arith.constant 0 : index
    %199 = vector.load %arg8[%c15_169, %c0_170] : memref<25x196xf32, #tpu.memory_space<vmem>>, vector<1x196xf32>
    %200 = vector.broadcast %199 : vector<1x196xf32> to vector<16x196xf32>
    %201 = arith.mulf %198, %200 : vector<16x196xf32>
    %c240 = arith.constant 240 : index
    %c0_171 = arith.constant 0 : index
    %202 = vector.load %arg19[%c240, %c0_171] : memref<400x196xf32, #tpu.memory_space<vmem>>, vector<16x196xf32>
    tpu.vector_store %arg19[%c240, %c0_171], %201 {strides = array<i32>} : memref<400x196xf32, #tpu.memory_space<vmem>>, vector<16x196xf32>,
    %c0_172 = arith.constant 0 : index
    %c45 = arith.constant 45 : index
    %203 = vector.load %arg18[%c0_172, %c45] : memref<16x260xf32, #tpu.memory_space<vmem>>, vector<16x196xf32>
    %c16_173 = arith.constant 16 : index
    %c0_174 = arith.constant 0 : index
    %204 = vector.load %arg8[%c16_173, %c0_174] : memref<25x196xf32, #tpu.memory_space<vmem>>, vector<1x196xf32>
    %205 = vector.broadcast %204 : vector<1x196xf32> to vector<16x196xf32>
    %206 = arith.mulf %203, %205 : vector<16x196xf32>
    %c256 = arith.constant 256 : index
    %c0_175 = arith.constant 0 : index
    %207 = vector.load %arg19[%c256, %c0_175] : memref<400x196xf32, #tpu.memory_space<vmem>>, vector<16x196xf32>
    tpu.vector_store %arg19[%c256, %c0_175], %206 {strides = array<i32>} : memref<400x196xf32, #tpu.memory_space<vmem>>, vector<16x196xf32>,
    %c0_176 = arith.constant 0 : index
    %c46 = arith.constant 46 : index
    %208 = vector.load %arg18[%c0_176, %c46] : memref<16x260xf32, #tpu.memory_space<vmem>>, vector<16x196xf32>
    %c17_177 = arith.constant 17 : index
    %c0_178 = arith.constant 0 : index
    %209 = vector.load %arg8[%c17_177, %c0_178] : memref<25x196xf32, #tpu.memory_space<vmem>>, vector<1x196xf32>
    %210 = vector.broadcast %209 : vector<1x196xf32> to vector<16x196xf32>
    %211 = arith.mulf %208, %210 : vector<16x196xf32>
    %c272 = arith.constant 272 : index
    %c0_179 = arith.constant 0 : index
    %212 = vector.load %arg19[%c272, %c0_179] : memref<400x196xf32, #tpu.memory_space<vmem>>, vector<16x196xf32>
    tpu.vector_store %arg19[%c272, %c0_179], %211 {strides = array<i32>} : memref<400x196xf32, #tpu.memory_space<vmem>>, vector<16x196xf32>,
    %c0_180 = arith.constant 0 : index
    %c47 = arith.constant 47 : index
    %213 = vector.load %arg18[%c0_180, %c47] : memref<16x260xf32, #tpu.memory_space<vmem>>, vector<16x196xf32>
    %c18_181 = arith.constant 18 : index
    %c0_182 = arith.constant 0 : index
    %214 = vector.load %arg8[%c18_181, %c0_182] : memref<25x196xf32, #tpu.memory_space<vmem>>, vector<1x196xf32>
    %215 = vector.broadcast %214 : vector<1x196xf32> to vector<16x196xf32>
    %216 = arith.mulf %213, %215 : vector<16x196xf32>
    %c288 = arith.constant 288 : index
    %c0_183 = arith.constant 0 : index
    %217 = vector.load %arg19[%c288, %c0_183] : memref<400x196xf32, #tpu.memory_space<vmem>>, vector<16x196xf32>
    tpu.vector_store %arg19[%c288, %c0_183], %216 {strides = array<i32>} : memref<400x196xf32, #tpu.memory_space<vmem>>, vector<16x196xf32>,
    %c0_184 = arith.constant 0 : index
    %c48_185 = arith.constant 48 : index
    %218 = vector.load %arg18[%c0_184, %c48_185] : memref<16x260xf32, #tpu.memory_space<vmem>>, vector<16x196xf32>
    %c19_186 = arith.constant 19 : index
    %c0_187 = arith.constant 0 : index
    %219 = vector.load %arg8[%c19_186, %c0_187] : memref<25x196xf32, #tpu.memory_space<vmem>>, vector<1x196xf32>
    %220 = vector.broadcast %219 : vector<1x196xf32> to vector<16x196xf32>
    %221 = arith.mulf %218, %220 : vector<16x196xf32>
    %c304 = arith.constant 304 : index
    %c0_188 = arith.constant 0 : index
    %222 = vector.load %arg19[%c304, %c0_188] : memref<400x196xf32, #tpu.memory_space<vmem>>, vector<16x196xf32>
    tpu.vector_store %arg19[%c304, %c0_188], %221 {strides = array<i32>} : memref<400x196xf32, #tpu.memory_space<vmem>>, vector<16x196xf32>,
    %c0_189 = arith.constant 0 : index
    %c58 = arith.constant 58 : index
    %223 = vector.load %arg18[%c0_189, %c58] : memref<16x260xf32, #tpu.memory_space<vmem>>, vector<16x196xf32>
    %c20_190 = arith.constant 20 : index
    %c0_191 = arith.constant 0 : index
    %224 = vector.load %arg8[%c20_190, %c0_191] : memref<25x196xf32, #tpu.memory_space<vmem>>, vector<1x196xf32>
    %225 = vector.broadcast %224 : vector<1x196xf32> to vector<16x196xf32>
    %226 = arith.mulf %223, %225 : vector<16x196xf32>
    %c320 = arith.constant 320 : index
    %c0_192 = arith.constant 0 : index
    %227 = vector.load %arg19[%c320, %c0_192] : memref<400x196xf32, #tpu.memory_space<vmem>>, vector<16x196xf32>
    tpu.vector_store %arg19[%c320, %c0_192], %226 {strides = array<i32>} : memref<400x196xf32, #tpu.memory_space<vmem>>, vector<16x196xf32>,
    %c0_193 = arith.constant 0 : index
    %c59 = arith.constant 59 : index
    %228 = vector.load %arg18[%c0_193, %c59] : memref<16x260xf32, #tpu.memory_space<vmem>>, vector<16x196xf32>
    %c21_194 = arith.constant 21 : index
    %c0_195 = arith.constant 0 : index
    %229 = vector.load %arg8[%c21_194, %c0_195] : memref<25x196xf32, #tpu.memory_space<vmem>>, vector<1x196xf32>
    %230 = vector.broadcast %229 : vector<1x196xf32> to vector<16x196xf32>
    %231 = arith.mulf %228, %230 : vector<16x196xf32>
    %c336 = arith.constant 336 : index
    %c0_196 = arith.constant 0 : index
    %232 = vector.load %arg19[%c336, %c0_196] : memref<400x196xf32, #tpu.memory_space<vmem>>, vector<16x196xf32>
    tpu.vector_store %arg19[%c336, %c0_196], %231 {strides = array<i32>} : memref<400x196xf32, #tpu.memory_space<vmem>>, vector<16x196xf32>,
    %c0_197 = arith.constant 0 : index
    %c60 = arith.constant 60 : index
    %233 = vector.load %arg18[%c0_197, %c60] : memref<16x260xf32, #tpu.memory_space<vmem>>, vector<16x196xf32>
    %c22_198 = arith.constant 22 : index
    %c0_199 = arith.constant 0 : index
    %234 = vector.load %arg8[%c22_198, %c0_199] : memref<25x196xf32, #tpu.memory_space<vmem>>, vector<1x196xf32>
    %235 = vector.broadcast %234 : vector<1x196xf32> to vector<16x196xf32>
    %236 = arith.mulf %233, %235 : vector<16x196xf32>
    %c352 = arith.constant 352 : index
    %c0_200 = arith.constant 0 : index
    %237 = vector.load %arg19[%c352, %c0_200] : memref<400x196xf32, #tpu.memory_space<vmem>>, vector<16x196xf32>
    tpu.vector_store %arg19[%c352, %c0_200], %236 {strides = array<i32>} : memref<400x196xf32, #tpu.memory_space<vmem>>, vector<16x196xf32>,
    %c0_201 = arith.constant 0 : index
    %c61 = arith.constant 61 : index
    %238 = vector.load %arg18[%c0_201, %c61] : memref<16x260xf32, #tpu.memory_space<vmem>>, vector<16x196xf32>
    %c23_202 = arith.constant 23 : index
    %c0_203 = arith.constant 0 : index
    %239 = vector.load %arg8[%c23_202, %c0_203] : memref<25x196xf32, #tpu.memory_space<vmem>>, vector<1x196xf32>
    %240 = vector.broadcast %239 : vector<1x196xf32> to vector<16x196xf32>
    %241 = arith.mulf %238, %240 : vector<16x196xf32>
    %c368 = arith.constant 368 : index
    %c0_204 = arith.constant 0 : index
    %242 = vector.load %arg19[%c368, %c0_204] : memref<400x196xf32, #tpu.memory_space<vmem>>, vector<16x196xf32>
    tpu.vector_store %arg19[%c368, %c0_204], %241 {strides = array<i32>} : memref<400x196xf32, #tpu.memory_space<vmem>>, vector<16x196xf32>,
    %c0_205 = arith.constant 0 : index
    %c62 = arith.constant 62 : index
    %243 = vector.load %arg18[%c0_205, %c62] : memref<16x260xf32, #tpu.memory_space<vmem>>, vector<16x196xf32>
    %c24_206 = arith.constant 24 : index
    %c0_207 = arith.constant 0 : index
    %244 = vector.load %arg8[%c24_206, %c0_207] : memref<25x196xf32, #tpu.memory_space<vmem>>, vector<1x196xf32>
    %245 = vector.broadcast %244 : vector<1x196xf32> to vector<16x196xf32>
    %246 = arith.mulf %243, %245 : vector<16x196xf32>
    %c384 = arith.constant 384 : index
    %c0_208 = arith.constant 0 : index
    %247 = vector.load %arg19[%c384, %c0_208] : memref<400x196xf32, #tpu.memory_space<vmem>>, vector<16x196xf32>
    tpu.vector_store %arg19[%c384, %c0_208], %246 {strides = array<i32>} : memref<400x196xf32, #tpu.memory_space<vmem>>, vector<16x196xf32>,
    %c0_209 = arith.constant 0 : index
    %c0_210 = arith.constant 0 : index
    %248 = vector.load %arg6[%c0_209, %c0_210] : memref<32x400xf32, #tpu.memory_space<vmem>>, vector<32x400xf32>
    %c0_211 = arith.constant 0 : index
    %c0_212 = arith.constant 0 : index
    %249 = vector.load %arg19[%c0_211, %c0_212] : memref<400x196xf32, #tpu.memory_space<vmem>>, vector<400x196xf32>
    %cst_213 = arith.constant dense<0.000000e+00> : vector<32x196xf32>
    %250 = tpu.matmul %248, %249, %cst_213 {dimension_numbers = #tpu.dot_dimension_numbers<[1], [0], [0], [1], [0, 0, 1, 1], [], []>} : vector<32x400xf32>, vector<400x196xf32>, vector<32x196xf32> -> vector<32x196xf32>
    %c0_214 = arith.constant 0 : index
    %c0_215 = arith.constant 0 : index
    %251 = vector.load %arg7[%c0_214, %c0_215] : memref<32x1xf32, #tpu.memory_space<vmem>>, vector<32x1xf32>
    %252 = vector.broadcast %251 : vector<32x1xf32> to vector<32x196xf32>
    %253 = arith.addf %250, %252 : vector<32x196xf32>
    %c0_216 = arith.constant 0 : index
    %c0_217 = arith.constant 0 : index
    %254 = vector.load %arg9[%c0_216, %c0_217] : memref<181x49xf32, #tpu.memory_space<vmem>>, vector<181x49xf32>
    %255 = vector.extract_strided_slice %253 {offsets = [0, 0], sizes = [32, 181], strides = [1, 1]} : vector<32x196xf32> to vector<32x181xf32>
    %cst_218 = arith.constant dense<0.000000e+00> : vector<32x49xf32>
    %256 = tpu.matmul %255, %254, %cst_218 {dimension_numbers = #tpu.dot_dimension_numbers<[1], [0], [0], [1], [0, 0, 1, 1], [], []>} : vector<32x181xf32>, vector<181x49xf32>, vector<32x49xf32> -> vector<32x49xf32>
    %257 = vector.extract_strided_slice %253 {offsets = [0, 1], sizes = [32, 181], strides = [1, 1]} : vector<32x196xf32> to vector<32x181xf32>
    %cst_219 = arith.constant dense<0.000000e+00> : vector<32x49xf32>
    %258 = tpu.matmul %257, %254, %cst_219 {dimension_numbers = #tpu.dot_dimension_numbers<[1], [0], [0], [1], [0, 0, 1, 1], [], []>} : vector<32x181xf32>, vector<181x49xf32>, vector<32x49xf32> -> vector<32x49xf32>
    %259 = arith.maximumf %256, %258 : vector<32x49xf32>
    %260 = vector.extract_strided_slice %253 {offsets = [0, 14], sizes = [32, 181], strides = [1, 1]} : vector<32x196xf32> to vector<32x181xf32>
    %cst_220 = arith.constant dense<0.000000e+00> : vector<32x49xf32>
    %261 = tpu.matmul %260, %254, %cst_220 {dimension_numbers = #tpu.dot_dimension_numbers<[1], [0], [0], [1], [0, 0, 1, 1], [], []>} : vector<32x181xf32>, vector<181x49xf32>, vector<32x49xf32> -> vector<32x49xf32>
    %262 = arith.maximumf %259, %261 : vector<32x49xf32>
    %263 = vector.extract_strided_slice %253 {offsets = [0, 15], sizes = [32, 181], strides = [1, 1]} : vector<32x196xf32> to vector<32x181xf32>
    %cst_221 = arith.constant dense<0.000000e+00> : vector<32x49xf32>
    %264 = tpu.matmul %263, %254, %cst_221 {dimension_numbers = #tpu.dot_dimension_numbers<[1], [0], [0], [1], [0, 0, 1, 1], [], []>} : vector<32x181xf32>, vector<181x49xf32>, vector<32x49xf32> -> vector<32x49xf32>
    %265 = arith.maximumf %262, %264 : vector<32x49xf32>
    %266 = vector.extract_strided_slice %265 {offsets = [0, 0], sizes = [1, 49], strides = [1, 1]} : vector<32x49xf32> to vector<1x49xf32>
    %c0_222 = arith.constant 0 : index
    %c0_223 = arith.constant 0 : index
    %267 = vector.load %arg20[%c0_222, %c0_223] : memref<1x1568xf32, #tpu.memory_space<vmem>>, vector<1x49xf32>
    tpu.vector_store %arg20[%c0_222, %c0_223], %266 {strides = array<i32>} : memref<1x1568xf32, #tpu.memory_space<vmem>>, vector<1x49xf32>,
    %268 = vector.extract_strided_slice %265 {offsets = [1, 0], sizes = [1, 49], strides = [1, 1]} : vector<32x49xf32> to vector<1x49xf32>
    %c0_224 = arith.constant 0 : index
    %c49 = arith.constant 49 : index
    %269 = vector.load %arg20[%c0_224, %c49] : memref<1x1568xf32, #tpu.memory_space<vmem>>, vector<1x49xf32>
    tpu.vector_store %arg20[%c0_224, %c49], %268 {strides = array<i32>} : memref<1x1568xf32, #tpu.memory_space<vmem>>, vector<1x49xf32>,
    %270 = vector.extract_strided_slice %265 {offsets = [2, 0], sizes = [1, 49], strides = [1, 1]} : vector<32x49xf32> to vector<1x49xf32>
    %c0_225 = arith.constant 0 : index
    %c98 = arith.constant 98 : index
    %271 = vector.load %arg20[%c0_225, %c98] : memref<1x1568xf32, #tpu.memory_space<vmem>>, vector<1x49xf32>
    tpu.vector_store %arg20[%c0_225, %c98], %270 {strides = array<i32>} : memref<1x1568xf32, #tpu.memory_space<vmem>>, vector<1x49xf32>,
    %272 = vector.extract_strided_slice %265 {offsets = [3, 0], sizes = [1, 49], strides = [1, 1]} : vector<32x49xf32> to vector<1x49xf32>
    %c0_226 = arith.constant 0 : index
    %c147 = arith.constant 147 : index
    %273 = vector.load %arg20[%c0_226, %c147] : memref<1x1568xf32, #tpu.memory_space<vmem>>, vector<1x49xf32>
    tpu.vector_store %arg20[%c0_226, %c147], %272 {strides = array<i32>} : memref<1x1568xf32, #tpu.memory_space<vmem>>, vector<1x49xf32>,
    %274 = vector.extract_strided_slice %265 {offsets = [4, 0], sizes = [1, 49], strides = [1, 1]} : vector<32x49xf32> to vector<1x49xf32>
    %c0_227 = arith.constant 0 : index
    %c196 = arith.constant 196 : index
    %275 = vector.load %arg20[%c0_227, %c196] : memref<1x1568xf32, #tpu.memory_space<vmem>>, vector<1x49xf32>
    tpu.vector_store %arg20[%c0_227, %c196], %274 {strides = array<i32>} : memref<1x1568xf32, #tpu.memory_space<vmem>>, vector<1x49xf32>,
    %276 = vector.extract_strided_slice %265 {offsets = [5, 0], sizes = [1, 49], strides = [1, 1]} : vector<32x49xf32> to vector<1x49xf32>
    %c0_228 = arith.constant 0 : index
    %c245 = arith.constant 245 : index
    %277 = vector.load %arg20[%c0_228, %c245] : memref<1x1568xf32, #tpu.memory_space<vmem>>, vector<1x49xf32>
    tpu.vector_store %arg20[%c0_228, %c245], %276 {strides = array<i32>} : memref<1x1568xf32, #tpu.memory_space<vmem>>, vector<1x49xf32>,
    %278 = vector.extract_strided_slice %265 {offsets = [6, 0], sizes = [1, 49], strides = [1, 1]} : vector<32x49xf32> to vector<1x49xf32>
    %c0_229 = arith.constant 0 : index
    %c294 = arith.constant 294 : index
    %279 = vector.load %arg20[%c0_229, %c294] : memref<1x1568xf32, #tpu.memory_space<vmem>>, vector<1x49xf32>
    tpu.vector_store %arg20[%c0_229, %c294], %278 {strides = array<i32>} : memref<1x1568xf32, #tpu.memory_space<vmem>>, vector<1x49xf32>,
    %280 = vector.extract_strided_slice %265 {offsets = [7, 0], sizes = [1, 49], strides = [1, 1]} : vector<32x49xf32> to vector<1x49xf32>
    %c0_230 = arith.constant 0 : index
    %c343 = arith.constant 343 : index
    %281 = vector.load %arg20[%c0_230, %c343] : memref<1x1568xf32, #tpu.memory_space<vmem>>, vector<1x49xf32>
    tpu.vector_store %arg20[%c0_230, %c343], %280 {strides = array<i32>} : memref<1x1568xf32, #tpu.memory_space<vmem>>, vector<1x49xf32>,
    %282 = vector.extract_strided_slice %265 {offsets = [8, 0], sizes = [1, 49], strides = [1, 1]} : vector<32x49xf32> to vector<1x49xf32>
    %c0_231 = arith.constant 0 : index
    %c392 = arith.constant 392 : index
    %283 = vector.load %arg20[%c0_231, %c392] : memref<1x1568xf32, #tpu.memory_space<vmem>>, vector<1x49xf32>
    tpu.vector_store %arg20[%c0_231, %c392], %282 {strides = array<i32>} : memref<1x1568xf32, #tpu.memory_space<vmem>>, vector<1x49xf32>,
    %284 = vector.extract_strided_slice %265 {offsets = [9, 0], sizes = [1, 49], strides = [1, 1]} : vector<32x49xf32> to vector<1x49xf32>
    %c0_232 = arith.constant 0 : index
    %c441 = arith.constant 441 : index
    %285 = vector.load %arg20[%c0_232, %c441] : memref<1x1568xf32, #tpu.memory_space<vmem>>, vector<1x49xf32>
    tpu.vector_store %arg20[%c0_232, %c441], %284 {strides = array<i32>} : memref<1x1568xf32, #tpu.memory_space<vmem>>, vector<1x49xf32>,
    %286 = vector.extract_strided_slice %265 {offsets = [10, 0], sizes = [1, 49], strides = [1, 1]} : vector<32x49xf32> to vector<1x49xf32>
    %c0_233 = arith.constant 0 : index
    %c490 = arith.constant 490 : index
    %287 = vector.load %arg20[%c0_233, %c490] : memref<1x1568xf32, #tpu.memory_space<vmem>>, vector<1x49xf32>
    tpu.vector_store %arg20[%c0_233, %c490], %286 {strides = array<i32>} : memref<1x1568xf32, #tpu.memory_space<vmem>>, vector<1x49xf32>,
    %288 = vector.extract_strided_slice %265 {offsets = [11, 0], sizes = [1, 49], strides = [1, 1]} : vector<32x49xf32> to vector<1x49xf32>
    %c0_234 = arith.constant 0 : index
    %c539 = arith.constant 539 : index
    %289 = vector.load %arg20[%c0_234, %c539] : memref<1x1568xf32, #tpu.memory_space<vmem>>, vector<1x49xf32>
    tpu.vector_store %arg20[%c0_234, %c539], %288 {strides = array<i32>} : memref<1x1568xf32, #tpu.memory_space<vmem>>, vector<1x49xf32>,
    %290 = vector.extract_strided_slice %265 {offsets = [12, 0], sizes = [1, 49], strides = [1, 1]} : vector<32x49xf32> to vector<1x49xf32>
    %c0_235 = arith.constant 0 : index
    %c588 = arith.constant 588 : index
    %291 = vector.load %arg20[%c0_235, %c588] : memref<1x1568xf32, #tpu.memory_space<vmem>>, vector<1x49xf32>
    tpu.vector_store %arg20[%c0_235, %c588], %290 {strides = array<i32>} : memref<1x1568xf32, #tpu.memory_space<vmem>>, vector<1x49xf32>,
    %292 = vector.extract_strided_slice %265 {offsets = [13, 0], sizes = [1, 49], strides = [1, 1]} : vector<32x49xf32> to vector<1x49xf32>
    %c0_236 = arith.constant 0 : index
    %c637 = arith.constant 637 : index
    %293 = vector.load %arg20[%c0_236, %c637] : memref<1x1568xf32, #tpu.memory_space<vmem>>, vector<1x49xf32>
    tpu.vector_store %arg20[%c0_236, %c637], %292 {strides = array<i32>} : memref<1x1568xf32, #tpu.memory_space<vmem>>, vector<1x49xf32>,
    %294 = vector.extract_strided_slice %265 {offsets = [14, 0], sizes = [1, 49], strides = [1, 1]} : vector<32x49xf32> to vector<1x49xf32>
    %c0_237 = arith.constant 0 : index
    %c686 = arith.constant 686 : index
    %295 = vector.load %arg20[%c0_237, %c686] : memref<1x1568xf32, #tpu.memory_space<vmem>>, vector<1x49xf32>
    tpu.vector_store %arg20[%c0_237, %c686], %294 {strides = array<i32>} : memref<1x1568xf32, #tpu.memory_space<vmem>>, vector<1x49xf32>,
    %296 = vector.extract_strided_slice %265 {offsets = [15, 0], sizes = [1, 49], strides = [1, 1]} : vector<32x49xf32> to vector<1x49xf32>
    %c0_238 = arith.constant 0 : index
    %c735 = arith.constant 735 : index
    %297 = vector.load %arg20[%c0_238, %c735] : memref<1x1568xf32, #tpu.memory_space<vmem>>, vector<1x49xf32>
    tpu.vector_store %arg20[%c0_238, %c735], %296 {strides = array<i32>} : memref<1x1568xf32, #tpu.memory_space<vmem>>, vector<1x49xf32>,
    %298 = vector.extract_strided_slice %265 {offsets = [16, 0], sizes = [1, 49], strides = [1, 1]} : vector<32x49xf32> to vector<1x49xf32>
    %c0_239 = arith.constant 0 : index
    %c784 = arith.constant 784 : index
    %299 = vector.load %arg20[%c0_239, %c784] : memref<1x1568xf32, #tpu.memory_space<vmem>>, vector<1x49xf32>
    tpu.vector_store %arg20[%c0_239, %c784], %298 {strides = array<i32>} : memref<1x1568xf32, #tpu.memory_space<vmem>>, vector<1x49xf32>,
    %300 = vector.extract_strided_slice %265 {offsets = [17, 0], sizes = [1, 49], strides = [1, 1]} : vector<32x49xf32> to vector<1x49xf32>
    %c0_240 = arith.constant 0 : index
    %c833 = arith.constant 833 : index
    %301 = vector.load %arg20[%c0_240, %c833] : memref<1x1568xf32, #tpu.memory_space<vmem>>, vector<1x49xf32>
    tpu.vector_store %arg20[%c0_240, %c833], %300 {strides = array<i32>} : memref<1x1568xf32, #tpu.memory_space<vmem>>, vector<1x49xf32>,
    %302 = vector.extract_strided_slice %265 {offsets = [18, 0], sizes = [1, 49], strides = [1, 1]} : vector<32x49xf32> to vector<1x49xf32>
    %c0_241 = arith.constant 0 : index
    %c882 = arith.constant 882 : index
    %303 = vector.load %arg20[%c0_241, %c882] : memref<1x1568xf32, #tpu.memory_space<vmem>>, vector<1x49xf32>
    tpu.vector_store %arg20[%c0_241, %c882], %302 {strides = array<i32>} : memref<1x1568xf32, #tpu.memory_space<vmem>>, vector<1x49xf32>,
    %304 = vector.extract_strided_slice %265 {offsets = [19, 0], sizes = [1, 49], strides = [1, 1]} : vector<32x49xf32> to vector<1x49xf32>
    %c0_242 = arith.constant 0 : index
    %c931 = arith.constant 931 : index
    %305 = vector.load %arg20[%c0_242, %c931] : memref<1x1568xf32, #tpu.memory_space<vmem>>, vector<1x49xf32>
    tpu.vector_store %arg20[%c0_242, %c931], %304 {strides = array<i32>} : memref<1x1568xf32, #tpu.memory_space<vmem>>, vector<1x49xf32>,
    %306 = vector.extract_strided_slice %265 {offsets = [20, 0], sizes = [1, 49], strides = [1, 1]} : vector<32x49xf32> to vector<1x49xf32>
    %c0_243 = arith.constant 0 : index
    %c980 = arith.constant 980 : index
    %307 = vector.load %arg20[%c0_243, %c980] : memref<1x1568xf32, #tpu.memory_space<vmem>>, vector<1x49xf32>
    tpu.vector_store %arg20[%c0_243, %c980], %306 {strides = array<i32>} : memref<1x1568xf32, #tpu.memory_space<vmem>>, vector<1x49xf32>,
    %308 = vector.extract_strided_slice %265 {offsets = [21, 0], sizes = [1, 49], strides = [1, 1]} : vector<32x49xf32> to vector<1x49xf32>
    %c0_244 = arith.constant 0 : index
    %c1029 = arith.constant 1029 : index
    %309 = vector.load %arg20[%c0_244, %c1029] : memref<1x1568xf32, #tpu.memory_space<vmem>>, vector<1x49xf32>
    tpu.vector_store %arg20[%c0_244, %c1029], %308 {strides = array<i32>} : memref<1x1568xf32, #tpu.memory_space<vmem>>, vector<1x49xf32>,
    %310 = vector.extract_strided_slice %265 {offsets = [22, 0], sizes = [1, 49], strides = [1, 1]} : vector<32x49xf32> to vector<1x49xf32>
    %c0_245 = arith.constant 0 : index
    %c1078 = arith.constant 1078 : index
    %311 = vector.load %arg20[%c0_245, %c1078] : memref<1x1568xf32, #tpu.memory_space<vmem>>, vector<1x49xf32>
    tpu.vector_store %arg20[%c0_245, %c1078], %310 {strides = array<i32>} : memref<1x1568xf32, #tpu.memory_space<vmem>>, vector<1x49xf32>,
    %312 = vector.extract_strided_slice %265 {offsets = [23, 0], sizes = [1, 49], strides = [1, 1]} : vector<32x49xf32> to vector<1x49xf32>
    %c0_246 = arith.constant 0 : index
    %c1127 = arith.constant 1127 : index
    %313 = vector.load %arg20[%c0_246, %c1127] : memref<1x1568xf32, #tpu.memory_space<vmem>>, vector<1x49xf32>
    tpu.vector_store %arg20[%c0_246, %c1127], %312 {strides = array<i32>} : memref<1x1568xf32, #tpu.memory_space<vmem>>, vector<1x49xf32>,
    %314 = vector.extract_strided_slice %265 {offsets = [24, 0], sizes = [1, 49], strides = [1, 1]} : vector<32x49xf32> to vector<1x49xf32>
    %c0_247 = arith.constant 0 : index
    %c1176 = arith.constant 1176 : index
    %315 = vector.load %arg20[%c0_247, %c1176] : memref<1x1568xf32, #tpu.memory_space<vmem>>, vector<1x49xf32>
    tpu.vector_store %arg20[%c0_247, %c1176], %314 {strides = array<i32>} : memref<1x1568xf32, #tpu.memory_space<vmem>>, vector<1x49xf32>,
    %316 = vector.extract_strided_slice %265 {offsets = [25, 0], sizes = [1, 49], strides = [1, 1]} : vector<32x49xf32> to vector<1x49xf32>
    %c0_248 = arith.constant 0 : index
    %c1225 = arith.constant 1225 : index
    %317 = vector.load %arg20[%c0_248, %c1225] : memref<1x1568xf32, #tpu.memory_space<vmem>>, vector<1x49xf32>
    tpu.vector_store %arg20[%c0_248, %c1225], %316 {strides = array<i32>} : memref<1x1568xf32, #tpu.memory_space<vmem>>, vector<1x49xf32>,
    %318 = vector.extract_strided_slice %265 {offsets = [26, 0], sizes = [1, 49], strides = [1, 1]} : vector<32x49xf32> to vector<1x49xf32>
    %c0_249 = arith.constant 0 : index
    %c1274 = arith.constant 1274 : index
    %319 = vector.load %arg20[%c0_249, %c1274] : memref<1x1568xf32, #tpu.memory_space<vmem>>, vector<1x49xf32>
    tpu.vector_store %arg20[%c0_249, %c1274], %318 {strides = array<i32>} : memref<1x1568xf32, #tpu.memory_space<vmem>>, vector<1x49xf32>,
    %320 = vector.extract_strided_slice %265 {offsets = [27, 0], sizes = [1, 49], strides = [1, 1]} : vector<32x49xf32> to vector<1x49xf32>
    %c0_250 = arith.constant 0 : index
    %c1323 = arith.constant 1323 : index
    %321 = vector.load %arg20[%c0_250, %c1323] : memref<1x1568xf32, #tpu.memory_space<vmem>>, vector<1x49xf32>
    tpu.vector_store %arg20[%c0_250, %c1323], %320 {strides = array<i32>} : memref<1x1568xf32, #tpu.memory_space<vmem>>, vector<1x49xf32>,
    %322 = vector.extract_strided_slice %265 {offsets = [28, 0], sizes = [1, 49], strides = [1, 1]} : vector<32x49xf32> to vector<1x49xf32>
    %c0_251 = arith.constant 0 : index
    %c1372 = arith.constant 1372 : index
    %323 = vector.load %arg20[%c0_251, %c1372] : memref<1x1568xf32, #tpu.memory_space<vmem>>, vector<1x49xf32>
    tpu.vector_store %arg20[%c0_251, %c1372], %322 {strides = array<i32>} : memref<1x1568xf32, #tpu.memory_space<vmem>>, vector<1x49xf32>,
    %324 = vector.extract_strided_slice %265 {offsets = [29, 0], sizes = [1, 49], strides = [1, 1]} : vector<32x49xf32> to vector<1x49xf32>
    %c0_252 = arith.constant 0 : index
    %c1421 = arith.constant 1421 : index
    %325 = vector.load %arg20[%c0_252, %c1421] : memref<1x1568xf32, #tpu.memory_space<vmem>>, vector<1x49xf32>
    tpu.vector_store %arg20[%c0_252, %c1421], %324 {strides = array<i32>} : memref<1x1568xf32, #tpu.memory_space<vmem>>, vector<1x49xf32>,
    %326 = vector.extract_strided_slice %265 {offsets = [30, 0], sizes = [1, 49], strides = [1, 1]} : vector<32x49xf32> to vector<1x49xf32>
    %c0_253 = arith.constant 0 : index
    %c1470 = arith.constant 1470 : index
    %327 = vector.load %arg20[%c0_253, %c1470] : memref<1x1568xf32, #tpu.memory_space<vmem>>, vector<1x49xf32>
    tpu.vector_store %arg20[%c0_253, %c1470], %326 {strides = array<i32>} : memref<1x1568xf32, #tpu.memory_space<vmem>>, vector<1x49xf32>,
    %328 = vector.extract_strided_slice %265 {offsets = [31, 0], sizes = [1, 49], strides = [1, 1]} : vector<32x49xf32> to vector<1x49xf32>
    %c0_254 = arith.constant 0 : index
    %c1519 = arith.constant 1519 : index
    %329 = vector.load %arg20[%c0_254, %c1519] : memref<1x1568xf32, #tpu.memory_space<vmem>>, vector<1x49xf32>
    tpu.vector_store %arg20[%c0_254, %c1519], %328 {strides = array<i32>} : memref<1x1568xf32, #tpu.memory_space<vmem>>, vector<1x49xf32>,
    %c0_255 = arith.constant 0 : index
    %c0_256 = arith.constant 0 : index
    %330 = vector.load %arg20[%c0_255, %c0_256] : memref<1x1568xf32, #tpu.memory_space<vmem>>, vector<1x1568xf32>
    %c0_257 = arith.constant 0 : index
    %c0_258 = arith.constant 0 : index
    %331 = vector.load %arg10[%c0_257, %c0_258] : memref<120x1568xf32, #tpu.memory_space<vmem>>, vector<120x1568xf32>
    %cst_259 = arith.constant dense<0.000000e+00> : vector<1x120xf32>
    %332 = tpu.matmul %330, %331, %cst_259 {dimension_numbers = #tpu.dot_dimension_numbers<[1], [1], [0], [0], [0, 0, 1, 0], [], []>} : vector<1x1568xf32>, vector<120x1568xf32>, vector<1x120xf32> -> vector<1x120xf32>
    %c0_260 = arith.constant 0 : index
    %c0_261 = arith.constant 0 : index
    %333 = vector.load %arg11[%c0_260, %c0_261] : memref<1x120xf32, #tpu.memory_space<vmem>>, vector<1x120xf32>
    %334 = arith.addf %332, %333 : vector<1x120xf32>
    %c0_262 = arith.constant 0 : index
    %c0_263 = arith.constant 0 : index
    %335 = vector.load %arg12[%c0_262, %c0_263] : memref<84x120xf32, #tpu.memory_space<vmem>>, vector<84x120xf32>
    %cst_264 = arith.constant dense<0.000000e+00> : vector<1x84xf32>
    %336 = tpu.matmul %334, %335, %cst_264 {dimension_numbers = #tpu.dot_dimension_numbers<[1], [1], [0], [0], [0, 0, 1, 0], [], []>} : vector<1x120xf32>, vector<84x120xf32>, vector<1x84xf32> -> vector<1x84xf32>
    %c0_265 = arith.constant 0 : index
    %c0_266 = arith.constant 0 : index
    %337 = vector.load %arg13[%c0_265, %c0_266] : memref<1x84xf32, #tpu.memory_space<vmem>>, vector<1x84xf32>
    %338 = arith.addf %336, %337 : vector<1x84xf32>
    %c0_267 = arith.constant 0 : index
    %c0_268 = arith.constant 0 : index
    %339 = vector.load %arg14[%c0_267, %c0_268] : memref<10x84xf32, #tpu.memory_space<vmem>>, vector<10x84xf32>
    %cst_269 = arith.constant dense<0.000000e+00> : vector<1x10xf32>
    %340 = tpu.matmul %338, %339, %cst_269 {dimension_numbers = #tpu.dot_dimension_numbers<[1], [1], [0], [0], [0, 0, 1, 0], [], []>} : vector<1x84xf32>, vector<10x84xf32>, vector<1x10xf32> -> vector<1x10xf32>
    %c0_270 = arith.constant 0 : index
    %c0_271 = arith.constant 0 : index
    %341 = vector.load %arg15[%c0_270, %c0_271] : memref<1x10xf32, #tpu.memory_space<vmem>>, vector<1x10xf32>
    %342 = arith.addf %340, %341 : vector<1x10xf32>
    %343 = vector.shape_cast %342 : vector<1x10xf32> to vector<1x1x10xf32>
    %c0_272 = arith.constant 0 : index
    %c0_273 = arith.constant 0 : index
    %c0_274 = arith.constant 0 : index
    %344 = vector.load %arg16[%c0_272, %c0_273, %c0_274] : memref<1x1x10xf32, #tpu.memory_space<vmem>>, vector<1x1x10xf32>
    tpu.vector_store %arg16[%c0_272, %c0_273, %c0_274], %343 {strides = array<i32>} : memref<1x1x10xf32, #tpu.memory_space<vmem>>, vector<1x1x10xf32>,
    return
  }
  func.func @transform_0(%arg0: i32) -> (i32, i32, i32) {
    %c0_i32 = arith.constant 0 : i32
    %c0_i32_0 = arith.constant 0 : i32
    %c0_i32_1 = arith.constant 0 : i32
    return %arg0, %c0_i32, %c0_i32_0 : i32, i32, i32
  }
  func.func @transform_1(%arg0: i32) -> (i32, i32) {
    %c0_i32 = arith.constant 0 : i32
    %c0_i32_0 = arith.constant 0 : i32
    %c0_i32_1 = arith.constant 0 : i32
    return %c0_i32, %c0_i32_0 : i32, i32
  }
  func.func @transform_2(%arg0: i32) -> (i32, i32) {
    %c0_i32 = arith.constant 0 : i32
    %c0_i32_0 = arith.constant 0 : i32
    %c0_i32_1 = arith.constant 0 : i32
    return %c0_i32, %c0_i32_0 : i32, i32
  }
  func.func @transform_3(%arg0: i32) -> (i32, i32) {
    %c0_i32 = arith.constant 0 : i32
    %c0_i32_0 = arith.constant 0 : i32
    %c0_i32_1 = arith.constant 0 : i32
    return %c0_i32, %c0_i32_0 : i32, i32
  }
  func.func @transform_4(%arg0: i32) -> (i32, i32) {
    %c0_i32 = arith.constant 0 : i32
    %c0_i32_0 = arith.constant 0 : i32
    %c0_i32_1 = arith.constant 0 : i32
    return %c0_i32, %c0_i32_0 : i32, i32
  }
  func.func @transform_5(%arg0: i32) -> (i32, i32) {
    %c0_i32 = arith.constant 0 : i32
    %c0_i32_0 = arith.constant 0 : i32
    %c0_i32_1 = arith.constant 0 : i32
    return %c0_i32, %c0_i32_0 : i32, i32
  }
  func.func @transform_6(%arg0: i32) -> (i32, i32) {
    %c0_i32 = arith.constant 0 : i32
    %c0_i32_0 = arith.constant 0 : i32
    %c0_i32_1 = arith.constant 0 : i32
    return %c0_i32, %c0_i32_0 : i32, i32
  }
  func.func @transform_7(%arg0: i32) -> (i32, i32) {
    %c0_i32 = arith.constant 0 : i32
    %c0_i32_0 = arith.constant 0 : i32
    %c0_i32_1 = arith.constant 0 : i32
    return %c0_i32, %c0_i32_0 : i32, i32
  }
  func.func @transform_8(%arg0: i32) -> (i32, i32) {
    %c0_i32 = arith.constant 0 : i32
    %c0_i32_0 = arith.constant 0 : i32
    %c0_i32_1 = arith.constant 0 : i32
    return %c0_i32, %c0_i32_0 : i32, i32
  }
  func.func @transform_9(%arg0: i32) -> (i32, i32) {
    %c0_i32 = arith.constant 0 : i32
    %c0_i32_0 = arith.constant 0 : i32
    %c0_i32_1 = arith.constant 0 : i32
    return %c0_i32, %c0_i32_0 : i32, i32
  }
  func.func @transform_10(%arg0: i32) -> (i32, i32) {
    %c0_i32 = arith.constant 0 : i32
    %c0_i32_0 = arith.constant 0 : i32
    %c0_i32_1 = arith.constant 0 : i32
    return %c0_i32, %c0_i32_0 : i32, i32
  }
  func.func @transform_11(%arg0: i32) -> (i32, i32) {
    %c0_i32 = arith.constant 0 : i32
    %c0_i32_0 = arith.constant 0 : i32
    %c0_i32_1 = arith.constant 0 : i32
    return %c0_i32, %c0_i32_0 : i32, i32
  }
  func.func @transform_12(%arg0: i32) -> (i32, i32) {
    %c0_i32 = arith.constant 0 : i32
    %c0_i32_0 = arith.constant 0 : i32
    %c0_i32_1 = arith.constant 0 : i32
    return %c0_i32, %c0_i32_0 : i32, i32
  }
  func.func @transform_13(%arg0: i32) -> (i32, i32) {
    %c0_i32 = arith.constant 0 : i32
    %c0_i32_0 = arith.constant 0 : i32
    %c0_i32_1 = arith.constant 0 : i32
    return %c0_i32, %c0_i32_0 : i32, i32
  }
  func.func @transform_14(%arg0: i32) -> (i32, i32) {
    %c0_i32 = arith.constant 0 : i32
    %c0_i32_0 = arith.constant 0 : i32
    %c0_i32_1 = arith.constant 0 : i32
    return %c0_i32, %c0_i32_0 : i32, i32
  }
  func.func @transform_15(%arg0: i32) -> (i32, i32, i32) {
    %c0_i32 = arith.constant 0 : i32
    %c0_i32_0 = arith.constant 0 : i32
    %c0_i32_1 = arith.constant 0 : i32
    return %arg0, %c0_i32, %c0_i32_0 : i32, i32, i32
  }
}

</mosaic_0001>

<llo_original>
// kernel: lenet_forward.1
$region0: #{lenet_forward.1}
  #allocation0 [shape = 'u32[]', space=smem, size = 0x4, offset = 0x4, fixed_abs, tag = 'smem constant byte address 0x4 - core index']
  #allocation1 [shape = 'u32[72,128]{1,0:T(1,128)}', space=vmem, size = 0x9000, scoped, tag = 'internal scratch']
  #allocation2 [shape = 'f32[25,784]{1,0:T(8,128)}', space=vmem, size = 0x1c000, scoped, tag = 'scratch operand']
  #allocation3 [shape = 'f32[16,260]{1,0:T(8,128)}', space=vmem, size = 0x6000, scoped, tag = 'scratch operand']
  #allocation4 [shape = 'f32[400,196]{1,0:T(8,128)}', space=vmem, size = 0x64000, scoped, tag = 'scratch operand']
  #allocation5 [shape = 'f32[1,1568]{1,0:T(1,128)}', space=vmem, size = 0x1a00, scoped, tag = 'scratch operand']
  %s0 = inlined_call_operand.vmem [shape: f32[2,1,912], index: 0, kind: input, shape index: {}]
  %s1 = inlined_call_operand.vmem [shape: f32[16,25], index: 1, kind: input, shape index: {}]
  %s2 = inlined_call_operand.vmem [shape: f32[16,1], index: 2, kind: input, shape index: {}]
  %s3 = inlined_call_operand.vmem [shape: f32[25,784], index: 3, kind: input, shape index: {}]
  %s4 = inlined_call_operand.hbm [shape: f32[755,196], index: 4, kind: input, shape index: {}]
  %s5 = inlined_call_operand.vmem [shape: f32[32,400], index: 5, kind: input, shape index: {}]
  %s6 = inlined_call_operand.vmem [shape: f32[32,1], index: 6, kind: input, shape index: {}]
  %s7 = inlined_call_operand.hbm [shape: f32[25,196], index: 7, kind: input, shape index: {}]
  %s8 = inlined_call_operand.vmem [shape: f32[181,49], index: 8, kind: input, shape index: {}]
  %s9 = inlined_call_operand.hbm [shape: f32[120,1568], index: 9, kind: input, shape index: {}]
  %s10 = inlined_call_operand.vmem [shape: f32[1,120], index: 10, kind: input, shape index: {}]
  %s11 = inlined_call_operand.vmem [shape: f32[84,120], index: 11, kind: input, shape index: {}]
  %s12 = inlined_call_operand.vmem [shape: f32[1,84], index: 12, kind: input, shape index: {}]
  %s13 = inlined_call_operand.vmem [shape: f32[10,84], index: 13, kind: input, shape index: {}]
  %s14 = inlined_call_operand.vmem [shape: f32[1,10], index: 14, kind: input, shape index: {}]
  %s15 = inlined_call_operand.hbm [shape: f32[2,1,10], index: 15, kind: output, shape index: {}]
  %s16 = sld [smem:[#allocation0]]
  $region105: #{lenet_forward.1} parent=0
    _
  %s18 = ssub.s32 1, %s16
  %s19 = scalar_select 0, %s18, %s16
  $region1: #{lenet_forward.1} parent=0
    #allocation6 [shape = 'u8[778240]{0}', space=vmem, size = 0xbe000, scoped, tag = 'input window, operand 4, single buffered']
    #allocation7 [shape = 's32[2]{0}', space=sflag, size = 0x8, scoped, tag = 'scoped memory for lenet_forward.1']
    #allocation8 [shape = 's32[2]{0}', space=sflag, size = 0x8, scoped, tag = 'scoped memory for lenet_forward.1']
    #allocation9 [shape = 'u8[32768]{0}', space=vmem, size = 0x8000, scoped, tag = 'input window, operand 7, single buffered']
    #allocation10 [shape = 's32[1]{0}', space=sflag, size = 0x4, scoped, tag = 'scoped memory for lenet_forward.1']
    #allocation11 [shape = 'u8[798720]{0}', space=vmem, size = 0xc3000, scoped, tag = 'input window, operand 9, single buffered']
    #allocation12 [shape = 'u8[1024]{0}', space=vmem, size = 0x400, scoped, tag = 'output window, operand 0']
    %20 = vsyncpa [#allocation7], 0
    %21 = vsyncpa [#allocation10], 0
    %22 = vsyncpa [#allocation8], 0
    %s23 = scalar_lea.sflag [#allocation8], 1
    %24 = vsyncpa %s23, 0
    loop: start=0, step=1, limit=4
    $region2: #{lenet_forward.1} parent=1 // loop_pre_header
      _
    $region3: #{lenet_forward.1} parent=1 // loop_header
      %s26 = sphi 0, %s30
      %p27 = scmp.ge.s32.totalorder %s26, 4
      %s36 = sphi 0, %s38
      %s39 = sphi 0, %s36
      %s40 = sphi 0, %s39
      %s56 = sphi 0, %s40
      %s60 = sphi 0, %s60
      %s62 = sphi 0, %s60
      %s63 = sphi 0, %s62
      %s77 = sphi 0, %s63
      %s81 = sphi 0, %s81
      %s83 = sphi 0, %s81
      %s84 = sphi 0, %s83
      %s98 = sphi 0, %s84
      %s102 = sphi 0, %s102
      %s104 = sphi 0, %s102
      %s105 = sphi 0, %s104
      %s119 = sphi 0, %s105
      %s123 = sphi 0, %s123
      %s125 = sphi 0, %s123
      %s126 = sphi 0, %s125
      %s140 = sphi 0, %s126
      %s144 = sphi 0, %s144
      %s146 = sphi 0, %s144
      %s147 = sphi 0, %s146
      %s161 = sphi 0, %s147
      %s165 = sphi 0, %s165
      %s167 = sphi 0, %s165
      %s168 = sphi 0, %s167
      %s182 = sphi 0, %s168
      %s186 = sphi 0, %s186
      %s188 = sphi 0, %s186
      %s189 = sphi 0, %s188
      %s203 = sphi 0, %s189
      %s207 = sphi 0, %s207
      %s209 = sphi 0, %s207
      %s210 = sphi 0, %s209
      %s224 = sphi 0, %s210
      %s228 = sphi 0, %s228
      %s230 = sphi 0, %s228
      %s231 = sphi 0, %s230
      %s245 = sphi 0, %s231
      %s249 = sphi 0, %s249
      %s251 = sphi 0, %s249
      %s252 = sphi 0, %s251
      %s266 = sphi 0, %s252
      %s270 = sphi 0, %s270
      %s272 = sphi 0, %s270
      %s273 = sphi 0, %s272
      %s287 = sphi 0, %s273
      %s291 = sphi 0, %s291
      %s293 = sphi 0, %s291
      %s294 = sphi 0, %s293
      %s308 = sphi 0, %s294
      %s312 = sphi 0, %s312
      %s314 = sphi 0, %s312
      %s315 = sphi 0, %s314
      %s329 = sphi 0, %s315
      %s333 = sphi 0, %s333
      %s335 = sphi 0, %s333
      %s336 = sphi 0, %s335
      %s350 = sphi 0, %s336
      %s356 = sphi 0, %s358
      %s359 = sphi 0, %s356
      %s360 = sphi 0, %s359
      %s376 = sphi 0, %s360
    $region4: #{lenet_forward.1} parent=1 // loop_header_branch
      %29 = sbr.rel (%p27) target = $region8
    $region5: #{lenet_forward.1} parent=1 // loop_body
      %s31 = ssub.s32 %s26, 1
      %s32 = ssub.s32 %s26, 2
      %s33 = sadd.s32 %s26, 1
      %s34 = ssub.s32 %s26, %s33
      %p35 = scmp.eq.s32.totalorder %s34, 0
      %s37 = sadd.s32 %s36, 1
      %s38 = scalar_select %p35, %s36, %s37
      %p41 = pneg %p35
      %p42 = scmp.eq.s32.totalorder %s26, 1
      %p43 = por %p41, %p42
      %p44 = scmp.ne.s32.totalorder %s36, %s39
      %p45 = scmp.eq.s32.totalorder %s26, 0
      %p46 = por %p44, %p45
      %p47 = scmp.ne.s32.totalorder %s36, %s39
      %p48 = scmp.eq.s32.totalorder %s31, 1
      %p49 = por %p47, %p48
      %p50 = scmp.ne.s32.totalorder %s39, %s40
      %p51 = scmp.eq.s32.totalorder %s31, 0
      %p52 = por %p50, %p51
      %p53 = scmp.ne.s32.totalorder %s39, %s40
      %p54 = scmp.eq.s32.totalorder %s32, 1
      %p55 = por %p53, %p54
      %p57 = scmp.ne.s32.totalorder %s40, %s56
      %p58 = scmp.eq.s32.totalorder %s32, 0
      %p59 = por %p57, %p58
      %s61 = sadd.s32 %s60, 1
      %p64 = scmp.eq.s32.totalorder %s26, 1
      %p65 = scmp.ne.s32.totalorder %s60, %s62
      %p66 = scmp.eq.s32.totalorder %s26, 0
      %p67 = por %p65, %p66
      %p68 = scmp.ne.s32.totalorder %s60, %s62
      %p69 = scmp.eq.s32.totalorder %s31, 1
      %p70 = por %p68, %p69
      %p71 = scmp.ne.s32.totalorder %s62, %s63
      %p72 = scmp.eq.s32.totalorder %s31, 0
      %p73 = por %p71, %p72
      %p74 = scmp.ne.s32.totalorder %s62, %s63
      %p75 = scmp.eq.s32.totalorder %s32, 1
      %p76 = por %p74, %p75
      %p78 = scmp.ne.s32.totalorder %s63, %s77
      %p79 = scmp.eq.s32.totalorder %s32, 0
      %p80 = por %p78, %p79
      %s82 = sadd.s32 %s81, 1
      %p85 = scmp.eq.s32.totalorder %s26, 1
      %p86 = scmp.ne.s32.totalorder %s81, %s83
      %p87 = scmp.eq.s32.totalorder %s26, 0
      %p88 = por %p86, %p87
      %p89 = scmp.ne.s32.totalorder %s81, %s83
      %p90 = scmp.eq.s32.totalorder %s31, 1
      %p91 = por %p89, %p90
      %p92 = scmp.ne.s32.totalorder %s83, %s84
      %p93 = scmp.eq.s32.totalorder %s31, 0
      %p94 = por %p92, %p93
      %p95 = scmp.ne.s32.totalorder %s83, %s84
      %p96 = scmp.eq.s32.totalorder %s32, 1
      %p97 = por %p95, %p96
      %p99 = scmp.ne.s32.totalorder %s84, %s98
      %p100 = scmp.eq.s32.totalorder %s32, 0
      %p101 = por %p99, %p100
      %s103 = sadd.s32 %s102, 1
      %p106 = scmp.eq.s32.totalorder %s26, 1
      %p107 = scmp.ne.s32.totalorder %s102, %s104
      %p108 = scmp.eq.s32.totalorder %s26, 0
      %p109 = por %p107, %p108
      %p110 = scmp.ne.s32.totalorder %s102, %s104
      %p111 = scmp.eq.s32.totalorder %s31, 1
      %p112 = por %p110, %p111
      %p113 = scmp.ne.s32.totalorder %s104, %s105
      %p114 = scmp.eq.s32.totalorder %s31, 0
      %p115 = por %p113, %p114
      %p116 = scmp.ne.s32.totalorder %s104, %s105
      %p117 = scmp.eq.s32.totalorder %s32, 1
      %p118 = por %p116, %p117
      %p120 = scmp.ne.s32.totalorder %s105, %s119
      %p121 = scmp.eq.s32.totalorder %s32, 0
      %p122 = por %p120, %p121
      %s124 = sadd.s32 %s123, 1
      %p127 = scmp.eq.s32.totalorder %s26, 1
      %p128 = scmp.ne.s32.totalorder %s123, %s125
      %p129 = scmp.eq.s32.totalorder %s26, 0
      %p130 = por %p128, %p129
      %p131 = scmp.ne.s32.totalorder %s123, %s125
      %p132 = scmp.eq.s32.totalorder %s31, 1
      %p133 = por %p131, %p132
      %p134 = scmp.ne.s32.totalorder %s125, %s126
      %p135 = scmp.eq.s32.totalorder %s31, 0
      %p136 = por %p134, %p135
      %p137 = scmp.ne.s32.totalorder %s125, %s126
      %p138 = scmp.eq.s32.totalorder %s32, 1
      %p139 = por %p137, %p138
      %p141 = scmp.ne.s32.totalorder %s126, %s140
      %p142 = scmp.eq.s32.totalorder %s32, 0
      %p143 = por %p141, %p142
      %s145 = sadd.s32 %s144, 1
      %p148 = scmp.eq.s32.totalorder %s26, 1
      %p149 = scmp.ne.s32.totalorder %s144, %s146
      %p150 = scmp.eq.s32.totalorder %s26, 0
      %p151 = por %p149, %p150
      %p152 = scmp.ne.s32.totalorder %s144, %s146
      %p153 = scmp.eq.s32.totalorder %s31, 1
      %p154 = por %p152, %p153
      %p155 = scmp.ne.s32.totalorder %s146, %s147
      %p156 = scmp.eq.s32.totalorder %s31, 0
      %p157 = por %p155, %p156
      %p158 = scmp.ne.s32.totalorder %s146, %s147
      %p159 = scmp.eq.s32.totalorder %s32, 1
      %p160 = por %p158, %p159
      %p162 = scmp.ne.s32.totalorder %s147, %s161
      %p163 = scmp.eq.s32.totalorder %s32, 0
      %p164 = por %p162, %p163
      %s166 = sadd.s32 %s165, 1
      %p169 = scmp.eq.s32.totalorder %s26, 1
      %p170 = scmp.ne.s32.totalorder %s165, %s167
      %p171 = scmp.eq.s32.totalorder %s26, 0
      %p172 = por %p170, %p171
      %p173 = scmp.ne.s32.totalorder %s165, %s167
      %p174 = scmp.eq.s32.totalorder %s31, 1
      %p175 = por %p173, %p174
      %p176 = scmp.ne.s32.totalorder %s167, %s168
      %p177 = scmp.eq.s32.totalorder %s31, 0
      %p178 = por %p176, %p177
      %p179 = scmp.ne.s32.totalorder %s167, %s168
      %p180 = scmp.eq.s32.totalorder %s32, 1
      %p181 = por %p179, %p180
      %p183 = scmp.ne.s32.totalorder %s168, %s182
      %p184 = scmp.eq.s32.totalorder %s32, 0
      %p185 = por %p183, %p184
      %s187 = sadd.s32 %s186, 1
      %p190 = scmp.eq.s32.totalorder %s26, 1
      %p191 = scmp.ne.s32.totalorder %s186, %s188
      %p192 = scmp.eq.s32.totalorder %s26, 0
      %p193 = por %p191, %p192
      %p194 = scmp.ne.s32.totalorder %s186, %s188
      %p195 = scmp.eq.s32.totalorder %s31, 1
      %p196 = por %p194, %p195
      %p197 = scmp.ne.s32.totalorder %s188, %s189
      %p198 = scmp.eq.s32.totalorder %s31, 0
      %p199 = por %p197, %p198
      %p200 = scmp.ne.s32.totalorder %s188, %s189
      %p201 = scmp.eq.s32.totalorder %s32, 1
      %p202 = por %p200, %p201
      %p204 = scmp.ne.s32.totalorder %s189, %s203
      %p205 = scmp.eq.s32.totalorder %s32, 0
      %p206 = por %p204, %p205
      %s208 = sadd.s32 %s207, 1
      %p211 = scmp.eq.s32.totalorder %s26, 1
      %p212 = scmp.ne.s32.totalorder %s207, %s209
      %p213 = scmp.eq.s32.totalorder %s26, 0
      %p214 = por %p212, %p213
      %p215 = scmp.ne.s32.totalorder %s207, %s209
      %p216 = scmp.eq.s32.totalorder %s31, 1
      %p217 = por %p215, %p216
      %p218 = scmp.ne.s32.totalorder %s209, %s210
      %p219 = scmp.eq.s32.totalorder %s31, 0
      %p220 = por %p218, %p219
      %p221 = scmp.ne.s32.totalorder %s209, %s210
      %p222 = scmp.eq.s32.totalorder %s32, 1
      %p223 = por %p221, %p222
      %p225 = scmp.ne.s32.totalorder %s210, %s224
      %p226 = scmp.eq.s32.totalorder %s32, 0
      %p227 = por %p225, %p226
      %s229 = sadd.s32 %s228, 1
      %p232 = scmp.eq.s32.totalorder %s26, 1
      %p233 = scmp.ne.s32.totalorder %s228, %s230
      %p234 = scmp.eq.s32.totalorder %s26, 0
      %p235 = por %p233, %p234
      %p236 = scmp.ne.s32.totalorder %s228, %s230
      %p237 = scmp.eq.s32.totalorder %s31, 1
      %p238 = por %p236, %p237
      %p239 = scmp.ne.s32.totalorder %s230, %s231
      %p240 = scmp.eq.s32.totalorder %s31, 0
      %p241 = por %p239, %p240
      %p242 = scmp.ne.s32.totalorder %s230, %s231
      %p243 = scmp.eq.s32.totalorder %s32, 1
      %p244 = por %p242, %p243
      %p246 = scmp.ne.s32.totalorder %s231, %s245
      %p247 = scmp.eq.s32.totalorder %s32, 0
      %p248 = por %p246, %p247
      %s250 = sadd.s32 %s249, 1
      %p253 = scmp.eq.s32.totalorder %s26, 1
      %p254 = scmp.ne.s32.totalorder %s249, %s251
      %p255 = scmp.eq.s32.totalorder %s26, 0
      %p256 = por %p254, %p255
      %p257 = scmp.ne.s32.totalorder %s249, %s251
      %p258 = scmp.eq.s32.totalorder %s31, 1
      %p259 = por %p257, %p258
      %p260 = scmp.ne.s32.totalorder %s251, %s252
      %p261 = scmp.eq.s32.totalorder %s31, 0
      %p262 = por %p260, %p261
      %p263 = scmp.ne.s32.totalorder %s251, %s252
      %p264 = scmp.eq.s32.totalorder %s32, 1
      %p265 = por %p263, %p264
      %p267 = scmp.ne.s32.totalorder %s252, %s266
      %p268 = scmp.eq.s32.totalorder %s32, 0
      %p269 = por %p267, %p268
      %s271 = sadd.s32 %s270, 1
      %p274 = scmp.eq.s32.totalorder %s26, 1
      %p275 = scmp.ne.s32.totalorder %s270, %s272
      %p276 = scmp.eq.s32.totalorder %s26, 0
      %p277 = por %p275, %p276
      %p278 = scmp.ne.s32.totalorder %s270, %s272
      %p279 = scmp.eq.s32.totalorder %s31, 1
      %p280 = por %p278, %p279
      %p281 = scmp.ne.s32.totalorder %s272, %s273
      %p282 = scmp.eq.s32.totalorder %s31, 0
      %p283 = por %p281, %p282
      %p284 = scmp.ne.s32.totalorder %s272, %s273
      %p285 = scmp.eq.s32.totalorder %s32, 1
      %p286 = por %p284, %p285
      %p288 = scmp.ne.s32.totalorder %s273, %s287
      %p289 = scmp.eq.s32.totalorder %s32, 0
      %p290 = por %p288, %p289
      %s292 = sadd.s32 %s291, 1
      %p295 = scmp.eq.s32.totalorder %s26, 1
      %p296 = scmp.ne.s32.totalorder %s291, %s293
      %p297 = scmp.eq.s32.totalorder %s26, 0
      %p298 = por %p296, %p297
      %p299 = scmp.ne.s32.totalorder %s291, %s293
      %p300 = scmp.eq.s32.totalorder %s31, 1
      %p301 = por %p299, %p300
      %p302 = scmp.ne.s32.totalorder %s293, %s294
      %p303 = scmp.eq.s32.totalorder %s31, 0
      %p304 = por %p302, %p303
      %p305 = scmp.ne.s32.totalorder %s293, %s294
      %p306 = scmp.eq.s32.totalorder %s32, 1
      %p307 = por %p305, %p306
      %p309 = scmp.ne.s32.totalorder %s294, %s308
      %p310 = scmp.eq.s32.totalorder %s32, 0
      %p311 = por %p309, %p310
      %s313 = sadd.s32 %s312, 1
      %p316 = scmp.eq.s32.totalorder %s26, 1
      %p317 = scmp.ne.s32.totalorder %s312, %s314
      %p318 = scmp.eq.s32.totalorder %s26, 0
      %p319 = por %p317, %p318
      %p320 = scmp.ne.s32.totalorder %s312, %s314
      %p321 = scmp.eq.s32.totalorder %s31, 1
      %p322 = por %p320, %p321
      %p323 = scmp.ne.s32.totalorder %s314, %s315
      %p324 = scmp.eq.s32.totalorder %s31, 0
      %p325 = por %p323, %p324
      %p326 = scmp.ne.s32.totalorder %s314, %s315
      %p327 = scmp.eq.s32.totalorder %s32, 1
      %p328 = por %p326, %p327
      %p330 = scmp.ne.s32.totalorder %s315, %s329
      %p331 = scmp.eq.s32.totalorder %s32, 0
      %p332 = por %p330, %p331
      %s334 = sadd.s32 %s333, 1
      %p337 = scmp.eq.s32.totalorder %s26, 1
      %p338 = scmp.ne.s32.totalorder %s333, %s335
      %p339 = scmp.eq.s32.totalorder %s26, 0
      %p340 = por %p338, %p339
      %p341 = scmp.ne.s32.totalorder %s333, %s335
      %p342 = scmp.eq.s32.totalorder %s31, 1
      %p343 = por %p341, %p342
      %p344 = scmp.ne.s32.totalorder %s335, %s336
      %p345 = scmp.eq.s32.totalorder %s31, 0
      %p346 = por %p344, %p345
      %p347 = scmp.ne.s32.totalorder %s335, %s336
      %p348 = scmp.eq.s32.totalorder %s32, 1
      %p349 = por %p347, %p348
      %p351 = scmp.ne.s32.totalorder %s336, %s350
      %p352 = scmp.eq.s32.totalorder %s32, 0
      %p353 = por %p351, %p352
      %s354 = ssub.s32 %s26, %s33
      %p355 = scmp.eq.s32.totalorder %s354, 0
      %s357 = sadd.s32 %s356, 1
      %s358 = scalar_select %p355, %s356, %s357
      %p361 = pneg %p355
      %p362 = scmp.eq.s32.totalorder %s26, 1
      %p363 = por %p361, %p362
      %p364 = scmp.ne.s32.totalorder %s356, %s359
      %p365 = scmp.eq.s32.totalorder %s26, 0
      %p366 = por %p364, %p365
      %p367 = scmp.ne.s32.totalorder %s356, %s359
      %p368 = scmp.eq.s32.totalorder %s31, 1
      %p369 = por %p367, %p368
      %p370 = scmp.ne.s32.totalorder %s359, %s360
      %p371 = scmp.eq.s32.totalorder %s31, 0
      %p372 = por %p370, %p371
      %p373 = scmp.ne.s32.totalorder %s359, %s360
      %p374 = scmp.eq.s32.totalorder %s32, 1
      %p375 = por %p373, %p374
      %p377 = scmp.ne.s32.totalorder %s360, %s376
      %p378 = scmp.eq.s32.totalorder %s32, 0
      %p379 = por %p377, %p378
      %p380 = scmp.le.s32.totalorder 1, %s26
      %p381 = scmp.lt.s32.totalorder %s26, 3
      %p382 = pnand %p380, %p381
      %p383 = pneg %p382
      // Predicated region
      $region9: #{lenet_forward.1} parent=5 // pred_check
        _
      $region10: #{lenet_forward.1} parent=5 // pred_check_branch
        %385 = sbr.rel (%p382) target = $region12
      $region11: #{lenet_forward.1} parent=5 // pred_region
        %s386 = ssub.s32 %s26, 1
        // Predicated region
        $region13: #{lenet_forward.1} parent=11 // pred_check
          %p387 = pneg %p73
        $region14: #{lenet_forward.1} parent=11 // pred_check_branch
          %389 = sbr.rel (%p387) target = $region16
        $region15: #{lenet_forward.1} parent=11 // pred_region
          _
        $region16: #{lenet_forward.1} parent=11 // pred_fallthru
          _
        // Predicated region
        $region17: #{lenet_forward.1} parent=11 // pred_check
          %p390 = pneg %p94
        $region18: #{lenet_forward.1} parent=11 // pred_check_branch
          %392 = sbr.rel (%p390) target = $region20
        $region19: #{lenet_forward.1} parent=11 // pred_region
          _
        $region20: #{lenet_forward.1} parent=11 // pred_fallthru
          _
        // Predicated region
        $region21: #{lenet_forward.1} parent=11 // pred_check
          %p393 = pneg %p115
        $region22: #{lenet_forward.1} parent=11 // pred_check_branch
          %395 = sbr.rel (%p393) target = $region24
        $region23: #{lenet_forward.1} parent=11 // pred_region
          _
        $region24: #{lenet_forward.1} parent=11 // pred_fallthru
          _
        // Predicated region
        $region25: #{lenet_forward.1} parent=11 // pred_check
          %p396 = pneg %p136
        $region26: #{lenet_forward.1} parent=11 // pred_check_branch
          %398 = sbr.rel (%p396) target = $region28
        $region27: #{lenet_forward.1} parent=11 // pred_region
          %400 = vsyncadd [#allocation7], 0
          %s401 = sshll.u32 %s4, 4
          %s402 = int_to_ptr.hbm [resolvable:$true] %s401
          %s403 = sshll.u32 [#allocation6], 4
          %s404 = int_to_ptr.vmem [resolvable:$true] %s403
          %409 = dma.hbm_to_vmem [thread:$0]  %s402, 24320, %s404, [#allocation7], 256, 256, 16
        $region28: #{lenet_forward.1} parent=11 // pred_fallthru
          _
        // Predicated region
        $region29: #{lenet_forward.1} parent=11 // pred_check
          %p410 = pneg %p157
        $region30: #{lenet_forward.1} parent=11 // pred_check_branch
          %412 = sbr.rel (%p410) target = $region32
        $region31: #{lenet_forward.1} parent=11 // pred_region
          _
        $region32: #{lenet_forward.1} parent=11 // pred_fallthru
          _
        // Predicated region
        $region33: #{lenet_forward.1} parent=11 // pred_check
          %p413 = pneg %p178
        $region34: #{lenet_forward.1} parent=11 // pred_check_branch
          %415 = sbr.rel (%p413) target = $region36
        $region35: #{lenet_forward.1} parent=11 // pred_region
          _
        $region36: #{lenet_forward.1} parent=11 // pred_fallthru
          _
        // Predicated region
        $region37: #{lenet_forward.1} parent=11 // pred_check
          %p416 = pneg %p199
        $region38: #{lenet_forward.1} parent=11 // pred_check_branch
          %418 = sbr.rel (%p416) target = $region40
        $region39: #{lenet_forward.1} parent=11 // pred_region
          %420 = vsyncadd [#allocation10], 0
          %s421 = sshll.u32 %s7, 4
          %s422 = int_to_ptr.hbm [resolvable:$true] %s421
          %s423 = sshll.u32 [#allocation9], 4
          %s424 = int_to_ptr.vmem [resolvable:$true] %s423
          %429 = dma.hbm_to_vmem [thread:$0]  %s422, 1024, %s424, [#allocation10], 256, 256, 16
        $region40: #{lenet_forward.1} parent=11 // pred_fallthru
          _
        // Predicated region
        $region41: #{lenet_forward.1} parent=11 // pred_check
          %p430 = pneg %p220
        $region42: #{lenet_forward.1} parent=11 // pred_check_branch
          %432 = sbr.rel (%p430) target = $region44
        $region43: #{lenet_forward.1} parent=11 // pred_region
          _
        $region44: #{lenet_forward.1} parent=11 // pred_fallthru
          _
        // Predicated region
        $region45: #{lenet_forward.1} parent=11 // pred_check
          %p433 = pneg %p241
        $region46: #{lenet_forward.1} parent=11 // pred_check_branch
          %435 = sbr.rel (%p433) target = $region48
        $region47: #{lenet_forward.1} parent=11 // pred_region
          %437 = vsyncadd [#allocation10], 0
          %s438 = sshll.u32 %s9, 4
          %s439 = int_to_ptr.hbm [resolvable:$true] %s438
          %s440 = sshll.u32 [#allocation11], 4
          %s441 = int_to_ptr.vmem [resolvable:$true] %s440
          %446 = dma.hbm_to_vmem [thread:$0]  %s439, 24960, %s441, [#allocation10], 1664, 1664, 104
        $region48: #{lenet_forward.1} parent=11 // pred_fallthru
          _
        // Predicated region
        $region49: #{lenet_forward.1} parent=11 // pred_check
          %p447 = pneg %p262
        $region50: #{lenet_forward.1} parent=11 // pred_check_branch
          %449 = sbr.rel (%p447) target = $region52
        $region51: #{lenet_forward.1} parent=11 // pred_region
          _
        $region52: #{lenet_forward.1} parent=11 // pred_fallthru
          _
        // Predicated region
        $region53: #{lenet_forward.1} parent=11 // pred_check
          %p450 = pneg %p283
        $region54: #{lenet_forward.1} parent=11 // pred_check_branch
          %452 = sbr.rel (%p450) target = $region56
        $region55: #{lenet_forward.1} parent=11 // pred_region
          _
        $region56: #{lenet_forward.1} parent=11 // pred_fallthru
          _
        // Predicated region
        $region57: #{lenet_forward.1} parent=11 // pred_check
          %p453 = pneg %p304
        $region58: #{lenet_forward.1} parent=11 // pred_check_branch
          %455 = sbr.rel (%p453) target = $region60
        $region59: #{lenet_forward.1} parent=11 // pred_region
          _
        $region60: #{lenet_forward.1} parent=11 // pred_fallthru
          _
        // Predicated region
        $region61: #{lenet_forward.1} parent=11 // pred_check
          %p456 = pneg %p325
        $region62: #{lenet_forward.1} parent=11 // pred_check_branch
          %458 = sbr.rel (%p456) target = $region64
        $region63: #{lenet_forward.1} parent=11 // pred_region
          _
        $region64: #{lenet_forward.1} parent=11 // pred_fallthru
          _
        // Predicated region
        $region65: #{lenet_forward.1} parent=11 // pred_check
          %p459 = pneg %p346
        $region66: #{lenet_forward.1} parent=11 // pred_check_branch
          %461 = sbr.rel (%p459) target = $region68
        $region67: #{lenet_forward.1} parent=11 // pred_region
          _
        $region68: #{lenet_forward.1} parent=11 // pred_fallthru
          _
      $region12: #{lenet_forward.1} parent=5 // pred_fallthru
        _
      %p462 = scmp.lt.s32.totalorder %s26, 2
      // Predicated region
      $region69: #{lenet_forward.1} parent=5 // pred_check
        %p463 = pneg %p462
      $region70: #{lenet_forward.1} parent=5 // pred_check_branch
        %465 = sbr.rel (%p463) target = $region72
      $region71: #{lenet_forward.1} parent=5 // pred_region
        // Predicated region
        $region73: #{lenet_forward.1} parent=71 // pred_check
          %p466 = pneg %p46
        $region74: #{lenet_forward.1} parent=71 // pred_check_branch
          %468 = sbr.rel (%p466) target = $region76
        $region75: #{lenet_forward.1} parent=71 // pred_region
          %p469 = scmp.lt.s32.totalorder %s26, 1
          %s470 = scalar_select %p469, %s26, 1
          %s471 = smul.addr %s470, 8
          %s472 = scalar_lea.vmem %s0, %s471
        $region76: #{lenet_forward.1} parent=71 // pred_fallthru
          _
      $region72: #{lenet_forward.1} parent=5 // pred_fallthru
        _
      %p473 = scmp.le.s32.totalorder 1, %s26
      %p474 = scmp.lt.s32.totalorder %s26, 3
      %p475 = pnand %p473, %p474
      %p476 = pneg %p475
      // Predicated region
      $region77: #{lenet_forward.1} parent=5 // pred_check
        _
      $region78: #{lenet_forward.1} parent=5 // pred_check_branch
        %478 = sbr.rel (%p475) target = $region80
      $region79: #{lenet_forward.1} parent=5 // pred_region
        %s479 = ssub.s32 %s26, 1
        // Predicated region
        $region81: #{lenet_forward.1} parent=79 // pred_check
          %p480 = pneg %p136
        $region82: #{lenet_forward.1} parent=79 // pred_check_branch
          %482 = sbr.rel (%p480) target = $region84
        $region83: #{lenet_forward.1} parent=79 // pred_region
          %484 = dma.done [#allocation7], 24320
        $region84: #{lenet_forward.1} parent=79 // pred_fallthru
          _
        // Predicated region
        $region85: #{lenet_forward.1} parent=79 // pred_check
          %p485 = pneg %p199
        $region86: #{lenet_forward.1} parent=79 // pred_check_branch
          %487 = sbr.rel (%p485) target = $region88
        $region87: #{lenet_forward.1} parent=79 // pred_region
          %489 = dma.done [#allocation10], 1024
        $region88: #{lenet_forward.1} parent=79 // pred_fallthru
          _
        // Predicated region
        $region89: #{lenet_forward.1} parent=79 // pred_check
          %p490 = pneg %p241
        $region90: #{lenet_forward.1} parent=79 // pred_check_branch
          %492 = sbr.rel (%p490) target = $region92
        $region91: #{lenet_forward.1} parent=79 // pred_region
          %494 = dma.done [#allocation10], 24960
        $region92: #{lenet_forward.1} parent=79 // pred_fallthru
          _
        %p495 = scmp.lt.s32.totalorder %s31, 1
        %s496 = scalar_select %p495, %s31, 1
        %s497 = smul.addr %s496, 8
        %s498 = scalar_lea.vmem %s0, %s497
        %p499 = pneg %p52
        %p500 = pneg %p49
        %p501 = pneg %p73
        %p502 = pneg %p70
        %p503 = pneg %p94
        %p504 = pneg %p91
        %p505 = pneg %p115
        %p506 = pneg %p112
        %p507 = pneg %p136
        %p508 = pneg %p133
        %p509 = pneg %p157
        %p510 = pneg %p154
        %p511 = pneg %p178
        %p512 = pneg %p175
        %p513 = pneg %p199
        %p514 = pneg %p196
        %p515 = pneg %p220
        %p516 = pneg %p217
        %p517 = pneg %p241
        %p518 = pneg %p238
        %p519 = pneg %p262
        %p520 = pneg %p259
        %p521 = pneg %p283
        %p522 = pneg %p280
        %p523 = pneg %p304
        %p524 = pneg %p301
        %p525 = pneg %p325
        %p526 = pneg %p322
        %p527 = pneg %p346
        %p528 = pneg %p343
        %p529 = pneg %p372
        %p530 = pneg %p369
        %s531 = sand.u32 %s359, 1
        %s532 = scalar_lea.sflag [#allocation8], %s531
        %s533 = sand.u32 %s359, 1
        %s534 = scalar_lea.vmem [#allocation12], %s533
        %p535 = scmp.lt.s32.totalorder %s31, 1
        %s536 = scalar_select %p535, %s31, 1
        %s537 = smul.addr %s536, 8
        %s538 = scalar_lea.vmem %s0, %s537
        %v539 = vld [vmem:[%s538] sm:$0xff]
        %v540 = vld [vmem:[%s3] ss:$8 sm:$0xf]
        %v541 = vld [vmem:[%s3] ss:$8 sm:$0x70]
        %v542 = vor.u32 %v540, %v541
        %544 = vrot.lane.b32.xlu0 %v542, 6
        %v545 = vpop.permute.xlu0 %544
        %v546 = vrot.slane %v545, 7
        %vm547 = vcmask 48128
        %v548 = vsel %vm547, %v546, %v545
        %v550 = vmul.f32 %v539, %v548
        %552 = vrot.lane.b32.xlu0 %v550, 122
        %v553 = vpop.permute.xlu0 %552
        %v554 = vrot.slane %v553, 1
        %vm555 = vcmask 998400
        %v556 = vsel %vm555, %v553, %v554
        %v558 = vlaneseq
        %vm559 = vcmp.ge.s32.totalorder %v558, 0
        %vm560 = vcmp.lt.s32.totalorder %v558, 784
        %vm561 = vmand %vm559, %vm560
        %562 = vst.msk [vmem:[#allocation2] ss:$8 sm:$0xf] %vm561, %v556
        %563 = vst.msk [vmem:[#allocation2] ss:$8 sm:$0x70] %vm561, %v556
        %s564 = scalar_lea.vmem %s3, 1
        %v565 = vld [vmem:[%s564] ss:$8 sm:$0xf]
        %v566 = vld [vmem:[%s564] ss:$8 sm:$0x70]
        %v567 = vor.u32 %v565, %v566
        %569 = vrot.lane.b32.xlu0 %v567, 7
        %v570 = vpop.permute.xlu0 %569
        %v571 = vrot.slane %v570, 7
        %vm572 = vcmask 56320
        %v573 = vsel %vm572, %v571, %v570
        %v575 = vmul.f32 %v539, %v573
        %577 = vrot.lane.b32.xlu0 %v575, 121
        %v578 = vpop.permute.xlu0 %577
        %v579 = vrot.slane %v578, 1
        %vm580 = vcmask 990208
        %v581 = vsel %vm580, %v578, %v579
        %s583 = scalar_lea.vmem [#allocation2], 1
        %584 = vst.msk [vmem:[%s583] ss:$8 sm:$0xf] %vm561, %v581
        %585 = vst.msk [vmem:[%s583] ss:$8 sm:$0x70] %vm561, %v581
        %s586 = scalar_lea.vmem %s3, 2
        %v587 = vld [vmem:[%s586] ss:$8 sm:$0xf]
        %v588 = vld [vmem:[%s586] ss:$8 sm:$0x70]
        %v589 = vor.u32 %v587, %v588
        %591 = vrot.lane.b32.xlu0 %v589, 8
        %v592 = vpop.permute.xlu0 %591
        %v593 = vrot.slane %v592, 7
        %vm594 = vcmask 64512
        %v595 = vsel %vm594, %v593, %v592
        %v597 = vmul.f32 %v539, %v595
        %599 = vrot.lane.b32.xlu0 %v597, 120
        %v600 = vpop.permute.xlu0 %599
        %v601 = vrot.slane %v600, 1
        %vm602 = vcmask 982016
        %v603 = vsel %vm602, %v600, %v601
        %s605 = scalar_lea.vmem [#allocation2], 2
        %606 = vst.msk [vmem:[%s605] ss:$8 sm:$0xf] %vm561, %v603
        %607 = vst.msk [vmem:[%s605] ss:$8 sm:$0x70] %vm561, %v603
        %s608 = scalar_lea.vmem %s3, 3
        %v609 = vld [vmem:[%s608] ss:$8 sm:$0xf]
        %v610 = vld [vmem:[%s608] ss:$8 sm:$0x70]
        %v611 = vor.u32 %v609, %v610
        %613 = vrot.lane.b32.xlu0 %v611, 9
        %v614 = vpop.permute.xlu0 %613
        %v615 = vrot.slane %v614, 7
        %vm616 = vcmask 72704
        %v617 = vsel %vm616, %v615, %v614
        %v619 = vmul.f32 %v539, %v617
        %621 = vrot.lane.b32.xlu0 %v619, 119
        %v622 = vpop.permute.xlu0 %621
        %v623 = vrot.slane %v622, 1
        %vm624 = vcmask 973824
        %v625 = vsel %vm624, %v622, %v623
        %s627 = scalar_lea.vmem [#allocation2], 3
        %628 = vst.msk [vmem:[%s627] ss:$8 sm:$0xf] %vm561, %v625
        %629 = vst.msk [vmem:[%s627] ss:$8 sm:$0x70] %vm561, %v625
        %s630 = scalar_lea.vmem %s3, 4
        %v631 = vld [vmem:[%s630] ss:$8 sm:$0xf]
        %v632 = vld [vmem:[%s630] ss:$8 sm:$0x70]
        %v633 = vor.u32 %v631, %v632
        %635 = vrot.lane.b32.xlu0 %v633, 10
        %v636 = vpop.permute.xlu0 %635
        %v637 = vrot.slane %v636, 7
        %vm638 = vcmask 80896
        %v639 = vsel %vm638, %v637, %v636
        %v641 = vmul.f32 %v539, %v639
        %643 = vrot.lane.b32.xlu0 %v641, 118
        %v644 = vpop.permute.xlu0 %643
        %v645 = vrot.slane %v644, 1
        %vm646 = vcmask 965632
        %v647 = vsel %vm646, %v644, %v645
        %s649 = scalar_lea.vmem [#allocation2], 4
        %650 = vst.msk [vmem:[%s649] ss:$8 sm:$0xf] %vm561, %v647
        %651 = vst.msk [vmem:[%s649] ss:$8 sm:$0x70] %vm561, %v647
        %s652 = scalar_lea.vmem %s3, 5
        %v653 = vld [vmem:[%s652] ss:$8 sm:$0xf]
        %v654 = vld [vmem:[%s652] ss:$8 sm:$0x70]
        %v655 = vor.u32 %v653, %v654
        %657 = vrot.lane.b32.xlu0 %v655, 34
        %v658 = vpop.permute.xlu0 %657
        %v659 = vrot.slane %v658, 7
        %vm660 = vcmask 277504
        %v661 = vsel %vm660, %v659, %v658
        %v663 = vmul.f32 %v539, %v661
        %665 = vrot.lane.b32.xlu0 %v663, 94
        %v666 = vpop.permute.xlu0 %665
        %v667 = vrot.slane %v666, 1
        %vm668 = vcmask 769024
        %v669 = vsel %vm668, %v666, %v667
        %s671 = scalar_lea.vmem [#allocation2], 5
        %672 = vst.msk [vmem:[%s671] ss:$8 sm:$0xf] %vm561, %v669
        %673 = vst.msk [vmem:[%s671] ss:$8 sm:$0x70] %vm561, %v669
        %s674 = scalar_lea.vmem %s3, 6
        %v675 = vld [vmem:[%s674] ss:$8 sm:$0xf]
        %v676 = vld [vmem:[%s674] ss:$8 sm:$0x70]
        %v677 = vor.u32 %v675, %v676
        %679 = vrot.lane.b32.xlu0 %v677, 35
        %v680 = vpop.permute.xlu0 %679
        %v681 = vrot.slane %v680, 7
        %vm682 = vcmask 285696
        %v683 = vsel %vm682, %v681, %v680
        %v685 = vmul.f32 %v539, %v683
        %687 = vrot.lane.b32.xlu0 %v685, 93
        %v688 = vpop.permute.xlu0 %687
        %v689 = vrot.slane %v688, 1
        %vm690 = vcmask 760832
        %v691 = vsel %vm690, %v688, %v689
        %s693 = scalar_lea.vmem [#allocation2], 6
        %694 = vst.msk [vmem:[%s693] ss:$8 sm:$0xf] %vm561, %v691
        %695 = vst.msk [vmem:[%s693] ss:$8 sm:$0x70] %vm561, %v691
        %s696 = scalar_lea.vmem %s3, 7
        %v697 = vld [vmem:[%s696] ss:$8 sm:$0xf]
        %v698 = vld [vmem:[%s696] ss:$8 sm:$0x70]
        %v699 = vor.u32 %v697, %v698
        %701 = vrot.lane.b32.xlu0 %v699, 36
        %v702 = vpop.permute.xlu0 %701
        %v703 = vrot.slane %v702, 7
        %vm704 = vcmask 293888
        %v705 = vsel %vm704, %v703, %v702
        %v707 = vmul.f32 %v539, %v705
        %709 = vrot.lane.b32.xlu0 %v707, 92
        %v710 = vpop.permute.xlu0 %709
        %v711 = vrot.slane %v710, 1
        %vm712 = vcmask 752640
        %v713 = vsel %vm712, %v710, %v711
        %s715 = scalar_lea.vmem [#allocation2], 7
        %716 = vst.msk [vmem:[%s715] ss:$8 sm:$0xf] %vm561, %v713
        %717 = vst.msk [vmem:[%s715] ss:$8 sm:$0x70] %vm561, %v713
        %s718 = scalar_lea.vmem %s3, 56
        %v719 = vld [vmem:[%s718] ss:$8 sm:$0xf]
        %v720 = vld [vmem:[%s718] ss:$8 sm:$0x70]
        %v721 = vor.u32 %v719, %v720
        %723 = vrot.lane.b32.xlu0 %v721, 37
        %v724 = vpop.permute.xlu0 %723
        %v725 = vrot.slane %v724, 7
        %vm726 = vcmask 302080
        %v727 = vsel %vm726, %v725, %v724
        %v729 = vmul.f32 %v539, %v727
        %731 = vrot.lane.b32.xlu0 %v729, 91
        %v732 = vpop.permute.xlu0 %731
        %v733 = vrot.slane %v732, 1
        %vm734 = vcmask 744448
        %v735 = vsel %vm734, %v732, %v733
        %s737 = scalar_lea.vmem [#allocation2], 56
        %738 = vst.msk [vmem:[%s737] ss:$8 sm:$0xf] %vm561, %v735
        %739 = vst.msk [vmem:[%s737] ss:$8 sm:$0x70] %vm561, %v735
        %s740 = scalar_lea.vmem %s3, 57
        %v741 = vld [vmem:[%s740] ss:$8 sm:$0xf]
        %v742 = vld [vmem:[%s740] ss:$8 sm:$0x70]
        %v743 = vor.u32 %v741, %v742
        %745 = vrot.lane.b32.xlu0 %v743, 38
        %v746 = vpop.permute.xlu0 %745
        %v747 = vrot.slane %v746, 7
        %vm748 = vcmask 310272
        %v749 = vsel %vm748, %v747, %v746
        %v751 = vmul.f32 %v539, %v749
        %753 = vrot.lane.b32.xlu0 %v751, 90
        %v754 = vpop.permute.xlu0 %753
        %v755 = vrot.slane %v754, 1
        %vm756 = vcmask 736256
        %v757 = vsel %vm756, %v754, %v755
        %s759 = scalar_lea.vmem [#allocation2], 57
        %760 = vst.msk [vmem:[%s759] ss:$8 sm:$0xf] %vm561, %v757
        %761 = vst.msk [vmem:[%s759] ss:$8 sm:$0x70] %vm561, %v757
        %s762 = scalar_lea.vmem %s3, 58
        %v763 = vld [vmem:[%s762] ss:$8 sm:$0xf]
        %v764 = vld [vmem:[%s762] ss:$8 sm:$0x70]
        %v765 = vor.u32 %v763, %v764
        %767 = vrot.lane.b32.xlu0 %v765, 62
        %v768 = vpop.permute.xlu0 %767
        %v769 = vrot.slane %v768, 7
        %vm770 = vcmask 506880
        %v771 = vsel %vm770, %v769, %v768
        %v773 = vmul.f32 %v539, %v771
        %775 = vrot.lane.b32.xlu0 %v773, 66
        %v776 = vpop.permute.xlu0 %775
        %v777 = vrot.slane %v776, 1
        %vm778 = vcmask 539648
        %v779 = vsel %vm778, %v776, %v777
        %s781 = scalar_lea.vmem [#allocation2], 58
        %782 = vst.msk [vmem:[%s781] ss:$8 sm:$0xf] %vm561, %v779
        %783 = vst.msk [vmem:[%s781] ss:$8 sm:$0x70] %vm561, %v779
        %s784 = scalar_lea.vmem %s3, 59
        %v785 = vld [vmem:[%s784] ss:$8 sm:$0xf]
        %v786 = vld [vmem:[%s784] ss:$8 sm:$0x70]
        %v787 = vor.u32 %v785, %v786
        %789 = vrot.lane.b32.xlu0 %v787, 63
        %v790 = vpop.permute.xlu0 %789
        %v791 = vrot.slane %v790, 7
        %vm792 = vcmask 515072
        %v793 = vsel %vm792, %v791, %v790
        %v795 = vmul.f32 %v539, %v793
        %797 = vrot.lane.b32.xlu0 %v795, 65
        %v798 = vpop.permute.xlu0 %797
        %v799 = vrot.slane %v798, 1
        %vm800 = vcmask 531456
        %v801 = vsel %vm800, %v798, %v799
        %s803 = scalar_lea.vmem [#allocation2], 59
        %804 = vst.msk [vmem:[%s803] ss:$8 sm:$0xf] %vm561, %v801
        %805 = vst.msk [vmem:[%s803] ss:$8 sm:$0x70] %vm561, %v801
        %s806 = scalar_lea.vmem %s3, 60
        %v807 = vld [vmem:[%s806] ss:$8 sm:$0xf]
        %v808 = vld [vmem:[%s806] ss:$8 sm:$0x70]
        %v809 = vor.u32 %v807, %v808
        %811 = vrot.lane.b32.xlu0 %v809, 64
        %v812 = vpop.permute.xlu0 %811
        %v813 = vrot.slane %v812, 7
        %vm814 = vcmask 523264
        %v815 = vsel %vm814, %v813, %v812
        %v817 = vmul.f32 %v539, %v815
        %819 = vrot.lane.b32.xlu0 %v817, 64
        %v820 = vpop.permute.xlu0 %819
        %v821 = vrot.slane %v820, 1
        %v822 = vsel %vm814, %v820, %v821
        %s824 = scalar_lea.vmem [#allocation2], 60
        %825 = vst.msk [vmem:[%s824] ss:$8 sm:$0xf] %vm561, %v822
        %826 = vst.msk [vmem:[%s824] ss:$8 sm:$0x70] %vm561, %v822
        %s827 = scalar_lea.vmem %s3, 61
        %v828 = vld [vmem:[%s827] ss:$8 sm:$0xf]
        %v829 = vld [vmem:[%s827] ss:$8 sm:$0x70]
        %v830 = vor.u32 %v828, %v829
        %832 = vrot.lane.b32.xlu0 %v830, 65
        %v833 = vpop.permute.xlu0 %832
        %v834 = vrot.slane %v833, 7
        %v835 = vsel %vm800, %v834, %v833
        %v837 = vmul.f32 %v539, %v835
        %839 = vrot.lane.b32.xlu0 %v837, 63
        %v840 = vpop.permute.xlu0 %839
        %v841 = vrot.slane %v840, 1
        %v842 = vsel %vm792, %v840, %v841
        %s844 = scalar_lea.vmem [#allocation2], 61
        %845 = vst.msk [vmem:[%s844] ss:$8 sm:$0xf] %vm561, %v842
        %846 = vst.msk [vmem:[%s844] ss:$8 sm:$0x70] %vm561, %v842
        %s847 = scalar_lea.vmem %s3, 62
        %v848 = vld [vmem:[%s847] ss:$8 sm:$0xf]
        %v849 = vld [vmem:[%s847] ss:$8 sm:$0x70]
        %v850 = vor.u32 %v848, %v849
        %852 = vrot.lane.b32.xlu0 %v850, 66
        %v853 = vpop.permute.xlu0 %852
        %v854 = vrot.slane %v853, 7
        %v855 = vsel %vm778, %v854, %v853
        %v857 = vmul.f32 %v539, %v855
        %859 = vrot.lane.b32.xlu0 %v857, 62
        %v860 = vpop.permute.xlu0 %859
        %v861 = vrot.slane %v860, 1
        %v862 = vsel %vm770, %v860, %v861
        %s864 = scalar_lea.vmem [#allocation2], 62
        %865 = vst.msk [vmem:[%s864] ss:$8 sm:$0xf] %vm561, %v862
        %866 = vst.msk [vmem:[%s864] ss:$8 sm:$0x70] %vm561, %v862
        %s867 = scalar_lea.vmem %s3, 63
        %v868 = vld [vmem:[%s867] ss:$8 sm:$0xf]
        %v869 = vld [vmem:[%s867] ss:$8 sm:$0x70]
        %v870 = vor.u32 %v868, %v869
        %872 = vrot.lane.b32.xlu0 %v870, 90
        %v873 = vpop.permute.xlu0 %872
        %v874 = vrot.slane %v873, 7
        %v875 = vsel %vm756, %v874, %v873
        %v877 = vmul.f32 %v539, %v875
        %879 = vrot.lane.b32.xlu0 %v877, 38
        %v880 = vpop.permute.xlu0 %879
        %v881 = vrot.slane %v880, 1
        %v882 = vsel %vm748, %v880, %v881
        %s884 = scalar_lea.vmem [#allocation2], 63
        %885 = vst.msk [vmem:[%s884] ss:$8 sm:$0xf] %vm561, %v882
        %886 = vst.msk [vmem:[%s884] ss:$8 sm:$0x70] %vm561, %v882
        %s887 = scalar_lea.vmem %s3, 112
        %v888 = vld [vmem:[%s887] ss:$8 sm:$0xf]
        %v889 = vld [vmem:[%s887] ss:$8 sm:$0x70]
        %v890 = vor.u32 %v888, %v889
        %892 = vrot.lane.b32.xlu0 %v890, 91
        %v893 = vpop.permute.xlu0 %892
        %v894 = vrot.slane %v893, 7
        %v895 = vsel %vm734, %v894, %v893
        %v897 = vmul.f32 %v539, %v895
        %899 = vrot.lane.b32.xlu0 %v897, 37
        %v900 = vpop.permute.xlu0 %899
        %v901 = vrot.slane %v900, 1
        %v902 = vsel %vm726, %v900, %v901
        %s904 = scalar_lea.vmem [#allocation2], 112
        %905 = vst.msk [vmem:[%s904] ss:$8 sm:$0xf] %vm561, %v902
        %906 = vst.msk [vmem:[%s904] ss:$8 sm:$0x70] %vm561, %v902
        %s907 = scalar_lea.vmem %s3, 113
        %v908 = vld [vmem:[%s907] ss:$8 sm:$0xf]
        %v909 = vld [vmem:[%s907] ss:$8 sm:$0x70]
        %v910 = vor.u32 %v908, %v909
        %912 = vrot.lane.b32.xlu0 %v910, 92
        %v913 = vpop.permute.xlu0 %912
        %v914 = vrot.slane %v913, 7
        %v915 = vsel %vm712, %v914, %v913
        %v917 = vmul.f32 %v539, %v915
        %919 = vrot.lane.b32.xlu0 %v917, 36
        %v920 = vpop.permute.xlu0 %919
        %v921 = vrot.slane %v920, 1
        %v922 = vsel %vm704, %v920, %v921
        %s924 = scalar_lea.vmem [#allocation2], 113
        %925 = vst.msk [vmem:[%s924] ss:$8 sm:$0xf] %vm561, %v922
        %926 = vst.msk [vmem:[%s924] ss:$8 sm:$0x70] %vm561, %v922
        %s927 = scalar_lea.vmem %s3, 114
        %v928 = vld [vmem:[%s927] ss:$8 sm:$0xf]
        %v929 = vld [vmem:[%s927] ss:$8 sm:$0x70]
        %v930 = vor.u32 %v928, %v929
        %932 = vrot.lane.b32.xlu0 %v930, 93
        %v933 = vpop.permute.xlu0 %932
        %v934 = vrot.slane %v933, 7
        %v935 = vsel %vm690, %v934, %v933
        %v937 = vmul.f32 %v539, %v935
        %939 = vrot.lane.b32.xlu0 %v937, 35
        %v940 = vpop.permute.xlu0 %939
        %v941 = vrot.slane %v940, 1
        %v942 = vsel %vm682, %v940, %v941
        %s944 = scalar_lea.vmem [#allocation2], 114
        %945 = vst.msk [vmem:[%s944] ss:$8 sm:$0xf] %vm561, %v942
        %946 = vst.msk [vmem:[%s944] ss:$8 sm:$0x70] %vm561, %v942
        %s947 = scalar_lea.vmem %s3, 115
        %v948 = vld [vmem:[%s947] ss:$8 sm:$0xf]
        %v949 = vld [vmem:[%s947] ss:$8 sm:$0x70]
        %v950 = vor.u32 %v948, %v949
        %952 = vrot.lane.b32.xlu0 %v950, 94
        %v953 = vpop.permute.xlu0 %952
        %v954 = vrot.slane %v953, 7
        %v955 = vsel %vm668, %v954, %v953
        %v957 = vmul.f32 %v539, %v955
        %959 = vrot.lane.b32.xlu0 %v957, 34
        %v960 = vpop.permute.xlu0 %959
        %v961 = vrot.slane %v960, 1
        %v962 = vsel %vm660, %v960, %v961
        %s964 = scalar_lea.vmem [#allocation2], 115
        %965 = vst.msk [vmem:[%s964] ss:$8 sm:$0xf] %vm561, %v962
        %966 = vst.msk [vmem:[%s964] ss:$8 sm:$0x70] %vm561, %v962
        %s967 = scalar_lea.vmem %s3, 116
        %v968 = vld [vmem:[%s967] ss:$8 sm:$0xf]
        %v969 = vld [vmem:[%s967] ss:$8 sm:$0x70]
        %v970 = vor.u32 %v968, %v969
        %972 = vrot.lane.b32.xlu0 %v970, 118
        %v973 = vpop.permute.xlu0 %972
        %v974 = vrot.slane %v973, 7
        %v975 = vsel %vm646, %v974, %v973
        %v977 = vmul.f32 %v539, %v975
        %979 = vrot.lane.b32.xlu0 %v977, 10
        %v980 = vpop.permute.xlu0 %979
        %v981 = vrot.slane %v980, 1
        %v982 = vsel %vm638, %v980, %v981
        %s984 = scalar_lea.vmem [#allocation2], 116
        %985 = vst.msk [vmem:[%s984] ss:$8 sm:$0xf] %vm561, %v982
        %986 = vst.msk [vmem:[%s984] ss:$8 sm:$0x70] %vm561, %v982
        %s987 = scalar_lea.vmem %s3, 117
        %v988 = vld [vmem:[%s987] ss:$8 sm:$0xf]
        %v989 = vld [vmem:[%s987] ss:$8 sm:$0x70]
        %v990 = vor.u32 %v988, %v989
        %992 = vrot.lane.b32.xlu0 %v990, 119
        %v993 = vpop.permute.xlu0 %992
        %v994 = vrot.slane %v993, 7
        %v995 = vsel %vm624, %v994, %v993
        %v997 = vmul.f32 %v539, %v995
        %999 = vrot.lane.b32.xlu0 %v997, 9
        %v1000 = vpop.permute.xlu0 %999
        %v1001 = vrot.slane %v1000, 1
        %v1002 = vsel %vm616, %v1000, %v1001
        %s1004 = scalar_lea.vmem [#allocation2], 117
        %1005 = vst.msk [vmem:[%s1004] ss:$8 sm:$0xf] %vm561, %v1002
        %1006 = vst.msk [vmem:[%s1004] ss:$8 sm:$0x70] %vm561, %v1002
        %s1007 = scalar_lea.vmem %s3, 118
        %v1008 = vld [vmem:[%s1007] ss:$8 sm:$0xf]
        %v1009 = vld [vmem:[%s1007] ss:$8 sm:$0x70]
        %v1010 = vor.u32 %v1008, %v1009
        %1012 = vrot.lane.b32.xlu0 %v1010, 120
        %v1013 = vpop.permute.xlu0 %1012
        %v1014 = vrot.slane %v1013, 7
        %v1015 = vsel %vm602, %v1014, %v1013
        %v1017 = vmul.f32 %v539, %v1015
        %1019 = vrot.lane.b32.xlu0 %v1017, 8
        %v1020 = vpop.permute.xlu0 %1019
        %v1021 = vrot.slane %v1020, 1
        %v1022 = vsel %vm594, %v1020, %v1021
        %s1024 = scalar_lea.vmem [#allocation2], 118
        %1025 = vst.msk [vmem:[%s1024] ss:$8 sm:$0xf] %vm561, %v1022
        %1026 = vst.msk [vmem:[%s1024] ss:$8 sm:$0x70] %vm561, %v1022
        %s1027 = scalar_lea.vmem %s3, 119
        %v1028 = vld [vmem:[%s1027] ss:$8 sm:$0xf]
        %v1029 = vld [vmem:[%s1027] ss:$8 sm:$0x70]
        %v1030 = vor.u32 %v1028, %v1029
        %1032 = vrot.lane.b32.xlu0 %v1030, 121
        %v1033 = vpop.permute.xlu0 %1032
        %v1034 = vrot.slane %v1033, 7
        %v1035 = vsel %vm580, %v1034, %v1033
        %v1037 = vmul.f32 %v539, %v1035
        %1039 = vrot.lane.b32.xlu0 %v1037, 7
        %v1040 = vpop.permute.xlu0 %1039
        %v1041 = vrot.slane %v1040, 1
        %v1042 = vsel %vm572, %v1040, %v1041
        %s1044 = scalar_lea.vmem [#allocation2], 119
        %1045 = vst.msk [vmem:[%s1044] ss:$8 sm:$0xf] %vm561, %v1042
        %1046 = vst.msk [vmem:[%s1044] ss:$8 sm:$0x70] %vm561, %v1042
        %s1047 = scalar_lea.vmem %s3, 168
        %v1048 = vld [vmem:[%s1047] ss:$8 sm:$0xf]
        %v1049 = vld [vmem:[%s1047] ss:$8 sm:$0x70]
        %v1050 = vor.u32 %v1048, %v1049
        %1052 = vrot.lane.b32.xlu0 %v1050, 122
        %v1053 = vpop.permute.xlu0 %1052
        %v1054 = vrot.slane %v1053, 7
        %v1055 = vsel %vm555, %v1054, %v1053
        %v1057 = vmul.f32 %v539, %v1055
        %1059 = vrot.lane.b32.xlu0 %v1057, 6
        %v1060 = vpop.permute.xlu0 %1059
        %v1061 = vrot.slane %v1060, 1
        %v1062 = vsel %vm547, %v1060, %v1061
        %s1064 = scalar_lea.vmem [#allocation2], 168
        %1065 = vst.msk [vmem:[%s1064] ss:$8 sm:$0xf] %vm561, %v1062
        %1066 = vst.msk [vmem:[%s1064] ss:$8 sm:$0x70] %vm561, %v1062
        %v1067 = vld [vmem:[%s1] sm:$0xff]
        %v1068 = vld [vmem:[%s1 + $0x8] sm:$0xff]
        %v1069 = vld [vmem:[#allocation2] sm:$0xff]
        %v1070 = vld [vmem:[#allocation2 + $0x8] sm:$0xff]
        %v1071 = vld [vmem:[#allocation2 + $0x10] sm:$0xff]
        %v1072 = vld [vmem:[#allocation2 + $0x18] sm:$0xff]
        %v1073 = vld [vmem:[#allocation2 + $0x20] sm:$0xff]
        %v1074 = vld [vmem:[#allocation2 + $0x28] sm:$0xff]
        %v1075 = vld [vmem:[#allocation2 + $0x30] sm:$0xff]
        %v1076 = vld [vmem:[#allocation2 + $0x38] sm:$0xff]
        %v1077 = vld [vmem:[#allocation2 + $0x40] sm:$0xff]
        %v1078 = vld [vmem:[#allocation2 + $0x48] sm:$0xff]
        %v1079 = vld [vmem:[#allocation2 + $0x50] sm:$0xff]
        %v1080 = vld [vmem:[#allocation2 + $0x58] sm:$0xff]
        %v1081 = vld [vmem:[#allocation2 + $0x60] sm:$0xff]
        %v1082 = vld [vmem:[#allocation2 + $0x68] sm:$0xff]
        %v1083 = vld [vmem:[#allocation2 + $0x70] sm:$0xff]
        %v1084 = vld [vmem:[#allocation2 + $0x78] sm:$0xff]
        %v1085 = vld [vmem:[#allocation2 + $0x80] sm:$0xff]
        %v1086 = vld [vmem:[#allocation2 + $0x88] sm:$0xff]
        %v1087 = vld [vmem:[#allocation2 + $0x90] sm:$0xff]
        %v1088 = vld [vmem:[#allocation2 + $0x98] sm:$0xff]
        %v1089 = vld [vmem:[#allocation2 + $0xa0] sm:$0xff]
        %v1090 = vld [vmem:[#allocation2 + $0xa8] sm:$0x1]
        %v1091 = vld [vmem:[#allocation2 + $0xb0] sm:$0x1]
        %v1092 = vld [vmem:[#allocation2 + $0xb8] sm:$0x1]
        %v1093 = vld [vmem:[#allocation2 + $0xc0] sm:$0x1]
        %v1094 = vld [vmem:[#allocation2 + $0xc8] sm:$0x1]
        %v1095 = vld [vmem:[#allocation2 + $0xd0] sm:$0x1]
        %v1096 = vld [vmem:[#allocation2 + $0xd8] sm:$0x1]
        %v1097 = vld [vmem:[%s2] sm:$0xff]
        %v1098 = vld [vmem:[%s2 + $0x8] sm:$0xff]
        %1100 = vset.pattern.permute.xlu0 0
        %1101 = vperm.xlu0 %1100, %v1097
        %v1102 = vpop.permute.xlu0 %1101
        %1105 = vset.pattern.permute.xlu0 0
        %1106 = vperm.xlu0 %1105, %v1098
        %v1107 = vpop.permute.xlu0 %1106
        %vm1109 = vcmask 203776
        %v1111 = vsel %vm1109, %v1067, 0
        %v1114 = vsel %vm1109, %v1068, 0
        %vm1116 = vcmask 1040384
        %v1118 = vsel %vm1116, %v1090, 0
        %v1121 = vsel %vm1116, %v1091, 0
        %v1124 = vsel %vm1116, %v1092, 0
        %v1127 = vsel %vm1116, %v1093, 0
        %v1130 = vsel %vm1116, %v1094, 0
        %v1133 = vsel %vm1116, %v1095, 0
        %v1136 = vsel %vm1116, %v1096, 0
        %1138 = vmatpush.msra.mxu0 0.0
        %1139 = vmatpush.msra.mxu0 0.0
        %1140 = vmatpush.msra.mxu0 0.0
        %1141 = vmatpush.msra.mxu0 0.0
        %1142 = vmatpush.msra.mxu0 0.0
        %1143 = vmatpush.msra.mxu0 0.0
        %1144 = vmatpush.msra.mxu0 0.0
        %1145 = vmatpush.msra.mxu0 0.0
        %1146 = vmatpush.msra.mxu0 0.0
        %1147 = vmatpush.msra.mxu0 0.0
        %1148 = vmatpush.msra.mxu0 0.0
        %1149 = vmatpush.msra.mxu0 0.0
        %1150 = vmatpush.msra.mxu0 %v1118
        %1151 = vmatpush.msra.mxu0 %v1083
        %1152 = vmatpush.msra.mxu0 %v1076
        %1153 = vmatpush.msra.mxu0 %v1069
        %1154 = vmatmul.f32.gmra.mxu0 %v1111
        %v1155 = vpop.f32.mrf.mxu0
        %v1156 = vadd.f32 %v1102, %v1155
        %1157 = vmatmul.f32.gmra.mxu0 %v1114
        %v1158 = vpop.f32.mrf.mxu0
        %v1159 = vadd.f32 %v1107, %v1158
        %1160 = vdwg.mxu0
        %1161 = vmatpush.msra.mxu0 0.0
        %1162 = vmatpush.msra.mxu0 0.0
        %1163 = vmatpush.msra.mxu0 0.0
        %1164 = vmatpush.msra.mxu0 0.0
        %1165 = vmatpush.msra.mxu0 0.0
        %1166 = vmatpush.msra.mxu0 0.0
        %1167 = vmatpush.msra.mxu0 0.0
        %1168 = vmatpush.msra.mxu0 0.0
        %1169 = vmatpush.msra.mxu0 0.0
        %1170 = vmatpush.msra.mxu0 0.0
        %1171 = vmatpush.msra.mxu0 0.0
        %1172 = vmatpush.msra.mxu0 0.0
        %1173 = vmatpush.msra.mxu0 %v1121
        %1174 = vmatpush.msra.mxu0 %v1084
        %1175 = vmatpush.msra.mxu0 %v1077
        %1176 = vmatpush.msra.mxu0 %v1070
        %1177 = vmatmul.f32.gmra.mxu0 %v1111
        %v1178 = vpop.f32.mrf.mxu0
        %v1179 = vadd.f32 %v1102, %v1178
        %1180 = vmatmul.f32.gmra.mxu0 %v1114
        %v1181 = vpop.f32.mrf.mxu0
        %v1182 = vadd.f32 %v1107, %v1181
        %1183 = vdwg.mxu0
        %1184 = vmatpush.msra.mxu0 0.0
        %1185 = vmatpush.msra.mxu0 0.0
        %1186 = vmatpush.msra.mxu0 0.0
        %1187 = vmatpush.msra.mxu0 0.0
        %1188 = vmatpush.msra.mxu0 0.0
        %1189 = vmatpush.msra.mxu0 0.0
        %1190 = vmatpush.msra.mxu0 0.0
        %1191 = vmatpush.msra.mxu0 0.0
        %1192 = vmatpush.msra.mxu0 0.0
        %1193 = vmatpush.msra.mxu0 0.0
        %1194 = vmatpush.msra.mxu0 0.0
        %1195 = vmatpush.msra.mxu0 0.0
        %1196 = vmatpush.msra.mxu0 %v1124
        %1197 = vmatpush.msra.mxu0 %v1085
        %1198 = vmatpush.msra.mxu0 %v1078
        %1199 = vmatpush.msra.mxu0 %v1071
        %1200 = vmatmul.f32.gmra.mxu0 %v1111
        %v1201 = vpop.f32.mrf.mxu0
        %v1202 = vadd.f32 %v1102, %v1201
        %1203 = vmatmul.f32.gmra.mxu0 %v1114
        %v1204 = vpop.f32.mrf.mxu0
        %v1205 = vadd.f32 %v1107, %v1204
        %1206 = vdwg.mxu0
        %1207 = vmatpush.msra.mxu0 0.0
        %1208 = vmatpush.msra.mxu0 0.0
        %1209 = vmatpush.msra.mxu0 0.0
        %1210 = vmatpush.msra.mxu0 0.0
        %1211 = vmatpush.msra.mxu0 0.0
        %1212 = vmatpush.msra.mxu0 0.0
        %1213 = vmatpush.msra.mxu0 0.0
        %1214 = vmatpush.msra.mxu0 0.0
        %1215 = vmatpush.msra.mxu0 0.0
        %1216 = vmatpush.msra.mxu0 0.0
        %1217 = vmatpush.msra.mxu0 0.0
        %1218 = vmatpush.msra.mxu0 0.0
        %1219 = vmatpush.msra.mxu0 %v1127
        %1220 = vmatpush.msra.mxu0 %v1086
        %1221 = vmatpush.msra.mxu0 %v1079
        %1222 = vmatpush.msra.mxu0 %v1072
        %1223 = vmatmul.f32.gmra.mxu0 %v1111
        %v1224 = vpop.f32.mrf.mxu0
        %v1225 = vadd.f32 %v1102, %v1224
        %1226 = vmatmul.f32.gmra.mxu0 %v1114
        %v1227 = vpop.f32.mrf.mxu0
        %v1228 = vadd.f32 %v1107, %v1227
        %1229 = vdwg.mxu0
        %1230 = vmatpush.msra.mxu0 0.0
        %1231 = vmatpush.msra.mxu0 0.0
        %1232 = vmatpush.msra.mxu0 0.0
        %1233 = vmatpush.msra.mxu0 0.0
        %1234 = vmatpush.msra.mxu0 0.0
        %1235 = vmatpush.msra.mxu0 0.0
        %1236 = vmatpush.msra.mxu0 0.0
        %1237 = vmatpush.msra.mxu0 0.0
        %1238 = vmatpush.msra.mxu0 0.0
        %1239 = vmatpush.msra.mxu0 0.0
        %1240 = vmatpush.msra.mxu0 0.0
        %1241 = vmatpush.msra.mxu0 0.0
        %1242 = vmatpush.msra.mxu0 %v1130
        %1243 = vmatpush.msra.mxu0 %v1087
        %1244 = vmatpush.msra.mxu0 %v1080
        %1245 = vmatpush.msra.mxu0 %v1073
        %1246 = vmatmul.f32.gmra.mxu0 %v1111
        %v1247 = vpop.f32.mrf.mxu0
        %v1248 = vadd.f32 %v1102, %v1247
        %1249 = vmatmul.f32.gmra.mxu0 %v1114
        %v1250 = vpop.f32.mrf.mxu0
        %v1251 = vadd.f32 %v1107, %v1250
        %1252 = vdwg.mxu0
        %1253 = vmatpush.msra.mxu0 0.0
        %1254 = vmatpush.msra.mxu0 0.0
        %1255 = vmatpush.msra.mxu0 0.0
        %1256 = vmatpush.msra.mxu0 0.0
        %1257 = vmatpush.msra.mxu0 0.0
        %1258 = vmatpush.msra.mxu0 0.0
        %1259 = vmatpush.msra.mxu0 0.0
        %1260 = vmatpush.msra.mxu0 0.0
        %1261 = vmatpush.msra.mxu0 0.0
        %1262 = vmatpush.msra.mxu0 0.0
        %1263 = vmatpush.msra.mxu0 0.0
        %1264 = vmatpush.msra.mxu0 0.0
        %1265 = vmatpush.msra.mxu0 %v1133
        %1266 = vmatpush.msra.mxu0 %v1088
        %1267 = vmatpush.msra.mxu0 %v1081
        %1268 = vmatpush.msra.mxu0 %v1074
        %1269 = vmatmul.f32.gmra.mxu0 %v1111
        %v1270 = vpop.f32.mrf.mxu0
        %v1271 = vadd.f32 %v1102, %v1270
        %1272 = vmatmul.f32.gmra.mxu0 %v1114
        %v1273 = vpop.f32.mrf.mxu0
        %v1274 = vadd.f32 %v1107, %v1273
        %1275 = vdwg.mxu0
        %1276 = vmatpush.msra.mxu0 0.0
        %1277 = vmatpush.msra.mxu0 0.0
        %1278 = vmatpush.msra.mxu0 0.0
        %1279 = vmatpush.msra.mxu0 0.0
        %1280 = vmatpush.msra.mxu0 0.0
        %1281 = vmatpush.msra.mxu0 0.0
        %1282 = vmatpush.msra.mxu0 0.0
        %1283 = vmatpush.msra.mxu0 0.0
        %1284 = vmatpush.msra.mxu0 0.0
        %1285 = vmatpush.msra.mxu0 0.0
        %1286 = vmatpush.msra.mxu0 0.0
        %1287 = vmatpush.msra.mxu0 0.0
        %1288 = vmatpush.msra.mxu0 %v1136
        %1289 = vmatpush.msra.mxu0 %v1089
        %1290 = vmatpush.msra.mxu0 %v1082
        %1291 = vmatpush.msra.mxu0 %v1075
        %1292 = vmatmul.f32.gmra.mxu0 %v1111
        %v1293 = vpop.f32.mrf.mxu0
        %v1294 = vadd.f32 %v1102, %v1293
        %1295 = vmatmul.f32.gmra.mxu0 %v1114
        %v1296 = vpop.f32.mrf.mxu0
        %v1297 = vadd.f32 %v1107, %v1296
        %1298 = vdwg.mxu0
        %v1299 = vld [vmem:[#allocation6] sm:$0xff]
        %v1300 = vld [vmem:[#allocation6 + $0x8] sm:$0xff]
        %v1301 = vld [vmem:[#allocation6 + $0x10] sm:$0xff]
        %v1302 = vld [vmem:[#allocation6 + $0x18] sm:$0xff]
        %v1303 = vld [vmem:[#allocation6 + $0x20] sm:$0xff]
        %v1304 = vld [vmem:[#allocation6 + $0x28] sm:$0xff]
        %v1305 = vld [vmem:[#allocation6 + $0x30] sm:$0xff]
        %v1306 = vld [vmem:[#allocation6 + $0x38] sm:$0xff]
        %v1307 = vld [vmem:[#allocation6 + $0x40] sm:$0xff]
        %v1308 = vld [vmem:[#allocation6 + $0x48] sm:$0xff]
        %v1309 = vld [vmem:[#allocation6 + $0x50] sm:$0xff]
        %v1310 = vld [vmem:[#allocation6 + $0x58] sm:$0xff]
        %v1311 = vld [vmem:[#allocation6 + $0x60] sm:$0xff]
        %v1312 = vld [vmem:[#allocation6 + $0x68] sm:$0xff]
        %v1313 = vld [vmem:[#allocation6 + $0x70] sm:$0xff]
        %v1314 = vld [vmem:[#allocation6 + $0x78] sm:$0xff]
        %v1315 = vld [vmem:[#allocation6 + $0x80] sm:$0xff]
        %v1316 = vld [vmem:[#allocation6 + $0x88] sm:$0xff]
        %v1317 = vld [vmem:[#allocation6 + $0x90] sm:$0xff]
        %v1318 = vld [vmem:[#allocation6 + $0x98] sm:$0xff]
        %v1319 = vld [vmem:[#allocation6 + $0xa0] sm:$0xff]
        %v1320 = vld [vmem:[#allocation6 + $0xa8] sm:$0xff]
        %v1321 = vld [vmem:[#allocation6 + $0xb0] sm:$0xff]
        %v1322 = vld [vmem:[#allocation6 + $0xb8] sm:$0xff]
        %v1323 = vld [vmem:[#allocation6 + $0xc0] sm:$0xff]
        %v1324 = vld [vmem:[#allocation6 + $0xc8] sm:$0xff]
        %v1325 = vld [vmem:[#allocation6 + $0xd0] sm:$0xff]
        %v1326 = vld [vmem:[#allocation6 + $0xd8] sm:$0xff]
        %v1327 = vld [vmem:[#allocation6 + $0xe0] sm:$0xff]
        %v1328 = vld [vmem:[#allocation6 + $0xe8] sm:$0xff]
        %v1329 = vld [vmem:[#allocation6 + $0xf0] sm:$0xff]
        %v1330 = vld [vmem:[#allocation6 + $0xf8] sm:$0xff]
        %v1331 = vld [vmem:[#allocation6 + $0x100] sm:$0xff]
        %v1332 = vld [vmem:[#allocation6 + $0x108] sm:$0xff]
        %v1333 = vld [vmem:[#allocation6 + $0x110] sm:$0xff]
        %v1334 = vld [vmem:[#allocation6 + $0x118] sm:$0xff]
        %v1335 = vld [vmem:[#allocation6 + $0x120] sm:$0xff]
        %v1336 = vld [vmem:[#allocation6 + $0x128] sm:$0xff]
        %v1337 = vld [vmem:[#allocation6 + $0x130] sm:$0xff]
        %v1338 = vld [vmem:[#allocation6 + $0x138] sm:$0xff]
        %v1339 = vld [vmem:[#allocation6 + $0x140] sm:$0xff]
        %v1340 = vld [vmem:[#allocation6 + $0x148] sm:$0xff]
        %v1341 = vld [vmem:[#allocation6 + $0x150] sm:$0xff]
        %v1342 = vld [vmem:[#allocation6 + $0x158] sm:$0xff]
        %v1343 = vld [vmem:[#allocation6 + $0x160] sm:$0xff]
        %v1344 = vld [vmem:[#allocation6 + $0x168] sm:$0xff]
        %v1345 = vld [vmem:[#allocation6 + $0x170] sm:$0xff]
        %v1346 = vld [vmem:[#allocation6 + $0x178] sm:$0xff]
        %v1347 = vld [vmem:[#allocation6 + $0x180] sm:$0xff]
        %v1348 = vld [vmem:[#allocation6 + $0x188] sm:$0xff]
        %v1349 = vld [vmem:[#allocation6 + $0x190] sm:$0xff]
        %v1350 = vld [vmem:[#allocation6 + $0x198] sm:$0xff]
        %v1351 = vld [vmem:[#allocation6 + $0x1a0] sm:$0xff]
        %v1352 = vld [vmem:[#allocation6 + $0x1a8] sm:$0xff]
        %v1353 = vld [vmem:[#allocation6 + $0x1b0] sm:$0xff]
        %v1354 = vld [vmem:[#allocation6 + $0x1b8] sm:$0xff]
        %v1355 = vld [vmem:[#allocation6 + $0x1c0] sm:$0xff]
        %v1356 = vld [vmem:[#allocation6 + $0x1c8] sm:$0xff]
        %v1357 = vld [vmem:[#allocation6 + $0x1d0] sm:$0xff]
        %v1358 = vld [vmem:[#allocation6 + $0x1d8] sm:$0xff]
        %v1359 = vld [vmem:[#allocation6 + $0x1e0] sm:$0xff]
        %v1360 = vld [vmem:[#allocation6 + $0x1e8] sm:$0xff]
        %v1361 = vld [vmem:[#allocation6 + $0x1f0] sm:$0xff]
        %v1362 = vld [vmem:[#allocation6 + $0x1f8] sm:$0xff]
        %v1363 = vld [vmem:[#allocation6 + $0x200] sm:$0xff]
        %v1364 = vld [vmem:[#allocation6 + $0x208] sm:$0xff]
        %v1365 = vld [vmem:[#allocation6 + $0x210] sm:$0xff]
        %v1366 = vld [vmem:[#allocation6 + $0x218] sm:$0xff]
        %v1367 = vld [vmem:[#allocation6 + $0x220] sm:$0xff]
        %v1368 = vld [vmem:[#allocation6 + $0x228] sm:$0xff]
        %v1369 = vld [vmem:[#allocation6 + $0x230] sm:$0xff]
        %v1370 = vld [vmem:[#allocation6 + $0x238] sm:$0xff]
        %v1371 = vld [vmem:[#allocation6 + $0x240] sm:$0xff]
        %v1372 = vld [vmem:[#allocation6 + $0x248] sm:$0xff]
        %v1373 = vld [vmem:[#allocation6 + $0x250] sm:$0xff]
        %v1374 = vld [vmem:[#allocation6 + $0x258] sm:$0xff]
        %v1375 = vld [vmem:[#allocation6 + $0x260] sm:$0xff]
        %v1376 = vld [vmem:[#allocation6 + $0x268] sm:$0xff]
        %v1377 = vld [vmem:[#allocation6 + $0x270] sm:$0xff]
        %v1378 = vld [vmem:[#allocation6 + $0x278] sm:$0xff]
        %v1379 = vld [vmem:[#allocation6 + $0x280] sm:$0xff]
        %v1380 = vld [vmem:[#allocation6 + $0x288] sm:$0xff]
        %v1381 = vld [vmem:[#allocation6 + $0x290] sm:$0xff]
        %v1382 = vld [vmem:[#allocation6 + $0x298] sm:$0xff]
        %v1383 = vld [vmem:[#allocation6 + $0x2a0] sm:$0xff]
        %v1384 = vld [vmem:[#allocation6 + $0x2a8] sm:$0xff]
        %v1385 = vld [vmem:[#allocation6 + $0x2b0] sm:$0xff]
        %v1386 = vld [vmem:[#allocation6 + $0x2b8] sm:$0xff]
        %v1387 = vld [vmem:[#allocation6 + $0x2c0] sm:$0xff]
        %v1388 = vld [vmem:[#allocation6 + $0x2c8] sm:$0xff]
        %v1389 = vld [vmem:[#allocation6 + $0x2d0] sm:$0xff]
        %v1390 = vld [vmem:[#allocation6 + $0x2d8] sm:$0xff]
        %v1391 = vld [vmem:[#allocation6 + $0x2e0] sm:$0xff]
        %v1392 = vld [vmem:[#allocation6 + $0x2e8] sm:$0xff]
        %v1393 = vld [vmem:[#allocation6 + $0x2f0] sm:$0xff]
        %v1394 = vld [vmem:[#allocation6 + $0x2f8] sm:$0xff]
        %v1395 = vld [vmem:[#allocation6 + $0x300] sm:$0xff]
        %v1396 = vld [vmem:[#allocation6 + $0x308] sm:$0xff]
        %v1397 = vld [vmem:[#allocation6 + $0x310] sm:$0xff]
        %v1398 = vld [vmem:[#allocation6 + $0x318] sm:$0xff]
        %v1399 = vld [vmem:[#allocation6 + $0x320] sm:$0xff]
        %v1400 = vld [vmem:[#allocation6 + $0x328] sm:$0xff]
        %v1401 = vld [vmem:[#allocation6 + $0x330] sm:$0xff]
        %v1402 = vld [vmem:[#allocation6 + $0x338] sm:$0xff]
        %v1403 = vld [vmem:[#allocation6 + $0x340] sm:$0xff]
        %v1404 = vld [vmem:[#allocation6 + $0x348] sm:$0xff]
        %v1405 = vld [vmem:[#allocation6 + $0x350] sm:$0xff]
        %v1406 = vld [vmem:[#allocation6 + $0x358] sm:$0xff]
        %v1407 = vld [vmem:[#allocation6 + $0x360] sm:$0xff]
        %v1408 = vld [vmem:[#allocation6 + $0x368] sm:$0xff]
        %v1409 = vld [vmem:[#allocation6 + $0x370] sm:$0xff]
        %v1410 = vld [vmem:[#allocation6 + $0x378] sm:$0xff]
        %v1411 = vld [vmem:[#allocation6 + $0x380] sm:$0xff]
        %v1412 = vld [vmem:[#allocation6 + $0x388] sm:$0xff]
        %v1413 = vld [vmem:[#allocation6 + $0x390] sm:$0xff]
        %v1414 = vld [vmem:[#allocation6 + $0x398] sm:$0xff]
        %v1415 = vld [vmem:[#allocation6 + $0x3a0] sm:$0xff]
        %v1416 = vld [vmem:[#allocation6 + $0x3a8] sm:$0xff]
        %v1417 = vld [vmem:[#allocation6 + $0x3b0] sm:$0xff]
        %v1418 = vld [vmem:[#allocation6 + $0x3b8] sm:$0xff]
        %v1419 = vld [vmem:[#allocation6 + $0x3c0] sm:$0xff]
        %v1420 = vld [vmem:[#allocation6 + $0x3c8] sm:$0xff]
        %v1421 = vld [vmem:[#allocation6 + $0x3d0] sm:$0xff]
        %v1422 = vld [vmem:[#allocation6 + $0x3d8] sm:$0xff]
        %v1423 = vld [vmem:[#allocation6 + $0x3e0] sm:$0xff]
        %v1424 = vld [vmem:[#allocation6 + $0x3e8] sm:$0xff]
        %v1425 = vld [vmem:[#allocation6 + $0x3f0] sm:$0xff]
        %v1426 = vld [vmem:[#allocation6 + $0x3f8] sm:$0xff]
        %v1427 = vld [vmem:[#allocation6 + $0x400] sm:$0xff]
        %v1428 = vld [vmem:[#allocation6 + $0x408] sm:$0xff]
        %v1429 = vld [vmem:[#allocation6 + $0x410] sm:$0xff]
        %v1430 = vld [vmem:[#allocation6 + $0x418] sm:$0xff]
        %v1431 = vld [vmem:[#allocation6 + $0x420] sm:$0xff]
        %v1432 = vld [vmem:[#allocation6 + $0x428] sm:$0xff]
        %v1433 = vld [vmem:[#allocation6 + $0x430] sm:$0xff]
        %v1434 = vld [vmem:[#allocation6 + $0x438] sm:$0xff]
        %v1435 = vld [vmem:[#allocation6 + $0x440] sm:$0xff]
        %v1436 = vld [vmem:[#allocation6 + $0x448] sm:$0xff]
        %v1437 = vld [vmem:[#allocation6 + $0x450] sm:$0xff]
        %v1438 = vld [vmem:[#allocation6 + $0x458] sm:$0xff]
        %v1439 = vld [vmem:[#allocation6 + $0x460] sm:$0xff]
        %v1440 = vld [vmem:[#allocation6 + $0x468] sm:$0xff]
        %v1441 = vld [vmem:[#allocation6 + $0x470] sm:$0xff]
        %v1442 = vld [vmem:[#allocation6 + $0x478] sm:$0xff]
        %v1443 = vld [vmem:[#allocation6 + $0x480] sm:$0xff]
        %v1444 = vld [vmem:[#allocation6 + $0x488] sm:$0xff]
        %v1445 = vld [vmem:[#allocation6 + $0x490] sm:$0xff]
        %v1446 = vld [vmem:[#allocation6 + $0x498] sm:$0xff]
        %v1447 = vld [vmem:[#allocation6 + $0x4a0] sm:$0xff]
        %v1448 = vld [vmem:[#allocation6 + $0x4a8] sm:$0xff]
        %v1449 = vld [vmem:[#allocation6 + $0x4b0] sm:$0xff]
        %v1450 = vld [vmem:[#allocation6 + $0x4b8] sm:$0xff]
        %v1451 = vld [vmem:[#allocation6 + $0x4c0] sm:$0xff]
        %v1452 = vld [vmem:[#allocation6 + $0x4c8] sm:$0xff]
        %v1453 = vld [vmem:[#allocation6 + $0x4d0] sm:$0xff]
        %v1454 = vld [vmem:[#allocation6 + $0x4d8] sm:$0xff]
        %v1455 = vld [vmem:[#allocation6 + $0x4e0] sm:$0xff]
        %v1456 = vld [vmem:[#allocation6 + $0x4e8] sm:$0xff]
        %v1457 = vld [vmem:[#allocation6 + $0x4f0] sm:$0xff]
        %v1458 = vld [vmem:[#allocation6 + $0x4f8] sm:$0xff]
        %v1459 = vld [vmem:[#allocation6 + $0x500] sm:$0xff]
        %v1460 = vld [vmem:[#allocation6 + $0x508] sm:$0xff]
        %v1461 = vld [vmem:[#allocation6 + $0x510] sm:$0xff]
        %v1462 = vld [vmem:[#allocation6 + $0x518] sm:$0xff]
        %v1463 = vld [vmem:[#allocation6 + $0x520] sm:$0xff]
        %v1464 = vld [vmem:[#allocation6 + $0x528] sm:$0xff]
        %v1465 = vld [vmem:[#allocation6 + $0x530] sm:$0xff]
        %v1466 = vld [vmem:[#allocation6 + $0x538] sm:$0xff]
        %v1467 = vld [vmem:[#allocation6 + $0x540] sm:$0xff]
        %v1468 = vld [vmem:[#allocation6 + $0x548] sm:$0xff]
        %v1469 = vld [vmem:[#allocation6 + $0x550] sm:$0xff]
        %v1470 = vld [vmem:[#allocation6 + $0x558] sm:$0xff]
        %v1471 = vld [vmem:[#allocation6 + $0x560] sm:$0xff]
        %v1472 = vld [vmem:[#allocation6 + $0x568] sm:$0xff]
        %v1473 = vld [vmem:[#allocation6 + $0x570] sm:$0xff]
        %v1474 = vld [vmem:[#allocation6 + $0x578] sm:$0xff]
        %v1475 = vld [vmem:[#allocation6 + $0x580] sm:$0xff]
        %v1476 = vld [vmem:[#allocation6 + $0x588] sm:$0xff]
        %v1477 = vld [vmem:[#allocation6 + $0x590] sm:$0xff]
        %v1478 = vld [vmem:[#allocation6 + $0x598] sm:$0xff]
        %v1479 = vld [vmem:[#allocation6 + $0x5a0] sm:$0xff]
        %v1480 = vld [vmem:[#allocation6 + $0x5a8] sm:$0xff]
        %v1481 = vld [vmem:[#allocation6 + $0x5b0] sm:$0xff]
        %v1482 = vld [vmem:[#allocation6 + $0x5b8] sm:$0xff]
        %v1483 = vld [vmem:[#allocation6 + $0x5c0] sm:$0xff]
        %v1484 = vld [vmem:[#allocation6 + $0x5c8] sm:$0xff]
        %v1485 = vld [vmem:[#allocation6 + $0x5d0] sm:$0xff]
        %v1486 = vld [vmem:[#allocation6 + $0x5d8] sm:$0xff]
        %v1487 = vld [vmem:[#allocation6 + $0x5e0] sm:$0x7]
        %v1488 = vld [vmem:[#allocation6 + $0x5e8] sm:$0x7]
        %vm1489 = vcmask 941056
        %v1491 = vsel %vm1489, %v1271, 0
        %v1494 = vsel %vm1489, %v1274, 0
        %vm1496 = vcmask 1042432
        %v1498 = vsel %vm1496, %v1487, 0
        %v1501 = vsel %vm1496, %v1488, 0
        %1503 = vmatpush.msra.mxu0 %v1329
        %1504 = vmatpush.msra.mxu0 %v1327
        %1505 = vmatpush.msra.mxu0 %v1325
        %1506 = vmatpush.msra.mxu0 %v1323
        %1507 = vmatpush.msra.mxu0 %v1321
        %1508 = vmatpush.msra.mxu0 %v1319
        %1509 = vmatpush.msra.mxu0 %v1317
        %1510 = vmatpush.msra.mxu0 %v1315
        %1511 = vmatpush.msra.mxu0 %v1313
        %1512 = vmatpush.msra.mxu0 %v1311
        %1513 = vmatpush.msra.mxu0 %v1309
        %1514 = vmatpush.msra.mxu0 %v1307
        %1515 = vmatpush.msra.mxu0 %v1305
        %1516 = vmatpush.msra.mxu0 %v1303
        %1517 = vmatpush.msra.mxu0 %v1301
        %1518 = vmatpush.msra.mxu0 %v1299
        %1519 = vmatmul.f32.gmra.mxu0 %v1156
        %v1520 = vpop.f32.mrf.mxu0
        %v1521 = vadd.f32 0.0, %v1520
        %1522 = vmatmul.f32.gmra.mxu0 %v1159
        %v1523 = vpop.f32.mrf.mxu0
        %v1524 = vadd.f32 0.0, %v1523
        %1525 = vdwg.mxu0
        %1526 = vmatpush.msra.mxu0 %v1361
        %1527 = vmatpush.msra.mxu0 %v1359
        %1528 = vmatpush.msra.mxu0 %v1357
        %1529 = vmatpush.msra.mxu0 %v1355
        %1530 = vmatpush.msra.mxu0 %v1353
        %1531 = vmatpush.msra.mxu0 %v1351
        %1532 = vmatpush.msra.mxu0 %v1349
        %1533 = vmatpush.msra.mxu0 %v1347
        %1534 = vmatpush.msra.mxu0 %v1345
        %1535 = vmatpush.msra.mxu0 %v1343
        %1536 = vmatpush.msra.mxu0 %v1341
        %1537 = vmatpush.msra.mxu0 %v1339
        %1538 = vmatpush.msra.mxu0 %v1337
        %1539 = vmatpush.msra.mxu0 %v1335
        %1540 = vmatpush.msra.mxu0 %v1333
        %1541 = vmatpush.msra.mxu0 %v1331
        %1542 = vmatmul.f32.gmra.mxu0 %v1179
        %v1543 = vpop.f32.mrf.mxu0
        %v1544 = vadd.f32 %v1521, %v1543
        %1545 = vmatmul.f32.gmra.mxu0 %v1182
        %v1546 = vpop.f32.mrf.mxu0
        %v1547 = vadd.f32 %v1524, %v1546
        %1548 = vdwg.mxu0
        %1549 = vmatpush.msra.mxu0 %v1393
        %1550 = vmatpush.msra.mxu0 %v1391
        %1551 = vmatpush.msra.mxu0 %v1389
        %1552 = vmatpush.msra.mxu0 %v1387
        %1553 = vmatpush.msra.mxu0 %v1385
        %1554 = vmatpush.msra.mxu0 %v1383
        %1555 = vmatpush.msra.mxu0 %v1381
        %1556 = vmatpush.msra.mxu0 %v1379
        %1557 = vmatpush.msra.mxu0 %v1377
        %1558 = vmatpush.msra.mxu0 %v1375
        %1559 = vmatpush.msra.mxu0 %v1373
        %1560 = vmatpush.msra.mxu0 %v1371
        %1561 = vmatpush.msra.mxu0 %v1369
        %1562 = vmatpush.msra.mxu0 %v1367
        %1563 = vmatpush.msra.mxu0 %v1365
        %1564 = vmatpush.msra.mxu0 %v1363
        %1565 = vmatmul.f32.gmra.mxu0 %v1202
        %v1566 = vpop.f32.mrf.mxu0
        %v1567 = vadd.f32 %v1544, %v1566
        %1568 = vmatmul.f32.gmra.mxu0 %v1205
        %v1569 = vpop.f32.mrf.mxu0
        %v1570 = vadd.f32 %v1547, %v1569
        %1571 = vdwg.mxu0
        %1572 = vmatpush.msra.mxu0 %v1425
        %1573 = vmatpush.msra.mxu0 %v1423
        %1574 = vmatpush.msra.mxu0 %v1421
        %1575 = vmatpush.msra.mxu0 %v1419
        %1576 = vmatpush.msra.mxu0 %v1417
        %1577 = vmatpush.msra.mxu0 %v1415
        %1578 = vmatpush.msra.mxu0 %v1413
        %1579 = vmatpush.msra.mxu0 %v1411
        %1580 = vmatpush.msra.mxu0 %v1409
        %1581 = vmatpush.msra.mxu0 %v1407
        %1582 = vmatpush.msra.mxu0 %v1405
        %1583 = vmatpush.msra.mxu0 %v1403
        %1584 = vmatpush.msra.mxu0 %v1401
        %1585 = vmatpush.msra.mxu0 %v1399
        %1586 = vmatpush.msra.mxu0 %v1397
        %1587 = vmatpush.msra.mxu0 %v1395
        %1588 = vmatmul.f32.gmra.mxu0 %v1225
        %v1589 = vpop.f32.mrf.mxu0
        %v1590 = vadd.f32 %v1567, %v1589
        %1591 = vmatmul.f32.gmra.mxu0 %v1228
        %v1592 = vpop.f32.mrf.mxu0
        %v1593 = vadd.f32 %v1570, %v1592
        %1594 = vdwg.mxu0
        %1595 = vmatpush.msra.mxu0 %v1457
        %1596 = vmatpush.msra.mxu0 %v1455
        %1597 = vmatpush.msra.mxu0 %v1453
        %1598 = vmatpush.msra.mxu0 %v1451
        %1599 = vmatpush.msra.mxu0 %v1449
        %1600 = vmatpush.msra.mxu0 %v1447
        %1601 = vmatpush.msra.mxu0 %v1445
        %1602 = vmatpush.msra.mxu0 %v1443
        %1603 = vmatpush.msra.mxu0 %v1441
        %1604 = vmatpush.msra.mxu0 %v1439
        %1605 = vmatpush.msra.mxu0 %v1437
        %1606 = vmatpush.msra.mxu0 %v1435
        %1607 = vmatpush.msra.mxu0 %v1433
        %1608 = vmatpush.msra.mxu0 %v1431
        %1609 = vmatpush.msra.mxu0 %v1429
        %1610 = vmatpush.msra.mxu0 %v1427
        %1611 = vmatmul.f32.gmra.mxu0 %v1248
        %v1612 = vpop.f32.mrf.mxu0
        %v1613 = vadd.f32 %v1590, %v1612
        %1614 = vmatmul.f32.gmra.mxu0 %v1251
        %v1615 = vpop.f32.mrf.mxu0
        %v1616 = vadd.f32 %v1593, %v1615
        %1617 = vdwg.mxu0
        %1618 = vmatpush.msra.mxu0 0.0
        %1619 = vmatpush.msra.mxu0 %v1498
        %1620 = vmatpush.msra.mxu0 %v1485
        %1621 = vmatpush.msra.mxu0 %v1483
        %1622 = vmatpush.msra.mxu0 %v1481
        %1623 = vmatpush.msra.mxu0 %v1479
        %1624 = vmatpush.msra.mxu0 %v1477
        %1625 = vmatpush.msra.mxu0 %v1475
        %1626 = vmatpush.msra.mxu0 %v1473
        %1627 = vmatpush.msra.mxu0 %v1471
        %1628 = vmatpush.msra.mxu0 %v1469
        %1629 = vmatpush.msra.mxu0 %v1467
        %1630 = vmatpush.msra.mxu0 %v1465
        %1631 = vmatpush.msra.mxu0 %v1463
        %1632 = vmatpush.msra.mxu0 %v1461
        %1633 = vmatpush.msra.mxu0 %v1459
        %1634 = vmatmul.f32.gmra.mxu0 %v1491
        %v1635 = vpop.f32.mrf.mxu0
        %v1636 = vadd.f32 %v1613, %v1635
        %1637 = vmatmul.f32.gmra.mxu0 %v1494
        %v1638 = vpop.f32.mrf.mxu0
        %v1639 = vadd.f32 %v1616, %v1638
        %1640 = vdwg.mxu0
        %1641 = vmatpush.msra.mxu0 %v1330
        %1642 = vmatpush.msra.mxu0 %v1328
        %1643 = vmatpush.msra.mxu0 %v1326
        %1644 = vmatpush.msra.mxu0 %v1324
        %1645 = vmatpush.msra.mxu0 %v1322
        %1646 = vmatpush.msra.mxu0 %v1320
        %1647 = vmatpush.msra.mxu0 %v1318
        %1648 = vmatpush.msra.mxu0 %v1316
        %1649 = vmatpush.msra.mxu0 %v1314
        %1650 = vmatpush.msra.mxu0 %v1312
        %1651 = vmatpush.msra.mxu0 %v1310
        %1652 = vmatpush.msra.mxu0 %v1308
        %1653 = vmatpush.msra.mxu0 %v1306
        %1654 = vmatpush.msra.mxu0 %v1304
        %1655 = vmatpush.msra.mxu0 %v1302
        %1656 = vmatpush.msra.mxu0 %v1300
        %1657 = vmatmul.f32.gmra.mxu0 %v1156
        %v1658 = vpop.f32.mrf.mxu0
        %v1659 = vadd.f32 0.0, %v1658
        %1660 = vmatmul.f32.gmra.mxu0 %v1159
        %v1661 = vpop.f32.mrf.mxu0
        %v1662 = vadd.f32 0.0, %v1661
        %1663 = vdwg.mxu0
        %1664 = vmatpush.msra.mxu0 %v1362
        %1665 = vmatpush.msra.mxu0 %v1360
        %1666 = vmatpush.msra.mxu0 %v1358
        %1667 = vmatpush.msra.mxu0 %v1356
        %1668 = vmatpush.msra.mxu0 %v1354
        %1669 = vmatpush.msra.mxu0 %v1352
        %1670 = vmatpush.msra.mxu0 %v1350
        %1671 = vmatpush.msra.mxu0 %v1348
        %1672 = vmatpush.msra.mxu0 %v1346
        %1673 = vmatpush.msra.mxu0 %v1344
        %1674 = vmatpush.msra.mxu0 %v1342
        %1675 = vmatpush.msra.mxu0 %v1340
        %1676 = vmatpush.msra.mxu0 %v1338
        %1677 = vmatpush.msra.mxu0 %v1336
        %1678 = vmatpush.msra.mxu0 %v1334
        %1679 = vmatpush.msra.mxu0 %v1332
        %1680 = vmatmul.f32.gmra.mxu0 %v1179
        %v1681 = vpop.f32.mrf.mxu0
        %v1682 = vadd.f32 %v1659, %v1681
        %1683 = vmatmul.f32.gmra.mxu0 %v1182
        %v1684 = vpop.f32.mrf.mxu0
        %v1685 = vadd.f32 %v1662, %v1684
        %1686 = vdwg.mxu0
        %1687 = vmatpush.msra.mxu0 %v1394
        %1688 = vmatpush.msra.mxu0 %v1392
        %1689 = vmatpush.msra.mxu0 %v1390
        %1690 = vmatpush.msra.mxu0 %v1388
        %1691 = vmatpush.msra.mxu0 %v1386
        %1692 = vmatpush.msra.mxu0 %v1384
        %1693 = vmatpush.msra.mxu0 %v1382
        %1694 = vmatpush.msra.mxu0 %v1380
        %1695 = vmatpush.msra.mxu0 %v1378
        %1696 = vmatpush.msra.mxu0 %v1376
        %1697 = vmatpush.msra.mxu0 %v1374
        %1698 = vmatpush.msra.mxu0 %v1372
        %1699 = vmatpush.msra.mxu0 %v1370
        %1700 = vmatpush.msra.mxu0 %v1368
        %1701 = vmatpush.msra.mxu0 %v1366
        %1702 = vmatpush.msra.mxu0 %v1364
        %1703 = vmatmul.f32.gmra.mxu0 %v1202
        %v1704 = vpop.f32.mrf.mxu0
        %v1705 = vadd.f32 %v1682, %v1704
        %1706 = vmatmul.f32.gmra.mxu0 %v1205
        %v1707 = vpop.f32.mrf.mxu0
        %v1708 = vadd.f32 %v1685, %v1707
        %1709 = vdwg.mxu0
        %1710 = vmatpush.msra.mxu0 %v1426
        %1711 = vmatpush.msra.mxu0 %v1424
        %1712 = vmatpush.msra.mxu0 %v1422
        %1713 = vmatpush.msra.mxu0 %v1420
        %1714 = vmatpush.msra.mxu0 %v1418
        %1715 = vmatpush.msra.mxu0 %v1416
        %1716 = vmatpush.msra.mxu0 %v1414
        %1717 = vmatpush.msra.mxu0 %v1412
        %1718 = vmatpush.msra.mxu0 %v1410
        %1719 = vmatpush.msra.mxu0 %v1408
        %1720 = vmatpush.msra.mxu0 %v1406
        %1721 = vmatpush.msra.mxu0 %v1404
        %1722 = vmatpush.msra.mxu0 %v1402
        %1723 = vmatpush.msra.mxu0 %v1400
        %1724 = vmatpush.msra.mxu0 %v1398
        %1725 = vmatpush.msra.mxu0 %v1396
        %1726 = vmatmul.f32.gmra.mxu0 %v1225
        %v1727 = vpop.f32.mrf.mxu0
        %v1728 = vadd.f32 %v1705, %v1727
        %1729 = vmatmul.f32.gmra.mxu0 %v1228
        %v1730 = vpop.f32.mrf.mxu0
        %v1731 = vadd.f32 %v1708, %v1730
        %1732 = vdwg.mxu0
        %1733 = vmatpush.msra.mxu0 %v1458
        %1734 = vmatpush.msra.mxu0 %v1456
        %1735 = vmatpush.msra.mxu0 %v1454
        %1736 = vmatpush.msra.mxu0 %v1452
        %1737 = vmatpush.msra.mxu0 %v1450
        %1738 = vmatpush.msra.mxu0 %v1448
        %1739 = vmatpush.msra.mxu0 %v1446
        %1740 = vmatpush.msra.mxu0 %v1444
        %1741 = vmatpush.msra.mxu0 %v1442
        %1742 = vmatpush.msra.mxu0 %v1440
        %1743 = vmatpush.msra.mxu0 %v1438
        %1744 = vmatpush.msra.mxu0 %v1436
        %1745 = vmatpush.msra.mxu0 %v1434
        %1746 = vmatpush.msra.mxu0 %v1432
        %1747 = vmatpush.msra.mxu0 %v1430
        %1748 = vmatpush.msra.mxu0 %v1428
        %1749 = vmatmul.f32.gmra.mxu0 %v1248
        %v1750 = vpop.f32.mrf.mxu0
        %v1751 = vadd.f32 %v1728, %v1750
        %1752 = vmatmul.f32.gmra.mxu0 %v1251
        %v1753 = vpop.f32.mrf.mxu0
        %v1754 = vadd.f32 %v1731, %v1753
        %1755 = vdwg.mxu0
        %1756 = vmatpush.msra.mxu0 0.0
        %1757 = vmatpush.msra.mxu0 %v1501
        %1758 = vmatpush.msra.mxu0 %v1486
        %1759 = vmatpush.msra.mxu0 %v1484
        %1760 = vmatpush.msra.mxu0 %v1482
        %1761 = vmatpush.msra.mxu0 %v1480
        %1762 = vmatpush.msra.mxu0 %v1478
        %1763 = vmatpush.msra.mxu0 %v1476
        %1764 = vmatpush.msra.mxu0 %v1474
        %1765 = vmatpush.msra.mxu0 %v1472
        %1766 = vmatpush.msra.mxu0 %v1470
        %1767 = vmatpush.msra.mxu0 %v1468
        %1768 = vmatpush.msra.mxu0 %v1466
        %1769 = vmatpush.msra.mxu0 %v1464
        %1770 = vmatpush.msra.mxu0 %v1462
        %1771 = vmatpush.msra.mxu0 %v1460
        %1772 = vmatmul.f32.gmra.mxu0 %v1491
        %v1773 = vpop.f32.mrf.mxu0
        %v1774 = vadd.f32 %v1751, %v1773
        %1775 = vmatmul.f32.gmra.mxu0 %v1494
        %v1776 = vpop.f32.mrf.mxu0
        %v1777 = vadd.f32 %v1754, %v1776
        %1778 = vdwg.mxu0
        %1789 = vrot.lane.b32.xlu0 %v1156, 127
        %v1790 = vpop.permute.xlu0 %1789
        %1791 = vrot.lane.b32.xlu0 %v1179, 127
        %v1792 = vpop.permute.xlu0 %1791
        %1793 = vrot.lane.b32.xlu0 %v1202, 127
        %v1794 = vpop.permute.xlu0 %1793
        %1795 = vrot.lane.b32.xlu0 %v1225, 127
        %v1796 = vpop.permute.xlu0 %1795
        %1797 = vrot.lane.b32.xlu0 %v1248, 127
        %v1798 = vpop.permute.xlu0 %1797
        %1799 = vrot.lane.b32.xlu0 %v1271, 127
        %v1800 = vpop.permute.xlu0 %1799
        %1801 = vrot.lane.b32.xlu0 %v1159, 127
        %v1802 = vpop.permute.xlu0 %1801
        %1803 = vrot.lane.b32.xlu0 %v1182, 127
        %v1804 = vpop.permute.xlu0 %1803
        %1805 = vrot.lane.b32.xlu0 %v1205, 127
        %v1806 = vpop.permute.xlu0 %1805
        %1807 = vrot.lane.b32.xlu0 %v1228, 127
        %v1808 = vpop.permute.xlu0 %1807
        %1809 = vrot.lane.b32.xlu0 %v1251, 127
        %v1810 = vpop.permute.xlu0 %1809
        %1811 = vrot.lane.b32.xlu0 %v1274, 127
        %v1812 = vpop.permute.xlu0 %1811
        %vm1813 = vcmask 1039360
        %v1814 = vsel %vm1813, %v1790, %v1792
        %v1815 = vsel %vm1813, %v1792, %v1794
        %v1816 = vsel %vm1813, %v1794, %v1796
        %v1817 = vsel %vm1813, %v1796, %v1798
        %v1818 = vsel %vm1813, %v1798, %v1800
        %v1819 = vsel %vm1813, %v1802, %v1804
        %v1820 = vsel %vm1813, %v1804, %v1806
        %v1821 = vsel %vm1813, %v1806, %v1808
        %v1822 = vsel %vm1813, %v1808, %v1810
        %v1823 = vsel %vm1813, %v1810, %v1812
        %v1834 = vsel %vm1489, %v1800, 0
        %v1836 = vsel %vm1489, %v1812, 0
        %1838 = vmatpush.msra.mxu0 %v1329
        %1839 = vmatpush.msra.mxu0 %v1327
        %1840 = vmatpush.msra.mxu0 %v1325
        %1841 = vmatpush.msra.mxu0 %v1323
        %1842 = vmatpush.msra.mxu0 %v1321
        %1843 = vmatpush.msra.mxu0 %v1319
        %1844 = vmatpush.msra.mxu0 %v1317
        %1845 = vmatpush.msra.mxu0 %v1315
        %1846 = vmatpush.msra.mxu0 %v1313
        %1847 = vmatpush.msra.mxu0 %v1311
        %1848 = vmatpush.msra.mxu0 %v1309
        %1849 = vmatpush.msra.mxu0 %v1307
        %1850 = vmatpush.msra.mxu0 %v1305
        %1851 = vmatpush.msra.mxu0 %v1303
        %1852 = vmatpush.msra.mxu0 %v1301
        %1853 = vmatpush.msra.mxu0 %v1299
        %1854 = vmatmul.f32.gmra.mxu0 %v1814
        %v1855 = vpop.f32.mrf.mxu0
        %v1856 = vadd.f32 0.0, %v1855
        %1857 = vmatmul.f32.gmra.mxu0 %v1819
        %v1858 = vpop.f32.mrf.mxu0
        %v1859 = vadd.f32 0.0, %v1858
        %1860 = vdwg.mxu0
        %1861 = vmatpush.msra.mxu0 %v1361
        %1862 = vmatpush.msra.mxu0 %v1359
        %1863 = vmatpush.msra.mxu0 %v1357
        %1864 = vmatpush.msra.mxu0 %v1355
        %1865 = vmatpush.msra.mxu0 %v1353
        %1866 = vmatpush.msra.mxu0 %v1351
        %1867 = vmatpush.msra.mxu0 %v1349
        %1868 = vmatpush.msra.mxu0 %v1347
        %1869 = vmatpush.msra.mxu0 %v1345
        %1870 = vmatpush.msra.mxu0 %v1343
        %1871 = vmatpush.msra.mxu0 %v1341
        %1872 = vmatpush.msra.mxu0 %v1339
        %1873 = vmatpush.msra.mxu0 %v1337
        %1874 = vmatpush.msra.mxu0 %v1335
        %1875 = vmatpush.msra.mxu0 %v1333
        %1876 = vmatpush.msra.mxu0 %v1331
        %1877 = vmatmul.f32.gmra.mxu0 %v1815
        %v1878 = vpop.f32.mrf.mxu0
        %v1879 = vadd.f32 %v1856, %v1878
        %1880 = vmatmul.f32.gmra.mxu0 %v1820
        %v1881 = vpop.f32.mrf.mxu0
        %v1882 = vadd.f32 %v1859, %v1881
        %1883 = vdwg.mxu0
        %1884 = vmatpush.msra.mxu0 %v1393
        %1885 = vmatpush.msra.mxu0 %v1391
        %1886 = vmatpush.msra.mxu0 %v1389
        %1887 = vmatpush.msra.mxu0 %v1387
        %1888 = vmatpush.msra.mxu0 %v1385
        %1889 = vmatpush.msra.mxu0 %v1383
        %1890 = vmatpush.msra.mxu0 %v1381
        %1891 = vmatpush.msra.mxu0 %v1379
        %1892 = vmatpush.msra.mxu0 %v1377
        %1893 = vmatpush.msra.mxu0 %v1375
        %1894 = vmatpush.msra.mxu0 %v1373
        %1895 = vmatpush.msra.mxu0 %v1371
        %1896 = vmatpush.msra.mxu0 %v1369
        %1897 = vmatpush.msra.mxu0 %v1367
        %1898 = vmatpush.msra.mxu0 %v1365
        %1899 = vmatpush.msra.mxu0 %v1363
        %1900 = vmatmul.f32.gmra.mxu0 %v1816
        %v1901 = vpop.f32.mrf.mxu0
        %v1902 = vadd.f32 %v1879, %v1901
        %1903 = vmatmul.f32.gmra.mxu0 %v1821
        %v1904 = vpop.f32.mrf.mxu0
        %v1905 = vadd.f32 %v1882, %v1904
        %1906 = vdwg.mxu0
        %1907 = vmatpush.msra.mxu0 %v1425
        %1908 = vmatpush.msra.mxu0 %v1423
        %1909 = vmatpush.msra.mxu0 %v1421
        %1910 = vmatpush.msra.mxu0 %v1419
        %1911 = vmatpush.msra.mxu0 %v1417
        %1912 = vmatpush.msra.mxu0 %v1415
        %1913 = vmatpush.msra.mxu0 %v1413
        %1914 = vmatpush.msra.mxu0 %v1411
        %1915 = vmatpush.msra.mxu0 %v1409
        %1916 = vmatpush.msra.mxu0 %v1407
        %1917 = vmatpush.msra.mxu0 %v1405
        %1918 = vmatpush.msra.mxu0 %v1403
        %1919 = vmatpush.msra.mxu0 %v1401
        %1920 = vmatpush.msra.mxu0 %v1399
        %1921 = vmatpush.msra.mxu0 %v1397
        %1922 = vmatpush.msra.mxu0 %v1395
        %1923 = vmatmul.f32.gmra.mxu0 %v1817
        %v1924 = vpop.f32.mrf.mxu0
        %v1925 = vadd.f32 %v1902, %v1924
        %1926 = vmatmul.f32.gmra.mxu0 %v1822
        %v1927 = vpop.f32.mrf.mxu0
        %v1928 = vadd.f32 %v1905, %v1927
        %1929 = vdwg.mxu0
        %1930 = vmatpush.msra.mxu0 %v1457
        %1931 = vmatpush.msra.mxu0 %v1455
        %1932 = vmatpush.msra.mxu0 %v1453
        %1933 = vmatpush.msra.mxu0 %v1451
        %1934 = vmatpush.msra.mxu0 %v1449
        %1935 = vmatpush.msra.mxu0 %v1447
        %1936 = vmatpush.msra.mxu0 %v1445
        %1937 = vmatpush.msra.mxu0 %v1443
        %1938 = vmatpush.msra.mxu0 %v1441
        %1939 = vmatpush.msra.mxu0 %v1439
        %1940 = vmatpush.msra.mxu0 %v1437
        %1941 = vmatpush.msra.mxu0 %v1435
        %1942 = vmatpush.msra.mxu0 %v1433
        %1943 = vmatpush.msra.mxu0 %v1431
        %1944 = vmatpush.msra.mxu0 %v1429
        %1945 = vmatpush.msra.mxu0 %v1427
        %1946 = vmatmul.f32.gmra.mxu0 %v1818
        %v1947 = vpop.f32.mrf.mxu0
        %v1948 = vadd.f32 %v1925, %v1947
        %1949 = vmatmul.f32.gmra.mxu0 %v1823
        %v1950 = vpop.f32.mrf.mxu0
        %v1951 = vadd.f32 %v1928, %v1950
        %1952 = vdwg.mxu0
        %1953 = vmatpush.msra.mxu0 0.0
        %1954 = vmatpush.msra.mxu0 %v1498
        %1955 = vmatpush.msra.mxu0 %v1485
        %1956 = vmatpush.msra.mxu0 %v1483
        %1957 = vmatpush.msra.mxu0 %v1481
        %1958 = vmatpush.msra.mxu0 %v1479
        %1959 = vmatpush.msra.mxu0 %v1477
        %1960 = vmatpush.msra.mxu0 %v1475
        %1961 = vmatpush.msra.mxu0 %v1473
        %1962 = vmatpush.msra.mxu0 %v1471
        %1963 = vmatpush.msra.mxu0 %v1469
        %1964 = vmatpush.msra.mxu0 %v1467
        %1965 = vmatpush.msra.mxu0 %v1465
        %1966 = vmatpush.msra.mxu0 %v1463
        %1967 = vmatpush.msra.mxu0 %v1461
        %1968 = vmatpush.msra.mxu0 %v1459
        %1969 = vmatmul.f32.gmra.mxu0 %v1834
        %v1970 = vpop.f32.mrf.mxu0
        %v1971 = vadd.f32 %v1948, %v1970
        %1972 = vmatmul.f32.gmra.mxu0 %v1836
        %v1973 = vpop.f32.mrf.mxu0
        %v1974 = vadd.f32 %v1951, %v1973
        %1975 = vdwg.mxu0
        %1976 = vmatpush.msra.mxu0 %v1330
        %1977 = vmatpush.msra.mxu0 %v1328
        %1978 = vmatpush.msra.mxu0 %v1326
        %1979 = vmatpush.msra.mxu0 %v1324
        %1980 = vmatpush.msra.mxu0 %v1322
        %1981 = vmatpush.msra.mxu0 %v1320
        %1982 = vmatpush.msra.mxu0 %v1318
        %1983 = vmatpush.msra.mxu0 %v1316
        %1984 = vmatpush.msra.mxu0 %v1314
        %1985 = vmatpush.msra.mxu0 %v1312
        %1986 = vmatpush.msra.mxu0 %v1310
        %1987 = vmatpush.msra.mxu0 %v1308
        %1988 = vmatpush.msra.mxu0 %v1306
        %1989 = vmatpush.msra.mxu0 %v1304
        %1990 = vmatpush.msra.mxu0 %v1302
        %1991 = vmatpush.msra.mxu0 %v1300
        %1992 = vmatmul.f32.gmra.mxu0 %v1814
        %v1993 = vpop.f32.mrf.mxu0
        %v1994 = vadd.f32 0.0, %v1993
        %1995 = vmatmul.f32.gmra.mxu0 %v1819
        %v1996 = vpop.f32.mrf.mxu0
        %v1997 = vadd.f32 0.0, %v1996
        %1998 = vdwg.mxu0
        %1999 = vmatpush.msra.mxu0 %v1362
        %2000 = vmatpush.msra.mxu0 %v1360
        %2001 = vmatpush.msra.mxu0 %v1358
        %2002 = vmatpush.msra.mxu0 %v1356
        %2003 = vmatpush.msra.mxu0 %v1354
        %2004 = vmatpush.msra.mxu0 %v1352
        %2005 = vmatpush.msra.mxu0 %v1350
        %2006 = vmatpush.msra.mxu0 %v1348
        %2007 = vmatpush.msra.mxu0 %v1346
        %2008 = vmatpush.msra.mxu0 %v1344
        %2009 = vmatpush.msra.mxu0 %v1342
        %2010 = vmatpush.msra.mxu0 %v1340
        %2011 = vmatpush.msra.mxu0 %v1338
        %2012 = vmatpush.msra.mxu0 %v1336
        %2013 = vmatpush.msra.mxu0 %v1334
        %2014 = vmatpush.msra.mxu0 %v1332
        %2015 = vmatmul.f32.gmra.mxu0 %v1815
        %v2016 = vpop.f32.mrf.mxu0
        %v2017 = vadd.f32 %v1994, %v2016
        %2018 = vmatmul.f32.gmra.mxu0 %v1820
        %v2019 = vpop.f32.mrf.mxu0
        %v2020 = vadd.f32 %v1997, %v2019
        %2021 = vdwg.mxu0
        %2022 = vmatpush.msra.mxu0 %v1394
        %2023 = vmatpush.msra.mxu0 %v1392
        %2024 = vmatpush.msra.mxu0 %v1390
        %2025 = vmatpush.msra.mxu0 %v1388
        %2026 = vmatpush.msra.mxu0 %v1386
        %2027 = vmatpush.msra.mxu0 %v1384
        %2028 = vmatpush.msra.mxu0 %v1382
        %2029 = vmatpush.msra.mxu0 %v1380
        %2030 = vmatpush.msra.mxu0 %v1378
        %2031 = vmatpush.msra.mxu0 %v1376
        %2032 = vmatpush.msra.mxu0 %v1374
        %2033 = vmatpush.msra.mxu0 %v1372
        %2034 = vmatpush.msra.mxu0 %v1370
        %2035 = vmatpush.msra.mxu0 %v1368
        %2036 = vmatpush.msra.mxu0 %v1366
        %2037 = vmatpush.msra.mxu0 %v1364
        %2038 = vmatmul.f32.gmra.mxu0 %v1816
        %v2039 = vpop.f32.mrf.mxu0
        %v2040 = vadd.f32 %v2017, %v2039
        %2041 = vmatmul.f32.gmra.mxu0 %v1821
        %v2042 = vpop.f32.mrf.mxu0
        %v2043 = vadd.f32 %v2020, %v2042
        %2044 = vdwg.mxu0
        %2045 = vmatpush.msra.mxu0 %v1426
        %2046 = vmatpush.msra.mxu0 %v1424
        %2047 = vmatpush.msra.mxu0 %v1422
        %2048 = vmatpush.msra.mxu0 %v1420
        %2049 = vmatpush.msra.mxu0 %v1418
        %2050 = vmatpush.msra.mxu0 %v1416
        %2051 = vmatpush.msra.mxu0 %v1414
        %2052 = vmatpush.msra.mxu0 %v1412
        %2053 = vmatpush.msra.mxu0 %v1410
        %2054 = vmatpush.msra.mxu0 %v1408
        %2055 = vmatpush.msra.mxu0 %v1406
        %2056 = vmatpush.msra.mxu0 %v1404
        %2057 = vmatpush.msra.mxu0 %v1402
        %2058 = vmatpush.msra.mxu0 %v1400
        %2059 = vmatpush.msra.mxu0 %v1398
        %2060 = vmatpush.msra.mxu0 %v1396
        %2061 = vmatmul.f32.gmra.mxu0 %v1817
        %v2062 = vpop.f32.mrf.mxu0
        %v2063 = vadd.f32 %v2040, %v2062
        %2064 = vmatmul.f32.gmra.mxu0 %v1822
        %v2065 = vpop.f32.mrf.mxu0
        %v2066 = vadd.f32 %v2043, %v2065
        %2067 = vdwg.mxu0
        %2068 = vmatpush.msra.mxu0 %v1458
        %2069 = vmatpush.msra.mxu0 %v1456
        %2070 = vmatpush.msra.mxu0 %v1454
        %2071 = vmatpush.msra.mxu0 %v1452
        %2072 = vmatpush.msra.mxu0 %v1450
        %2073 = vmatpush.msra.mxu0 %v1448
        %2074 = vmatpush.msra.mxu0 %v1446
        %2075 = vmatpush.msra.mxu0 %v1444
        %2076 = vmatpush.msra.mxu0 %v1442
        %2077 = vmatpush.msra.mxu0 %v1440
        %2078 = vmatpush.msra.mxu0 %v1438
        %2079 = vmatpush.msra.mxu0 %v1436
        %2080 = vmatpush.msra.mxu0 %v1434
        %2081 = vmatpush.msra.mxu0 %v1432
        %2082 = vmatpush.msra.mxu0 %v1430
        %2083 = vmatpush.msra.mxu0 %v1428
        %2084 = vmatmul.f32.gmra.mxu0 %v1818
        %v2085 = vpop.f32.mrf.mxu0
        %v2086 = vadd.f32 %v2063, %v2085
        %2087 = vmatmul.f32.gmra.mxu0 %v1823
        %v2088 = vpop.f32.mrf.mxu0
        %v2089 = vadd.f32 %v2066, %v2088
        %2090 = vdwg.mxu0
        %2091 = vmatpush.msra.mxu0 0.0
        %2092 = vmatpush.msra.mxu0 %v1501
        %2093 = vmatpush.msra.mxu0 %v1486
        %2094 = vmatpush.msra.mxu0 %v1484
        %2095 = vmatpush.msra.mxu0 %v1482
        %2096 = vmatpush.msra.mxu0 %v1480
        %2097 = vmatpush.msra.mxu0 %v1478
        %2098 = vmatpush.msra.mxu0 %v1476
        %2099 = vmatpush.msra.mxu0 %v1474
        %2100 = vmatpush.msra.mxu0 %v1472
        %2101 = vmatpush.msra.mxu0 %v1470
        %2102 = vmatpush.msra.mxu0 %v1468
        %2103 = vmatpush.msra.mxu0 %v1466
        %2104 = vmatpush.msra.mxu0 %v1464
        %2105 = vmatpush.msra.mxu0 %v1462
        %2106 = vmatpush.msra.mxu0 %v1460
        %2107 = vmatmul.f32.gmra.mxu0 %v1834
        %v2108 = vpop.f32.mrf.mxu0
        %v2109 = vadd.f32 %v2086, %v2108
        %2110 = vmatmul.f32.gmra.mxu0 %v1836
        %v2111 = vpop.f32.mrf.mxu0
        %v2112 = vadd.f32 %v2089, %v2111
        %2113 = vdwg.mxu0
        %v2114 = vmax.f32 %v1636, %v1971
        %v2115 = vmax.f32 %v1774, %v2109
        %v2116 = vmax.f32 %v1639, %v1974
        %v2117 = vmax.f32 %v1777, %v2112
        %2120 = vrot.lane.b32.xlu0 %v1156, 100
        %v2121 = vpop.permute.xlu0 %2120
        %2122 = vrot.lane.b32.xlu0 %v1179, 100
        %v2123 = vpop.permute.xlu0 %2122
        %2124 = vrot.lane.b32.xlu0 %v1202, 100
        %v2125 = vpop.permute.xlu0 %2124
        %2126 = vrot.lane.b32.xlu0 %v1225, 100
        %v2127 = vpop.permute.xlu0 %2126
        %2128 = vrot.lane.b32.xlu0 %v1248, 100
        %v2129 = vpop.permute.xlu0 %2128
        %2130 = vrot.lane.b32.xlu0 %v1271, 100
        %v2131 = vpop.permute.xlu0 %2130
        %2132 = vrot.lane.b32.xlu0 %v1294, 100
        %v2133 = vpop.permute.xlu0 %2132
        %2134 = vrot.lane.b32.xlu0 %v1159, 100
        %v2135 = vpop.permute.xlu0 %2134
        %2136 = vrot.lane.b32.xlu0 %v1182, 100
        %v2137 = vpop.permute.xlu0 %2136
        %2138 = vrot.lane.b32.xlu0 %v1205, 100
        %v2139 = vpop.permute.xlu0 %2138
        %2140 = vrot.lane.b32.xlu0 %v1228, 100
        %v2141 = vpop.permute.xlu0 %2140
        %2142 = vrot.lane.b32.xlu0 %v1251, 100
        %v2143 = vpop.permute.xlu0 %2142
        %2144 = vrot.lane.b32.xlu0 %v1274, 100
        %v2145 = vpop.permute.xlu0 %2144
        %2146 = vrot.lane.b32.xlu0 %v1297, 100
        %v2147 = vpop.permute.xlu0 %2146
        %vm2148 = vcmask 818176
        %v2149 = vsel %vm2148, %v2121, %v2123
        %v2150 = vsel %vm2148, %v2123, %v2125
        %v2151 = vsel %vm2148, %v2125, %v2127
        %v2152 = vsel %vm2148, %v2127, %v2129
        %v2153 = vsel %vm2148, %v2129, %v2131
        %v2154 = vsel %vm2148, %v2131, %v2133
        %v2155 = vsel %vm2148, %v2135, %v2137
        %v2156 = vsel %vm2148, %v2137, %v2139
        %v2157 = vsel %vm2148, %v2139, %v2141
        %v2158 = vsel %vm2148, %v2141, %v2143
        %v2159 = vsel %vm2148, %v2143, %v2145
        %v2160 = vsel %vm2148, %v2145, %v2147
        %v2171 = vsel %vm1489, %v2154, 0
        %v2173 = vsel %vm1489, %v2160, 0
        %2175 = vmatpush.msra.mxu0 %v1329
        %2176 = vmatpush.msra.mxu0 %v1327
        %2177 = vmatpush.msra.mxu0 %v1325
        %2178 = vmatpush.msra.mxu0 %v1323
        %2179 = vmatpush.msra.mxu0 %v1321
        %2180 = vmatpush.msra.mxu0 %v1319
        %2181 = vmatpush.msra.mxu0 %v1317
        %2182 = vmatpush.msra.mxu0 %v1315
        %2183 = vmatpush.msra.mxu0 %v1313
        %2184 = vmatpush.msra.mxu0 %v1311
        %2185 = vmatpush.msra.mxu0 %v1309
        %2186 = vmatpush.msra.mxu0 %v1307
        %2187 = vmatpush.msra.mxu0 %v1305
        %2188 = vmatpush.msra.mxu0 %v1303
        %2189 = vmatpush.msra.mxu0 %v1301
        %2190 = vmatpush.msra.mxu0 %v1299
        %2191 = vmatmul.f32.gmra.mxu0 %v2149
        %v2192 = vpop.f32.mrf.mxu0
        %v2193 = vadd.f32 0.0, %v2192
        %2194 = vmatmul.f32.gmra.mxu0 %v2155
        %v2195 = vpop.f32.mrf.mxu0
        %v2196 = vadd.f32 0.0, %v2195
        %2197 = vdwg.mxu0
        %2198 = vmatpush.msra.mxu0 %v1361
        %2199 = vmatpush.msra.mxu0 %v1359
        %2200 = vmatpush.msra.mxu0 %v1357
        %2201 = vmatpush.msra.mxu0 %v1355
        %2202 = vmatpush.msra.mxu0 %v1353
        %2203 = vmatpush.msra.mxu0 %v1351
        %2204 = vmatpush.msra.mxu0 %v1349
        %2205 = vmatpush.msra.mxu0 %v1347
        %2206 = vmatpush.msra.mxu0 %v1345
        %2207 = vmatpush.msra.mxu0 %v1343
        %2208 = vmatpush.msra.mxu0 %v1341
        %2209 = vmatpush.msra.mxu0 %v1339
        %2210 = vmatpush.msra.mxu0 %v1337
        %2211 = vmatpush.msra.mxu0 %v1335
        %2212 = vmatpush.msra.mxu0 %v1333
        %2213 = vmatpush.msra.mxu0 %v1331
        %2214 = vmatmul.f32.gmra.mxu0 %v2150
        %v2215 = vpop.f32.mrf.mxu0
        %v2216 = vadd.f32 %v2193, %v2215
        %2217 = vmatmul.f32.gmra.mxu0 %v2156
        %v2218 = vpop.f32.mrf.mxu0
        %v2219 = vadd.f32 %v2196, %v2218
        %2220 = vdwg.mxu0
        %2221 = vmatpush.msra.mxu0 %v1393
        %2222 = vmatpush.msra.mxu0 %v1391
        %2223 = vmatpush.msra.mxu0 %v1389
        %2224 = vmatpush.msra.mxu0 %v1387
        %2225 = vmatpush.msra.mxu0 %v1385
        %2226 = vmatpush.msra.mxu0 %v1383
        %2227 = vmatpush.msra.mxu0 %v1381
        %2228 = vmatpush.msra.mxu0 %v1379
        %2229 = vmatpush.msra.mxu0 %v1377
        %2230 = vmatpush.msra.mxu0 %v1375
        %2231 = vmatpush.msra.mxu0 %v1373
        %2232 = vmatpush.msra.mxu0 %v1371
        %2233 = vmatpush.msra.mxu0 %v1369
        %2234 = vmatpush.msra.mxu0 %v1367
        %2235 = vmatpush.msra.mxu0 %v1365
        %2236 = vmatpush.msra.mxu0 %v1363
        %2237 = vmatmul.f32.gmra.mxu0 %v2151
        %v2238 = vpop.f32.mrf.mxu0
        %v2239 = vadd.f32 %v2216, %v2238
        %2240 = vmatmul.f32.gmra.mxu0 %v2157
        %v2241 = vpop.f32.mrf.mxu0
        %v2242 = vadd.f32 %v2219, %v2241
        %2243 = vdwg.mxu0
        %2244 = vmatpush.msra.mxu0 %v1425
        %2245 = vmatpush.msra.mxu0 %v1423
        %2246 = vmatpush.msra.mxu0 %v1421
        %2247 = vmatpush.msra.mxu0 %v1419
        %2248 = vmatpush.msra.mxu0 %v1417
        %2249 = vmatpush.msra.mxu0 %v1415
        %2250 = vmatpush.msra.mxu0 %v1413
        %2251 = vmatpush.msra.mxu0 %v1411
        %2252 = vmatpush.msra.mxu0 %v1409
        %2253 = vmatpush.msra.mxu0 %v1407
        %2254 = vmatpush.msra.mxu0 %v1405
        %2255 = vmatpush.msra.mxu0 %v1403
        %2256 = vmatpush.msra.mxu0 %v1401
        %2257 = vmatpush.msra.mxu0 %v1399
        %2258 = vmatpush.msra.mxu0 %v1397
        %2259 = vmatpush.msra.mxu0 %v1395
        %2260 = vmatmul.f32.gmra.mxu0 %v2152
        %v2261 = vpop.f32.mrf.mxu0
        %v2262 = vadd.f32 %v2239, %v2261
        %2263 = vmatmul.f32.gmra.mxu0 %v2158
        %v2264 = vpop.f32.mrf.mxu0
        %v2265 = vadd.f32 %v2242, %v2264
        %2266 = vdwg.mxu0
        %2267 = vmatpush.msra.mxu0 %v1457
        %2268 = vmatpush.msra.mxu0 %v1455
        %2269 = vmatpush.msra.mxu0 %v1453
        %2270 = vmatpush.msra.mxu0 %v1451
        %2271 = vmatpush.msra.mxu0 %v1449
        %2272 = vmatpush.msra.mxu0 %v1447
        %2273 = vmatpush.msra.mxu0 %v1445
        %2274 = vmatpush.msra.mxu0 %v1443
        %2275 = vmatpush.msra.mxu0 %v1441
        %2276 = vmatpush.msra.mxu0 %v1439
        %2277 = vmatpush.msra.mxu0 %v1437
        %2278 = vmatpush.msra.mxu0 %v1435
        %2279 = vmatpush.msra.mxu0 %v1433
        %2280 = vmatpush.msra.mxu0 %v1431
        %2281 = vmatpush.msra.mxu0 %v1429
        %2282 = vmatpush.msra.mxu0 %v1427
        %2283 = vmatmul.f32.gmra.mxu0 %v2153
        %v2284 = vpop.f32.mrf.mxu0
        %v2285 = vadd.f32 %v2262, %v2284
        %2286 = vmatmul.f32.gmra.mxu0 %v2159
        %v2287 = vpop.f32.mrf.mxu0
        %v2288 = vadd.f32 %v2265, %v2287
        %2289 = vdwg.mxu0
        %2290 = vmatpush.msra.mxu0 0.0
        %2291 = vmatpush.msra.mxu0 %v1498
        %2292 = vmatpush.msra.mxu0 %v1485
        %2293 = vmatpush.msra.mxu0 %v1483
        %2294 = vmatpush.msra.mxu0 %v1481
        %2295 = vmatpush.msra.mxu0 %v1479
        %2296 = vmatpush.msra.mxu0 %v1477
        %2297 = vmatpush.msra.mxu0 %v1475
        %2298 = vmatpush.msra.mxu0 %v1473
        %2299 = vmatpush.msra.mxu0 %v1471
        %2300 = vmatpush.msra.mxu0 %v1469
        %2301 = vmatpush.msra.mxu0 %v1467
        %2302 = vmatpush.msra.mxu0 %v1465
        %2303 = vmatpush.msra.mxu0 %v1463
        %2304 = vmatpush.msra.mxu0 %v1461
        %2305 = vmatpush.msra.mxu0 %v1459
        %2306 = vmatmul.f32.gmra.mxu0 %v2171
        %v2307 = vpop.f32.mrf.mxu0
        %v2308 = vadd.f32 %v2285, %v2307
        %2309 = vmatmul.f32.gmra.mxu0 %v2173
        %v2310 = vpop.f32.mrf.mxu0
        %v2311 = vadd.f32 %v2288, %v2310
        %2312 = vdwg.mxu0
        %2313 = vmatpush.msra.mxu0 %v1330
        %2314 = vmatpush.msra.mxu0 %v1328
        %2315 = vmatpush.msra.mxu0 %v1326
        %2316 = vmatpush.msra.mxu0 %v1324
        %2317 = vmatpush.msra.mxu0 %v1322
        %2318 = vmatpush.msra.mxu0 %v1320
        %2319 = vmatpush.msra.mxu0 %v1318
        %2320 = vmatpush.msra.mxu0 %v1316
        %2321 = vmatpush.msra.mxu0 %v1314
        %2322 = vmatpush.msra.mxu0 %v1312
        %2323 = vmatpush.msra.mxu0 %v1310
        %2324 = vmatpush.msra.mxu0 %v1308
        %2325 = vmatpush.msra.mxu0 %v1306
        %2326 = vmatpush.msra.mxu0 %v1304
        %2327 = vmatpush.msra.mxu0 %v1302
        %2328 = vmatpush.msra.mxu0 %v1300
        %2329 = vmatmul.f32.gmra.mxu0 %v2149
        %v2330 = vpop.f32.mrf.mxu0
        %v2331 = vadd.f32 0.0, %v2330
        %2332 = vmatmul.f32.gmra.mxu0 %v2155
        %v2333 = vpop.f32.mrf.mxu0
        %v2334 = vadd.f32 0.0, %v2333
        %2335 = vdwg.mxu0
        %2336 = vmatpush.msra.mxu0 %v1362
        %2337 = vmatpush.msra.mxu0 %v1360
        %2338 = vmatpush.msra.mxu0 %v1358
        %2339 = vmatpush.msra.mxu0 %v1356
        %2340 = vmatpush.msra.mxu0 %v1354
        %2341 = vmatpush.msra.mxu0 %v1352
        %2342 = vmatpush.msra.mxu0 %v1350
        %2343 = vmatpush.msra.mxu0 %v1348
        %2344 = vmatpush.msra.mxu0 %v1346
        %2345 = vmatpush.msra.mxu0 %v1344
        %2346 = vmatpush.msra.mxu0 %v1342
        %2347 = vmatpush.msra.mxu0 %v1340
        %2348 = vmatpush.msra.mxu0 %v1338
        %2349 = vmatpush.msra.mxu0 %v1336
        %2350 = vmatpush.msra.mxu0 %v1334
        %2351 = vmatpush.msra.mxu0 %v1332
        %2352 = vmatmul.f32.gmra.mxu0 %v2150
        %v2353 = vpop.f32.mrf.mxu0
        %v2354 = vadd.f32 %v2331, %v2353
        %2355 = vmatmul.f32.gmra.mxu0 %v2156
        %v2356 = vpop.f32.mrf.mxu0
        %v2357 = vadd.f32 %v2334, %v2356
        %2358 = vdwg.mxu0
        %2359 = vmatpush.msra.mxu0 %v1394
        %2360 = vmatpush.msra.mxu0 %v1392
        %2361 = vmatpush.msra.mxu0 %v1390
        %2362 = vmatpush.msra.mxu0 %v1388
        %2363 = vmatpush.msra.mxu0 %v1386
        %2364 = vmatpush.msra.mxu0 %v1384
        %2365 = vmatpush.msra.mxu0 %v1382
        %2366 = vmatpush.msra.mxu0 %v1380
        %2367 = vmatpush.msra.mxu0 %v1378
        %2368 = vmatpush.msra.mxu0 %v1376
        %2369 = vmatpush.msra.mxu0 %v1374
        %2370 = vmatpush.msra.mxu0 %v1372
        %2371 = vmatpush.msra.mxu0 %v1370
        %2372 = vmatpush.msra.mxu0 %v1368
        %2373 = vmatpush.msra.mxu0 %v1366
        %2374 = vmatpush.msra.mxu0 %v1364
        %2375 = vmatmul.f32.gmra.mxu0 %v2151
        %v2376 = vpop.f32.mrf.mxu0
        %v2377 = vadd.f32 %v2354, %v2376
        %2378 = vmatmul.f32.gmra.mxu0 %v2157
        %v2379 = vpop.f32.mrf.mxu0
        %v2380 = vadd.f32 %v2357, %v2379
        %2381 = vdwg.mxu0
        %2382 = vmatpush.msra.mxu0 %v1426
        %2383 = vmatpush.msra.mxu0 %v1424
        %2384 = vmatpush.msra.mxu0 %v1422
        %2385 = vmatpush.msra.mxu0 %v1420
        %2386 = vmatpush.msra.mxu0 %v1418
        %2387 = vmatpush.msra.mxu0 %v1416
        %2388 = vmatpush.msra.mxu0 %v1414
        %2389 = vmatpush.msra.mxu0 %v1412
        %2390 = vmatpush.msra.mxu0 %v1410
        %2391 = vmatpush.msra.mxu0 %v1408
        %2392 = vmatpush.msra.mxu0 %v1406
        %2393 = vmatpush.msra.mxu0 %v1404
        %2394 = vmatpush.msra.mxu0 %v1402
        %2395 = vmatpush.msra.mxu0 %v1400
        %2396 = vmatpush.msra.mxu0 %v1398
        %2397 = vmatpush.msra.mxu0 %v1396
        %2398 = vmatmul.f32.gmra.mxu0 %v2152
        %v2399 = vpop.f32.mrf.mxu0
        %v2400 = vadd.f32 %v2377, %v2399
        %2401 = vmatmul.f32.gmra.mxu0 %v2158
        %v2402 = vpop.f32.mrf.mxu0
        %v2403 = vadd.f32 %v2380, %v2402
        %2404 = vdwg.mxu0
        %2405 = vmatpush.msra.mxu0 %v1458
        %2406 = vmatpush.msra.mxu0 %v1456
        %2407 = vmatpush.msra.mxu0 %v1454
        %2408 = vmatpush.msra.mxu0 %v1452
        %2409 = vmatpush.msra.mxu0 %v1450
        %2410 = vmatpush.msra.mxu0 %v1448
        %2411 = vmatpush.msra.mxu0 %v1446
        %2412 = vmatpush.msra.mxu0 %v1444
        %2413 = vmatpush.msra.mxu0 %v1442
        %2414 = vmatpush.msra.mxu0 %v1440
        %2415 = vmatpush.msra.mxu0 %v1438
        %2416 = vmatpush.msra.mxu0 %v1436
        %2417 = vmatpush.msra.mxu0 %v1434
        %2418 = vmatpush.msra.mxu0 %v1432
        %2419 = vmatpush.msra.mxu0 %v1430
        %2420 = vmatpush.msra.mxu0 %v1428
        %2421 = vmatmul.f32.gmra.mxu0 %v2153
        %v2422 = vpop.f32.mrf.mxu0
        %v2423 = vadd.f32 %v2400, %v2422
        %2424 = vmatmul.f32.gmra.mxu0 %v2159
        %v2425 = vpop.f32.mrf.mxu0
        %v2426 = vadd.f32 %v2403, %v2425
        %2427 = vdwg.mxu0
        %2428 = vmatpush.msra.mxu0 0.0
        %2429 = vmatpush.msra.mxu0 %v1501
        %2430 = vmatpush.msra.mxu0 %v1486
        %2431 = vmatpush.msra.mxu0 %v1484
        %2432 = vmatpush.msra.mxu0 %v1482
        %2433 = vmatpush.msra.mxu0 %v1480
        %2434 = vmatpush.msra.mxu0 %v1478
        %2435 = vmatpush.msra.mxu0 %v1476
        %2436 = vmatpush.msra.mxu0 %v1474
        %2437 = vmatpush.msra.mxu0 %v1472
        %2438 = vmatpush.msra.mxu0 %v1470
        %2439 = vmatpush.msra.mxu0 %v1468
        %2440 = vmatpush.msra.mxu0 %v1466
        %2441 = vmatpush.msra.mxu0 %v1464
        %2442 = vmatpush.msra.mxu0 %v1462
        %2443 = vmatpush.msra.mxu0 %v1460
        %2444 = vmatmul.f32.gmra.mxu0 %v2171
        %v2445 = vpop.f32.mrf.mxu0
        %v2446 = vadd.f32 %v2423, %v2445
        %2447 = vmatmul.f32.gmra.mxu0 %v2173
        %v2448 = vpop.f32.mrf.mxu0
        %v2449 = vadd.f32 %v2426, %v2448
        %2450 = vdwg.mxu0
        %v2451 = vmax.f32 %v2114, %v2308
        %v2452 = vmax.f32 %v2115, %v2446
        %v2453 = vmax.f32 %v2116, %v2311
        %v2454 = vmax.f32 %v2117, %v2449
        %2455 = vrot.lane.b32.xlu0 %v1156, 99
        %v2456 = vpop.permute.xlu0 %2455
        %2457 = vrot.lane.b32.xlu0 %v1179, 99
        %v2458 = vpop.permute.xlu0 %2457
        %2459 = vrot.lane.b32.xlu0 %v1202, 99
        %v2460 = vpop.permute.xlu0 %2459
        %2461 = vrot.lane.b32.xlu0 %v1225, 99
        %v2462 = vpop.permute.xlu0 %2461
        %2463 = vrot.lane.b32.xlu0 %v1248, 99
        %v2464 = vpop.permute.xlu0 %2463
        %2465 = vrot.lane.b32.xlu0 %v1271, 99
        %v2466 = vpop.permute.xlu0 %2465
        %2467 = vrot.lane.b32.xlu0 %v1294, 99
        %v2468 = vpop.permute.xlu0 %2467
        %2469 = vrot.lane.b32.xlu0 %v1159, 99
        %v2470 = vpop.permute.xlu0 %2469
        %2471 = vrot.lane.b32.xlu0 %v1182, 99
        %v2472 = vpop.permute.xlu0 %2471
        %2473 = vrot.lane.b32.xlu0 %v1205, 99
        %v2474 = vpop.permute.xlu0 %2473
        %2475 = vrot.lane.b32.xlu0 %v1228, 99
        %v2476 = vpop.permute.xlu0 %2475
        %2477 = vrot.lane.b32.xlu0 %v1251, 99
        %v2478 = vpop.permute.xlu0 %2477
        %2479 = vrot.lane.b32.xlu0 %v1274, 99
        %v2480 = vpop.permute.xlu0 %2479
        %2481 = vrot.lane.b32.xlu0 %v1297, 99
        %v2482 = vpop.permute.xlu0 %2481
        %vm2483 = vcmask 809984
        %v2484 = vsel %vm2483, %v2456, %v2458
        %v2485 = vsel %vm2483, %v2458, %v2460
        %v2486 = vsel %vm2483, %v2460, %v2462
        %v2487 = vsel %vm2483, %v2462, %v2464
        %v2488 = vsel %vm2483, %v2464, %v2466
        %v2489 = vsel %vm2483, %v2466, %v2468
        %v2490 = vsel %vm2483, %v2470, %v2472
        %v2491 = vsel %vm2483, %v2472, %v2474
        %v2492 = vsel %vm2483, %v2474, %v2476
        %v2493 = vsel %vm2483, %v2476, %v2478
        %v2494 = vsel %vm2483, %v2478, %v2480
        %v2495 = vsel %vm2483, %v2480, %v2482
        %v2506 = vsel %vm1489, %v2489, 0
        %v2508 = vsel %vm1489, %v2495, 0
        %2510 = vmatpush.msra.mxu0 %v1329
        %2511 = vmatpush.msra.mxu0 %v1327
        %2512 = vmatpush.msra.mxu0 %v1325
        %2513 = vmatpush.msra.mxu0 %v1323
        %2514 = vmatpush.msra.mxu0 %v1321
        %2515 = vmatpush.msra.mxu0 %v1319
        %2516 = vmatpush.msra.mxu0 %v1317
        %2517 = vmatpush.msra.mxu0 %v1315
        %2518 = vmatpush.msra.mxu0 %v1313
        %2519 = vmatpush.msra.mxu0 %v1311
        %2520 = vmatpush.msra.mxu0 %v1309
        %2521 = vmatpush.msra.mxu0 %v1307
        %2522 = vmatpush.msra.mxu0 %v1305
        %2523 = vmatpush.msra.mxu0 %v1303
        %2524 = vmatpush.msra.mxu0 %v1301
        %2525 = vmatpush.msra.mxu0 %v1299
        %2526 = vmatmul.f32.gmra.mxu0 %v2484
        %v2527 = vpop.f32.mrf.mxu0
        %v2528 = vadd.f32 0.0, %v2527
        %2529 = vmatmul.f32.gmra.mxu0 %v2490
        %v2530 = vpop.f32.mrf.mxu0
        %v2531 = vadd.f32 0.0, %v2530
        %2532 = vdwg.mxu0
        %2533 = vmatpush.msra.mxu0 %v1361
        %2534 = vmatpush.msra.mxu0 %v1359
        %2535 = vmatpush.msra.mxu0 %v1357
        %2536 = vmatpush.msra.mxu0 %v1355
        %2537 = vmatpush.msra.mxu0 %v1353
        %2538 = vmatpush.msra.mxu0 %v1351
        %2539 = vmatpush.msra.mxu0 %v1349
        %2540 = vmatpush.msra.mxu0 %v1347
        %2541 = vmatpush.msra.mxu0 %v1345
        %2542 = vmatpush.msra.mxu0 %v1343
        %2543 = vmatpush.msra.mxu0 %v1341
        %2544 = vmatpush.msra.mxu0 %v1339
        %2545 = vmatpush.msra.mxu0 %v1337
        %2546 = vmatpush.msra.mxu0 %v1335
        %2547 = vmatpush.msra.mxu0 %v1333
        %2548 = vmatpush.msra.mxu0 %v1331
        %2549 = vmatmul.f32.gmra.mxu0 %v2485
        %v2550 = vpop.f32.mrf.mxu0
        %v2551 = vadd.f32 %v2528, %v2550
        %2552 = vmatmul.f32.gmra.mxu0 %v2491
        %v2553 = vpop.f32.mrf.mxu0
        %v2554 = vadd.f32 %v2531, %v2553
        %2555 = vdwg.mxu0
        %2556 = vmatpush.msra.mxu0 %v1393
        %2557 = vmatpush.msra.mxu0 %v1391
        %2558 = vmatpush.msra.mxu0 %v1389
        %2559 = vmatpush.msra.mxu0 %v1387
        %2560 = vmatpush.msra.mxu0 %v1385
        %2561 = vmatpush.msra.mxu0 %v1383
        %2562 = vmatpush.msra.mxu0 %v1381
        %2563 = vmatpush.msra.mxu0 %v1379
        %2564 = vmatpush.msra.mxu0 %v1377
        %2565 = vmatpush.msra.mxu0 %v1375
        %2566 = vmatpush.msra.mxu0 %v1373
        %2567 = vmatpush.msra.mxu0 %v1371
        %2568 = vmatpush.msra.mxu0 %v1369
        %2569 = vmatpush.msra.mxu0 %v1367
        %2570 = vmatpush.msra.mxu0 %v1365
        %2571 = vmatpush.msra.mxu0 %v1363
        %2572 = vmatmul.f32.gmra.mxu0 %v2486
        %v2573 = vpop.f32.mrf.mxu0
        %v2574 = vadd.f32 %v2551, %v2573
        %2575 = vmatmul.f32.gmra.mxu0 %v2492
        %v2576 = vpop.f32.mrf.mxu0
        %v2577 = vadd.f32 %v2554, %v2576
        %2578 = vdwg.mxu0
        %2579 = vmatpush.msra.mxu0 %v1425
        %2580 = vmatpush.msra.mxu0 %v1423
        %2581 = vmatpush.msra.mxu0 %v1421
        %2582 = vmatpush.msra.mxu0 %v1419
        %2583 = vmatpush.msra.mxu0 %v1417
        %2584 = vmatpush.msra.mxu0 %v1415
        %2585 = vmatpush.msra.mxu0 %v1413
        %2586 = vmatpush.msra.mxu0 %v1411
        %2587 = vmatpush.msra.mxu0 %v1409
        %2588 = vmatpush.msra.mxu0 %v1407
        %2589 = vmatpush.msra.mxu0 %v1405
        %2590 = vmatpush.msra.mxu0 %v1403
        %2591 = vmatpush.msra.mxu0 %v1401
        %2592 = vmatpush.msra.mxu0 %v1399
        %2593 = vmatpush.msra.mxu0 %v1397
        %2594 = vmatpush.msra.mxu0 %v1395
        %2595 = vmatmul.f32.gmra.mxu0 %v2487
        %v2596 = vpop.f32.mrf.mxu0
        %v2597 = vadd.f32 %v2574, %v2596
        %2598 = vmatmul.f32.gmra.mxu0 %v2493
        %v2599 = vpop.f32.mrf.mxu0
        %v2600 = vadd.f32 %v2577, %v2599
        %2601 = vdwg.mxu0
        %2602 = vmatpush.msra.mxu0 %v1457
        %2603 = vmatpush.msra.mxu0 %v1455
        %2604 = vmatpush.msra.mxu0 %v1453
        %2605 = vmatpush.msra.mxu0 %v1451
        %2606 = vmatpush.msra.mxu0 %v1449
        %2607 = vmatpush.msra.mxu0 %v1447
        %2608 = vmatpush.msra.mxu0 %v1445
        %2609 = vmatpush.msra.mxu0 %v1443
        %2610 = vmatpush.msra.mxu0 %v1441
        %2611 = vmatpush.msra.mxu0 %v1439
        %2612 = vmatpush.msra.mxu0 %v1437
        %2613 = vmatpush.msra.mxu0 %v1435
        %2614 = vmatpush.msra.mxu0 %v1433
        %2615 = vmatpush.msra.mxu0 %v1431
        %2616 = vmatpush.msra.mxu0 %v1429
        %2617 = vmatpush.msra.mxu0 %v1427
        %2618 = vmatmul.f32.gmra.mxu0 %v2488
        %v2619 = vpop.f32.mrf.mxu0
        %v2620 = vadd.f32 %v2597, %v2619
        %2621 = vmatmul.f32.gmra.mxu0 %v2494
        %v2622 = vpop.f32.mrf.mxu0
        %v2623 = vadd.f32 %v2600, %v2622
        %2624 = vdwg.mxu0
        %2625 = vmatpush.msra.mxu0 0.0
        %2626 = vmatpush.msra.mxu0 %v1498
        %2627 = vmatpush.msra.mxu0 %v1485
        %2628 = vmatpush.msra.mxu0 %v1483
        %2629 = vmatpush.msra.mxu0 %v1481
        %2630 = vmatpush.msra.mxu0 %v1479
        %2631 = vmatpush.msra.mxu0 %v1477
        %2632 = vmatpush.msra.mxu0 %v1475
        %2633 = vmatpush.msra.mxu0 %v1473
        %2634 = vmatpush.msra.mxu0 %v1471
        %2635 = vmatpush.msra.mxu0 %v1469
        %2636 = vmatpush.msra.mxu0 %v1467
        %2637 = vmatpush.msra.mxu0 %v1465
        %2638 = vmatpush.msra.mxu0 %v1463
        %2639 = vmatpush.msra.mxu0 %v1461
        %2640 = vmatpush.msra.mxu0 %v1459
        %2641 = vmatmul.f32.gmra.mxu0 %v2506
        %v2642 = vpop.f32.mrf.mxu0
        %v2643 = vadd.f32 %v2620, %v2642
        %2644 = vmatmul.f32.gmra.mxu0 %v2508
        %v2645 = vpop.f32.mrf.mxu0
        %v2646 = vadd.f32 %v2623, %v2645
        %2647 = vdwg.mxu0
        %2648 = vmatpush.msra.mxu0 %v1330
        %2649 = vmatpush.msra.mxu0 %v1328
        %2650 = vmatpush.msra.mxu0 %v1326
        %2651 = vmatpush.msra.mxu0 %v1324
        %2652 = vmatpush.msra.mxu0 %v1322
        %2653 = vmatpush.msra.mxu0 %v1320
        %2654 = vmatpush.msra.mxu0 %v1318
        %2655 = vmatpush.msra.mxu0 %v1316
        %2656 = vmatpush.msra.mxu0 %v1314
        %2657 = vmatpush.msra.mxu0 %v1312
        %2658 = vmatpush.msra.mxu0 %v1310
        %2659 = vmatpush.msra.mxu0 %v1308
        %2660 = vmatpush.msra.mxu0 %v1306
        %2661 = vmatpush.msra.mxu0 %v1304
        %2662 = vmatpush.msra.mxu0 %v1302
        %2663 = vmatpush.msra.mxu0 %v1300
        %2664 = vmatmul.f32.gmra.mxu0 %v2484
        %v2665 = vpop.f32.mrf.mxu0
        %v2666 = vadd.f32 0.0, %v2665
        %2667 = vmatmul.f32.gmra.mxu0 %v2490
        %v2668 = vpop.f32.mrf.mxu0
        %v2669 = vadd.f32 0.0, %v2668
        %2670 = vdwg.mxu0
        %2671 = vmatpush.msra.mxu0 %v1362
        %2672 = vmatpush.msra.mxu0 %v1360
        %2673 = vmatpush.msra.mxu0 %v1358
        %2674 = vmatpush.msra.mxu0 %v1356
        %2675 = vmatpush.msra.mxu0 %v1354
        %2676 = vmatpush.msra.mxu0 %v1352
        %2677 = vmatpush.msra.mxu0 %v1350
        %2678 = vmatpush.msra.mxu0 %v1348
        %2679 = vmatpush.msra.mxu0 %v1346
        %2680 = vmatpush.msra.mxu0 %v1344
        %2681 = vmatpush.msra.mxu0 %v1342
        %2682 = vmatpush.msra.mxu0 %v1340
        %2683 = vmatpush.msra.mxu0 %v1338
        %2684 = vmatpush.msra.mxu0 %v1336
        %2685 = vmatpush.msra.mxu0 %v1334
        %2686 = vmatpush.msra.mxu0 %v1332
        %2687 = vmatmul.f32.gmra.mxu0 %v2485
        %v2688 = vpop.f32.mrf.mxu0
        %v2689 = vadd.f32 %v2666, %v2688
        %2690 = vmatmul.f32.gmra.mxu0 %v2491
        %v2691 = vpop.f32.mrf.mxu0
        %v2692 = vadd.f32 %v2669, %v2691
        %2693 = vdwg.mxu0
        %2694 = vmatpush.msra.mxu0 %v1394
        %2695 = vmatpush.msra.mxu0 %v1392
        %2696 = vmatpush.msra.mxu0 %v1390
        %2697 = vmatpush.msra.mxu0 %v1388
        %2698 = vmatpush.msra.mxu0 %v1386
        %2699 = vmatpush.msra.mxu0 %v1384
        %2700 = vmatpush.msra.mxu0 %v1382
        %2701 = vmatpush.msra.mxu0 %v1380
        %2702 = vmatpush.msra.mxu0 %v1378
        %2703 = vmatpush.msra.mxu0 %v1376
        %2704 = vmatpush.msra.mxu0 %v1374
        %2705 = vmatpush.msra.mxu0 %v1372
        %2706 = vmatpush.msra.mxu0 %v1370
        %2707 = vmatpush.msra.mxu0 %v1368
        %2708 = vmatpush.msra.mxu0 %v1366
        %2709 = vmatpush.msra.mxu0 %v1364
        %2710 = vmatmul.f32.gmra.mxu0 %v2486
        %v2711 = vpop.f32.mrf.mxu0
        %v2712 = vadd.f32 %v2689, %v2711
        %2713 = vmatmul.f32.gmra.mxu0 %v2492
        %v2714 = vpop.f32.mrf.mxu0
        %v2715 = vadd.f32 %v2692, %v2714
        %2716 = vdwg.mxu0
        %2717 = vmatpush.msra.mxu0 %v1426
        %2718 = vmatpush.msra.mxu0 %v1424
        %2719 = vmatpush.msra.mxu0 %v1422
        %2720 = vmatpush.msra.mxu0 %v1420
        %2721 = vmatpush.msra.mxu0 %v1418
        %2722 = vmatpush.msra.mxu0 %v1416
        %2723 = vmatpush.msra.mxu0 %v1414
        %2724 = vmatpush.msra.mxu0 %v1412
        %2725 = vmatpush.msra.mxu0 %v1410
        %2726 = vmatpush.msra.mxu0 %v1408
        %2727 = vmatpush.msra.mxu0 %v1406
        %2728 = vmatpush.msra.mxu0 %v1404
        %2729 = vmatpush.msra.mxu0 %v1402
        %2730 = vmatpush.msra.mxu0 %v1400
        %2731 = vmatpush.msra.mxu0 %v1398
        %2732 = vmatpush.msra.mxu0 %v1396
        %2733 = vmatmul.f32.gmra.mxu0 %v2487
        %v2734 = vpop.f32.mrf.mxu0
        %v2735 = vadd.f32 %v2712, %v2734
        %2736 = vmatmul.f32.gmra.mxu0 %v2493
        %v2737 = vpop.f32.mrf.mxu0
        %v2738 = vadd.f32 %v2715, %v2737
        %2739 = vdwg.mxu0
        %2740 = vmatpush.msra.mxu0 %v1458
        %2741 = vmatpush.msra.mxu0 %v1456
        %2742 = vmatpush.msra.mxu0 %v1454
        %2743 = vmatpush.msra.mxu0 %v1452
        %2744 = vmatpush.msra.mxu0 %v1450
        %2745 = vmatpush.msra.mxu0 %v1448
        %2746 = vmatpush.msra.mxu0 %v1446
        %2747 = vmatpush.msra.mxu0 %v1444
        %2748 = vmatpush.msra.mxu0 %v1442
        %2749 = vmatpush.msra.mxu0 %v1440
        %2750 = vmatpush.msra.mxu0 %v1438
        %2751 = vmatpush.msra.mxu0 %v1436
        %2752 = vmatpush.msra.mxu0 %v1434
        %2753 = vmatpush.msra.mxu0 %v1432
        %2754 = vmatpush.msra.mxu0 %v1430
        %2755 = vmatpush.msra.mxu0 %v1428
        %2756 = vmatmul.f32.gmra.mxu0 %v2488
        %v2757 = vpop.f32.mrf.mxu0
        %v2758 = vadd.f32 %v2735, %v2757
        %2759 = vmatmul.f32.gmra.mxu0 %v2494
        %v2760 = vpop.f32.mrf.mxu0
        %v2761 = vadd.f32 %v2738, %v2760
        %2762 = vdwg.mxu0
        %2763 = vmatpush.msra.mxu0 0.0
        %2764 = vmatpush.msra.mxu0 %v1501
        %2765 = vmatpush.msra.mxu0 %v1486
        %2766 = vmatpush.msra.mxu0 %v1484
        %2767 = vmatpush.msra.mxu0 %v1482
        %2768 = vmatpush.msra.mxu0 %v1480
        %2769 = vmatpush.msra.mxu0 %v1478
        %2770 = vmatpush.msra.mxu0 %v1476
        %2771 = vmatpush.msra.mxu0 %v1474
        %2772 = vmatpush.msra.mxu0 %v1472
        %2773 = vmatpush.msra.mxu0 %v1470
        %2774 = vmatpush.msra.mxu0 %v1468
        %2775 = vmatpush.msra.mxu0 %v1466
        %2776 = vmatpush.msra.mxu0 %v1464
        %2777 = vmatpush.msra.mxu0 %v1462
        %2778 = vmatpush.msra.mxu0 %v1460
        %2779 = vmatmul.f32.gmra.mxu0 %v2506
        %v2780 = vpop.f32.mrf.mxu0
        %v2781 = vadd.f32 %v2758, %v2780
        %2782 = vmatmul.f32.gmra.mxu0 %v2508
        %v2783 = vpop.f32.mrf.mxu0
        %v2784 = vadd.f32 %v2761, %v2783
        %2785 = vdwg.mxu0
        %v2786 = vmax.f32 %v2451, %v2643
        %v2787 = vmax.f32 %v2452, %v2781
        %v2788 = vmax.f32 %v2453, %v2646
        %v2789 = vmax.f32 %v2454, %v2784
        %2790 = vst [vmem:[#allocation3] sm:$0xff] 0.0
        %2791 = vst [vmem:[#allocation3 + $0x8] sm:$0xff] 0.0
        %vm2792 = vcmask 31744
        %2793 = vst.msk [vmem:[#allocation3 + $0x10] sm:$0xff] %vm2792, 0.0
        %2794 = vst [vmem:[#allocation3 + $0x18] sm:$0xff] 0.0
        %2795 = vst [vmem:[#allocation3 + $0x20] sm:$0xff] 0.0
        %2796 = vst.msk [vmem:[#allocation3 + $0x28] sm:$0xff] %vm2792, 0.0
        %2801 = vrot.lane.b32.xlu0 %v2786, 32
        %v2802 = vpop.permute.xlu0 %2801
        %2803 = vrot.lane.b32.xlu0 %v2787, 32
        %v2804 = vpop.permute.xlu0 %2803
        %2805 = vrot.lane.b32.xlu0 %v2788, 32
        %v2806 = vpop.permute.xlu0 %2805
        %2807 = vrot.lane.b32.xlu0 %v2789, 32
        %v2808 = vpop.permute.xlu0 %2807
        %vm2809 = vcmask 261120
        %v2810 = vsel %vm2809, %v2802, %v2804
        %v2811 = vsel %vm2809, %v2806, %v2808
        %vm2816 = vcmask 1047808
        %2817 = vst.msk [vmem:[#allocation3] sm:$0xff] %vm2816, %v2802
        %2818 = vst.msk [vmem:[#allocation3 + $0x8] sm:$0xff] %vm2148, %v2810
        %2819 = vst.msk [vmem:[#allocation3 + $0x18] sm:$0xff] %vm2816, %v2806
        %2820 = vst.msk [vmem:[#allocation3 + $0x20] sm:$0xff] %vm2148, %v2811
        %v2821 = vld [vmem:[#allocation3] sm:$0xff]
        %v2822 = vld [vmem:[#allocation3 + $0x8] sm:$0xff]
        %v2823 = vld [vmem:[#allocation3 + $0x18] sm:$0xff]
        %v2824 = vld [vmem:[#allocation3 + $0x20] sm:$0xff]
        %v2825 = vld [vmem:[#allocation9] ss:$8 sm:$0x3]
        %v2827 = vperm.slane %v2825, 0
        %v2828 = vperm.slane %v2825, 1
        %2829 = vrot.lane.b32.xlu0 %v2827, 2
        %v2830 = vpop.permute.xlu0 %2829
        %2831 = vrot.lane.b32.xlu0 %v2828, 2
        %v2832 = vpop.permute.xlu0 %2831
        %vm2833 = vcmask 15360
        %v2834 = vsel %vm2833, %v2830, %v2832
        %v2837 = vmul.f32 %v2821, %v2830
        %v2838 = vmul.f32 %v2822, %v2834
        %v2839 = vmul.f32 %v2823, %v2830
        %v2840 = vmul.f32 %v2824, %v2834
        %2845 = vrot.lane.b32.xlu0 %v2837, 126
        %v2846 = vpop.permute.xlu0 %2845
        %2847 = vrot.lane.b32.xlu0 %v2838, 126
        %v2848 = vpop.permute.xlu0 %2847
        %2849 = vrot.lane.b32.xlu0 %v2839, 126
        %v2850 = vpop.permute.xlu0 %2849
        %2851 = vrot.lane.b32.xlu0 %v2840, 126
        %v2852 = vpop.permute.xlu0 %2851
        %vm2853 = vcmask 1031168
        %v2854 = vsel %vm2853, %v2846, %v2848
        %v2855 = vsel %vm2853, %v2850, %v2852
        %2860 = vst [vmem:[#allocation4] sm:$0xff] %v2854
        %vm2861 = vcmask 556032
        %2862 = vst.msk [vmem:[#allocation4 + $0x8] sm:$0xff] %vm2861, %v2848
        %2863 = vst [vmem:[#allocation4 + $0x10] sm:$0xff] %v2855
        %2864 = vst.msk [vmem:[#allocation4 + $0x18] sm:$0xff] %vm2861, %v2852
        %v2865 = vld [vmem:[#allocation3] sm:$0xff]
        %v2866 = vld [vmem:[#allocation3 + $0x8] sm:$0xff]
        %v2867 = vld [vmem:[#allocation3 + $0x18] sm:$0xff]
        %v2868 = vld [vmem:[#allocation3 + $0x20] sm:$0xff]
        %s2869 = scalar_lea.vmem [#allocation9], 1
        %v2870 = vld [vmem:[%s2869] ss:$8 sm:$0x3]
        %v2872 = vperm.slane %v2870, 0
        %v2873 = vperm.slane %v2870, 1
        %2874 = vrot.lane.b32.xlu0 %v2872, 3
        %v2875 = vpop.permute.xlu0 %2874
        %2876 = vrot.lane.b32.xlu0 %v2873, 3
        %v2877 = vpop.permute.xlu0 %2876
        %vm2878 = vcmask 23552
        %v2879 = vsel %vm2878, %v2875, %v2877
        %v2882 = vmul.f32 %v2865, %v2875
        %v2883 = vmul.f32 %v2866, %v2879
        %v2884 = vmul.f32 %v2867, %v2875
        %v2885 = vmul.f32 %v2868, %v2879
        %2890 = vrot.lane.b32.xlu0 %v2882, 125
        %v2891 = vpop.permute.xlu0 %2890
        %2892 = vrot.lane.b32.xlu0 %v2883, 125
        %v2893 = vpop.permute.xlu0 %2892
        %2894 = vrot.lane.b32.xlu0 %v2884, 125
        %v2895 = vpop.permute.xlu0 %2894
        %2896 = vrot.lane.b32.xlu0 %v2885, 125
        %v2897 = vpop.permute.xlu0 %2896
        %vm2898 = vcmask 1022976
        %v2899 = vsel %vm2898, %v2891, %v2893
        %v2900 = vsel %vm2898, %v2895, %v2897
        %2905 = vst [vmem:[#allocation4 + $0x20] sm:$0xff] %v2899
        %2906 = vst.msk [vmem:[#allocation4 + $0x28] sm:$0xff] %vm2861, %v2893
        %2907 = vst [vmem:[#allocation4 + $0x30] sm:$0xff] %v2900
        %2908 = vst.msk [vmem:[#allocation4 + $0x38] sm:$0xff] %vm2861, %v2897
        %v2909 = vld [vmem:[#allocation3] sm:$0xff]
        %v2910 = vld [vmem:[#allocation3 + $0x8] sm:$0xff]
        %v2911 = vld [vmem:[#allocation3 + $0x18] sm:$0xff]
        %v2912 = vld [vmem:[#allocation3 + $0x20] sm:$0xff]
        %s2913 = scalar_lea.vmem [#allocation9], 2
        %v2914 = vld [vmem:[%s2913] ss:$8 sm:$0x3]
        %v2916 = vperm.slane %v2914, 0
        %v2917 = vperm.slane %v2914, 1
        %2918 = vrot.lane.b32.xlu0 %v2916, 4
        %v2919 = vpop.permute.xlu0 %2918
        %2920 = vrot.lane.b32.xlu0 %v2917, 4
        %v2921 = vpop.permute.xlu0 %2920
        %v2922 = vsel %vm2792, %v2919, %v2921
        %v2925 = vmul.f32 %v2909, %v2919
        %v2926 = vmul.f32 %v2910, %v2922
        %v2927 = vmul.f32 %v2911, %v2919
        %v2928 = vmul.f32 %v2912, %v2922
        %2933 = vrot.lane.b32.xlu0 %v2925, 124
        %v2934 = vpop.permute.xlu0 %2933
        %2935 = vrot.lane.b32.xlu0 %v2926, 124
        %v2936 = vpop.permute.xlu0 %2935
        %2937 = vrot.lane.b32.xlu0 %v2927, 124
        %v2938 = vpop.permute.xlu0 %2937
        %2939 = vrot.lane.b32.xlu0 %v2928, 124
        %v2940 = vpop.permute.xlu0 %2939
        %vm2941 = vcmask 1014784
        %v2942 = vsel %vm2941, %v2934, %v2936
        %v2943 = vsel %vm2941, %v2938, %v2940
        %2948 = vst [vmem:[#allocation4 + $0x40] sm:$0xff] %v2942
        %2949 = vst.msk [vmem:[#allocation4 + $0x48] sm:$0xff] %vm2861, %v2936
        %2950 = vst [vmem:[#allocation4 + $0x50] sm:$0xff] %v2943
        %2951 = vst.msk [vmem:[#allocation4 + $0x58] sm:$0xff] %vm2861, %v2940
        %v2952 = vld [vmem:[#allocation3] sm:$0xff]
        %v2953 = vld [vmem:[#allocation3 + $0x8] sm:$0xff]
        %v2954 = vld [vmem:[#allocation3 + $0x18] sm:$0xff]
        %v2955 = vld [vmem:[#allocation3 + $0x20] sm:$0xff]
        %s2956 = scalar_lea.vmem [#allocation9], 3
        %v2957 = vld [vmem:[%s2956] ss:$8 sm:$0x3]
        %v2959 = vperm.slane %v2957, 0
        %v2960 = vperm.slane %v2957, 1
        %2961 = vrot.lane.b32.xlu0 %v2959, 5
        %v2962 = vpop.permute.xlu0 %2961
        %2963 = vrot.lane.b32.xlu0 %v2960, 5
        %v2964 = vpop.permute.xlu0 %2963
        %vm2965 = vcmask 39936
        %v2966 = vsel %vm2965, %v2962, %v2964
        %v2969 = vmul.f32 %v2952, %v2962
        %v2970 = vmul.f32 %v2953, %v2966
        %v2971 = vmul.f32 %v2954, %v2962
        %v2972 = vmul.f32 %v2955, %v2966
        %2977 = vrot.lane.b32.xlu0 %v2969, 123
        %v2978 = vpop.permute.xlu0 %2977
        %2979 = vrot.lane.b32.xlu0 %v2970, 123
        %v2980 = vpop.permute.xlu0 %2979
        %2981 = vrot.lane.b32.xlu0 %v2971, 123
        %v2982 = vpop.permute.xlu0 %2981
        %2983 = vrot.lane.b32.xlu0 %v2972, 123
        %v2984 = vpop.permute.xlu0 %2983
        %vm2985 = vcmask 1006592
        %v2986 = vsel %vm2985, %v2978, %v2980
        %v2987 = vsel %vm2985, %v2982, %v2984
        %2992 = vst [vmem:[#allocation4 + $0x60] sm:$0xff] %v2986
        %2993 = vst.msk [vmem:[#allocation4 + $0x68] sm:$0xff] %vm2861, %v2980
        %2994 = vst [vmem:[#allocation4 + $0x70] sm:$0xff] %v2987
        %2995 = vst.msk [vmem:[#allocation4 + $0x78] sm:$0xff] %vm2861, %v2984
        %v2996 = vld [vmem:[#allocation3] sm:$0xff]
        %v2997 = vld [vmem:[#allocation3 + $0x8] sm:$0xff]
        %v2998 = vld [vmem:[#allocation3 + $0x18] sm:$0xff]
        %v2999 = vld [vmem:[#allocation3 + $0x20] sm:$0xff]
        %s3000 = scalar_lea.vmem [#allocation9], 4
        %v3001 = vld [vmem:[%s3000] ss:$8 sm:$0x3]
        %v3003 = vperm.slane %v3001, 0
        %v3004 = vperm.slane %v3001, 1
        %3005 = vrot.lane.b32.xlu0 %v3003, 6
        %v3006 = vpop.permute.xlu0 %3005
        %3007 = vrot.lane.b32.xlu0 %v3004, 6
        %v3008 = vpop.permute.xlu0 %3007
        %v3009 = vsel %vm547, %v3006, %v3008
        %v3012 = vmul.f32 %v2996, %v3006
        %v3013 = vmul.f32 %v2997, %v3009
        %v3014 = vmul.f32 %v2998, %v3006
        %v3015 = vmul.f32 %v2999, %v3009
        %3020 = vrot.lane.b32.xlu0 %v3012, 122
        %v3021 = vpop.permute.xlu0 %3020
        %3022 = vrot.lane.b32.xlu0 %v3013, 122
        %v3023 = vpop.permute.xlu0 %3022
        %3024 = vrot.lane.b32.xlu0 %v3014, 122
        %v3025 = vpop.permute.xlu0 %3024
        %3026 = vrot.lane.b32.xlu0 %v3015, 122
        %v3027 = vpop.permute.xlu0 %3026
        %v3028 = vsel %vm555, %v3021, %v3023
        %v3029 = vsel %vm555, %v3025, %v3027
        %3034 = vst [vmem:[#allocation4 + $0x80] sm:$0xff] %v3028
        %3035 = vst.msk [vmem:[#allocation4 + $0x88] sm:$0xff] %vm2861, %v3023
        %3036 = vst [vmem:[#allocation4 + $0x90] sm:$0xff] %v3029
        %3037 = vst.msk [vmem:[#allocation4 + $0x98] sm:$0xff] %vm2861, %v3027
        %v3038 = vld [vmem:[#allocation3] sm:$0xff]
        %v3039 = vld [vmem:[#allocation3 + $0x8] sm:$0xff]
        %v3040 = vld [vmem:[#allocation3 + $0x18] sm:$0xff]
        %v3041 = vld [vmem:[#allocation3 + $0x20] sm:$0xff]
        %s3042 = scalar_lea.vmem [#allocation9], 5
        %v3043 = vld [vmem:[%s3042] ss:$8 sm:$0x3]
        %v3045 = vperm.slane %v3043, 0
        %v3046 = vperm.slane %v3043, 1
        %3047 = vrot.lane.b32.xlu0 %v3045, 16
        %v3048 = vpop.permute.xlu0 %3047
        %3049 = vrot.lane.b32.xlu0 %v3046, 16
        %v3050 = vpop.permute.xlu0 %3049
        %vm3051 = vcmask 130048
        %v3052 = vsel %vm3051, %v3048, %v3050
        %v3055 = vmul.f32 %v3038, %v3048
        %v3056 = vmul.f32 %v3039, %v3052
        %v3057 = vmul.f32 %v3040, %v3048
        %v3058 = vmul.f32 %v3041, %v3052
        %3063 = vrot.lane.b32.xlu0 %v3055, 112
        %v3064 = vpop.permute.xlu0 %3063
        %3065 = vrot.lane.b32.xlu0 %v3056, 112
        %v3066 = vpop.permute.xlu0 %3065
        %3067 = vrot.lane.b32.xlu0 %v3057, 112
        %v3068 = vpop.permute.xlu0 %3067
        %3069 = vrot.lane.b32.xlu0 %v3058, 112
        %v3070 = vpop.permute.xlu0 %3069
        %vm3071 = vcmask 916480
        %v3072 = vsel %vm3071, %v3064, %v3066
        %v3073 = vsel %vm3071, %v3068, %v3070
        %3078 = vst [vmem:[#allocation4 + $0xa0] sm:$0xff] %v3072
        %3079 = vst.msk [vmem:[#allocation4 + $0xa8] sm:$0xff] %vm2861, %v3066
        %3080 = vst [vmem:[#allocation4 + $0xb0] sm:$0xff] %v3073
        %3081 = vst.msk [vmem:[#allocation4 + $0xb8] sm:$0xff] %vm2861, %v3070
        %v3082 = vld [vmem:[#allocation3] sm:$0xff]
        %v3083 = vld [vmem:[#allocation3 + $0x8] sm:$0xff]
        %v3084 = vld [vmem:[#allocation3 + $0x18] sm:$0xff]
        %v3085 = vld [vmem:[#allocation3 + $0x20] sm:$0xff]
        %s3086 = scalar_lea.vmem [#allocation9], 6
        %v3087 = vld [vmem:[%s3086] ss:$8 sm:$0x3]
        %v3089 = vperm.slane %v3087, 0
        %v3090 = vperm.slane %v3087, 1
        %3091 = vrot.lane.b32.xlu0 %v3089, 17
        %v3092 = vpop.permute.xlu0 %3091
        %3093 = vrot.lane.b32.xlu0 %v3090, 17
        %v3094 = vpop.permute.xlu0 %3093
        %vm3095 = vcmask 138240
        %v3096 = vsel %vm3095, %v3092, %v3094
        %v3099 = vmul.f32 %v3082, %v3092
        %v3100 = vmul.f32 %v3083, %v3096
        %v3101 = vmul.f32 %v3084, %v3092
        %v3102 = vmul.f32 %v3085, %v3096
        %3107 = vrot.lane.b32.xlu0 %v3099, 111
        %v3108 = vpop.permute.xlu0 %3107
        %3109 = vrot.lane.b32.xlu0 %v3100, 111
        %v3110 = vpop.permute.xlu0 %3109
        %3111 = vrot.lane.b32.xlu0 %v3101, 111
        %v3112 = vpop.permute.xlu0 %3111
        %3113 = vrot.lane.b32.xlu0 %v3102, 111
        %v3114 = vpop.permute.xlu0 %3113
        %vm3115 = vcmask 908288
        %v3116 = vsel %vm3115, %v3108, %v3110
        %v3117 = vsel %vm3115, %v3112, %v3114
        %3122 = vst [vmem:[#allocation4 + $0xc0] sm:$0xff] %v3116
        %3123 = vst.msk [vmem:[#allocation4 + $0xc8] sm:$0xff] %vm2861, %v3110
        %3124 = vst [vmem:[#allocation4 + $0xd0] sm:$0xff] %v3117
        %3125 = vst.msk [vmem:[#allocation4 + $0xd8] sm:$0xff] %vm2861, %v3114
        %v3126 = vld [vmem:[#allocation3] sm:$0xff]
        %v3127 = vld [vmem:[#allocation3 + $0x8] sm:$0xff]
        %v3128 = vld [vmem:[#allocation3 + $0x18] sm:$0xff]
        %v3129 = vld [vmem:[#allocation3 + $0x20] sm:$0xff]
        %s3130 = scalar_lea.vmem [#allocation9], 7
        %v3131 = vld [vmem:[%s3130] ss:$8 sm:$0x3]
        %v3133 = vperm.slane %v3131, 0
        %v3134 = vperm.slane %v3131, 1
        %3135 = vrot.lane.b32.xlu0 %v3133, 18
        %v3136 = vpop.permute.xlu0 %3135
        %3137 = vrot.lane.b32.xlu0 %v3134, 18
        %v3138 = vpop.permute.xlu0 %3137
        %vm3139 = vcmask 146432
        %v3140 = vsel %vm3139, %v3136, %v3138
        %v3143 = vmul.f32 %v3126, %v3136
        %v3144 = vmul.f32 %v3127, %v3140
        %v3145 = vmul.f32 %v3128, %v3136
        %v3146 = vmul.f32 %v3129, %v3140
        %3151 = vrot.lane.b32.xlu0 %v3143, 110
        %v3152 = vpop.permute.xlu0 %3151
        %3153 = vrot.lane.b32.xlu0 %v3144, 110
        %v3154 = vpop.permute.xlu0 %3153
        %3155 = vrot.lane.b32.xlu0 %v3145, 110
        %v3156 = vpop.permute.xlu0 %3155
        %3157 = vrot.lane.b32.xlu0 %v3146, 110
        %v3158 = vpop.permute.xlu0 %3157
        %vm3159 = vcmask 900096
        %v3160 = vsel %vm3159, %v3152, %v3154
        %v3161 = vsel %vm3159, %v3156, %v3158
        %3166 = vst [vmem:[#allocation4 + $0xe0] sm:$0xff] %v3160
        %3167 = vst.msk [vmem:[#allocation4 + $0xe8] sm:$0xff] %vm2861, %v3154
        %3168 = vst [vmem:[#allocation4 + $0xf0] sm:$0xff] %v3161
        %3169 = vst.msk [vmem:[#allocation4 + $0xf8] sm:$0xff] %vm2861, %v3158
        %v3170 = vld [vmem:[#allocation3] sm:$0xff]
        %v3171 = vld [vmem:[#allocation3 + $0x8] sm:$0xff]
        %v3172 = vld [vmem:[#allocation3 + $0x18] sm:$0xff]
        %v3173 = vld [vmem:[#allocation3 + $0x20] sm:$0xff]
        %s3174 = scalar_lea.vmem [#allocation9], 16
        %v3175 = vld [vmem:[%s3174] ss:$8 sm:$0x3]
        %v3177 = vperm.slane %v3175, 0
        %v3178 = vperm.slane %v3175, 1
        %3179 = vrot.lane.b32.xlu0 %v3177, 19
        %v3180 = vpop.permute.xlu0 %3179
        %3181 = vrot.lane.b32.xlu0 %v3178, 19
        %v3182 = vpop.permute.xlu0 %3181
        %vm3183 = vcmask 154624
        %v3184 = vsel %vm3183, %v3180, %v3182
        %v3187 = vmul.f32 %v3170, %v3180
        %v3188 = vmul.f32 %v3171, %v3184
        %v3189 = vmul.f32 %v3172, %v3180
        %v3190 = vmul.f32 %v3173, %v3184
        %3195 = vrot.lane.b32.xlu0 %v3187, 109
        %v3196 = vpop.permute.xlu0 %3195
        %3197 = vrot.lane.b32.xlu0 %v3188, 109
        %v3198 = vpop.permute.xlu0 %3197
        %3199 = vrot.lane.b32.xlu0 %v3189, 109
        %v3200 = vpop.permute.xlu0 %3199
        %3201 = vrot.lane.b32.xlu0 %v3190, 109
        %v3202 = vpop.permute.xlu0 %3201
        %vm3203 = vcmask 891904
        %v3204 = vsel %vm3203, %v3196, %v3198
        %v3205 = vsel %vm3203, %v3200, %v3202
        %3210 = vst [vmem:[#allocation4 + $0x100] sm:$0xff] %v3204
        %3211 = vst.msk [vmem:[#allocation4 + $0x108] sm:$0xff] %vm2861, %v3198
        %3212 = vst [vmem:[#allocation4 + $0x110] sm:$0xff] %v3205
        %3213 = vst.msk [vmem:[#allocation4 + $0x118] sm:$0xff] %vm2861, %v3202
        %v3214 = vld [vmem:[#allocation3] sm:$0xff]
        %v3215 = vld [vmem:[#allocation3 + $0x8] sm:$0xff]
        %v3216 = vld [vmem:[#allocation3 + $0x18] sm:$0xff]
        %v3217 = vld [vmem:[#allocation3 + $0x20] sm:$0xff]
        %s3218 = scalar_lea.vmem [#allocation9], 17
        %v3219 = vld [vmem:[%s3218] ss:$8 sm:$0x3]
        %v3221 = vperm.slane %v3219, 0
        %v3222 = vperm.slane %v3219, 1
        %3223 = vrot.lane.b32.xlu0 %v3221, 20
        %v3224 = vpop.permute.xlu0 %3223
        %3225 = vrot.lane.b32.xlu0 %v3222, 20
        %v3226 = vpop.permute.xlu0 %3225
        %vm3227 = vcmask 162816
        %v3228 = vsel %vm3227, %v3224, %v3226
        %v3231 = vmul.f32 %v3214, %v3224
        %v3232 = vmul.f32 %v3215, %v3228
        %v3233 = vmul.f32 %v3216, %v3224
        %v3234 = vmul.f32 %v3217, %v3228
        %3239 = vrot.lane.b32.xlu0 %v3231, 108
        %v3240 = vpop.permute.xlu0 %3239
        %3241 = vrot.lane.b32.xlu0 %v3232, 108
        %v3242 = vpop.permute.xlu0 %3241
        %3243 = vrot.lane.b32.xlu0 %v3233, 108
        %v3244 = vpop.permute.xlu0 %3243
        %3245 = vrot.lane.b32.xlu0 %v3234, 108
        %v3246 = vpop.permute.xlu0 %3245
        %vm3247 = vcmask 883712
        %v3248 = vsel %vm3247, %v3240, %v3242
        %v3249 = vsel %vm3247, %v3244, %v3246
        %3254 = vst [vmem:[#allocation4 + $0x120] sm:$0xff] %v3248
        %3255 = vst.msk [vmem:[#allocation4 + $0x128] sm:$0xff] %vm2861, %v3242
        %3256 = vst [vmem:[#allocation4 + $0x130] sm:$0xff] %v3249
        %3257 = vst.msk [vmem:[#allocation4 + $0x138] sm:$0xff] %vm2861, %v3246
        %v3258 = vld [vmem:[#allocation3] sm:$0xff]
        %v3259 = vld [vmem:[#allocation3 + $0x8] sm:$0xff]
        %v3260 = vld [vmem:[#allocation3 + $0x18] sm:$0xff]
        %v3261 = vld [vmem:[#allocation3 + $0x20] sm:$0xff]
        %s3262 = scalar_lea.vmem [#allocation9], 18
        %v3263 = vld [vmem:[%s3262] ss:$8 sm:$0x3]
        %v3265 = vperm.slane %v3263, 0
        %v3266 = vperm.slane %v3263, 1
        %3267 = vrot.lane.b32.xlu0 %v3265, 30
        %v3268 = vpop.permute.xlu0 %3267
        %3269 = vrot.lane.b32.xlu0 %v3266, 30
        %v3270 = vpop.permute.xlu0 %3269
        %vm3271 = vcmask 244736
        %v3272 = vsel %vm3271, %v3268, %v3270
        %v3275 = vmul.f32 %v3258, %v3268
        %v3276 = vmul.f32 %v3259, %v3272
        %v3277 = vmul.f32 %v3260, %v3268
        %v3278 = vmul.f32 %v3261, %v3272
        %3283 = vrot.lane.b32.xlu0 %v3275, 98
        %v3284 = vpop.permute.xlu0 %3283
        %3285 = vrot.lane.b32.xlu0 %v3276, 98
        %v3286 = vpop.permute.xlu0 %3285
        %3287 = vrot.lane.b32.xlu0 %v3277, 98
        %v3288 = vpop.permute.xlu0 %3287
        %3289 = vrot.lane.b32.xlu0 %v3278, 98
        %v3290 = vpop.permute.xlu0 %3289
        %vm3291 = vcmask 801792
        %v3292 = vsel %vm3291, %v3284, %v3286
        %v3293 = vsel %vm3291, %v3288, %v3290
        %3298 = vst [vmem:[#allocation4 + $0x140] sm:$0xff] %v3292
        %3299 = vst.msk [vmem:[#allocation4 + $0x148] sm:$0xff] %vm2861, %v3286
        %3300 = vst [vmem:[#allocation4 + $0x150] sm:$0xff] %v3293
        %3301 = vst.msk [vmem:[#allocation4 + $0x158] sm:$0xff] %vm2861, %v3290
        %v3302 = vld [vmem:[#allocation3] sm:$0xff]
        %v3303 = vld [vmem:[#allocation3 + $0x8] sm:$0xff]
        %v3304 = vld [vmem:[#allocation3 + $0x18] sm:$0xff]
        %v3305 = vld [vmem:[#allocation3 + $0x20] sm:$0xff]
        %s3306 = scalar_lea.vmem [#allocation9], 19
        %v3307 = vld [vmem:[%s3306] ss:$8 sm:$0x3]
        %v3309 = vperm.slane %v3307, 0
        %v3310 = vperm.slane %v3307, 1
        %3311 = vrot.lane.b32.xlu0 %v3309, 31
        %v3312 = vpop.permute.xlu0 %3311
        %3313 = vrot.lane.b32.xlu0 %v3310, 31
        %v3314 = vpop.permute.xlu0 %3313
        %vm3315 = vcmask 252928
        %v3316 = vsel %vm3315, %v3312, %v3314
        %v3319 = vmul.f32 %v3302, %v3312
        %v3320 = vmul.f32 %v3303, %v3316
        %v3321 = vmul.f32 %v3304, %v3312
        %v3322 = vmul.f32 %v3305, %v3316
        %3327 = vrot.lane.b32.xlu0 %v3319, 97
        %v3328 = vpop.permute.xlu0 %3327
        %3329 = vrot.lane.b32.xlu0 %v3320, 97
        %v3330 = vpop.permute.xlu0 %3329
        %3331 = vrot.lane.b32.xlu0 %v3321, 97
        %v3332 = vpop.permute.xlu0 %3331
        %3333 = vrot.lane.b32.xlu0 %v3322, 97
        %v3334 = vpop.permute.xlu0 %3333
        %vm3335 = vcmask 793600
        %v3336 = vsel %vm3335, %v3328, %v3330
        %v3337 = vsel %vm3335, %v3332, %v3334
        %3342 = vst [vmem:[#allocation4 + $0x160] sm:$0xff] %v3336
        %3343 = vst.msk [vmem:[#allocation4 + $0x168] sm:$0xff] %vm2861, %v3330
        %3344 = vst [vmem:[#allocation4 + $0x170] sm:$0xff] %v3337
        %3345 = vst.msk [vmem:[#allocation4 + $0x178] sm:$0xff] %vm2861, %v3334
        %v3346 = vld [vmem:[#allocation3] sm:$0xff]
        %v3347 = vld [vmem:[#allocation3 + $0x8] sm:$0xff]
        %v3348 = vld [vmem:[#allocation3 + $0x18] sm:$0xff]
        %v3349 = vld [vmem:[#allocation3 + $0x20] sm:$0xff]
        %s3350 = scalar_lea.vmem [#allocation9], 20
        %v3351 = vld [vmem:[%s3350] ss:$8 sm:$0x3]
        %v3353 = vperm.slane %v3351, 0
        %v3354 = vperm.slane %v3351, 1
        %3355 = vrot.lane.b32.xlu0 %v3353, 32
        %v3356 = vpop.permute.xlu0 %3355
        %3357 = vrot.lane.b32.xlu0 %v3354, 32
        %v3358 = vpop.permute.xlu0 %3357
        %v3359 = vsel %vm2809, %v3356, %v3358
        %v3362 = vmul.f32 %v3346, %v3356
        %v3363 = vmul.f32 %v3347, %v3359
        %v3364 = vmul.f32 %v3348, %v3356
        %v3365 = vmul.f32 %v3349, %v3359
        %3370 = vrot.lane.b32.xlu0 %v3362, 96
        %v3371 = vpop.permute.xlu0 %3370
        %3372 = vrot.lane.b32.xlu0 %v3363, 96
        %v3373 = vpop.permute.xlu0 %3372
        %3374 = vrot.lane.b32.xlu0 %v3364, 96
        %v3375 = vpop.permute.xlu0 %3374
        %3376 = vrot.lane.b32.xlu0 %v3365, 96
        %v3377 = vpop.permute.xlu0 %3376
        %vm3378 = vcmask 785408
        %v3379 = vsel %vm3378, %v3371, %v3373
        %v3380 = vsel %vm3378, %v3375, %v3377
        %3385 = vst [vmem:[#allocation4 + $0x180] sm:$0xff] %v3379
        %3386 = vst.msk [vmem:[#allocation4 + $0x188] sm:$0xff] %vm2861, %v3373
        %3387 = vst [vmem:[#allocation4 + $0x190] sm:$0xff] %v3380
        %3388 = vst.msk [vmem:[#allocation4 + $0x198] sm:$0xff] %vm2861, %v3377
        %v3389 = vld [vmem:[#allocation3] sm:$0xff]
        %v3390 = vld [vmem:[#allocation3 + $0x8] sm:$0xff]
        %v3391 = vld [vmem:[#allocation3 + $0x18] sm:$0xff]
        %v3392 = vld [vmem:[#allocation3 + $0x20] sm:$0xff]
        %s3393 = scalar_lea.vmem [#allocation9], 21
        %v3394 = vld [vmem:[%s3393] ss:$8 sm:$0x3]
        %v3396 = vperm.slane %v3394, 0
        %v3397 = vperm.slane %v3394, 1
        %3398 = vrot.lane.b32.xlu0 %v3396, 33
        %v3399 = vpop.permute.xlu0 %3398
        %3400 = vrot.lane.b32.xlu0 %v3397, 33
        %v3401 = vpop.permute.xlu0 %3400
        %vm3402 = vcmask 269312
        %v3403 = vsel %vm3402, %v3399, %v3401
        %v3406 = vmul.f32 %v3389, %v3399
        %v3407 = vmul.f32 %v3390, %v3403
        %v3408 = vmul.f32 %v3391, %v3399
        %v3409 = vmul.f32 %v3392, %v3403
        %3414 = vrot.lane.b32.xlu0 %v3406, 95
        %v3415 = vpop.permute.xlu0 %3414
        %3416 = vrot.lane.b32.xlu0 %v3407, 95
        %v3417 = vpop.permute.xlu0 %3416
        %3418 = vrot.lane.b32.xlu0 %v3408, 95
        %v3419 = vpop.permute.xlu0 %3418
        %3420 = vrot.lane.b32.xlu0 %v3409, 95
        %v3421 = vpop.permute.xlu0 %3420
        %vm3422 = vcmask 777216
        %v3423 = vsel %vm3422, %v3415, %v3417
        %v3424 = vsel %vm3422, %v3419, %v3421
        %3429 = vst [vmem:[#allocation4 + $0x1a0] sm:$0xff] %v3423
        %3430 = vst.msk [vmem:[#allocation4 + $0x1a8] sm:$0xff] %vm2861, %v3417
        %3431 = vst [vmem:[#allocation4 + $0x1b0] sm:$0xff] %v3424
        %3432 = vst.msk [vmem:[#allocation4 + $0x1b8] sm:$0xff] %vm2861, %v3421
        %v3433 = vld [vmem:[#allocation3] sm:$0xff]
        %v3434 = vld [vmem:[#allocation3 + $0x8] sm:$0xff]
        %v3435 = vld [vmem:[#allocation3 + $0x18] sm:$0xff]
        %v3436 = vld [vmem:[#allocation3 + $0x20] sm:$0xff]
        %s3437 = scalar_lea.vmem [#allocation9], 22
        %v3438 = vld [vmem:[%s3437] ss:$8 sm:$0x3]
        %v3440 = vperm.slane %v3438, 0
        %v3441 = vperm.slane %v3438, 1
        %3442 = vrot.lane.b32.xlu0 %v3440, 34
        %v3443 = vpop.permute.xlu0 %3442
        %3444 = vrot.lane.b32.xlu0 %v3441, 34
        %v3445 = vpop.permute.xlu0 %3444
        %v3446 = vsel %vm660, %v3443, %v3445
        %v3449 = vmul.f32 %v3433, %v3443
        %v3450 = vmul.f32 %v3434, %v3446
        %v3451 = vmul.f32 %v3435, %v3443
        %v3452 = vmul.f32 %v3436, %v3446
        %3457 = vrot.lane.b32.xlu0 %v3449, 94
        %v3458 = vpop.permute.xlu0 %3457
        %3459 = vrot.lane.b32.xlu0 %v3450, 94
        %v3460 = vpop.permute.xlu0 %3459
        %3461 = vrot.lane.b32.xlu0 %v3451, 94
        %v3462 = vpop.permute.xlu0 %3461
        %3463 = vrot.lane.b32.xlu0 %v3452, 94
        %v3464 = vpop.permute.xlu0 %3463
        %v3465 = vsel %vm668, %v3458, %v3460
        %v3466 = vsel %vm668, %v3462, %v3464
        %3471 = vst [vmem:[#allocation4 + $0x1c0] sm:$0xff] %v3465
        %3472 = vst.msk [vmem:[#allocation4 + $0x1c8] sm:$0xff] %vm2861, %v3460
        %3473 = vst [vmem:[#allocation4 + $0x1d0] sm:$0xff] %v3466
        %3474 = vst.msk [vmem:[#allocation4 + $0x1d8] sm:$0xff] %vm2861, %v3464
        %v3475 = vld [vmem:[#allocation3] sm:$0xff]
        %v3476 = vld [vmem:[#allocation3 + $0x8] sm:$0xff]
        %v3477 = vld [vmem:[#allocation3 + $0x18] sm:$0xff]
        %v3478 = vld [vmem:[#allocation3 + $0x20] sm:$0xff]
        %s3479 = scalar_lea.vmem [#allocation9], 23
        %v3480 = vld [vmem:[%s3479] ss:$8 sm:$0x3]
        %v3482 = vperm.slane %v3480, 0
        %v3483 = vperm.slane %v3480, 1
        %3484 = vrot.lane.b32.xlu0 %v3482, 44
        %v3485 = vpop.permute.xlu0 %3484
        %3486 = vrot.lane.b32.xlu0 %v3483, 44
        %v3487 = vpop.permute.xlu0 %3486
        %vm3488 = vcmask 359424
        %v3489 = vsel %vm3488, %v3485, %v3487
        %v3492 = vmul.f32 %v3475, %v3485
        %v3493 = vmul.f32 %v3476, %v3489
        %v3494 = vmul.f32 %v3477, %v3485
        %v3495 = vmul.f32 %v3478, %v3489
        %3500 = vrot.lane.b32.xlu0 %v3492, 84
        %v3501 = vpop.permute.xlu0 %3500
        %3502 = vrot.lane.b32.xlu0 %v3493, 84
        %v3503 = vpop.permute.xlu0 %3502
        %3504 = vrot.lane.b32.xlu0 %v3494, 84
        %v3505 = vpop.permute.xlu0 %3504
        %3506 = vrot.lane.b32.xlu0 %v3495, 84
        %v3507 = vpop.permute.xlu0 %3506
        %vm3508 = vcmask 687104
        %v3509 = vsel %vm3508, %v3501, %v3503
        %v3510 = vsel %vm3508, %v3505, %v3507
        %3515 = vst [vmem:[#allocation4 + $0x1e0] sm:$0xff] %v3509
        %3516 = vst.msk [vmem:[#allocation4 + $0x1e8] sm:$0xff] %vm2861, %v3503
        %3517 = vst [vmem:[#allocation4 + $0x1f0] sm:$0xff] %v3510
        %3518 = vst.msk [vmem:[#allocation4 + $0x1f8] sm:$0xff] %vm2861, %v3507
        %v3519 = vld [vmem:[#allocation3] sm:$0xff]
        %v3520 = vld [vmem:[#allocation3 + $0x8] sm:$0xff]
        %v3521 = vld [vmem:[#allocation3 + $0x18] sm:$0xff]
        %v3522 = vld [vmem:[#allocation3 + $0x20] sm:$0xff]
        %s3523 = scalar_lea.vmem [#allocation9], 32
        %v3524 = vld [vmem:[%s3523] ss:$8 sm:$0x3]
        %v3526 = vperm.slane %v3524, 0
        %v3527 = vperm.slane %v3524, 1
        %3528 = vrot.lane.b32.xlu0 %v3526, 45
        %v3529 = vpop.permute.xlu0 %3528
        %3530 = vrot.lane.b32.xlu0 %v3527, 45
        %v3531 = vpop.permute.xlu0 %3530
        %vm3532 = vcmask 367616
        %v3533 = vsel %vm3532, %v3529, %v3531
        %v3536 = vmul.f32 %v3519, %v3529
        %v3537 = vmul.f32 %v3520, %v3533
        %v3538 = vmul.f32 %v3521, %v3529
        %v3539 = vmul.f32 %v3522, %v3533
        %3544 = vrot.lane.b32.xlu0 %v3536, 83
        %v3545 = vpop.permute.xlu0 %3544
        %3546 = vrot.lane.b32.xlu0 %v3537, 83
        %v3547 = vpop.permute.xlu0 %3546
        %3548 = vrot.lane.b32.xlu0 %v3538, 83
        %v3549 = vpop.permute.xlu0 %3548
        %3550 = vrot.lane.b32.xlu0 %v3539, 83
        %v3551 = vpop.permute.xlu0 %3550
        %vm3552 = vcmask 678912
        %v3553 = vsel %vm3552, %v3545, %v3547
        %v3554 = vsel %vm3552, %v3549, %v3551
        %3559 = vst [vmem:[#allocation4 + $0x200] sm:$0xff] %v3553
        %3560 = vst.msk [vmem:[#allocation4 + $0x208] sm:$0xff] %vm2861, %v3547
        %3561 = vst [vmem:[#allocation4 + $0x210] sm:$0xff] %v3554
        %3562 = vst.msk [vmem:[#allocation4 + $0x218] sm:$0xff] %vm2861, %v3551
        %v3563 = vld [vmem:[#allocation3] sm:$0xff]
        %v3564 = vld [vmem:[#allocation3 + $0x8] sm:$0xff]
        %v3565 = vld [vmem:[#allocation3 + $0x18] sm:$0xff]
        %v3566 = vld [vmem:[#allocation3 + $0x20] sm:$0xff]
        %s3567 = scalar_lea.vmem [#allocation9], 33
        %v3568 = vld [vmem:[%s3567] ss:$8 sm:$0x3]
        %v3570 = vperm.slane %v3568, 0
        %v3571 = vperm.slane %v3568, 1
        %3572 = vrot.lane.b32.xlu0 %v3570, 46
        %v3573 = vpop.permute.xlu0 %3572
        %3574 = vrot.lane.b32.xlu0 %v3571, 46
        %v3575 = vpop.permute.xlu0 %3574
        %vm3576 = vcmask 375808
        %v3577 = vsel %vm3576, %v3573, %v3575
        %v3580 = vmul.f32 %v3563, %v3573
        %v3581 = vmul.f32 %v3564, %v3577
        %v3582 = vmul.f32 %v3565, %v3573
        %v3583 = vmul.f32 %v3566, %v3577
        %3588 = vrot.lane.b32.xlu0 %v3580, 82
        %v3589 = vpop.permute.xlu0 %3588
        %3590 = vrot.lane.b32.xlu0 %v3581, 82
        %v3591 = vpop.permute.xlu0 %3590
        %3592 = vrot.lane.b32.xlu0 %v3582, 82
        %v3593 = vpop.permute.xlu0 %3592
        %3594 = vrot.lane.b32.xlu0 %v3583, 82
        %v3595 = vpop.permute.xlu0 %3594
        %vm3596 = vcmask 670720
        %v3597 = vsel %vm3596, %v3589, %v3591
        %v3598 = vsel %vm3596, %v3593, %v3595
        %3603 = vst [vmem:[#allocation4 + $0x220] sm:$0xff] %v3597
        %3604 = vst.msk [vmem:[#allocation4 + $0x228] sm:$0xff] %vm2861, %v3591
        %3605 = vst [vmem:[#allocation4 + $0x230] sm:$0xff] %v3598
        %3606 = vst.msk [vmem:[#allocation4 + $0x238] sm:$0xff] %vm2861, %v3595
        %v3607 = vld [vmem:[#allocation3] sm:$0xff]
        %v3608 = vld [vmem:[#allocation3 + $0x8] sm:$0xff]
        %v3609 = vld [vmem:[#allocation3 + $0x18] sm:$0xff]
        %v3610 = vld [vmem:[#allocation3 + $0x20] sm:$0xff]
        %s3611 = scalar_lea.vmem [#allocation9], 34
        %v3612 = vld [vmem:[%s3611] ss:$8 sm:$0x3]
        %v3614 = vperm.slane %v3612, 0
        %v3615 = vperm.slane %v3612, 1
        %3616 = vrot.lane.b32.xlu0 %v3614, 47
        %v3617 = vpop.permute.xlu0 %3616
        %3618 = vrot.lane.b32.xlu0 %v3615, 47
        %v3619 = vpop.permute.xlu0 %3618
        %vm3620 = vcmask 384000
        %v3621 = vsel %vm3620, %v3617, %v3619
        %v3624 = vmul.f32 %v3607, %v3617
        %v3625 = vmul.f32 %v3608, %v3621
        %v3626 = vmul.f32 %v3609, %v3617
        %v3627 = vmul.f32 %v3610, %v3621
        %3632 = vrot.lane.b32.xlu0 %v3624, 81
        %v3633 = vpop.permute.xlu0 %3632
        %3634 = vrot.lane.b32.xlu0 %v3625, 81
        %v3635 = vpop.permute.xlu0 %3634
        %3636 = vrot.lane.b32.xlu0 %v3626, 81
        %v3637 = vpop.permute.xlu0 %3636
        %3638 = vrot.lane.b32.xlu0 %v3627, 81
        %v3639 = vpop.permute.xlu0 %3638
        %vm3640 = vcmask 662528
        %v3641 = vsel %vm3640, %v3633, %v3635
        %v3642 = vsel %vm3640, %v3637, %v3639
        %3647 = vst [vmem:[#allocation4 + $0x240] sm:$0xff] %v3641
        %3648 = vst.msk [vmem:[#allocation4 + $0x248] sm:$0xff] %vm2861, %v3635
        %3649 = vst [vmem:[#allocation4 + $0x250] sm:$0xff] %v3642
        %3650 = vst.msk [vmem:[#allocation4 + $0x258] sm:$0xff] %vm2861, %v3639
        %v3651 = vld [vmem:[#allocation3] sm:$0xff]
        %v3652 = vld [vmem:[#allocation3 + $0x8] sm:$0xff]
        %v3653 = vld [vmem:[#allocation3 + $0x18] sm:$0xff]
        %v3654 = vld [vmem:[#allocation3 + $0x20] sm:$0xff]
        %s3655 = scalar_lea.vmem [#allocation9], 35
        %v3656 = vld [vmem:[%s3655] ss:$8 sm:$0x3]
        %v3658 = vperm.slane %v3656, 0
        %v3659 = vperm.slane %v3656, 1
        %3660 = vrot.lane.b32.xlu0 %v3658, 48
        %v3661 = vpop.permute.xlu0 %3660
        %3662 = vrot.lane.b32.xlu0 %v3659, 48
        %v3663 = vpop.permute.xlu0 %3662
        %vm3664 = vcmask 392192
        %v3665 = vsel %vm3664, %v3661, %v3663
        %v3668 = vmul.f32 %v3651, %v3661
        %v3669 = vmul.f32 %v3652, %v3665
        %v3670 = vmul.f32 %v3653, %v3661
        %v3671 = vmul.f32 %v3654, %v3665
        %3676 = vrot.lane.b32.xlu0 %v3668, 80
        %v3677 = vpop.permute.xlu0 %3676
        %3678 = vrot.lane.b32.xlu0 %v3669, 80
        %v3679 = vpop.permute.xlu0 %3678
        %3680 = vrot.lane.b32.xlu0 %v3670, 80
        %v3681 = vpop.permute.xlu0 %3680
        %3682 = vrot.lane.b32.xlu0 %v3671, 80
        %v3683 = vpop.permute.xlu0 %3682
        %vm3684 = vcmask 654336
        %v3685 = vsel %vm3684, %v3677, %v3679
        %v3686 = vsel %vm3684, %v3681, %v3683
        %3691 = vst [vmem:[#allocation4 + $0x260] sm:$0xff] %v3685
        %3692 = vst.msk [vmem:[#allocation4 + $0x268] sm:$0xff] %vm2861, %v3679
        %3693 = vst [vmem:[#allocation4 + $0x270] sm:$0xff] %v3686
        %3694 = vst.msk [vmem:[#allocation4 + $0x278] sm:$0xff] %vm2861, %v3683
        %v3695 = vld [vmem:[#allocation3] sm:$0xff]
        %v3696 = vld [vmem:[#allocation3 + $0x8] sm:$0xff]
        %v3697 = vld [vmem:[#allocation3 + $0x18] sm:$0xff]
        %v3698 = vld [vmem:[#allocation3 + $0x20] sm:$0xff]
        %s3699 = scalar_lea.vmem [#allocation9], 36
        %v3700 = vld [vmem:[%s3699] ss:$8 sm:$0x3]
        %v3702 = vperm.slane %v3700, 0
        %v3703 = vperm.slane %v3700, 1
        %3704 = vrot.lane.b32.xlu0 %v3702, 58
        %v3705 = vpop.permute.xlu0 %3704
        %3706 = vrot.lane.b32.xlu0 %v3703, 58
        %v3707 = vpop.permute.xlu0 %3706
        %vm3708 = vcmask 474112
        %v3709 = vsel %vm3708, %v3705, %v3707
        %v3712 = vmul.f32 %v3695, %v3705
        %v3713 = vmul.f32 %v3696, %v3709
        %v3714 = vmul.f32 %v3697, %v3705
        %v3715 = vmul.f32 %v3698, %v3709
        %3720 = vrot.lane.b32.xlu0 %v3712, 70
        %v3721 = vpop.permute.xlu0 %3720
        %3722 = vrot.lane.b32.xlu0 %v3713, 70
        %v3723 = vpop.permute.xlu0 %3722
        %3724 = vrot.lane.b32.xlu0 %v3714, 70
        %v3725 = vpop.permute.xlu0 %3724
        %3726 = vrot.lane.b32.xlu0 %v3715, 70
        %v3727 = vpop.permute.xlu0 %3726
        %vm3728 = vcmask 572416
        %v3729 = vsel %vm3728, %v3721, %v3723
        %v3730 = vsel %vm3728, %v3725, %v3727
        %3735 = vst [vmem:[#allocation4 + $0x280] sm:$0xff] %v3729
        %3736 = vst.msk [vmem:[#allocation4 + $0x288] sm:$0xff] %vm2861, %v3723
        %3737 = vst [vmem:[#allocation4 + $0x290] sm:$0xff] %v3730
        %3738 = vst.msk [vmem:[#allocation4 + $0x298] sm:$0xff] %vm2861, %v3727
        %v3739 = vld [vmem:[#allocation3] sm:$0xff]
        %v3740 = vld [vmem:[#allocation3 + $0x8] sm:$0xff]
        %v3741 = vld [vmem:[#allocation3 + $0x18] sm:$0xff]
        %v3742 = vld [vmem:[#allocation3 + $0x20] sm:$0xff]
        %s3743 = scalar_lea.vmem [#allocation9], 37
        %v3744 = vld [vmem:[%s3743] ss:$8 sm:$0x3]
        %v3746 = vperm.slane %v3744, 0
        %v3747 = vperm.slane %v3744, 1
        %3748 = vrot.lane.b32.xlu0 %v3746, 59
        %v3749 = vpop.permute.xlu0 %3748
        %3750 = vrot.lane.b32.xlu0 %v3747, 59
        %v3751 = vpop.permute.xlu0 %3750
        %vm3752 = vcmask 482304
        %v3753 = vsel %vm3752, %v3749, %v3751
        %v3756 = vmul.f32 %v3739, %v3749
        %v3757 = vmul.f32 %v3740, %v3753
        %v3758 = vmul.f32 %v3741, %v3749
        %v3759 = vmul.f32 %v3742, %v3753
        %3764 = vrot.lane.b32.xlu0 %v3756, 69
        %v3765 = vpop.permute.xlu0 %3764
        %3766 = vrot.lane.b32.xlu0 %v3757, 69
        %v3767 = vpop.permute.xlu0 %3766
        %3768 = vrot.lane.b32.xlu0 %v3758, 69
        %v3769 = vpop.permute.xlu0 %3768
        %3770 = vrot.lane.b32.xlu0 %v3759, 69
        %v3771 = vpop.permute.xlu0 %3770
        %vm3772 = vcmask 564224
        %v3773 = vsel %vm3772, %v3765, %v3767
        %v3774 = vsel %vm3772, %v3769, %v3771
        %3779 = vst [vmem:[#allocation4 + $0x2a0] sm:$0xff] %v3773
        %3780 = vst.msk [vmem:[#allocation4 + $0x2a8] sm:$0xff] %vm2861, %v3767
        %3781 = vst [vmem:[#allocation4 + $0x2b0] sm:$0xff] %v3774
        %3782 = vst.msk [vmem:[#allocation4 + $0x2b8] sm:$0xff] %vm2861, %v3771
        %v3783 = vld [vmem:[#allocation3] sm:$0xff]
        %v3784 = vld [vmem:[#allocation3 + $0x8] sm:$0xff]
        %v3785 = vld [vmem:[#allocation3 + $0x18] sm:$0xff]
        %v3786 = vld [vmem:[#allocation3 + $0x20] sm:$0xff]
        %s3787 = scalar_lea.vmem [#allocation9], 38
        %v3788 = vld [vmem:[%s3787] ss:$8 sm:$0x3]
        %v3790 = vperm.slane %v3788, 0
        %v3791 = vperm.slane %v3788, 1
        %3792 = vrot.lane.b32.xlu0 %v3790, 60
        %v3793 = vpop.permute.xlu0 %3792
        %3794 = vrot.lane.b32.xlu0 %v3791, 60
        %v3795 = vpop.permute.xlu0 %3794
        %vm3796 = vcmask 490496
        %v3797 = vsel %vm3796, %v3793, %v3795
        %v3800 = vmul.f32 %v3783, %v3793
        %v3801 = vmul.f32 %v3784, %v3797
        %v3802 = vmul.f32 %v3785, %v3793
        %v3803 = vmul.f32 %v3786, %v3797
        %3808 = vrot.lane.b32.xlu0 %v3800, 68
        %v3809 = vpop.permute.xlu0 %3808
        %3810 = vrot.lane.b32.xlu0 %v3801, 68
        %v3811 = vpop.permute.xlu0 %3810
        %3812 = vrot.lane.b32.xlu0 %v3802, 68
        %v3813 = vpop.permute.xlu0 %3812
        %3814 = vrot.lane.b32.xlu0 %v3803, 68
        %v3815 = vpop.permute.xlu0 %3814
        %v3816 = vsel %vm2861, %v3809, %v3811
        %v3817 = vsel %vm2861, %v3813, %v3815
        %3822 = vst [vmem:[#allocation4 + $0x2c0] sm:$0xff] %v3816
        %3823 = vst.msk [vmem:[#allocation4 + $0x2c8] sm:$0xff] %vm2861, %v3811
        %3824 = vst [vmem:[#allocation4 + $0x2d0] sm:$0xff] %v3817
        %3825 = vst.msk [vmem:[#allocation4 + $0x2d8] sm:$0xff] %vm2861, %v3815
        %v3826 = vld [vmem:[#allocation3] sm:$0xff]
        %v3827 = vld [vmem:[#allocation3 + $0x8] sm:$0xff]
        %v3828 = vld [vmem:[#allocation3 + $0x10] sm:$0xff]
        %v3829 = vld [vmem:[#allocation3 + $0x18] sm:$0xff]
        %v3830 = vld [vmem:[#allocation3 + $0x20] sm:$0xff]
        %v3831 = vld [vmem:[#allocation3 + $0x28] sm:$0xff]
        %s3832 = scalar_lea.vmem [#allocation9], 39
        %v3833 = vld [vmem:[%s3832] ss:$8 sm:$0x3]
        %v3835 = vperm.slane %v3833, 0
        %v3836 = vperm.slane %v3833, 1
        %3837 = vrot.lane.b32.xlu0 %v3835, 61
        %v3838 = vpop.permute.xlu0 %3837
        %3839 = vrot.lane.b32.xlu0 %v3836, 61
        %v3840 = vpop.permute.xlu0 %3839
        %vm3841 = vcmask 498688
        %v3842 = vsel %vm3841, %v3838, %v3840
        %v3846 = vmul.f32 %v3826, %v3838
        %v3847 = vmul.f32 %v3827, %v3842
        %v3848 = vmul.f32 %v3828, %v3840
        %v3849 = vmul.f32 %v3829, %v3838
        %v3850 = vmul.f32 %v3830, %v3842
        %v3851 = vmul.f32 %v3831, %v3840
        %3858 = vrot.lane.b32.xlu0 %v3846, 67
        %v3859 = vpop.permute.xlu0 %3858
        %3860 = vrot.lane.b32.xlu0 %v3847, 67
        %v3861 = vpop.permute.xlu0 %3860
        %3862 = vrot.lane.b32.xlu0 %v3848, 67
        %v3863 = vpop.permute.xlu0 %3862
        %3864 = vrot.lane.b32.xlu0 %v3849, 67
        %v3865 = vpop.permute.xlu0 %3864
        %3866 = vrot.lane.b32.xlu0 %v3850, 67
        %v3867 = vpop.permute.xlu0 %3866
        %3868 = vrot.lane.b32.xlu0 %v3851, 67
        %v3869 = vpop.permute.xlu0 %3868
        %vm3870 = vcmask 547840
        %v3871 = vsel %vm3870, %v3859, %v3861
        %v3872 = vsel %vm3870, %v3861, %v3863
        %v3873 = vsel %vm3870, %v3865, %v3867
        %v3874 = vsel %vm3870, %v3867, %v3869
        %3879 = vst [vmem:[#allocation4 + $0x2e0] sm:$0xff] %v3871
        %3880 = vst.msk [vmem:[#allocation4 + $0x2e8] sm:$0xff] %vm2861, %v3872
        %3881 = vst [vmem:[#allocation4 + $0x2f0] sm:$0xff] %v3873
        %3882 = vst.msk [vmem:[#allocation4 + $0x2f8] sm:$0xff] %vm2861, %v3874
        %v3883 = vld [vmem:[#allocation3] sm:$0xff]
        %v3884 = vld [vmem:[#allocation3 + $0x8] sm:$0xff]
        %v3885 = vld [vmem:[#allocation3 + $0x10] sm:$0xff]
        %v3886 = vld [vmem:[#allocation3 + $0x18] sm:$0xff]
        %v3887 = vld [vmem:[#allocation3 + $0x20] sm:$0xff]
        %v3888 = vld [vmem:[#allocation3 + $0x28] sm:$0xff]
        %s3889 = scalar_lea.vmem [#allocation9], 48
        %v3890 = vld [vmem:[%s3889] ss:$8 sm:$0x3]
        %v3892 = vperm.slane %v3890, 0
        %v3893 = vperm.slane %v3890, 1
        %3894 = vrot.lane.b32.xlu0 %v3892, 62
        %v3895 = vpop.permute.xlu0 %3894
        %3896 = vrot.lane.b32.xlu0 %v3893, 62
        %v3897 = vpop.permute.xlu0 %3896
        %v3898 = vsel %vm770, %v3895, %v3897
        %v3902 = vmul.f32 %v3883, %v3895
        %v3903 = vmul.f32 %v3884, %v3898
        %v3904 = vmul.f32 %v3885, %v3897
        %v3905 = vmul.f32 %v3886, %v3895
        %v3906 = vmul.f32 %v3887, %v3898
        %v3907 = vmul.f32 %v3888, %v3897
        %3914 = vrot.lane.b32.xlu0 %v3902, 66
        %v3915 = vpop.permute.xlu0 %3914
        %3916 = vrot.lane.b32.xlu0 %v3903, 66
        %v3917 = vpop.permute.xlu0 %3916
        %3918 = vrot.lane.b32.xlu0 %v3904, 66
        %v3919 = vpop.permute.xlu0 %3918
        %3920 = vrot.lane.b32.xlu0 %v3905, 66
        %v3921 = vpop.permute.xlu0 %3920
        %3922 = vrot.lane.b32.xlu0 %v3906, 66
        %v3923 = vpop.permute.xlu0 %3922
        %3924 = vrot.lane.b32.xlu0 %v3907, 66
        %v3925 = vpop.permute.xlu0 %3924
        %v3926 = vsel %vm778, %v3915, %v3917
        %v3927 = vsel %vm778, %v3917, %v3919
        %v3928 = vsel %vm778, %v3921, %v3923
        %v3929 = vsel %vm778, %v3923, %v3925
        %3934 = vst [vmem:[#allocation4 + $0x300] sm:$0xff] %v3926
        %3935 = vst.msk [vmem:[#allocation4 + $0x308] sm:$0xff] %vm2861, %v3927
        %3936 = vst [vmem:[#allocation4 + $0x310] sm:$0xff] %v3928
        %3937 = vst.msk [vmem:[#allocation4 + $0x318] sm:$0xff] %vm2861, %v3929
        %v3938 = vld [vmem:[%s5] sm:$0xff]
        %v3939 = vld [vmem:[%s5 + $0x8] sm:$0xff]
        %v3940 = vld [vmem:[%s5 + $0x10] sm:$0xff]
        %v3941 = vld [vmem:[%s5 + $0x18] sm:$0xff]
        %v3942 = vld [vmem:[%s5 + $0x20] sm:$0xff]
        %v3943 = vld [vmem:[%s5 + $0x28] sm:$0xff]
        %v3944 = vld [vmem:[%s5 + $0x30] sm:$0xff]
        %v3945 = vld [vmem:[%s5 + $0x38] sm:$0xff]
        %v3946 = vld [vmem:[%s5 + $0x40] sm:$0xff]
        %v3947 = vld [vmem:[%s5 + $0x48] sm:$0xff]
        %v3948 = vld [vmem:[%s5 + $0x50] sm:$0xff]
        %v3949 = vld [vmem:[%s5 + $0x58] sm:$0xff]
        %v3950 = vld [vmem:[%s5 + $0x60] sm:$0xff]
        %v3951 = vld [vmem:[%s5 + $0x68] sm:$0xff]
        %v3952 = vld [vmem:[%s5 + $0x70] sm:$0xff]
        %v3953 = vld [vmem:[%s5 + $0x78] sm:$0xff]
        %v3954 = vld [vmem:[#allocation4] sm:$0xff]
        %v3955 = vld [vmem:[#allocation4 + $0x8] sm:$0xff]
        %v3956 = vld [vmem:[#allocation4 + $0x10] sm:$0xff]
        %v3957 = vld [vmem:[#allocation4 + $0x18] sm:$0xff]
        %v3958 = vld [vmem:[#allocation4 + $0x20] sm:$0xff]
        %v3959 = vld [vmem:[#allocation4 + $0x28] sm:$0xff]
        %v3960 = vld [vmem:[#allocation4 + $0x30] sm:$0xff]
        %v3961 = vld [vmem:[#allocation4 + $0x38] sm:$0xff]
        %v3962 = vld [vmem:[#allocation4 + $0x40] sm:$0xff]
        %v3963 = vld [vmem:[#allocation4 + $0x48] sm:$0xff]
        %v3964 = vld [vmem:[#allocation4 + $0x50] sm:$0xff]
        %v3965 = vld [vmem:[#allocation4 + $0x58] sm:$0xff]
        %v3966 = vld [vmem:[#allocation4 + $0x60] sm:$0xff]
        %v3967 = vld [vmem:[#allocation4 + $0x68] sm:$0xff]
        %v3968 = vld [vmem:[#allocation4 + $0x70] sm:$0xff]
        %v3969 = vld [vmem:[#allocation4 + $0x78] sm:$0xff]
        %v3970 = vld [vmem:[#allocation4 + $0x80] sm:$0xff]
        %v3971 = vld [vmem:[#allocation4 + $0x88] sm:$0xff]
        %v3972 = vld [vmem:[#allocation4 + $0x90] sm:$0xff]
        %v3973 = vld [vmem:[#allocation4 + $0x98] sm:$0xff]
        %v3974 = vld [vmem:[#allocation4 + $0xa0] sm:$0xff]
        %v3975 = vld [vmem:[#allocation4 + $0xa8] sm:$0xff]
        %v3976 = vld [vmem:[#allocation4 + $0xb0] sm:$0xff]
        %v3977 = vld [vmem:[#allocation4 + $0xb8] sm:$0xff]
        %v3978 = vld [vmem:[#allocation4 + $0xc0] sm:$0xff]
        %v3979 = vld [vmem:[#allocation4 + $0xc8] sm:$0xff]
        %v3980 = vld [vmem:[#allocation4 + $0xd0] sm:$0xff]
        %v3981 = vld [vmem:[#allocation4 + $0xd8] sm:$0xff]
        %v3982 = vld [vmem:[#allocation4 + $0xe0] sm:$0xff]
        %v3983 = vld [vmem:[#allocation4 + $0xe8] sm:$0xff]
        %v3984 = vld [vmem:[#allocation4 + $0xf0] sm:$0xff]
        %v3985 = vld [vmem:[#allocation4 + $0xf8] sm:$0xff]
        %v3986 = vld [vmem:[#allocation4 + $0x100] sm:$0xff]
        %v3987 = vld [vmem:[#allocation4 + $0x108] sm:$0xff]
        %v3988 = vld [vmem:[#allocation4 + $0x110] sm:$0xff]
        %v3989 = vld [vmem:[#allocation4 + $0x118] sm:$0xff]
        %v3990 = vld [vmem:[#allocation4 + $0x120] sm:$0xff]
        %v3991 = vld [vmem:[#allocation4 + $0x128] sm:$0xff]
        %v3992 = vld [vmem:[#allocation4 + $0x130] sm:$0xff]
        %v3993 = vld [vmem:[#allocation4 + $0x138] sm:$0xff]
        %v3994 = vld [vmem:[#allocation4 + $0x140] sm:$0xff]
        %v3995 = vld [vmem:[#allocation4 + $0x148] sm:$0xff]
        %v3996 = vld [vmem:[#allocation4 + $0x150] sm:$0xff]
        %v3997 = vld [vmem:[#allocation4 + $0x158] sm:$0xff]
        %v3998 = vld [vmem:[#allocation4 + $0x160] sm:$0xff]
        %v3999 = vld [vmem:[#allocation4 + $0x168] sm:$0xff]
        %v4000 = vld [vmem:[#allocation4 + $0x170] sm:$0xff]
        %v4001 = vld [vmem:[#allocation4 + $0x178] sm:$0xff]
        %v4002 = vld [vmem:[#allocation4 + $0x180] sm:$0xff]
        %v4003 = vld [vmem:[#allocation4 + $0x188] sm:$0xff]
        %v4004 = vld [vmem:[#allocation4 + $0x190] sm:$0xff]
        %v4005 = vld [vmem:[#allocation4 + $0x198] sm:$0xff]
        %v4006 = vld [vmem:[#allocation4 + $0x1a0] sm:$0xff]
        %v4007 = vld [vmem:[#allocation4 + $0x1a8] sm:$0xff]
        %v4008 = vld [vmem:[#allocation4 + $0x1b0] sm:$0xff]
        %v4009 = vld [vmem:[#allocation4 + $0x1b8] sm:$0xff]
        %v4010 = vld [vmem:[#allocation4 + $0x1c0] sm:$0xff]
        %v4011 = vld [vmem:[#allocation4 + $0x1c8] sm:$0xff]
        %v4012 = vld [vmem:[#allocation4 + $0x1d0] sm:$0xff]
        %v4013 = vld [vmem:[#allocation4 + $0x1d8] sm:$0xff]
        %v4014 = vld [vmem:[#allocation4 + $0x1e0] sm:$0xff]
        %v4015 = vld [vmem:[#allocation4 + $0x1e8] sm:$0xff]
        %v4016 = vld [vmem:[#allocation4 + $0x1f0] sm:$0xff]
        %v4017 = vld [vmem:[#allocation4 + $0x1f8] sm:$0xff]
        %v4018 = vld [vmem:[#allocation4 + $0x200] sm:$0xff]
        %v4019 = vld [vmem:[#allocation4 + $0x208] sm:$0xff]
        %v4020 = vld [vmem:[#allocation4 + $0x210] sm:$0xff]
        %v4021 = vld [vmem:[#allocation4 + $0x218] sm:$0xff]
        %v4022 = vld [vmem:[#allocation4 + $0x220] sm:$0xff]
        %v4023 = vld [vmem:[#allocation4 + $0x228] sm:$0xff]
        %v4024 = vld [vmem:[#allocation4 + $0x230] sm:$0xff]
        %v4025 = vld [vmem:[#allocation4 + $0x238] sm:$0xff]
        %v4026 = vld [vmem:[#allocation4 + $0x240] sm:$0xff]
        %v4027 = vld [vmem:[#allocation4 + $0x248] sm:$0xff]
        %v4028 = vld [vmem:[#allocation4 + $0x250] sm:$0xff]
        %v4029 = vld [vmem:[#allocation4 + $0x258] sm:$0xff]
        %v4030 = vld [vmem:[#allocation4 + $0x260] sm:$0xff]
        %v4031 = vld [vmem:[#allocation4 + $0x268] sm:$0xff]
        %v4032 = vld [vmem:[#allocation4 + $0x270] sm:$0xff]
        %v4033 = vld [vmem:[#allocation4 + $0x278] sm:$0xff]
        %v4034 = vld [vmem:[#allocation4 + $0x280] sm:$0xff]
        %v4035 = vld [vmem:[#allocation4 + $0x288] sm:$0xff]
        %v4036 = vld [vmem:[#allocation4 + $0x290] sm:$0xff]
        %v4037 = vld [vmem:[#allocation4 + $0x298] sm:$0xff]
        %v4038 = vld [vmem:[#allocation4 + $0x2a0] sm:$0xff]
        %v4039 = vld [vmem:[#allocation4 + $0x2a8] sm:$0xff]
        %v4040 = vld [vmem:[#allocation4 + $0x2b0] sm:$0xff]
        %v4041 = vld [vmem:[#allocation4 + $0x2b8] sm:$0xff]
        %v4042 = vld [vmem:[#allocation4 + $0x2c0] sm:$0xff]
        %v4043 = vld [vmem:[#allocation4 + $0x2c8] sm:$0xff]
        %v4044 = vld [vmem:[#allocation4 + $0x2d0] sm:$0xff]
        %v4045 = vld [vmem:[#allocation4 + $0x2d8] sm:$0xff]
        %v4046 = vld [vmem:[#allocation4 + $0x2e0] sm:$0xff]
        %v4047 = vld [vmem:[#allocation4 + $0x2e8] sm:$0xff]
        %v4048 = vld [vmem:[#allocation4 + $0x2f0] sm:$0xff]
        %v4049 = vld [vmem:[#allocation4 + $0x2f8] sm:$0xff]
        %v4050 = vld [vmem:[#allocation4 + $0x300] sm:$0xff]
        %v4051 = vld [vmem:[#allocation4 + $0x308] sm:$0xff]
        %v4052 = vld [vmem:[#allocation4 + $0x310] sm:$0xff]
        %v4053 = vld [vmem:[#allocation4 + $0x318] sm:$0xff]
        %v4054 = vld [vmem:[%s6] sm:$0xff]
        %v4055 = vld [vmem:[%s6 + $0x8] sm:$0xff]
        %v4056 = vld [vmem:[%s6 + $0x10] sm:$0xff]
        %v4057 = vld [vmem:[%s6 + $0x18] sm:$0xff]
        %4059 = vset.pattern.permute.xlu0 0
        %4060 = vperm.xlu0 %4059, %v4054
        %v4061 = vpop.permute.xlu0 %4060
        %4064 = vset.pattern.permute.xlu0 0
        %4065 = vperm.xlu0 %4064, %v4055
        %v4066 = vpop.permute.xlu0 %4065
        %4069 = vset.pattern.permute.xlu0 0
        %4070 = vperm.xlu0 %4069, %v4056
        %v4071 = vpop.permute.xlu0 %4070
        %4074 = vset.pattern.permute.xlu0 0
        %4075 = vperm.xlu0 %4074, %v4057
        %v4076 = vpop.permute.xlu0 %4075
        %v4079 = vsel %vm3051, %v3941, 0
        %v4082 = vsel %vm3051, %v3945, 0
        %v4085 = vsel %vm3051, %v3949, 0
        %v4088 = vsel %vm3051, %v3953, 0
        %4090 = vmatpush.msra.mxu0 %v3984
        %4091 = vmatpush.msra.mxu0 %v3982
        %4092 = vmatpush.msra.mxu0 %v3980
        %4093 = vmatpush.msra.mxu0 %v3978
        %4094 = vmatpush.msra.mxu0 %v3976
        %4095 = vmatpush.msra.mxu0 %v3974
        %4096 = vmatpush.msra.mxu0 %v3972
        %4097 = vmatpush.msra.mxu0 %v3970
        %4098 = vmatpush.msra.mxu0 %v3968
        %4099 = vmatpush.msra.mxu0 %v3966
        %4100 = vmatpush.msra.mxu0 %v3964
        %4101 = vmatpush.msra.mxu0 %v3962
        %4102 = vmatpush.msra.mxu0 %v3960
        %4103 = vmatpush.msra.mxu0 %v3958
        %4104 = vmatpush.msra.mxu0 %v3956
        %4105 = vmatpush.msra.mxu0 %v3954
        %4106 = vmatmul.f32.gmra.mxu0 %v3938
        %v4107 = vpop.f32.mrf.mxu0
        %v4108 = vadd.f32 %v4061, %v4107
        %4109 = vmatmul.f32.gmra.mxu0 %v3942
        %v4110 = vpop.f32.mrf.mxu0
        %v4111 = vadd.f32 %v4066, %v4110
        %4112 = vmatmul.f32.gmra.mxu0 %v3946
        %v4113 = vpop.f32.mrf.mxu0
        %v4114 = vadd.f32 %v4071, %v4113
        %4115 = vmatmul.f32.gmra.mxu0 %v3950
        %v4116 = vpop.f32.mrf.mxu0
        %v4117 = vadd.f32 %v4076, %v4116
        %4118 = vdwg.mxu0
        %4119 = vmatpush.msra.mxu0 %v4016
        %4120 = vmatpush.msra.mxu0 %v4014
        %4121 = vmatpush.msra.mxu0 %v4012
        %4122 = vmatpush.msra.mxu0 %v4010
        %4123 = vmatpush.msra.mxu0 %v4008
        %4124 = vmatpush.msra.mxu0 %v4006
        %4125 = vmatpush.msra.mxu0 %v4004
        %4126 = vmatpush.msra.mxu0 %v4002
        %4127 = vmatpush.msra.mxu0 %v4000
        %4128 = vmatpush.msra.mxu0 %v3998
        %4129 = vmatpush.msra.mxu0 %v3996
        %4130 = vmatpush.msra.mxu0 %v3994
        %4131 = vmatpush.msra.mxu0 %v3992
        %4132 = vmatpush.msra.mxu0 %v3990
        %4133 = vmatpush.msra.mxu0 %v3988
        %4134 = vmatpush.msra.mxu0 %v3986
        %4135 = vmatmul.f32.gmra.mxu0 %v3939
        %v4136 = vpop.f32.mrf.mxu0
        %v4137 = vadd.f32 %v4108, %v4136
        %4138 = vmatmul.f32.gmra.mxu0 %v3943
        %v4139 = vpop.f32.mrf.mxu0
        %v4140 = vadd.f32 %v4111, %v4139
        %4141 = vmatmul.f32.gmra.mxu0 %v3947
        %v4142 = vpop.f32.mrf.mxu0
        %v4143 = vadd.f32 %v4114, %v4142
        %4144 = vmatmul.f32.gmra.mxu0 %v3951
        %v4145 = vpop.f32.mrf.mxu0
        %v4146 = vadd.f32 %v4117, %v4145
        %4147 = vdwg.mxu0
        %4148 = vmatpush.msra.mxu0 %v4048
        %4149 = vmatpush.msra.mxu0 %v4046
        %4150 = vmatpush.msra.mxu0 %v4044
        %4151 = vmatpush.msra.mxu0 %v4042
        %4152 = vmatpush.msra.mxu0 %v4040
        %4153 = vmatpush.msra.mxu0 %v4038
        %4154 = vmatpush.msra.mxu0 %v4036
        %4155 = vmatpush.msra.mxu0 %v4034
        %4156 = vmatpush.msra.mxu0 %v4032
        %4157 = vmatpush.msra.mxu0 %v4030
        %4158 = vmatpush.msra.mxu0 %v4028
        %4159 = vmatpush.msra.mxu0 %v4026
        %4160 = vmatpush.msra.mxu0 %v4024
        %4161 = vmatpush.msra.mxu0 %v4022
        %4162 = vmatpush.msra.mxu0 %v4020
        %4163 = vmatpush.msra.mxu0 %v4018
        %4164 = vmatmul.f32.gmra.mxu0 %v3940
        %v4165 = vpop.f32.mrf.mxu0
        %v4166 = vadd.f32 %v4137, %v4165
        %4167 = vmatmul.f32.gmra.mxu0 %v3944
        %v4168 = vpop.f32.mrf.mxu0
        %v4169 = vadd.f32 %v4140, %v4168
        %4170 = vmatmul.f32.gmra.mxu0 %v3948
        %v4171 = vpop.f32.mrf.mxu0
        %v4172 = vadd.f32 %v4143, %v4171
        %4173 = vmatmul.f32.gmra.mxu0 %v3952
        %v4174 = vpop.f32.mrf.mxu0
        %v4175 = vadd.f32 %v4146, %v4174
        %4176 = vdwg.mxu0
        %4177 = vmatpush.msra.mxu0 0.0
        %4178 = vmatpush.msra.mxu0 0.0
        %4179 = vmatpush.msra.mxu0 0.0
        %4180 = vmatpush.msra.mxu0 0.0
        %4181 = vmatpush.msra.mxu0 0.0
        %4182 = vmatpush.msra.mxu0 0.0
        %4183 = vmatpush.msra.mxu0 0.0
        %4184 = vmatpush.msra.mxu0 0.0
        %4185 = vmatpush.msra.mxu0 0.0
        %4186 = vmatpush.msra.mxu0 0.0
        %4187 = vmatpush.msra.mxu0 0.0
        %4188 = vmatpush.msra.mxu0 0.0
        %4189 = vmatpush.msra.mxu0 0.0
        %4190 = vmatpush.msra.mxu0 0.0
        %4191 = vmatpush.msra.mxu0 %v4052
        %4192 = vmatpush.msra.mxu0 %v4050
        %4193 = vmatmul.f32.gmra.mxu0 %v4079
        %v4194 = vpop.f32.mrf.mxu0
        %v4195 = vadd.f32 %v4166, %v4194
        %4196 = vmatmul.f32.gmra.mxu0 %v4082
        %v4197 = vpop.f32.mrf.mxu0
        %v4198 = vadd.f32 %v4169, %v4197
        %4199 = vmatmul.f32.gmra.mxu0 %v4085
        %v4200 = vpop.f32.mrf.mxu0
        %v4201 = vadd.f32 %v4172, %v4200
        %4202 = vmatmul.f32.gmra.mxu0 %v4088
        %v4203 = vpop.f32.mrf.mxu0
        %v4204 = vadd.f32 %v4175, %v4203
        %4205 = vdwg.mxu0
        %4206 = vmatpush.msra.mxu0 %v3985
        %4207 = vmatpush.msra.mxu0 %v3983
        %4208 = vmatpush.msra.mxu0 %v3981
        %4209 = vmatpush.msra.mxu0 %v3979
        %4210 = vmatpush.msra.mxu0 %v3977
        %4211 = vmatpush.msra.mxu0 %v3975
        %4212 = vmatpush.msra.mxu0 %v3973
        %4213 = vmatpush.msra.mxu0 %v3971
        %4214 = vmatpush.msra.mxu0 %v3969
        %4215 = vmatpush.msra.mxu0 %v3967
        %4216 = vmatpush.msra.mxu0 %v3965
        %4217 = vmatpush.msra.mxu0 %v3963
        %4218 = vmatpush.msra.mxu0 %v3961
        %4219 = vmatpush.msra.mxu0 %v3959
        %4220 = vmatpush.msra.mxu0 %v3957
        %4221 = vmatpush.msra.mxu0 %v3955
        %4222 = vmatmul.f32.gmra.mxu0 %v3938
        %v4223 = vpop.f32.mrf.mxu0
        %v4224 = vadd.f32 %v4061, %v4223
        %4225 = vmatmul.f32.gmra.mxu0 %v3942
        %v4226 = vpop.f32.mrf.mxu0
        %v4227 = vadd.f32 %v4066, %v4226
        %4228 = vmatmul.f32.gmra.mxu0 %v3946
        %v4229 = vpop.f32.mrf.mxu0
        %v4230 = vadd.f32 %v4071, %v4229
        %4231 = vmatmul.f32.gmra.mxu0 %v3950
        %v4232 = vpop.f32.mrf.mxu0
        %v4233 = vadd.f32 %v4076, %v4232
        %4234 = vdwg.mxu0
        %4235 = vmatpush.msra.mxu0 %v4017
        %4236 = vmatpush.msra.mxu0 %v4015
        %4237 = vmatpush.msra.mxu0 %v4013
        %4238 = vmatpush.msra.mxu0 %v4011
        %4239 = vmatpush.msra.mxu0 %v4009
        %4240 = vmatpush.msra.mxu0 %v4007
        %4241 = vmatpush.msra.mxu0 %v4005
        %4242 = vmatpush.msra.mxu0 %v4003
        %4243 = vmatpush.msra.mxu0 %v4001
        %4244 = vmatpush.msra.mxu0 %v3999
        %4245 = vmatpush.msra.mxu0 %v3997
        %4246 = vmatpush.msra.mxu0 %v3995
        %4247 = vmatpush.msra.mxu0 %v3993
        %4248 = vmatpush.msra.mxu0 %v3991
        %4249 = vmatpush.msra.mxu0 %v3989
        %4250 = vmatpush.msra.mxu0 %v3987
        %4251 = vmatmul.f32.gmra.mxu0 %v3939
        %v4252 = vpop.f32.mrf.mxu0
        %v4253 = vadd.f32 %v4224, %v4252
        %4254 = vmatmul.f32.gmra.mxu0 %v3943
        %v4255 = vpop.f32.mrf.mxu0
        %v4256 = vadd.f32 %v4227, %v4255
        %4257 = vmatmul.f32.gmra.mxu0 %v3947
        %v4258 = vpop.f32.mrf.mxu0
        %v4259 = vadd.f32 %v4230, %v4258
        %4260 = vmatmul.f32.gmra.mxu0 %v3951
        %v4261 = vpop.f32.mrf.mxu0
        %v4262 = vadd.f32 %v4233, %v4261
        %4263 = vdwg.mxu0
        %4264 = vmatpush.msra.mxu0 %v4049
        %4265 = vmatpush.msra.mxu0 %v4047
        %4266 = vmatpush.msra.mxu0 %v4045
        %4267 = vmatpush.msra.mxu0 %v4043
        %4268 = vmatpush.msra.mxu0 %v4041
        %4269 = vmatpush.msra.mxu0 %v4039
        %4270 = vmatpush.msra.mxu0 %v4037
        %4271 = vmatpush.msra.mxu0 %v4035
        %4272 = vmatpush.msra.mxu0 %v4033
        %4273 = vmatpush.msra.mxu0 %v4031
        %4274 = vmatpush.msra.mxu0 %v4029
        %4275 = vmatpush.msra.mxu0 %v4027
        %4276 = vmatpush.msra.mxu0 %v4025
        %4277 = vmatpush.msra.mxu0 %v4023
        %4278 = vmatpush.msra.mxu0 %v4021
        %4279 = vmatpush.msra.mxu0 %v4019
        %4280 = vmatmul.f32.gmra.mxu0 %v3940
        %v4281 = vpop.f32.mrf.mxu0
        %v4282 = vadd.f32 %v4253, %v4281
        %4283 = vmatmul.f32.gmra.mxu0 %v3944
        %v4284 = vpop.f32.mrf.mxu0
        %v4285 = vadd.f32 %v4256, %v4284
        %4286 = vmatmul.f32.gmra.mxu0 %v3948
        %v4287 = vpop.f32.mrf.mxu0
        %v4288 = vadd.f32 %v4259, %v4287
        %4289 = vmatmul.f32.gmra.mxu0 %v3952
        %v4290 = vpop.f32.mrf.mxu0
        %v4291 = vadd.f32 %v4262, %v4290
        %4292 = vdwg.mxu0
        %4293 = vmatpush.msra.mxu0 0.0
        %4294 = vmatpush.msra.mxu0 0.0
        %4295 = vmatpush.msra.mxu0 0.0
        %4296 = vmatpush.msra.mxu0 0.0
        %4297 = vmatpush.msra.mxu0 0.0
        %4298 = vmatpush.msra.mxu0 0.0
        %4299 = vmatpush.msra.mxu0 0.0
        %4300 = vmatpush.msra.mxu0 0.0
        %4301 = vmatpush.msra.mxu0 0.0
        %4302 = vmatpush.msra.mxu0 0.0
        %4303 = vmatpush.msra.mxu0 0.0
        %4304 = vmatpush.msra.mxu0 0.0
        %4305 = vmatpush.msra.mxu0 0.0
        %4306 = vmatpush.msra.mxu0 0.0
        %4307 = vmatpush.msra.mxu0 %v4053
        %4308 = vmatpush.msra.mxu0 %v4051
        %4309 = vmatmul.f32.gmra.mxu0 %v4079
        %v4310 = vpop.f32.mrf.mxu0
        %v4311 = vadd.f32 %v4282, %v4310
        %4312 = vmatmul.f32.gmra.mxu0 %v4082
        %v4313 = vpop.f32.mrf.mxu0
        %v4314 = vadd.f32 %v4285, %v4313
        %4315 = vmatmul.f32.gmra.mxu0 %v4085
        %v4316 = vpop.f32.mrf.mxu0
        %v4317 = vadd.f32 %v4288, %v4316
        %4318 = vmatmul.f32.gmra.mxu0 %v4088
        %v4319 = vpop.f32.mrf.mxu0
        %v4320 = vadd.f32 %v4291, %v4319
        %4321 = vdwg.mxu0
        %v4322 = vld [vmem:[%s8] sm:$0xff]
        %v4323 = vld [vmem:[%s8 + $0x8] sm:$0xff]
        %v4324 = vld [vmem:[%s8 + $0x10] sm:$0xff]
        %v4325 = vld [vmem:[%s8 + $0x18] sm:$0xff]
        %v4326 = vld [vmem:[%s8 + $0x20] sm:$0xff]
        %v4327 = vld [vmem:[%s8 + $0x28] sm:$0xff]
        %v4328 = vld [vmem:[%s8 + $0x30] sm:$0xff]
        %v4329 = vld [vmem:[%s8 + $0x38] sm:$0xff]
        %v4330 = vld [vmem:[%s8 + $0x40] sm:$0xff]
        %v4331 = vld [vmem:[%s8 + $0x48] sm:$0xff]
        %v4332 = vld [vmem:[%s8 + $0x50] sm:$0xff]
        %v4333 = vld [vmem:[%s8 + $0x58] sm:$0xff]
        %v4334 = vld [vmem:[%s8 + $0x60] sm:$0xff]
        %v4335 = vld [vmem:[%s8 + $0x68] sm:$0xff]
        %v4336 = vld [vmem:[%s8 + $0x70] sm:$0xff]
        %v4337 = vld [vmem:[%s8 + $0x78] sm:$0xff]
        %v4338 = vld [vmem:[%s8 + $0x80] sm:$0xff]
        %v4339 = vld [vmem:[%s8 + $0x88] sm:$0xff]
        %v4340 = vld [vmem:[%s8 + $0x90] sm:$0xff]
        %v4341 = vld [vmem:[%s8 + $0x98] sm:$0xff]
        %v4342 = vld [vmem:[%s8 + $0xa0] sm:$0xff]
        %v4343 = vld [vmem:[%s8 + $0xa8] sm:$0xff]
        %v4344 = vld [vmem:[%s8 + $0xb0] sm:$0x1f]
        %vm4345 = vcmask 433152
        %v4347 = vsel %vm4345, %v4311, 0
        %v4350 = vsel %vm4345, %v4314, 0
        %v4353 = vsel %vm4345, %v4317, 0
        %v4356 = vsel %vm4345, %v4320, 0
        %vm4358 = vcmask 1044480
        %v4360 = vsel %vm4358, %v4344, 0
        %4362 = vmatpush.msra.mxu0 %v4337
        %4363 = vmatpush.msra.mxu0 %v4336
        %4364 = vmatpush.msra.mxu0 %v4335
        %4365 = vmatpush.msra.mxu0 %v4334
        %4366 = vmatpush.msra.mxu0 %v4333
        %4367 = vmatpush.msra.mxu0 %v4332
        %4368 = vmatpush.msra.mxu0 %v4331
        %4369 = vmatpush.msra.mxu0 %v4330
        %4370 = vmatpush.msra.mxu0 %v4329
        %4371 = vmatpush.msra.mxu0 %v4328
        %4372 = vmatpush.msra.mxu0 %v4327
        %4373 = vmatpush.msra.mxu0 %v4326
        %4374 = vmatpush.msra.mxu0 %v4325
        %4375 = vmatpush.msra.mxu0 %v4324
        %4376 = vmatpush.msra.mxu0 %v4323
        %4377 = vmatpush.msra.mxu0 %v4322
        %4378 = vmatmul.f32.gmra.mxu0 %v4195
        %v4379 = vpop.f32.mrf.mxu0
        %v4380 = vadd.f32 0.0, %v4379
        %4381 = vmatmul.f32.gmra.mxu0 %v4198
        %v4382 = vpop.f32.mrf.mxu0
        %v4383 = vadd.f32 0.0, %v4382
        %4384 = vmatmul.f32.gmra.mxu0 %v4201
        %v4385 = vpop.f32.mrf.mxu0
        %v4386 = vadd.f32 0.0, %v4385
        %4387 = vmatmul.f32.gmra.mxu0 %v4204
        %v4388 = vpop.f32.mrf.mxu0
        %v4389 = vadd.f32 0.0, %v4388
        %4390 = vdwg.mxu0
        %4391 = vmatpush.msra.mxu0 0.0
        %4392 = vmatpush.msra.mxu0 0.0
        %4393 = vmatpush.msra.mxu0 0.0
        %4394 = vmatpush.msra.mxu0 0.0
        %4395 = vmatpush.msra.mxu0 0.0
        %4396 = vmatpush.msra.mxu0 0.0
        %4397 = vmatpush.msra.mxu0 0.0
        %4398 = vmatpush.msra.mxu0 0.0
        %4399 = vmatpush.msra.mxu0 0.0
        %4400 = vmatpush.msra.mxu0 %v4360
        %4401 = vmatpush.msra.mxu0 %v4343
        %4402 = vmatpush.msra.mxu0 %v4342
        %4403 = vmatpush.msra.mxu0 %v4341
        %4404 = vmatpush.msra.mxu0 %v4340
        %4405 = vmatpush.msra.mxu0 %v4339
        %4406 = vmatpush.msra.mxu0 %v4338
        %4407 = vmatmul.f32.gmra.mxu0 %v4347
        %v4408 = vpop.f32.mrf.mxu0
        %v4409 = vadd.f32 %v4380, %v4408
        %4410 = vmatmul.f32.gmra.mxu0 %v4350
        %v4411 = vpop.f32.mrf.mxu0
        %v4412 = vadd.f32 %v4383, %v4411
        %4413 = vmatmul.f32.gmra.mxu0 %v4353
        %v4414 = vpop.f32.mrf.mxu0
        %v4415 = vadd.f32 %v4386, %v4414
        %4416 = vmatmul.f32.gmra.mxu0 %v4356
        %v4417 = vpop.f32.mrf.mxu0
        %v4418 = vadd.f32 %v4389, %v4417
        %4419 = vdwg.mxu0
        %4424 = vrot.lane.b32.xlu0 %v4195, 127
        %v4425 = vpop.permute.xlu0 %4424
        %4426 = vrot.lane.b32.xlu0 %v4311, 127
        %v4427 = vpop.permute.xlu0 %4426
        %4428 = vrot.lane.b32.xlu0 %v4198, 127
        %v4429 = vpop.permute.xlu0 %4428
        %4430 = vrot.lane.b32.xlu0 %v4314, 127
        %v4431 = vpop.permute.xlu0 %4430
        %4432 = vrot.lane.b32.xlu0 %v4201, 127
        %v4433 = vpop.permute.xlu0 %4432
        %4434 = vrot.lane.b32.xlu0 %v4317, 127
        %v4435 = vpop.permute.xlu0 %4434
        %4436 = vrot.lane.b32.xlu0 %v4204, 127
        %v4437 = vpop.permute.xlu0 %4436
        %4438 = vrot.lane.b32.xlu0 %v4320, 127
        %v4439 = vpop.permute.xlu0 %4438
        %v4440 = vsel %vm1813, %v4425, %v4427
        %v4441 = vsel %vm1813, %v4429, %v4431
        %v4442 = vsel %vm1813, %v4433, %v4435
        %v4443 = vsel %vm1813, %v4437, %v4439
        %v4448 = vsel %vm4345, %v4427, 0
        %v4450 = vsel %vm4345, %v4431, 0
        %v4452 = vsel %vm4345, %v4435, 0
        %v4454 = vsel %vm4345, %v4439, 0
        %4456 = vmatpush.msra.mxu0 %v4337
        %4457 = vmatpush.msra.mxu0 %v4336
        %4458 = vmatpush.msra.mxu0 %v4335
        %4459 = vmatpush.msra.mxu0 %v4334
        %4460 = vmatpush.msra.mxu0 %v4333
        %4461 = vmatpush.msra.mxu0 %v4332
        %4462 = vmatpush.msra.mxu0 %v4331
        %4463 = vmatpush.msra.mxu0 %v4330
        %4464 = vmatpush.msra.mxu0 %v4329
        %4465 = vmatpush.msra.mxu0 %v4328
        %4466 = vmatpush.msra.mxu0 %v4327
        %4467 = vmatpush.msra.mxu0 %v4326
        %4468 = vmatpush.msra.mxu0 %v4325
        %4469 = vmatpush.msra.mxu0 %v4324
        %4470 = vmatpush.msra.mxu0 %v4323
        %4471 = vmatpush.msra.mxu0 %v4322
        %4472 = vmatmul.f32.gmra.mxu0 %v4440
        %v4473 = vpop.f32.mrf.mxu0
        %v4474 = vadd.f32 0.0, %v4473
        %4475 = vmatmul.f32.gmra.mxu0 %v4441
        %v4476 = vpop.f32.mrf.mxu0
        %v4477 = vadd.f32 0.0, %v4476
        %4478 = vmatmul.f32.gmra.mxu0 %v4442
        %v4479 = vpop.f32.mrf.mxu0
        %v4480 = vadd.f32 0.0, %v4479
        %4481 = vmatmul.f32.gmra.mxu0 %v4443
        %v4482 = vpop.f32.mrf.mxu0
        %v4483 = vadd.f32 0.0, %v4482
        %4484 = vdwg.mxu0
        %4485 = vmatpush.msra.mxu0 0.0
        %4486 = vmatpush.msra.mxu0 0.0
        %4487 = vmatpush.msra.mxu0 0.0
        %4488 = vmatpush.msra.mxu0 0.0
        %4489 = vmatpush.msra.mxu0 0.0
        %4490 = vmatpush.msra.mxu0 0.0
        %4491 = vmatpush.msra.mxu0 0.0
        %4492 = vmatpush.msra.mxu0 0.0
        %4493 = vmatpush.msra.mxu0 0.0
        %4494 = vmatpush.msra.mxu0 %v4360
        %4495 = vmatpush.msra.mxu0 %v4343
        %4496 = vmatpush.msra.mxu0 %v4342
        %4497 = vmatpush.msra.mxu0 %v4341
        %4498 = vmatpush.msra.mxu0 %v4340
        %4499 = vmatpush.msra.mxu0 %v4339
        %4500 = vmatpush.msra.mxu0 %v4338
        %4501 = vmatmul.f32.gmra.mxu0 %v4448
        %v4502 = vpop.f32.mrf.mxu0
        %v4503 = vadd.f32 %v4474, %v4502
        %4504 = vmatmul.f32.gmra.mxu0 %v4450
        %v4505 = vpop.f32.mrf.mxu0
        %v4506 = vadd.f32 %v4477, %v4505
        %4507 = vmatmul.f32.gmra.mxu0 %v4452
        %v4508 = vpop.f32.mrf.mxu0
        %v4509 = vadd.f32 %v4480, %v4508
        %4510 = vmatmul.f32.gmra.mxu0 %v4454
        %v4511 = vpop.f32.mrf.mxu0
        %v4512 = vadd.f32 %v4483, %v4511
        %4513 = vdwg.mxu0
        %v4514 = vmax.f32 %v4409, %v4503
        %v4515 = vmax.f32 %v4412, %v4506
        %v4516 = vmax.f32 %v4415, %v4509
        %v4517 = vmax.f32 %v4418, %v4512
        %4518 = vrot.lane.b32.xlu0 %v4195, 114
        %v4519 = vpop.permute.xlu0 %4518
        %4520 = vrot.lane.b32.xlu0 %v4311, 114
        %v4521 = vpop.permute.xlu0 %4520
        %4522 = vrot.lane.b32.xlu0 %v4198, 114
        %v4523 = vpop.permute.xlu0 %4522
        %4524 = vrot.lane.b32.xlu0 %v4314, 114
        %v4525 = vpop.permute.xlu0 %4524
        %4526 = vrot.lane.b32.xlu0 %v4201, 114
        %v4527 = vpop.permute.xlu0 %4526
        %4528 = vrot.lane.b32.xlu0 %v4317, 114
        %v4529 = vpop.permute.xlu0 %4528
        %4530 = vrot.lane.b32.xlu0 %v4204, 114
        %v4531 = vpop.permute.xlu0 %4530
        %4532 = vrot.lane.b32.xlu0 %v4320, 114
        %v4533 = vpop.permute.xlu0 %4532
        %vm4534 = vcmask 932864
        %v4535 = vsel %vm4534, %v4519, %v4521
        %v4536 = vsel %vm4534, %v4523, %v4525
        %v4537 = vsel %vm4534, %v4527, %v4529
        %v4538 = vsel %vm4534, %v4531, %v4533
        %v4543 = vsel %vm4345, %v4521, 0
        %v4545 = vsel %vm4345, %v4525, 0
        %v4547 = vsel %vm4345, %v4529, 0
        %v4549 = vsel %vm4345, %v4533, 0
        %4551 = vmatpush.msra.mxu0 %v4337
        %4552 = vmatpush.msra.mxu0 %v4336
        %4553 = vmatpush.msra.mxu0 %v4335
        %4554 = vmatpush.msra.mxu0 %v4334
        %4555 = vmatpush.msra.mxu0 %v4333
        %4556 = vmatpush.msra.mxu0 %v4332
        %4557 = vmatpush.msra.mxu0 %v4331
        %4558 = vmatpush.msra.mxu0 %v4330
        %4559 = vmatpush.msra.mxu0 %v4329
        %4560 = vmatpush.msra.mxu0 %v4328
        %4561 = vmatpush.msra.mxu0 %v4327
        %4562 = vmatpush.msra.mxu0 %v4326
        %4563 = vmatpush.msra.mxu0 %v4325
        %4564 = vmatpush.msra.mxu0 %v4324
        %4565 = vmatpush.msra.mxu0 %v4323
        %4566 = vmatpush.msra.mxu0 %v4322
        %4567 = vmatmul.f32.gmra.mxu0 %v4535
        %v4568 = vpop.f32.mrf.mxu0
        %v4569 = vadd.f32 0.0, %v4568
        %4570 = vmatmul.f32.gmra.mxu0 %v4536
        %v4571 = vpop.f32.mrf.mxu0
        %v4572 = vadd.f32 0.0, %v4571
        %4573 = vmatmul.f32.gmra.mxu0 %v4537
        %v4574 = vpop.f32.mrf.mxu0
        %v4575 = vadd.f32 0.0, %v4574
        %4576 = vmatmul.f32.gmra.mxu0 %v4538
        %v4577 = vpop.f32.mrf.mxu0
        %v4578 = vadd.f32 0.0, %v4577
        %4579 = vdwg.mxu0
        %4580 = vmatpush.msra.mxu0 0.0
        %4581 = vmatpush.msra.mxu0 0.0
        %4582 = vmatpush.msra.mxu0 0.0
        %4583 = vmatpush.msra.mxu0 0.0
        %4584 = vmatpush.msra.mxu0 0.0
        %4585 = vmatpush.msra.mxu0 0.0
        %4586 = vmatpush.msra.mxu0 0.0
        %4587 = vmatpush.msra.mxu0 0.0
        %4588 = vmatpush.msra.mxu0 0.0
        %4589 = vmatpush.msra.mxu0 %v4360
        %4590 = vmatpush.msra.mxu0 %v4343
        %4591 = vmatpush.msra.mxu0 %v4342
        %4592 = vmatpush.msra.mxu0 %v4341
        %4593 = vmatpush.msra.mxu0 %v4340
        %4594 = vmatpush.msra.mxu0 %v4339
        %4595 = vmatpush.msra.mxu0 %v4338
        %4596 = vmatmul.f32.gmra.mxu0 %v4543
        %v4597 = vpop.f32.mrf.mxu0
        %v4598 = vadd.f32 %v4569, %v4597
        %4599 = vmatmul.f32.gmra.mxu0 %v4545
        %v4600 = vpop.f32.mrf.mxu0
        %v4601 = vadd.f32 %v4572, %v4600
        %4602 = vmatmul.f32.gmra.mxu0 %v4547
        %v4603 = vpop.f32.mrf.mxu0
        %v4604 = vadd.f32 %v4575, %v4603
        %4605 = vmatmul.f32.gmra.mxu0 %v4549
        %v4606 = vpop.f32.mrf.mxu0
        %v4607 = vadd.f32 %v4578, %v4606
        %4608 = vdwg.mxu0
        %v4609 = vmax.f32 %v4514, %v4598
        %v4610 = vmax.f32 %v4515, %v4601
        %v4611 = vmax.f32 %v4516, %v4604
        %v4612 = vmax.f32 %v4517, %v4607
        %4613 = vrot.lane.b32.xlu0 %v4195, 113
        %v4614 = vpop.permute.xlu0 %4613
        %4615 = vrot.lane.b32.xlu0 %v4311, 113
        %v4616 = vpop.permute.xlu0 %4615
        %4617 = vrot.lane.b32.xlu0 %v4198, 113
        %v4618 = vpop.permute.xlu0 %4617
        %4619 = vrot.lane.b32.xlu0 %v4314, 113
        %v4620 = vpop.permute.xlu0 %4619
        %4621 = vrot.lane.b32.xlu0 %v4201, 113
        %v4622 = vpop.permute.xlu0 %4621
        %4623 = vrot.lane.b32.xlu0 %v4317, 113
        %v4624 = vpop.permute.xlu0 %4623
        %4625 = vrot.lane.b32.xlu0 %v4204, 113
        %v4626 = vpop.permute.xlu0 %4625
        %4627 = vrot.lane.b32.xlu0 %v4320, 113
        %v4628 = vpop.permute.xlu0 %4627
        %vm4629 = vcmask 924672
        %v4630 = vsel %vm4629, %v4614, %v4616
        %v4631 = vsel %vm4629, %v4618, %v4620
        %v4632 = vsel %vm4629, %v4622, %v4624
        %v4633 = vsel %vm4629, %v4626, %v4628
        %v4638 = vsel %vm4345, %v4616, 0
        %v4640 = vsel %vm4345, %v4620, 0
        %v4642 = vsel %vm4345, %v4624, 0
        %v4644 = vsel %vm4345, %v4628, 0
        %4646 = vmatpush.msra.mxu0 %v4337
        %4647 = vmatpush.msra.mxu0 %v4336
        %4648 = vmatpush.msra.mxu0 %v4335
        %4649 = vmatpush.msra.mxu0 %v4334
        %4650 = vmatpush.msra.mxu0 %v4333
        %4651 = vmatpush.msra.mxu0 %v4332
        %4652 = vmatpush.msra.mxu0 %v4331
        %4653 = vmatpush.msra.mxu0 %v4330
        %4654 = vmatpush.msra.mxu0 %v4329
        %4655 = vmatpush.msra.mxu0 %v4328
        %4656 = vmatpush.msra.mxu0 %v4327
        %4657 = vmatpush.msra.mxu0 %v4326
        %4658 = vmatpush.msra.mxu0 %v4325
        %4659 = vmatpush.msra.mxu0 %v4324
        %4660 = vmatpush.msra.mxu0 %v4323
        %4661 = vmatpush.msra.mxu0 %v4322
        %4662 = vmatmul.f32.gmra.mxu0 %v4630
        %v4663 = vpop.f32.mrf.mxu0
        %v4664 = vadd.f32 0.0, %v4663
        %4665 = vmatmul.f32.gmra.mxu0 %v4631
        %v4666 = vpop.f32.mrf.mxu0
        %v4667 = vadd.f32 0.0, %v4666
        %4668 = vmatmul.f32.gmra.mxu0 %v4632
        %v4669 = vpop.f32.mrf.mxu0
        %v4670 = vadd.f32 0.0, %v4669
        %4671 = vmatmul.f32.gmra.mxu0 %v4633
        %v4672 = vpop.f32.mrf.mxu0
        %v4673 = vadd.f32 0.0, %v4672
        %4674 = vdwg.mxu0
        %4675 = vmatpush.msra.mxu0 0.0
        %4676 = vmatpush.msra.mxu0 0.0
        %4677 = vmatpush.msra.mxu0 0.0
        %4678 = vmatpush.msra.mxu0 0.0
        %4679 = vmatpush.msra.mxu0 0.0
        %4680 = vmatpush.msra.mxu0 0.0
        %4681 = vmatpush.msra.mxu0 0.0
        %4682 = vmatpush.msra.mxu0 0.0
        %4683 = vmatpush.msra.mxu0 0.0
        %4684 = vmatpush.msra.mxu0 %v4360
        %4685 = vmatpush.msra.mxu0 %v4343
        %4686 = vmatpush.msra.mxu0 %v4342
        %4687 = vmatpush.msra.mxu0 %v4341
        %4688 = vmatpush.msra.mxu0 %v4340
        %4689 = vmatpush.msra.mxu0 %v4339
        %4690 = vmatpush.msra.mxu0 %v4338
        %4691 = vmatmul.f32.gmra.mxu0 %v4638
        %v4692 = vpop.f32.mrf.mxu0
        %v4693 = vadd.f32 %v4664, %v4692
        %4694 = vmatmul.f32.gmra.mxu0 %v4640
        %v4695 = vpop.f32.mrf.mxu0
        %v4696 = vadd.f32 %v4667, %v4695
        %4697 = vmatmul.f32.gmra.mxu0 %v4642
        %v4698 = vpop.f32.mrf.mxu0
        %v4699 = vadd.f32 %v4670, %v4698
        %4700 = vmatmul.f32.gmra.mxu0 %v4644
        %v4701 = vpop.f32.mrf.mxu0
        %v4702 = vadd.f32 %v4673, %v4701
        %4703 = vdwg.mxu0
        %v4704 = vmax.f32 %v4609, %v4693
        %v4705 = vmax.f32 %v4610, %v4696
        %v4706 = vmax.f32 %v4611, %v4699
        %v4707 = vmax.f32 %v4612, %v4702
        %vm4708 = vcmp.lt.s32.totalorder %v558, 49
        %vm4709 = vmand %vm559, %vm4708
        %4710 = vst.msk [vmem:[#allocation5] sm:$0x1] %vm4709, %v4704
        %4712 = vst [vmem:[#allocation1] sm:$0xff] %v4704
        %s4713 = scalar_lea.vmem [#allocation1], 1
        %v4714 = vld [vmem:[%s4713] ss:$9 sm:$0xff]
        %4715 = vrot.lane.b32.xlu0 %v4714, 49
        %v4716 = vpop.permute.xlu0 %4715
        %vm4718 = vcmp.ge.s32.totalorder %v558, 49
        %vm4719 = vcmp.lt.s32.totalorder %v558, 98
        %vm4720 = vmand %vm4718, %vm4719
        %4721 = vst.msk [vmem:[#allocation5] sm:$0x1] %vm4720, %v4716
        %4722 = vst [vmem:[#allocation1] sm:$0xff] %v4704
        %s4723 = scalar_lea.vmem [#allocation1], 2
        %v4724 = vld [vmem:[%s4723] ss:$9 sm:$0xff]
        %4725 = vrot.lane.b32.xlu0 %v4724, 98
        %v4726 = vpop.permute.xlu0 %4725
        %v4727 = vrot.slane %v4726, 7
        %v4728 = vsel %vm3291, %v4727, %v4726
        %vm4730 = vcmp.ge.s32.totalorder %v558, 98
        %vm4731 = vcmp.lt.s32.totalorder %v558, 147
        %vm4732 = vmand %vm4730, %vm4731
        %4733 = vst.msk [vmem:[#allocation5] sm:$0x3] %vm4732, %v4728
        %4734 = vst [vmem:[#allocation1] sm:$0xff] %v4704
        %s4735 = scalar_lea.vmem [#allocation1], 3
        %v4736 = vld [vmem:[%s4735] ss:$9 sm:$0xff]
        %4737 = vrot.lane.b32.xlu0 %v4736, 19
        %v4738 = vpop.permute.xlu0 %4737
        %vm4740 = vcmp.ge.s32.totalorder %v558, 19
        %vm4741 = vcmp.lt.s32.totalorder %v558, 68
        %vm4742 = vmand %vm4740, %vm4741
        %4743 = vst.msk [vmem:[#allocation5 + $0x1] sm:$0x1] %vm4742, %v4738
        %4744 = vst [vmem:[#allocation1] sm:$0xff] %v4704
        %s4745 = scalar_lea.vmem [#allocation1], 4
        %v4746 = vld [vmem:[%s4745] ss:$9 sm:$0xff]
        %4747 = vrot.lane.b32.xlu0 %v4746, 68
        %v4748 = vpop.permute.xlu0 %4747
        %vm4750 = vcmp.ge.s32.totalorder %v558, 68
        %vm4751 = vcmp.lt.s32.totalorder %v558, 117
        %vm4752 = vmand %vm4750, %vm4751
        %4753 = vst.msk [vmem:[#allocation5 + $0x1] sm:$0x1] %vm4752, %v4748
        %4754 = vst [vmem:[#allocation1] sm:$0xff] %v4704
        %s4755 = scalar_lea.vmem [#allocation1], 5
        %v4756 = vld [vmem:[%s4755] ss:$9 sm:$0xff]
        %4757 = vrot.lane.b32.xlu0 %v4756, 117
        %v4758 = vpop.permute.xlu0 %4757
        %v4759 = vrot.slane %v4758, 7
        %vm4760 = vcmask 957440
        %v4761 = vsel %vm4760, %v4759, %v4758
        %vm4763 = vcmp.ge.s32.totalorder %v558, 117
        %vm4764 = vcmp.lt.s32.totalorder %v558, 166
        %vm4765 = vmand %vm4763, %vm4764
        %4766 = vst.msk [vmem:[#allocation5 + $0x1] sm:$0x3] %vm4765, %v4761
        %4767 = vst [vmem:[#allocation1] sm:$0xff] %v4704
        %s4768 = scalar_lea.vmem [#allocation1], 6
        %v4769 = vld [vmem:[%s4768] ss:$9 sm:$0xff]
        %4770 = vrot.lane.b32.xlu0 %v4769, 38
        %v4771 = vpop.permute.xlu0 %4770
        %vm4773 = vcmp.ge.s32.totalorder %v558, 38
        %vm4774 = vcmp.lt.s32.totalorder %v558, 87
        %vm4775 = vmand %vm4773, %vm4774
        %4776 = vst.msk [vmem:[#allocation5 + $0x2] sm:$0x1] %vm4775, %v4771
        %4777 = vst [vmem:[#allocation1] sm:$0xff] %v4704
        %s4778 = scalar_lea.vmem [#allocation1], 7
        %v4779 = vld [vmem:[%s4778] ss:$9 sm:$0xff]
        %4780 = vrot.lane.b32.xlu0 %v4779, 87
        %v4781 = vpop.permute.xlu0 %4780
        %v4782 = vrot.slane %v4781, 7
        %vm4783 = vcmask 711680
        %v4784 = vsel %vm4783, %v4782, %v4781
        %vm4786 = vcmp.ge.s32.totalorder %v558, 87
        %vm4787 = vcmp.lt.s32.totalorder %v558, 136
        %vm4788 = vmand %vm4786, %vm4787
        %4789 = vst.msk [vmem:[#allocation5 + $0x2] sm:$0x3] %vm4788, %v4784
        %4791 = vrot.lane.b32.xlu0 %v4705, 8
        %v4792 = vpop.permute.xlu0 %4791
        %vm4794 = vcmp.ge.s32.totalorder %v558, 8
        %vm4795 = vcmp.lt.s32.totalorder %v558, 57
        %vm4796 = vmand %vm4794, %vm4795
        %4797 = vst.msk [vmem:[#allocation5 + $0x3] sm:$0x1] %vm4796, %v4792
        %4798 = vst [vmem:[#allocation1] sm:$0xff] %v4705
        %s4799 = scalar_lea.vmem [#allocation1], 1
        %v4800 = vld [vmem:[%s4799] ss:$9 sm:$0xff]
        %4801 = vrot.lane.b32.xlu0 %v4800, 57
        %v4802 = vpop.permute.xlu0 %4801
        %vm4804 = vcmp.ge.s32.totalorder %v558, 57
        %vm4805 = vcmp.lt.s32.totalorder %v558, 106
        %vm4806 = vmand %vm4804, %vm4805
        %4807 = vst.msk [vmem:[#allocation5 + $0x3] sm:$0x1] %vm4806, %v4802
        %4808 = vst [vmem:[#allocation1] sm:$0xff] %v4705
        %s4809 = scalar_lea.vmem [#allocation1], 2
        %v4810 = vld [vmem:[%s4809] ss:$9 sm:$0xff]
        %4811 = vrot.lane.b32.xlu0 %v4810, 106
        %v4812 = vpop.permute.xlu0 %4811
        %v4813 = vrot.slane %v4812, 7
        %vm4814 = vcmask 867328
        %v4815 = vsel %vm4814, %v4813, %v4812
        %vm4817 = vcmp.ge.s32.totalorder %v558, 106
        %vm4818 = vcmp.lt.s32.totalorder %v558, 155
        %vm4819 = vmand %vm4817, %vm4818
        %4820 = vst.msk [vmem:[#allocation5 + $0x3] sm:$0x3] %vm4819, %v4815
        %4821 = vst [vmem:[#allocation1] sm:$0xff] %v4705
        %s4822 = scalar_lea.vmem [#allocation1], 3
        %v4823 = vld [vmem:[%s4822] ss:$9 sm:$0xff]
        %4824 = vrot.lane.b32.xlu0 %v4823, 27
        %v4825 = vpop.permute.xlu0 %4824
        %vm4827 = vcmp.ge.s32.totalorder %v558, 27
        %vm4828 = vcmp.lt.s32.totalorder %v558, 76
        %vm4829 = vmand %vm4827, %vm4828
        %4830 = vst.msk [vmem:[#allocation5 + $0x4] sm:$0x1] %vm4829, %v4825
        %4831 = vst [vmem:[#allocation1] sm:$0xff] %v4705
        %s4832 = scalar_lea.vmem [#allocation1], 4
        %v4833 = vld [vmem:[%s4832] ss:$9 sm:$0xff]
        %4834 = vrot.lane.b32.xlu0 %v4833, 76
        %v4835 = vpop.permute.xlu0 %4834
        %vm4837 = vcmp.ge.s32.totalorder %v558, 76
        %vm4838 = vcmp.lt.s32.totalorder %v558, 125
        %vm4839 = vmand %vm4837, %vm4838
        %4840 = vst.msk [vmem:[#allocation5 + $0x4] sm:$0x1] %vm4839, %v4835
        %4841 = vst [vmem:[#allocation1] sm:$0xff] %v4705
        %s4842 = scalar_lea.vmem [#allocation1], 5
        %v4843 = vld [vmem:[%s4842] ss:$9 sm:$0xff]
        %4844 = vrot.lane.b32.xlu0 %v4843, 125
        %v4845 = vpop.permute.xlu0 %4844
        %v4846 = vrot.slane %v4845, 7
        %v4847 = vsel %vm2898, %v4846, %v4845
        %vm4849 = vcmp.ge.s32.totalorder %v558, 125
        %vm4850 = vcmp.lt.s32.totalorder %v558, 174
        %vm4851 = vmand %vm4849, %vm4850
        %4852 = vst.msk [vmem:[#allocation5 + $0x4] sm:$0x3] %vm4851, %v4847
        %4853 = vst [vmem:[#allocation1] sm:$0xff] %v4705
        %s4854 = scalar_lea.vmem [#allocation1], 6
        %v4855 = vld [vmem:[%s4854] ss:$9 sm:$0xff]
        %4856 = vrot.lane.b32.xlu0 %v4855, 46
        %v4857 = vpop.permute.xlu0 %4856
        %vm4859 = vcmp.ge.s32.totalorder %v558, 46
        %vm4860 = vcmp.lt.s32.totalorder %v558, 95
        %vm4861 = vmand %vm4859, %vm4860
        %4862 = vst.msk [vmem:[#allocation5 + $0x5] sm:$0x1] %vm4861, %v4857
        %4863 = vst [vmem:[#allocation1] sm:$0xff] %v4705
        %s4864 = scalar_lea.vmem [#allocation1], 7
        %v4865 = vld [vmem:[%s4864] ss:$9 sm:$0xff]
        %4866 = vrot.lane.b32.xlu0 %v4865, 95
        %v4867 = vpop.permute.xlu0 %4866
        %v4868 = vrot.slane %v4867, 7
        %v4869 = vsel %vm3422, %v4868, %v4867
        %vm4871 = vcmp.ge.s32.totalorder %v558, 95
        %vm4872 = vcmp.lt.s32.totalorder %v558, 144
        %vm4873 = vmand %vm4871, %vm4872
        %4874 = vst.msk [vmem:[#allocation5 + $0x5] sm:$0x3] %vm4873, %v4869
        %4876 = vrot.lane.b32.xlu0 %v4706, 16
        %v4877 = vpop.permute.xlu0 %4876
        %vm4879 = vcmp.ge.s32.totalorder %v558, 16
        %vm4880 = vcmp.lt.s32.totalorder %v558, 65
        %vm4881 = vmand %vm4879, %vm4880
        %4882 = vst.msk [vmem:[#allocation5 + $0x6] sm:$0x1] %vm4881, %v4877
        %4883 = vst [vmem:[#allocation1] sm:$0xff] %v4706
        %s4884 = scalar_lea.vmem [#allocation1], 1
        %v4885 = vld [vmem:[%s4884] ss:$9 sm:$0xff]
        %4886 = vrot.lane.b32.xlu0 %v4885, 65
        %v4887 = vpop.permute.xlu0 %4886
        %vm4889 = vcmp.ge.s32.totalorder %v558, 65
        %vm4890 = vcmp.lt.s32.totalorder %v558, 114
        %vm4891 = vmand %vm4889, %vm4890
        %4892 = vst.msk [vmem:[#allocation5 + $0x6] sm:$0x1] %vm4891, %v4887
        %4893 = vst [vmem:[#allocation1] sm:$0xff] %v4706
        %s4894 = scalar_lea.vmem [#allocation1], 2
        %v4895 = vld [vmem:[%s4894] ss:$9 sm:$0xff]
        %4896 = vrot.lane.b32.xlu0 %v4895, 114
        %v4897 = vpop.permute.xlu0 %4896
        %v4898 = vrot.slane %v4897, 7
        %v4899 = vsel %vm4534, %v4898, %v4897
        %vm4901 = vcmp.ge.s32.totalorder %v558, 114
        %vm4902 = vcmp.lt.s32.totalorder %v558, 163
        %vm4903 = vmand %vm4901, %vm4902
        %4904 = vst.msk [vmem:[#allocation5 + $0x6] sm:$0x3] %vm4903, %v4899
        %4905 = vst [vmem:[#allocation1] sm:$0xff] %v4706
        %s4906 = scalar_lea.vmem [#allocation1], 3
        %v4907 = vld [vmem:[%s4906] ss:$9 sm:$0xff]
        %4908 = vrot.lane.b32.xlu0 %v4907, 35
        %v4909 = vpop.permute.xlu0 %4908
        %vm4911 = vcmp.ge.s32.totalorder %v558, 35
        %vm4912 = vcmp.lt.s32.totalorder %v558, 84
        %vm4913 = vmand %vm4911, %vm4912
        %4914 = vst.msk [vmem:[#allocation5 + $0x7] sm:$0x1] %vm4913, %v4909
        %4915 = vst [vmem:[#allocation1] sm:$0xff] %v4706
        %s4916 = scalar_lea.vmem [#allocation1], 4
        %v4917 = vld [vmem:[%s4916] ss:$9 sm:$0xff]
        %4918 = vrot.lane.b32.xlu0 %v4917, 84
        %v4919 = vpop.permute.xlu0 %4918
        %v4920 = vrot.slane %v4919, 7
        %v4921 = vsel %vm3508, %v4920, %v4919
        %vm4923 = vcmp.ge.s32.totalorder %v558, 84
        %vm4924 = vcmp.lt.s32.totalorder %v558, 133
        %vm4925 = vmand %vm4923, %vm4924
        %4926 = vst.msk [vmem:[#allocation5 + $0x7] sm:$0x3] %vm4925, %v4921
        %4927 = vst [vmem:[#allocation1] sm:$0xff] %v4706
        %s4928 = scalar_lea.vmem [#allocation1], 5
        %v4929 = vld [vmem:[%s4928] ss:$9 sm:$0xff]
        %4930 = vrot.lane.b32.xlu0 %v4929, 5
        %v4931 = vpop.permute.xlu0 %4930
        %vm4933 = vcmp.ge.s32.totalorder %v558, 5
        %vm4934 = vcmp.lt.s32.totalorder %v558, 54
        %vm4935 = vmand %vm4933, %vm4934
        %4936 = vst.msk [vmem:[#allocation5 + $0x8] sm:$0x1] %vm4935, %v4931
        %4937 = vst [vmem:[#allocation1] sm:$0xff] %v4706
        %s4938 = scalar_lea.vmem [#allocation1], 6
        %v4939 = vld [vmem:[%s4938] ss:$9 sm:$0xff]
        %4940 = vrot.lane.b32.xlu0 %v4939, 54
        %v4941 = vpop.permute.xlu0 %4940
        %vm4943 = vcmp.ge.s32.totalorder %v558, 54
        %vm4944 = vcmp.lt.s32.totalorder %v558, 103
        %vm4945 = vmand %vm4943, %vm4944
        %4946 = vst.msk [vmem:[#allocation5 + $0x8] sm:$0x1] %vm4945, %v4941
        %4947 = vst [vmem:[#allocation1] sm:$0xff] %v4706
        %s4948 = scalar_lea.vmem [#allocation1], 7
        %v4949 = vld [vmem:[%s4948] ss:$9 sm:$0xff]
        %4950 = vrot.lane.b32.xlu0 %v4949, 103
        %v4951 = vpop.permute.xlu0 %4950
        %v4952 = vrot.slane %v4951, 7
        %vm4953 = vcmask 842752
        %v4954 = vsel %vm4953, %v4952, %v4951
        %vm4956 = vcmp.ge.s32.totalorder %v558, 103
        %vm4957 = vcmp.lt.s32.totalorder %v558, 152
        %vm4958 = vmand %vm4956, %vm4957
        %4959 = vst.msk [vmem:[#allocation5 + $0x8] sm:$0x3] %vm4958, %v4954
        %4961 = vrot.lane.b32.xlu0 %v4707, 24
        %v4962 = vpop.permute.xlu0 %4961
        %vm4964 = vcmp.ge.s32.totalorder %v558, 24
        %vm4965 = vcmp.lt.s32.totalorder %v558, 73
        %vm4966 = vmand %vm4964, %vm4965
        %4967 = vst.msk [vmem:[#allocation5 + $0x9] sm:$0x1] %vm4966, %v4962
        %4968 = vst [vmem:[#allocation1] sm:$0xff] %v4707
        %s4969 = scalar_lea.vmem [#allocation1], 1
        %v4970 = vld [vmem:[%s4969] ss:$9 sm:$0xff]
        %4971 = vrot.lane.b32.xlu0 %v4970, 73
        %v4972 = vpop.permute.xlu0 %4971
        %vm4974 = vcmp.ge.s32.totalorder %v558, 73
        %vm4975 = vcmp.lt.s32.totalorder %v558, 122
        %vm4976 = vmand %vm4974, %vm4975
        %4977 = vst.msk [vmem:[#allocation5 + $0x9] sm:$0x1] %vm4976, %v4972
        %4978 = vst [vmem:[#allocation1] sm:$0xff] %v4707
        %s4979 = scalar_lea.vmem [#allocation1], 2
        %v4980 = vld [vmem:[%s4979] ss:$9 sm:$0xff]
        %4981 = vrot.lane.b32.xlu0 %v4980, 122
        %v4982 = vpop.permute.xlu0 %4981
        %v4983 = vrot.slane %v4982, 7
        %v4984 = vsel %vm555, %v4983, %v4982
        %vm4986 = vcmp.ge.s32.totalorder %v558, 122
        %vm4987 = vcmp.lt.s32.totalorder %v558, 171
        %vm4988 = vmand %vm4986, %vm4987
        %4989 = vst.msk [vmem:[#allocation5 + $0x9] sm:$0x3] %vm4988, %v4984
        %4990 = vst [vmem:[#allocation1] sm:$0xff] %v4707
        %s4991 = scalar_lea.vmem [#allocation1], 3
        %v4992 = vld [vmem:[%s4991] ss:$9 sm:$0xff]
        %4993 = vrot.lane.b32.xlu0 %v4992, 43
        %v4994 = vpop.permute.xlu0 %4993
        %vm4996 = vcmp.ge.s32.totalorder %v558, 43
        %vm4997 = vcmp.lt.s32.totalorder %v558, 92
        %vm4998 = vmand %vm4996, %vm4997
        %4999 = vst.msk [vmem:[#allocation5 + $0xa] sm:$0x1] %vm4998, %v4994
        %5000 = vst [vmem:[#allocation1] sm:$0xff] %v4707
        %s5001 = scalar_lea.vmem [#allocation1], 4
        %v5002 = vld [vmem:[%s5001] ss:$9 sm:$0xff]
        %5003 = vrot.lane.b32.xlu0 %v5002, 92
        %v5004 = vpop.permute.xlu0 %5003
        %v5005 = vrot.slane %v5004, 7
        %v5006 = vsel %vm712, %v5005, %v5004
        %vm5008 = vcmp.ge.s32.totalorder %v558, 92
        %vm5009 = vcmp.lt.s32.totalorder %v558, 141
        %vm5010 = vmand %vm5008, %vm5009
        %5011 = vst.msk [vmem:[#allocation5 + $0xa] sm:$0x3] %vm5010, %v5006
        %5012 = vst [vmem:[#allocation1] sm:$0xff] %v4707
        %s5013 = scalar_lea.vmem [#allocation1], 5
        %v5014 = vld [vmem:[%s5013] ss:$9 sm:$0xff]
        %5015 = vrot.lane.b32.xlu0 %v5014, 13
        %v5016 = vpop.permute.xlu0 %5015
        %vm5018 = vcmp.ge.s32.totalorder %v558, 13
        %vm5019 = vcmp.lt.s32.totalorder %v558, 62
        %vm5020 = vmand %vm5018, %vm5019
        %5021 = vst.msk [vmem:[#allocation5 + $0xb] sm:$0x1] %vm5020, %v5016
        %5022 = vst [vmem:[#allocation1] sm:$0xff] %v4707
        %s5023 = scalar_lea.vmem [#allocation1], 6
        %v5024 = vld [vmem:[%s5023] ss:$9 sm:$0xff]
        %5025 = vrot.lane.b32.xlu0 %v5024, 62
        %v5026 = vpop.permute.xlu0 %5025
        %vm5028 = vcmp.ge.s32.totalorder %v558, 62
        %vm5029 = vcmp.lt.s32.totalorder %v558, 111
        %vm5030 = vmand %vm5028, %vm5029
        %5031 = vst.msk [vmem:[#allocation5 + $0xb] sm:$0x1] %vm5030, %v5026
        %5032 = vst [vmem:[#allocation1] sm:$0xff] %v4707
        %s5033 = scalar_lea.vmem [#allocation1], 7
        %v5034 = vld [vmem:[%s5033] ss:$9 sm:$0xff]
        %5035 = vrot.lane.b32.xlu0 %v5034, 111
        %v5036 = vpop.permute.xlu0 %5035
        %v5037 = vrot.slane %v5036, 7
        %v5038 = vsel %vm3115, %v5037, %v5036
        %vm5040 = vcmp.ge.s32.totalorder %v558, 111
        %vm5041 = vcmp.lt.s32.totalorder %v558, 160
        %vm5042 = vmand %vm5040, %vm5041
        %5043 = vst.msk [vmem:[#allocation5 + $0xb] sm:$0x3] %vm5042, %v5038
        %v5044 = vld [vmem:[#allocation5] sm:$0xff]
        %v5045 = vld [vmem:[#allocation5 + $0x8] sm:$0x1f]
        %v5046 = vld [vmem:[#allocation11] sm:$0xff]
        %v5047 = vld [vmem:[#allocation11 + $0x8] sm:$0xff]
        %v5048 = vld [vmem:[#allocation11 + $0x10] sm:$0xff]
        %v5049 = vld [vmem:[#allocation11 + $0x18] sm:$0xff]
        %v5050 = vld [vmem:[#allocation11 + $0x20] sm:$0xff]
        %v5051 = vld [vmem:[#allocation11 + $0x28] sm:$0xff]
        %v5052 = vld [vmem:[#allocation11 + $0x30] sm:$0xff]
        %v5053 = vld [vmem:[#allocation11 + $0x38] sm:$0xff]
        %v5054 = vld [vmem:[#allocation11 + $0x40] sm:$0xff]
        %v5055 = vld [vmem:[#allocation11 + $0x48] sm:$0xff]
        %v5056 = vld [vmem:[#allocation11 + $0x50] sm:$0xff]
        %v5057 = vld [vmem:[#allocation11 + $0x58] sm:$0xff]
        %v5058 = vld [vmem:[#allocation11 + $0x60] sm:$0xff]
        %v5059 = vld [vmem:[#allocation11 + $0x68] sm:$0xff]
        %v5060 = vld [vmem:[#allocation11 + $0x70] sm:$0xff]
        %v5061 = vld [vmem:[#allocation11 + $0x78] sm:$0xff]
        %v5062 = vld [vmem:[#allocation11 + $0x80] sm:$0xff]
        %v5063 = vld [vmem:[#allocation11 + $0x88] sm:$0xff]
        %v5064 = vld [vmem:[#allocation11 + $0x90] sm:$0xff]
        %v5065 = vld [vmem:[#allocation11 + $0x98] sm:$0xff]
        %v5066 = vld [vmem:[#allocation11 + $0xa0] sm:$0xff]
        %v5067 = vld [vmem:[#allocation11 + $0xa8] sm:$0xff]
        %v5068 = vld [vmem:[#allocation11 + $0xb0] sm:$0xff]
        %v5069 = vld [vmem:[#allocation11 + $0xb8] sm:$0xff]
        %v5070 = vld [vmem:[#allocation11 + $0xc0] sm:$0xff]
        %v5071 = vld [vmem:[#allocation11 + $0xc8] sm:$0xff]
        %v5072 = vld [vmem:[#allocation11 + $0xd0] sm:$0xff]
        %v5073 = vld [vmem:[#allocation11 + $0xd8] sm:$0xff]
        %v5074 = vld [vmem:[#allocation11 + $0xe0] sm:$0xff]
        %v5075 = vld [vmem:[#allocation11 + $0xe8] sm:$0xff]
        %v5076 = vld [vmem:[#allocation11 + $0xf0] sm:$0xff]
        %v5077 = vld [vmem:[#allocation11 + $0xf8] sm:$0xff]
        %v5078 = vld [vmem:[#allocation11 + $0x100] sm:$0xff]
        %v5079 = vld [vmem:[#allocation11 + $0x108] sm:$0xff]
        %v5080 = vld [vmem:[#allocation11 + $0x110] sm:$0xff]
        %v5081 = vld [vmem:[#allocation11 + $0x118] sm:$0xff]
        %v5082 = vld [vmem:[#allocation11 + $0x120] sm:$0xff]
        %v5083 = vld [vmem:[#allocation11 + $0x128] sm:$0xff]
        %v5084 = vld [vmem:[#allocation11 + $0x130] sm:$0xff]
        %v5085 = vld [vmem:[#allocation11 + $0x138] sm:$0xff]
        %v5086 = vld [vmem:[#allocation11 + $0x140] sm:$0xff]
        %v5087 = vld [vmem:[#allocation11 + $0x148] sm:$0xff]
        %v5088 = vld [vmem:[#allocation11 + $0x150] sm:$0xff]
        %v5089 = vld [vmem:[#allocation11 + $0x158] sm:$0xff]
        %v5090 = vld [vmem:[#allocation11 + $0x160] sm:$0xff]
        %v5091 = vld [vmem:[#allocation11 + $0x168] sm:$0xff]
        %v5092 = vld [vmem:[#allocation11 + $0x170] sm:$0xff]
        %v5093 = vld [vmem:[#allocation11 + $0x178] sm:$0xff]
        %v5094 = vld [vmem:[#allocation11 + $0x180] sm:$0xff]
        %v5095 = vld [vmem:[#allocation11 + $0x188] sm:$0xff]
        %v5096 = vld [vmem:[#allocation11 + $0x190] sm:$0xff]
        %v5097 = vld [vmem:[#allocation11 + $0x198] sm:$0xff]
        %v5098 = vld [vmem:[#allocation11 + $0x1a0] sm:$0xff]
        %v5099 = vld [vmem:[#allocation11 + $0x1a8] sm:$0xff]
        %v5100 = vld [vmem:[#allocation11 + $0x1b0] sm:$0xff]
        %v5101 = vld [vmem:[#allocation11 + $0x1b8] sm:$0xff]
        %v5102 = vld [vmem:[#allocation11 + $0x1c0] sm:$0xff]
        %v5103 = vld [vmem:[#allocation11 + $0x1c8] sm:$0xff]
        %v5104 = vld [vmem:[#allocation11 + $0x1d0] sm:$0xff]
        %v5105 = vld [vmem:[#allocation11 + $0x1d8] sm:$0xff]
        %v5106 = vld [vmem:[#allocation11 + $0x1e0] sm:$0xff]
        %v5107 = vld [vmem:[#allocation11 + $0x1e8] sm:$0xff]
        %v5108 = vld [vmem:[#allocation11 + $0x1f0] sm:$0xff]
        %v5109 = vld [vmem:[#allocation11 + $0x1f8] sm:$0xff]
        %v5110 = vld [vmem:[#allocation11 + $0x200] sm:$0xff]
        %v5111 = vld [vmem:[#allocation11 + $0x208] sm:$0xff]
        %v5112 = vld [vmem:[#allocation11 + $0x210] sm:$0xff]
        %v5113 = vld [vmem:[#allocation11 + $0x218] sm:$0xff]
        %v5114 = vld [vmem:[#allocation11 + $0x220] sm:$0xff]
        %v5115 = vld [vmem:[#allocation11 + $0x228] sm:$0xff]
        %v5116 = vld [vmem:[#allocation11 + $0x230] sm:$0xff]
        %v5117 = vld [vmem:[#allocation11 + $0x238] sm:$0xff]
        %v5118 = vld [vmem:[#allocation11 + $0x240] sm:$0xff]
        %v5119 = vld [vmem:[#allocation11 + $0x248] sm:$0xff]
        %v5120 = vld [vmem:[#allocation11 + $0x250] sm:$0xff]
        %v5121 = vld [vmem:[#allocation11 + $0x258] sm:$0xff]
        %v5122 = vld [vmem:[#allocation11 + $0x260] sm:$0xff]
        %v5123 = vld [vmem:[#allocation11 + $0x268] sm:$0xff]
        %v5124 = vld [vmem:[#allocation11 + $0x270] sm:$0xff]
        %v5125 = vld [vmem:[#allocation11 + $0x278] sm:$0xff]
        %v5126 = vld [vmem:[#allocation11 + $0x280] sm:$0xff]
        %v5127 = vld [vmem:[#allocation11 + $0x288] sm:$0xff]
        %v5128 = vld [vmem:[#allocation11 + $0x290] sm:$0xff]
        %v5129 = vld [vmem:[#allocation11 + $0x298] sm:$0xff]
        %v5130 = vld [vmem:[#allocation11 + $0x2a0] sm:$0xff]
        %v5131 = vld [vmem:[#allocation11 + $0x2a8] sm:$0xff]
        %v5132 = vld [vmem:[#allocation11 + $0x2b0] sm:$0xff]
        %v5133 = vld [vmem:[#allocation11 + $0x2b8] sm:$0xff]
        %v5134 = vld [vmem:[#allocation11 + $0x2c0] sm:$0xff]
        %v5135 = vld [vmem:[#allocation11 + $0x2c8] sm:$0xff]
        %v5136 = vld [vmem:[#allocation11 + $0x2d0] sm:$0xff]
        %v5137 = vld [vmem:[#allocation11 + $0x2d8] sm:$0xff]
        %v5138 = vld [vmem:[#allocation11 + $0x2e0] sm:$0xff]
        %v5139 = vld [vmem:[#allocation11 + $0x2e8] sm:$0xff]
        %v5140 = vld [vmem:[#allocation11 + $0x2f0] sm:$0xff]
        %v5141 = vld [vmem:[#allocation11 + $0x2f8] sm:$0xff]
        %v5142 = vld [vmem:[#allocation11 + $0x300] sm:$0xff]
        %v5143 = vld [vmem:[#allocation11 + $0x308] sm:$0xff]
        %v5144 = vld [vmem:[#allocation11 + $0x310] sm:$0xff]
        %v5145 = vld [vmem:[#allocation11 + $0x318] sm:$0xff]
        %v5146 = vld [vmem:[#allocation11 + $0x320] sm:$0xff]
        %v5147 = vld [vmem:[#allocation11 + $0x328] sm:$0xff]
        %v5148 = vld [vmem:[#allocation11 + $0x330] sm:$0xff]
        %v5149 = vld [vmem:[#allocation11 + $0x338] sm:$0xff]
        %v5150 = vld [vmem:[#allocation11 + $0x340] sm:$0xff]
        %v5151 = vld [vmem:[#allocation11 + $0x348] sm:$0xff]
        %v5152 = vld [vmem:[#allocation11 + $0x350] sm:$0xff]
        %v5153 = vld [vmem:[#allocation11 + $0x358] sm:$0xff]
        %v5154 = vld [vmem:[#allocation11 + $0x360] sm:$0xff]
        %v5155 = vld [vmem:[#allocation11 + $0x368] sm:$0xff]
        %v5156 = vld [vmem:[#allocation11 + $0x370] sm:$0xff]
        %v5157 = vld [vmem:[#allocation11 + $0x378] sm:$0xff]
        %v5158 = vld [vmem:[#allocation11 + $0x380] sm:$0xff]
        %v5159 = vld [vmem:[#allocation11 + $0x388] sm:$0xff]
        %v5160 = vld [vmem:[#allocation11 + $0x390] sm:$0xff]
        %v5161 = vld [vmem:[#allocation11 + $0x398] sm:$0xff]
        %v5162 = vld [vmem:[#allocation11 + $0x3a0] sm:$0xff]
        %v5163 = vld [vmem:[#allocation11 + $0x3a8] sm:$0xff]
        %v5164 = vld [vmem:[#allocation11 + $0x3b0] sm:$0xff]
        %v5165 = vld [vmem:[#allocation11 + $0x3b8] sm:$0xff]
        %v5166 = vld [vmem:[#allocation11 + $0x3c0] sm:$0xff]
        %v5167 = vld [vmem:[#allocation11 + $0x3c8] sm:$0xff]
        %v5168 = vld [vmem:[#allocation11 + $0x3d0] sm:$0xff]
        %v5169 = vld [vmem:[#allocation11 + $0x3d8] sm:$0xff]
        %v5170 = vld [vmem:[#allocation11 + $0x3e0] sm:$0xff]
        %v5171 = vld [vmem:[#allocation11 + $0x3e8] sm:$0xff]
        %v5172 = vld [vmem:[#allocation11 + $0x3f0] sm:$0xff]
        %v5173 = vld [vmem:[#allocation11 + $0x3f8] sm:$0xff]
        %v5174 = vld [vmem:[#allocation11 + $0x400] sm:$0xff]
        %v5175 = vld [vmem:[#allocation11 + $0x408] sm:$0xff]
        %v5176 = vld [vmem:[#allocation11 + $0x410] sm:$0xff]
        %v5177 = vld [vmem:[#allocation11 + $0x418] sm:$0xff]
        %v5178 = vld [vmem:[#allocation11 + $0x420] sm:$0xff]
        %v5179 = vld [vmem:[#allocation11 + $0x428] sm:$0xff]
        %v5180 = vld [vmem:[#allocation11 + $0x430] sm:$0xff]
        %v5181 = vld [vmem:[#allocation11 + $0x438] sm:$0xff]
        %v5182 = vld [vmem:[#allocation11 + $0x440] sm:$0xff]
        %v5183 = vld [vmem:[#allocation11 + $0x448] sm:$0xff]
        %v5184 = vld [vmem:[#allocation11 + $0x450] sm:$0xff]
        %v5185 = vld [vmem:[#allocation11 + $0x458] sm:$0xff]
        %v5186 = vld [vmem:[#allocation11 + $0x460] sm:$0xff]
        %v5187 = vld [vmem:[#allocation11 + $0x468] sm:$0xff]
        %v5188 = vld [vmem:[#allocation11 + $0x470] sm:$0xff]
        %v5189 = vld [vmem:[#allocation11 + $0x478] sm:$0xff]
        %v5190 = vld [vmem:[#allocation11 + $0x480] sm:$0xff]
        %v5191 = vld [vmem:[#allocation11 + $0x488] sm:$0xff]
        %v5192 = vld [vmem:[#allocation11 + $0x490] sm:$0xff]
        %v5193 = vld [vmem:[#allocation11 + $0x498] sm:$0xff]
        %v5194 = vld [vmem:[#allocation11 + $0x4a0] sm:$0xff]
        %v5195 = vld [vmem:[#allocation11 + $0x4a8] sm:$0xff]
        %v5196 = vld [vmem:[#allocation11 + $0x4b0] sm:$0xff]
        %v5197 = vld [vmem:[#allocation11 + $0x4b8] sm:$0xff]
        %v5198 = vld [vmem:[#allocation11 + $0x4c0] sm:$0xff]
        %v5199 = vld [vmem:[#allocation11 + $0x4c8] sm:$0xff]
        %v5200 = vld [vmem:[#allocation11 + $0x4d0] sm:$0xff]
        %v5201 = vld [vmem:[#allocation11 + $0x4d8] sm:$0xff]
        %v5202 = vld [vmem:[#allocation11 + $0x4e0] sm:$0xff]
        %v5203 = vld [vmem:[#allocation11 + $0x4e8] sm:$0xff]
        %v5204 = vld [vmem:[#allocation11 + $0x4f0] sm:$0xff]
        %v5205 = vld [vmem:[#allocation11 + $0x4f8] sm:$0xff]
        %v5206 = vld [vmem:[#allocation11 + $0x500] sm:$0xff]
        %v5207 = vld [vmem:[#allocation11 + $0x508] sm:$0xff]
        %v5208 = vld [vmem:[#allocation11 + $0x510] sm:$0xff]
        %v5209 = vld [vmem:[#allocation11 + $0x518] sm:$0xff]
        %v5210 = vld [vmem:[#allocation11 + $0x520] sm:$0xff]
        %v5211 = vld [vmem:[#allocation11 + $0x528] sm:$0xff]
        %v5212 = vld [vmem:[#allocation11 + $0x530] sm:$0xff]
        %v5213 = vld [vmem:[#allocation11 + $0x538] sm:$0xff]
        %v5214 = vld [vmem:[#allocation11 + $0x540] sm:$0xff]
        %v5215 = vld [vmem:[#allocation11 + $0x548] sm:$0xff]
        %v5216 = vld [vmem:[#allocation11 + $0x550] sm:$0xff]
        %v5217 = vld [vmem:[#allocation11 + $0x558] sm:$0xff]
        %v5218 = vld [vmem:[#allocation11 + $0x560] sm:$0xff]
        %v5219 = vld [vmem:[#allocation11 + $0x568] sm:$0xff]
        %v5220 = vld [vmem:[#allocation11 + $0x570] sm:$0xff]
        %v5221 = vld [vmem:[#allocation11 + $0x578] sm:$0xff]
        %v5222 = vld [vmem:[#allocation11 + $0x580] sm:$0xff]
        %v5223 = vld [vmem:[#allocation11 + $0x588] sm:$0xff]
        %v5224 = vld [vmem:[#allocation11 + $0x590] sm:$0xff]
        %v5225 = vld [vmem:[#allocation11 + $0x598] sm:$0xff]
        %v5226 = vld [vmem:[#allocation11 + $0x5a0] sm:$0xff]
        %v5227 = vld [vmem:[#allocation11 + $0x5a8] sm:$0xff]
        %v5228 = vld [vmem:[#allocation11 + $0x5b0] sm:$0xff]
        %v5229 = vld [vmem:[#allocation11 + $0x5b8] sm:$0xff]
        %v5230 = vld [vmem:[#allocation11 + $0x5c0] sm:$0xff]
        %v5231 = vld [vmem:[#allocation11 + $0x5c8] sm:$0xff]
        %v5232 = vld [vmem:[#allocation11 + $0x5d0] sm:$0xff]
        %v5233 = vld [vmem:[#allocation11 + $0x5d8] sm:$0xff]
        %v5234 = vld [vmem:[#allocation11 + $0x5e0] sm:$0xff]
        %v5235 = vld [vmem:[#allocation11 + $0x5e8] sm:$0xff]
        %v5236 = vld [vmem:[#allocation11 + $0x5f0] sm:$0xff]
        %v5237 = vld [vmem:[#allocation11 + $0x5f8] sm:$0xff]
        %v5238 = vld [vmem:[#allocation11 + $0x600] sm:$0xff]
        %v5239 = vld [vmem:[#allocation11 + $0x608] sm:$0xff]
        %v5240 = vld [vmem:[#allocation11 + $0x610] sm:$0xff]
        %v5241 = vld [vmem:[%s10] sm:$0x1]
        %v5244 = vperm.slane %v5044, 0
        %v5245 = vperm.slane %v5044, 1
        %v5246 = vperm.slane %v5044, 2
        %v5247 = vperm.slane %v5044, 3
        %v5248 = vperm.slane %v5044, 4
        %v5249 = vperm.slane %v5044, 5
        %v5250 = vperm.slane %v5044, 6
        %v5251 = vperm.slane %v5044, 7
        %v5252 = vperm.slane %v5045, 0
        %v5253 = vperm.slane %v5045, 1
        %v5254 = vperm.slane %v5045, 2
        %v5255 = vperm.slane %v5045, 3
        %v5256 = vperm.slane %v5045, 4
        %v5269 = vsel %vm2809, %v5256, 0
        %v5272 = vsel %vm2809, %v5058, 0
        %v5275 = vsel %vm2809, %v5071, 0
        %v5278 = vsel %vm2809, %v5084, 0
        %v5281 = vsel %vm2809, %v5097, 0
        %v5284 = vsel %vm2809, %v5110, 0
        %v5287 = vsel %vm2809, %v5123, 0
        %v5290 = vsel %vm2809, %v5136, 0
        %v5293 = vsel %vm2809, %v5149, 0
        %v5296 = vsel %vm2809, %v5162, 0
        %v5299 = vsel %vm2809, %v5175, 0
        %v5302 = vsel %vm2809, %v5188, 0
        %v5305 = vsel %vm2809, %v5201, 0
        %v5308 = vsel %vm2809, %v5214, 0
        %v5311 = vsel %vm2809, %v5227, 0
        %v5314 = vsel %vm2809, %v5240, 0
        %5316 = vmatpush.xpose.msra.mxu0 0.0
        %5317 = vmatpush.xpose.msra.mxu0 %v5228
        %5318 = vmatpush.xpose.msra.mxu0 %v5215
        %5319 = vmatpush.xpose.msra.mxu0 %v5202
        %5320 = vmatpush.xpose.msra.mxu0 %v5189
        %5321 = vmatpush.xpose.msra.mxu0 %v5176
        %5322 = vmatpush.xpose.msra.mxu0 %v5163
        %5323 = vmatpush.xpose.msra.mxu0 %v5150
        %5324 = vmatpush.xpose.msra.mxu0 %v5137
        %5325 = vmatpush.xpose.msra.mxu0 %v5124
        %5326 = vmatpush.xpose.msra.mxu0 %v5111
        %5327 = vmatpush.xpose.msra.mxu0 %v5098
        %5328 = vmatpush.xpose.msra.mxu0 %v5085
        %5329 = vmatpush.xpose.msra.mxu0 %v5072
        %5330 = vmatpush.xpose.msra.mxu0 %v5059
        %5331 = vmatpush.xpose.msra.mxu0 %v5046
        %5332 = vmatmul.f32.gmra.mxu0 %v5244
        %v5333 = vpop.f32.mrf.mxu0
        %v5334 = vadd.f32 %v5241, %v5333
        %5335 = vdwg.mxu0
        %5336 = vmatpush.xpose.msra.mxu0 0.0
        %5337 = vmatpush.xpose.msra.mxu0 %v5229
        %5338 = vmatpush.xpose.msra.mxu0 %v5216
        %5339 = vmatpush.xpose.msra.mxu0 %v5203
        %5340 = vmatpush.xpose.msra.mxu0 %v5190
        %5341 = vmatpush.xpose.msra.mxu0 %v5177
        %5342 = vmatpush.xpose.msra.mxu0 %v5164
        %5343 = vmatpush.xpose.msra.mxu0 %v5151
        %5344 = vmatpush.xpose.msra.mxu0 %v5138
        %5345 = vmatpush.xpose.msra.mxu0 %v5125
        %5346 = vmatpush.xpose.msra.mxu0 %v5112
        %5347 = vmatpush.xpose.msra.mxu0 %v5099
        %5348 = vmatpush.xpose.msra.mxu0 %v5086
        %5349 = vmatpush.xpose.msra.mxu0 %v5073
        %5350 = vmatpush.xpose.msra.mxu0 %v5060
        %5351 = vmatpush.xpose.msra.mxu0 %v5047
        %5352 = vmatmul.f32.gmra.mxu0 %v5245
        %v5353 = vpop.f32.mrf.mxu0
        %v5354 = vadd.f32 %v5334, %v5353
        %5355 = vdwg.mxu0
        %5356 = vmatpush.xpose.msra.mxu0 0.0
        %5357 = vmatpush.xpose.msra.mxu0 %v5230
        %5358 = vmatpush.xpose.msra.mxu0 %v5217
        %5359 = vmatpush.xpose.msra.mxu0 %v5204
        %5360 = vmatpush.xpose.msra.mxu0 %v5191
        %5361 = vmatpush.xpose.msra.mxu0 %v5178
        %5362 = vmatpush.xpose.msra.mxu0 %v5165
        %5363 = vmatpush.xpose.msra.mxu0 %v5152
        %5364 = vmatpush.xpose.msra.mxu0 %v5139
        %5365 = vmatpush.xpose.msra.mxu0 %v5126
        %5366 = vmatpush.xpose.msra.mxu0 %v5113
        %5367 = vmatpush.xpose.msra.mxu0 %v5100
        %5368 = vmatpush.xpose.msra.mxu0 %v5087
        %5369 = vmatpush.xpose.msra.mxu0 %v5074
        %5370 = vmatpush.xpose.msra.mxu0 %v5061
        %5371 = vmatpush.xpose.msra.mxu0 %v5048
        %5372 = vmatmul.f32.gmra.mxu0 %v5246
        %v5373 = vpop.f32.mrf.mxu0
        %v5374 = vadd.f32 %v5354, %v5373
        %5375 = vdwg.mxu0
        %5376 = vmatpush.xpose.msra.mxu0 0.0
        %5377 = vmatpush.xpose.msra.mxu0 %v5231
        %5378 = vmatpush.xpose.msra.mxu0 %v5218
        %5379 = vmatpush.xpose.msra.mxu0 %v5205
        %5380 = vmatpush.xpose.msra.mxu0 %v5192
        %5381 = vmatpush.xpose.msra.mxu0 %v5179
        %5382 = vmatpush.xpose.msra.mxu0 %v5166
        %5383 = vmatpush.xpose.msra.mxu0 %v5153
        %5384 = vmatpush.xpose.msra.mxu0 %v5140
        %5385 = vmatpush.xpose.msra.mxu0 %v5127
        %5386 = vmatpush.xpose.msra.mxu0 %v5114
        %5387 = vmatpush.xpose.msra.mxu0 %v5101
        %5388 = vmatpush.xpose.msra.mxu0 %v5088
        %5389 = vmatpush.xpose.msra.mxu0 %v5075
        %5390 = vmatpush.xpose.msra.mxu0 %v5062
        %5391 = vmatpush.xpose.msra.mxu0 %v5049
        %5392 = vmatmul.f32.gmra.mxu0 %v5247
        %v5393 = vpop.f32.mrf.mxu0
        %v5394 = vadd.f32 %v5374, %v5393
        %5395 = vdwg.mxu0
        %5396 = vmatpush.xpose.msra.mxu0 0.0
        %5397 = vmatpush.xpose.msra.mxu0 %v5232
        %5398 = vmatpush.xpose.msra.mxu0 %v5219
        %5399 = vmatpush.xpose.msra.mxu0 %v5206
        %5400 = vmatpush.xpose.msra.mxu0 %v5193
        %5401 = vmatpush.xpose.msra.mxu0 %v5180
        %5402 = vmatpush.xpose.msra.mxu0 %v5167
        %5403 = vmatpush.xpose.msra.mxu0 %v5154
        %5404 = vmatpush.xpose.msra.mxu0 %v5141
        %5405 = vmatpush.xpose.msra.mxu0 %v5128
        %5406 = vmatpush.xpose.msra.mxu0 %v5115
        %5407 = vmatpush.xpose.msra.mxu0 %v5102
        %5408 = vmatpush.xpose.msra.mxu0 %v5089
        %5409 = vmatpush.xpose.msra.mxu0 %v5076
        %5410 = vmatpush.xpose.msra.mxu0 %v5063
        %5411 = vmatpush.xpose.msra.mxu0 %v5050
        %5412 = vmatmul.f32.gmra.mxu0 %v5248
        %v5413 = vpop.f32.mrf.mxu0
        %v5414 = vadd.f32 %v5394, %v5413
        %5415 = vdwg.mxu0
        %5416 = vmatpush.xpose.msra.mxu0 0.0
        %5417 = vmatpush.xpose.msra.mxu0 %v5233
        %5418 = vmatpush.xpose.msra.mxu0 %v5220
        %5419 = vmatpush.xpose.msra.mxu0 %v5207
        %5420 = vmatpush.xpose.msra.mxu0 %v5194
        %5421 = vmatpush.xpose.msra.mxu0 %v5181
        %5422 = vmatpush.xpose.msra.mxu0 %v5168
        %5423 = vmatpush.xpose.msra.mxu0 %v5155
        %5424 = vmatpush.xpose.msra.mxu0 %v5142
        %5425 = vmatpush.xpose.msra.mxu0 %v5129
        %5426 = vmatpush.xpose.msra.mxu0 %v5116
        %5427 = vmatpush.xpose.msra.mxu0 %v5103
        %5428 = vmatpush.xpose.msra.mxu0 %v5090
        %5429 = vmatpush.xpose.msra.mxu0 %v5077
        %5430 = vmatpush.xpose.msra.mxu0 %v5064
        %5431 = vmatpush.xpose.msra.mxu0 %v5051
        %5432 = vmatmul.f32.gmra.mxu0 %v5249
        %v5433 = vpop.f32.mrf.mxu0
        %v5434 = vadd.f32 %v5414, %v5433
        %5435 = vdwg.mxu0
        %5436 = vmatpush.xpose.msra.mxu0 0.0
        %5437 = vmatpush.xpose.msra.mxu0 %v5234
        %5438 = vmatpush.xpose.msra.mxu0 %v5221
        %5439 = vmatpush.xpose.msra.mxu0 %v5208
        %5440 = vmatpush.xpose.msra.mxu0 %v5195
        %5441 = vmatpush.xpose.msra.mxu0 %v5182
        %5442 = vmatpush.xpose.msra.mxu0 %v5169
        %5443 = vmatpush.xpose.msra.mxu0 %v5156
        %5444 = vmatpush.xpose.msra.mxu0 %v5143
        %5445 = vmatpush.xpose.msra.mxu0 %v5130
        %5446 = vmatpush.xpose.msra.mxu0 %v5117
        %5447 = vmatpush.xpose.msra.mxu0 %v5104
        %5448 = vmatpush.xpose.msra.mxu0 %v5091
        %5449 = vmatpush.xpose.msra.mxu0 %v5078
        %5450 = vmatpush.xpose.msra.mxu0 %v5065
        %5451 = vmatpush.xpose.msra.mxu0 %v5052
        %5452 = vmatmul.f32.gmra.mxu0 %v5250
        %v5453 = vpop.f32.mrf.mxu0
        %v5454 = vadd.f32 %v5434, %v5453
        %5455 = vdwg.mxu0
        %5456 = vmatpush.xpose.msra.mxu0 0.0
        %5457 = vmatpush.xpose.msra.mxu0 %v5235
        %5458 = vmatpush.xpose.msra.mxu0 %v5222
        %5459 = vmatpush.xpose.msra.mxu0 %v5209
        %5460 = vmatpush.xpose.msra.mxu0 %v5196
        %5461 = vmatpush.xpose.msra.mxu0 %v5183
        %5462 = vmatpush.xpose.msra.mxu0 %v5170
        %5463 = vmatpush.xpose.msra.mxu0 %v5157
        %5464 = vmatpush.xpose.msra.mxu0 %v5144
        %5465 = vmatpush.xpose.msra.mxu0 %v5131
        %5466 = vmatpush.xpose.msra.mxu0 %v5118
        %5467 = vmatpush.xpose.msra.mxu0 %v5105
        %5468 = vmatpush.xpose.msra.mxu0 %v5092
        %5469 = vmatpush.xpose.msra.mxu0 %v5079
        %5470 = vmatpush.xpose.msra.mxu0 %v5066
        %5471 = vmatpush.xpose.msra.mxu0 %v5053
        %5472 = vmatmul.f32.gmra.mxu0 %v5251
        %v5473 = vpop.f32.mrf.mxu0
        %v5474 = vadd.f32 %v5454, %v5473
        %5475 = vdwg.mxu0
        %5476 = vmatpush.xpose.msra.mxu0 0.0
        %5477 = vmatpush.xpose.msra.mxu0 %v5236
        %5478 = vmatpush.xpose.msra.mxu0 %v5223
        %5479 = vmatpush.xpose.msra.mxu0 %v5210
        %5480 = vmatpush.xpose.msra.mxu0 %v5197
        %5481 = vmatpush.xpose.msra.mxu0 %v5184
        %5482 = vmatpush.xpose.msra.mxu0 %v5171
        %5483 = vmatpush.xpose.msra.mxu0 %v5158
        %5484 = vmatpush.xpose.msra.mxu0 %v5145
        %5485 = vmatpush.xpose.msra.mxu0 %v5132
        %5486 = vmatpush.xpose.msra.mxu0 %v5119
        %5487 = vmatpush.xpose.msra.mxu0 %v5106
        %5488 = vmatpush.xpose.msra.mxu0 %v5093
        %5489 = vmatpush.xpose.msra.mxu0 %v5080
        %5490 = vmatpush.xpose.msra.mxu0 %v5067
        %5491 = vmatpush.xpose.msra.mxu0 %v5054
        %5492 = vmatmul.f32.gmra.mxu0 %v5252
        %v5493 = vpop.f32.mrf.mxu0
        %v5494 = vadd.f32 %v5474, %v5493
        %5495 = vdwg.mxu0
        %5496 = vmatpush.xpose.msra.mxu0 0.0
        %5497 = vmatpush.xpose.msra.mxu0 %v5237
        %5498 = vmatpush.xpose.msra.mxu0 %v5224
        %5499 = vmatpush.xpose.msra.mxu0 %v5211
        %5500 = vmatpush.xpose.msra.mxu0 %v5198
        %5501 = vmatpush.xpose.msra.mxu0 %v5185
        %5502 = vmatpush.xpose.msra.mxu0 %v5172
        %5503 = vmatpush.xpose.msra.mxu0 %v5159
        %5504 = vmatpush.xpose.msra.mxu0 %v5146
        %5505 = vmatpush.xpose.msra.mxu0 %v5133
        %5506 = vmatpush.xpose.msra.mxu0 %v5120
        %5507 = vmatpush.xpose.msra.mxu0 %v5107
        %5508 = vmatpush.xpose.msra.mxu0 %v5094
        %5509 = vmatpush.xpose.msra.mxu0 %v5081
        %5510 = vmatpush.xpose.msra.mxu0 %v5068
        %5511 = vmatpush.xpose.msra.mxu0 %v5055
        %5512 = vmatmul.f32.gmra.mxu0 %v5253
        %v5513 = vpop.f32.mrf.mxu0
        %v5514 = vadd.f32 %v5494, %v5513
        %5515 = vdwg.mxu0
        %5516 = vmatpush.xpose.msra.mxu0 0.0
        %5517 = vmatpush.xpose.msra.mxu0 %v5238
        %5518 = vmatpush.xpose.msra.mxu0 %v5225
        %5519 = vmatpush.xpose.msra.mxu0 %v5212
        %5520 = vmatpush.xpose.msra.mxu0 %v5199
        %5521 = vmatpush.xpose.msra.mxu0 %v5186
        %5522 = vmatpush.xpose.msra.mxu0 %v5173
        %5523 = vmatpush.xpose.msra.mxu0 %v5160
        %5524 = vmatpush.xpose.msra.mxu0 %v5147
        %5525 = vmatpush.xpose.msra.mxu0 %v5134
        %5526 = vmatpush.xpose.msra.mxu0 %v5121
        %5527 = vmatpush.xpose.msra.mxu0 %v5108
        %5528 = vmatpush.xpose.msra.mxu0 %v5095
        %5529 = vmatpush.xpose.msra.mxu0 %v5082
        %5530 = vmatpush.xpose.msra.mxu0 %v5069
        %5531 = vmatpush.xpose.msra.mxu0 %v5056
        %5532 = vmatmul.f32.gmra.mxu0 %v5254
        %v5533 = vpop.f32.mrf.mxu0
        %v5534 = vadd.f32 %v5514, %v5533
        %5535 = vdwg.mxu0
        %5536 = vmatpush.xpose.msra.mxu0 0.0
        %5537 = vmatpush.xpose.msra.mxu0 %v5239
        %5538 = vmatpush.xpose.msra.mxu0 %v5226
        %5539 = vmatpush.xpose.msra.mxu0 %v5213
        %5540 = vmatpush.xpose.msra.mxu0 %v5200
        %5541 = vmatpush.xpose.msra.mxu0 %v5187
        %5542 = vmatpush.xpose.msra.mxu0 %v5174
        %5543 = vmatpush.xpose.msra.mxu0 %v5161
        %5544 = vmatpush.xpose.msra.mxu0 %v5148
        %5545 = vmatpush.xpose.msra.mxu0 %v5135
        %5546 = vmatpush.xpose.msra.mxu0 %v5122
        %5547 = vmatpush.xpose.msra.mxu0 %v5109
        %5548 = vmatpush.xpose.msra.mxu0 %v5096
        %5549 = vmatpush.xpose.msra.mxu0 %v5083
        %5550 = vmatpush.xpose.msra.mxu0 %v5070
        %5551 = vmatpush.xpose.msra.mxu0 %v5057
        %5552 = vmatmul.f32.gmra.mxu0 %v5255
        %v5553 = vpop.f32.mrf.mxu0
        %v5554 = vadd.f32 %v5534, %v5553
        %5555 = vdwg.mxu0
        %5556 = vmatpush.xpose.msra.mxu0 0.0
        %5557 = vmatpush.xpose.msra.mxu0 %v5314
        %5558 = vmatpush.xpose.msra.mxu0 %v5311
        %5559 = vmatpush.xpose.msra.mxu0 %v5308
        %5560 = vmatpush.xpose.msra.mxu0 %v5305
        %5561 = vmatpush.xpose.msra.mxu0 %v5302
        %5562 = vmatpush.xpose.msra.mxu0 %v5299
        %5563 = vmatpush.xpose.msra.mxu0 %v5296
        %5564 = vmatpush.xpose.msra.mxu0 %v5293
        %5565 = vmatpush.xpose.msra.mxu0 %v5290
        %5566 = vmatpush.xpose.msra.mxu0 %v5287
        %5567 = vmatpush.xpose.msra.mxu0 %v5284
        %5568 = vmatpush.xpose.msra.mxu0 %v5281
        %5569 = vmatpush.xpose.msra.mxu0 %v5278
        %5570 = vmatpush.xpose.msra.mxu0 %v5275
        %5571 = vmatpush.xpose.msra.mxu0 %v5272
        %5572 = vmatmul.f32.gmra.mxu0 %v5269
        %v5573 = vpop.f32.mrf.mxu0
        %v5574 = vadd.f32 %v5554, %v5573
        %5575 = vdwg.mxu0
        %v5576 = vld [vmem:[%s11] sm:$0xff]
        %v5577 = vld [vmem:[%s11 + $0x8] sm:$0xff]
        %v5578 = vld [vmem:[%s11 + $0x10] sm:$0xff]
        %v5579 = vld [vmem:[%s11 + $0x18] sm:$0xff]
        %v5580 = vld [vmem:[%s11 + $0x20] sm:$0xff]
        %v5581 = vld [vmem:[%s11 + $0x28] sm:$0xff]
        %v5582 = vld [vmem:[%s11 + $0x30] sm:$0xff]
        %v5583 = vld [vmem:[%s11 + $0x38] sm:$0xff]
        %v5584 = vld [vmem:[%s11 + $0x40] sm:$0xff]
        %v5585 = vld [vmem:[%s11 + $0x48] sm:$0xff]
        %v5586 = vld [vmem:[%s11 + $0x50] sm:$0xf]
        %v5587 = vld [vmem:[%s12] sm:$0x1]
        %v5589 = vsel %vm602, %v5574, 0
        %v5592 = vsel %vm602, %v5576, 0
        %v5595 = vsel %vm602, %v5577, 0
        %v5598 = vsel %vm602, %v5578, 0
        %v5601 = vsel %vm602, %v5579, 0
        %v5604 = vsel %vm602, %v5580, 0
        %v5607 = vsel %vm602, %v5581, 0
        %v5610 = vsel %vm602, %v5582, 0
        %v5613 = vsel %vm602, %v5583, 0
        %v5616 = vsel %vm602, %v5584, 0
        %v5619 = vsel %vm602, %v5585, 0
        %v5622 = vsel %vm602, %v5586, 0
        %5624 = vmatpush.xpose.msra.mxu0 0.0
        %5625 = vmatpush.xpose.msra.mxu0 0.0
        %5626 = vmatpush.xpose.msra.mxu0 0.0
        %5627 = vmatpush.xpose.msra.mxu0 0.0
        %5628 = vmatpush.xpose.msra.mxu0 0.0
        %5629 = vmatpush.xpose.msra.mxu0 %v5622
        %5630 = vmatpush.xpose.msra.mxu0 %v5619
        %5631 = vmatpush.xpose.msra.mxu0 %v5616
        %5632 = vmatpush.xpose.msra.mxu0 %v5613
        %5633 = vmatpush.xpose.msra.mxu0 %v5610
        %5634 = vmatpush.xpose.msra.mxu0 %v5607
        %5635 = vmatpush.xpose.msra.mxu0 %v5604
        %5636 = vmatpush.xpose.msra.mxu0 %v5601
        %5637 = vmatpush.xpose.msra.mxu0 %v5598
        %5638 = vmatpush.xpose.msra.mxu0 %v5595
        %5639 = vmatpush.xpose.msra.mxu0 %v5592
        %5640 = vmatmul.f32.gmra.mxu0 %v5589
        %v5641 = vpop.f32.mrf.mxu0
        %v5642 = vadd.f32 %v5587, %v5641
        %5643 = vdwg.mxu0
        %v5644 = vld [vmem:[%s13] sm:$0xff]
        %v5645 = vld [vmem:[%s13 + $0x8] sm:$0x3]
        %v5646 = vld [vmem:[%s14] sm:$0x1]
        %v5648 = vsel %vm3508, %v5642, 0
        %v5651 = vsel %vm3508, %v5644, 0
        %v5654 = vsel %vm3508, %v5645, 0
        %5656 = vmatpush.xpose.msra.mxu0 0.0
        %5657 = vmatpush.xpose.msra.mxu0 0.0
        %5658 = vmatpush.xpose.msra.mxu0 0.0
        %5659 = vmatpush.xpose.msra.mxu0 0.0
        %5660 = vmatpush.xpose.msra.mxu0 0.0
        %5661 = vmatpush.xpose.msra.mxu0 0.0
        %5662 = vmatpush.xpose.msra.mxu0 0.0
        %5663 = vmatpush.xpose.msra.mxu0 0.0
        %5664 = vmatpush.xpose.msra.mxu0 0.0
        %5665 = vmatpush.xpose.msra.mxu0 0.0
        %5666 = vmatpush.xpose.msra.mxu0 0.0
        %5667 = vmatpush.xpose.msra.mxu0 0.0
        %5668 = vmatpush.xpose.msra.mxu0 0.0
        %5669 = vmatpush.xpose.msra.mxu0 0.0
        %5670 = vmatpush.xpose.msra.mxu0 %v5654
        %5671 = vmatpush.xpose.msra.mxu0 %v5651
        %5672 = vmatmul.f32.gmra.mxu0 %v5648
        %v5673 = vpop.f32.mrf.mxu0
        %v5674 = vadd.f32 %v5646, %v5673
        %5675 = vdwg.mxu0
        %vm5676 = vcmask 73728
        %5677 = vst.msk [vmem:[%s534] sm:$0x1] %vm5676, %v5674
        %s5678 = sand.u32 %s359, 1
        %s5679 = scalar_lea.sflag [#allocation8], %s5678
        %s5680 = sand.u32 %s359, 1
        %s5681 = scalar_lea.vmem [#allocation12], %s5680
        // Predicated region
        $region93: #{lenet_forward.1} parent=79 // pred_check
          %p5682 = pneg %p369
        $region94: #{lenet_forward.1} parent=79 // pred_check_branch
          %5684 = sbr.rel (%p5682) target = $region96
        $region95: #{lenet_forward.1} parent=79 // pred_region
          %5686 = vsyncadd %s5679, 0
          %s5687 = scalar_lea.hbm %s15, %s31
          %s5689 = sshll.u32 %s5681, 4
          %s5690 = int_to_ptr.vmem [resolvable:$true] %s5689
          %s5691 = sshll.u32 %s5687, 4
          %s5692 = int_to_ptr.hbm [resolvable:$true] %s5691
          %5694 = dma.vmem_to_hbm [thread:$0]  %s5690, 16, %s5692, %s5679
        $region96: #{lenet_forward.1} parent=79 // pred_fallthru
          _
      $region80: #{lenet_forward.1} parent=5 // pred_fallthru
        _
      %p5695 = scmp.le.s32.totalorder 2, %s26
      // Predicated region
      $region97: #{lenet_forward.1} parent=5 // pred_check
        %p5696 = pneg %p5695
      $region98: #{lenet_forward.1} parent=5 // pred_check_branch
        %5698 = sbr.rel (%p5696) target = $region100
      $region99: #{lenet_forward.1} parent=5 // pred_region
        %s5699 = ssub.s32 %s26, 2
        // Predicated region
        $region101: #{lenet_forward.1} parent=99 // pred_check
          %p5700 = pneg %p375
        $region102: #{lenet_forward.1} parent=99 // pred_check_branch
          %5702 = sbr.rel (%p5700) target = $region104
        $region103: #{lenet_forward.1} parent=99 // pred_region
          %s5703 = sand.u32 %s360, 1
          %s5704 = scalar_lea.sflag [#allocation8], %s5703
          %s5705 = sand.u32 %s360, 1
          %s5706 = scalar_lea.vmem [#allocation12], %s5705
          %5708 = dma.done %s5704, 16
        $region104: #{lenet_forward.1} parent=99 // pred_fallthru
          _
      $region100: #{lenet_forward.1} parent=5 // pred_fallthru
        _
    $region6: #{lenet_forward.1} parent=1 // loop_footer
      %s30 = sadd.s32 1, %s26
    $region7: #{lenet_forward.1} parent=1 // loop_footer_branch
      %25 = sbr.rel target = $region3
    $region8: #{lenet_forward.1} parent=1 // loop_exit
      _
    %5709 = vsyncpa [#allocation7], 1
    %s5710 = scalar_lea.sflag [#allocation7], 1
    %5711 = vsyncpa %s5710, 1
    %5712 = vsyncpa [#allocation10], 1
    %5713 = vsyncpa [#allocation8], 1
    %s5714 = scalar_lea.sflag [#allocation8], 1
    %5715 = vsyncpa %s5714, 1

</llo_original>
